<compile_context>
chip_gen: v5e
topology: v5e:2x2
jax: 0.10.0
libtpu: 0.0.40
codegen_flags: <defaults>
</compile_context>

<pallas_src>
import numpy as np

import jax
import jax.numpy as jnp
from jax import lax
from jax.experimental import pallas as pl
from jax.experimental.pallas import tpu as pltpu

# ----------------------------- model dimensions ------------------------------
B = 2          # batch
IMG = 128      # H = W
PATCH = 16
GRID = IMG // PATCH          # 8
TOK = GRID * GRID            # 64 tokens
ENC_DIM = 64                 # ViT embed dim
HEADS = 2
HEAD_DIM = ENC_DIM // HEADS  # 32
MLP = 128
PROMPT_DIM = 32              # embedding dim after neck / prompt dim
UP1, UP2 = 16, 8             # decoder upscaling channels
LOW_RES = GRID * 4           # 32 = IMG // 4 (SAM low-res mask size)
NPTS = 2                     # point prompts per image
NTOK = 2 + NPTS              # iou token + mask token + point prompts
NPLANE = 16                  # 4x4 sub-pixel planes of the 4x upscale
UPC = NPLANE * UP2           # 128 columns of the block-diagonal 2nd conv-T


# ------------------------- packed bias / vector slab --------------------------
VEC_SPECS = (
    [('patch_b', ENC_DIM), ('ln1_g', ENC_DIM), ('ln1_b', ENC_DIM)]
    + [(f'b{c}{h}', HEAD_DIM) for h in range(HEADS) for c in ('q', 'k', 'v')]
    + [('b_proj', ENC_DIM), ('ln2_g', ENC_DIM), ('ln2_b', ENC_DIM),
       ('b_mlp1', MLP), ('b_mlp2', ENC_DIM),
       ('ln_neck_g', PROMPT_DIM), ('ln_neck_b', PROMPT_DIM),
       ('no_mask', PROMPT_DIM), ('iou_token', PROMPT_DIM), ('mask_token', PROMPT_DIM),
       ('dec_bq', PROMPT_DIM), ('dec_bk', PROMPT_DIM),
       ('dec_bv', PROMPT_DIM), ('dec_bo', PROMPT_DIM),
       ('dec_ln1_g', PROMPT_DIM), ('dec_ln1_b', PROMPT_DIM),
       ('dec_b1', 4 * PROMPT_DIM), ('dec_b2', PROMPT_DIM),
       ('dec_ln2_g', PROMPT_DIM), ('dec_ln2_b', PROMPT_DIM),
       ('up1_b', 4 * UP1), ('b2_all', UPC),
       ('hyper_b0', PROMPT_DIM), ('hyper_b1', PROMPT_DIM), ('hb2e', UPC),
       ('iou_b0', PROMPT_DIM), ('iou_b1', PROMPT_DIM),
       ('iou_w2', PROMPT_DIM), ('iou_b2', 1)]
)
VEC_ROW = {name: i for i, (name, _) in enumerate(VEC_SPECS)}
VEC_LEN = dict(VEC_SPECS)
SLAB_LANES = 128
SLAB_ROWS = -(-len(VEC_SPECS) // 8) * 8


# -------------------- sub-pixel plane / block-diagonal maps -------------------
def _subpixel_maps():
    """(column start in the (A,Bp,k)-ordered 128-wide layout, ab, cd) per plane."""
    maps = []
    for A in range(4):
        for Bp in range(4):
            a1, a2 = A // 2, A % 2
            b1, b2 = Bp // 2, Bp % 2
            maps.append((A * 4 * UP2 + Bp * UP2, 2 * a1 + b1, 2 * a2 + b2))
    return maps


_SUBPIX = _subpixel_maps()


def _make_expand_np():
    """(UP2, UPC): tiles a hyper vector hyp[k] to every plane's k-column."""
    e = np.zeros((UP2, UPC), np.float32)
    for col0, _, _ in _SUBPIX:
        for k in range(UP2):
            e[k, col0 + k] = 1.0
    return e


def _make_selt_np():
    """(NPLANE, UPC): sums the UP2 channels of each plane (plane p = 4A+Bp)."""
    s = np.zeros((NPLANE, UPC), np.float32)
    for i, (col0, _, _) in enumerate(_SUBPIX):
        s[i, col0:col0 + UP2] = 1.0
    return s


def _make_bd2(up2_w):
    """Block-diagonal 2nd ConvT weights: (4*UP1, UPC), columns ordered (A,Bp,k)."""
    bd = jnp.zeros((4 * UP1, UPC), jnp.float32)
    for col0, ab, cd in _SUBPIX:
        bd = bd.at[ab * UP1:(ab + 1) * UP1, col0:col0 + UP2].set(
            up2_w[:, cd * UP2:(cd + 1) * UP2])
    return bd


def _make_b2_all(up2_b):
    v = jnp.zeros((UPC,), jnp.float32)
    for col0, _, cd in _SUBPIX:
        v = v.at[col0:col0 + UP2].set(up2_b[cd * UP2:(cd + 1) * UP2])
    return v


# ------------------ bilinear (align_corners=False) constants ------------------
def _bilinear_matrix_np(out_size, in_size):
    scale = in_size / out_size
    R = np.zeros((out_size, in_size), np.float32)
    for i in range(out_size):
        src = (i + 0.5) * scale - 0.5
        src = max(src, 0.0)
        i0 = min(int(np.floor(src)), in_size - 1)
        i1 = min(i0 + 1, in_size - 1)
        w1 = src - i0
        R[i, i0] += 1.0 - w1
        R[i, i1] += w1
    return R


_R_NP = _bilinear_matrix_np(IMG, LOW_RES)                                   # (128, 32)
_RH_PLANES_NP = np.stack([_R_NP[:, A::4] for A in range(4)], axis=0)        # (4,128,8)
_RWT_PLANES_NP = np.stack([_R_NP.T[Bp::4, :] for Bp in range(4)], axis=0)   # (4,8,128)
_EXPAND_NP = _make_expand_np()                                              # (8,128)
_SELT_NP = _make_selt_np()                                                  # (16,128)


# --------------------------- BlockSpec helpers --------------------------------
def _full_spec(a):
    zeros = (0,) * a.ndim
    return pl.BlockSpec(a.shape, lambda b, _z=zeros: _z)


def _batch_spec(block_shape):
    rest = (0,) * (len(block_shape) - 1)
    return pl.BlockSpec(block_shape, lambda b, _r=rest: (b,) + _r)


# ------------------------------ in-kernel helpers -----------------------------
def _bdot(a, b):
    """bf16 inputs, f32 accumulation on the MXU."""
    return jnp.dot(a.astype(jnp.bfloat16), b.astype(jnp.bfloat16),
                   preferred_element_type=jnp.float32)


def _layernorm(x, g, b, eps=1e-6):
    x = x.astype(jnp.float32)
    mu = jnp.mean(x, axis=-1, keepdims=True)
    var = jnp.mean(jnp.square(x - mu), axis=-1, keepdims=True)
    return (x - mu) * jax.lax.rsqrt(var + eps) * g + b


def _softmax_lastdim(s):
    s = s - jnp.max(s, axis=-1, keepdims=True)
    p = jnp.exp(s)
    return p * pl.reciprocal(jnp.sum(p, axis=-1, keepdims=True), approx=True)


# =================== 1) fused encoder + decoder + heads kernel ================
def _sam_core_kernel(patches_ref, sparse_ref, slab_ref,
                     patch_w_ref, pos_ref, qkv_w_ref, proj_w_ref,
                     mlp1_ref, mlp2_ref, neck_ref,
                     pe_ref, dec_sq_ref, dec_w1_ref, dec_w2_ref,
                     up1_w_ref, bd2_ref, hw2e_ref, selt_ref,
                     vt_ref, iou_ref):
    f32 = jnp.float32
    bf16 = jnp.bfloat16

    def vec(name):
        r = VEC_ROW[name]
        return slab_ref[r:r + 1, :VEC_LEN[name]]          # (1, n) f32

    # --------------- image encoder: patch embed + ViT block + neck -----------
    x = _bdot(patches_ref[...], patch_w_ref[...]) + vec('patch_b')    # (TOK, D)
    x = x + pos_ref[...]

    h = _layernorm(x, vec('ln1_g'), vec('ln1_b'))
    hb = h.astype(bf16)
    scale = 1.0 / np.sqrt(HEAD_DIM)
    attn_out = None
    for hh in range(HEADS):                               # per-head pre-split weights
        q = jnp.dot(hb, qkv_w_ref[3 * hh + 0], preferred_element_type=f32) + vec(f'bq{hh}')
        k = jnp.dot(hb, qkv_w_ref[3 * hh + 1], preferred_element_type=f32) + vec(f'bk{hh}')
        v = jnp.dot(hb, qkv_w_ref[3 * hh + 2], preferred_element_type=f32) + vec(f'bv{hh}')
        s = lax.dot_general(q.astype(bf16), k.astype(bf16),
                            (((1,), (1,)), ((), ())),
                            preferred_element_type=f32) * scale
        p = _softmax_lastdim(s)
        o = jnp.dot(p.astype(bf16), v.astype(bf16), preferred_element_type=f32)  # (TOK, HD)
        c = jnp.dot(o.astype(bf16), proj_w_ref[hh], preferred_element_type=f32)  # (TOK, D)
        attn_out = c if attn_out is None else attn_out + c
    x = x + attn_out + vec('b_proj')

    h = _layernorm(x, vec('ln2_g'), vec('ln2_b'))
    h = jax.nn.gelu(_bdot(h, mlp1_ref[...]) + vec('b_mlp1'))
    x = x + _bdot(h, mlp2_ref[...]) + vec('b_mlp2')

    emb = _bdot(x, neck_ref[...])                                      # neck 1x1 conv
    emb = _layernorm(emb, vec('ln_neck_g'), vec('ln_neck_b'))          # (TOK, C)

    # --------------- mask decoder: token <-> image cross-attention -----------
    src = emb + vec('no_mask')                                         # + dense embed
    pe = pe_ref[...]
    tokens = jnp.concatenate(
        [vec('iou_token'), vec('mask_token'), sparse_ref[...]], axis=0)  # (NTOK, C)

    q = _bdot(tokens, dec_sq_ref[0]) + vec('dec_bq')
    k = _bdot(src + pe, dec_sq_ref[1]) + vec('dec_bk')
    v = _bdot(src, dec_sq_ref[2]) + vec('dec_bv')
    s = lax.dot_general(q.astype(bf16), k.astype(bf16),
                        (((1,), (1,)), ((), ())),
                        preferred_element_type=f32) * (1.0 / np.sqrt(PROMPT_DIM))
    p = _softmax_lastdim(s)
    attn = jnp.dot(p.astype(bf16), v.astype(bf16), preferred_element_type=f32)
    attn = _bdot(attn, dec_sq_ref[3]) + vec('dec_bo')
    tokens = _layernorm(tokens + attn, vec('dec_ln1_g'), vec('dec_ln1_b'))
    hmlp = jax.nn.gelu(_bdot(tokens, dec_w1_ref[...]) + vec('dec_b1'))
    hmlp = _bdot(hmlp, dec_w2_ref[...]) + vec('dec_b2')
    tokens = _layernorm(tokens + hmlp, vec('dec_ln2_g'), vec('dec_ln2_b'))  # (NTOK, C)

    # --------------- hypernetwork (mask token) + IoU head (iou token) --------
    mask_tok = tokens[1:2, :]
    hyp = jax.nn.relu(_bdot(mask_tok, dec_sq_ref[4]) + vec('hyper_b0'))
    hyp = jax.nn.relu(_bdot(hyp, dec_sq_ref[5]) + vec('hyper_b1'))
    hyp_rep = _bdot(hyp, hw2e_ref[...]) + vec('hb2e')                  # (1, UPC) tiled hyp

    iou_tok = tokens[0:1, :]
    it = jax.nn.relu(_bdot(iou_tok, dec_sq_ref[6]) + vec('iou_b0'))
    it = jax.nn.relu(_bdot(it, dec_sq_ref[7]) + vec('iou_b1'))
    iou_ref[...] = (jnp.sum(it * vec('iou_w2'), axis=-1, keepdims=True)
                    + vec('iou_b2'))                                   # (1, 1)

    # --------------- 4x upscale: two ConvT(k=2,s=2) as block-diag matmuls ----
    u1 = jax.nn.gelu(_bdot(src, up1_w_ref[...]) + vec('up1_b'))        # (TOK, 4*UP1)
    u2 = jax.nn.gelu(_bdot(u1, bd2_ref[...]) + vec('b2_all'))          # (TOK, UPC)
    u2s = u2 * hyp_rep                                                 # hyper dot (scaled)
    # Vt[p, t] = sum_k u2s[t, plane-p's k columns]  -> lane-dense (NPLANE, TOK)
    vt_ref[...] = lax.dot_general(selt_ref[...], u2s.astype(bf16),
                                  (((1,), (1,)), ((), ())),
                                  preferred_element_type=f32)


def sam_core(packed, patches, sparse):
    """patches (B,TOK,768) bf16, sparse (B,NPTS,C) -> Vt (B,16,TOK), iou (B,1,1)."""
    b = patches.shape[0]
    ws = [packed['slab'], packed['patch_w'], packed['pos'],
          packed['qkv_w'], packed['proj_w'],
          packed['mlp1'], packed['mlp2'], packed['neck'],
          packed['pe'], packed['dec_sq'], packed['dec_w1'], packed['dec_w2'],
          packed['up1_w'], packed['bd2'], packed['hw2e'], packed['selt']]
    in_specs = ([_batch_spec((None, TOK, 3 * PATCH * PATCH)),
                 _batch_spec((None, NPTS, PROMPT_DIM))]
                + [_full_spec(w) for w in ws])
    vt, iou = pl.pallas_call(
        _sam_core_kernel,
        out_shape=(jax.ShapeDtypeStruct((b, NPLANE, TOK), jnp.float32),
                   jax.ShapeDtypeStruct((b, 1, 1), jnp.float32)),
        grid=(b,),
        in_specs=in_specs,
        out_specs=(_batch_spec((None, NPLANE, TOK)),
                   _batch_spec((None, 1, 1))),
        compiler_params=pltpu.CompilerParams(dimension_semantics=("parallel",)),
    )(patches, sparse, *ws)
    return vt, iou


# ============ 2) fused pixel-shuffle + bilinear x4 upsample kernel ============
def _mask_upsample_kernel(v4_ref, rhp_ref, rwtp_ref, o_ref):
    bf16 = jnp.bfloat16
    acc = None
    for A in range(4):                      # row sub-pixel
        t = None
        for Bp in range(4):                 # col sub-pixel
            plane = v4_ref[4 * A + Bp].astype(bf16)                       # (GRID, GRID)
            term = jnp.dot(plane, rwtp_ref[Bp], preferred_element_type=jnp.float32)
            t = term if t is None else t + term                           # (GRID, IMG)
        big = jnp.dot(rhp_ref[A], t.astype(bf16), preferred_element_type=jnp.float32)
        acc = big if acc is None else acc + big                           # (IMG, IMG)
    o_ref[...] = acc


def mask_upsample(packed, vt):
    """Vt (B, 16, TOK) -> masks (B, IMG, IMG) (pixel-shuffle + bilinear fused)."""
    b = vt.shape[0]
    v4 = vt.reshape(b, NPLANE, GRID, GRID)   # row-major minor split: free in XLA
    ws = [packed['rh_planes'], packed['rwt_planes']]
    return pl.pallas_call(
        _mask_upsample_kernel,
        out_shape=jax.ShapeDtypeStruct((b, IMG, IMG), jnp.float32),
        grid=(b,),
        in_specs=[_batch_spec((None, NPLANE, GRID, GRID))]
                 + [_full_spec(w) for w in ws],
        out_specs=_batch_spec((None, IMG, IMG)),
        compiler_params=pltpu.CompilerParams(dimension_semantics=("parallel",)),
    )(v4, *ws)


# --------------------------------- parameters --------------------------------
def init_params(key):
    ks = iter(jax.random.split(key, 96))

    def w(shape, scale=0.02):
        return scale * jax.random.normal(next(ks), shape, jnp.float32)

    p = {}
    # image encoder (patch embed + 1 transformer block + neck)
    p['patch_w'] = w((3 * PATCH * PATCH, ENC_DIM))
    p['patch_b'] = jnp.zeros((ENC_DIM,), jnp.float32)
    p['pos_embed'] = w((TOK, ENC_DIM))
    p['ln1_g'] = jnp.ones((ENC_DIM,)); p['ln1_b'] = jnp.zeros((ENC_DIM,))
    p['w_qkv'] = w((ENC_DIM, 3 * ENC_DIM)); p['b_qkv'] = jnp.zeros((3 * ENC_DIM,))
    p['w_proj'] = w((ENC_DIM, ENC_DIM)); p['b_proj'] = jnp.zeros((ENC_DIM,))
    p['ln2_g'] = jnp.ones((ENC_DIM,)); p['ln2_b'] = jnp.zeros((ENC_DIM,))
    p['w_mlp1'] = w((ENC_DIM, MLP)); p['b_mlp1'] = jnp.zeros((MLP,))
    p['w_mlp2'] = w((MLP, ENC_DIM)); p['b_mlp2'] = jnp.zeros((ENC_DIM,))
    p['w_neck'] = w((ENC_DIM, PROMPT_DIM))
    p['ln_neck_g'] = jnp.ones((PROMPT_DIM,)); p['ln_neck_b'] = jnp.zeros((PROMPT_DIM,))
    # prompt encoder
    p['pe_gauss'] = w((2, PROMPT_DIM // 2), scale=1.0)
    p['point_embed_pos'] = w((PROMPT_DIM,))
    p['point_embed_neg'] = w((PROMPT_DIM,))
    p['no_mask_embed'] = w((PROMPT_DIM,))
    # mask decoder
    p['iou_token'] = w((PROMPT_DIM,))
    p['mask_token'] = w((PROMPT_DIM,))
    for n in ['q', 'k', 'v', 'o']:
        p[f'dec_w{n}'] = w((PROMPT_DIM, PROMPT_DIM))
        p[f'dec_b{n}'] = jnp.zeros((PROMPT_DIM,))
    p['dec_ln1_g'] = jnp.ones((PROMPT_DIM,)); p['dec_ln1_b'] = jnp.zeros((PROMPT_DIM,))
    p['dec_w1'] = w((PROMPT_DIM, 4 * PROMPT_DIM)); p['dec_b1'] = jnp.zeros((4 * PROMPT_DIM,))
    p['dec_w2'] = w((4 * PROMPT_DIM, PROMPT_DIM)); p['dec_b2'] = jnp.zeros((PROMPT_DIM,))
    p['dec_ln2_g'] = jnp.ones((PROMPT_DIM,)); p['dec_ln2_b'] = jnp.zeros((PROMPT_DIM,))
    p['up1_w'] = w((PROMPT_DIM, 4 * UP1)); p['up1_b'] = jnp.zeros((4 * UP1,))
    p['up2_w'] = w((UP1, 4 * UP2)); p['up2_b'] = jnp.zeros((4 * UP2,))
    for i, (di, do) in enumerate([(PROMPT_DIM, PROMPT_DIM),
                                  (PROMPT_DIM, PROMPT_DIM),
                                  (PROMPT_DIM, UP2)]):
        p[f'hyper_w{i}'] = w((di, do)); p[f'hyper_b{i}'] = jnp.zeros((do,))
    for i, (di, do) in enumerate([(PROMPT_DIM, PROMPT_DIM),
                                  (PROMPT_DIM, PROMPT_DIM),
                                  (PROMPT_DIM, 1)]):
        p[f'iou_w{i}'] = w((di, do)); p[f'iou_b{i}'] = jnp.zeros((do,))
    return p


# --------------------------- prompt encoder (XLA, tiny) -----------------------
def dense_pe(params):
    g = (jnp.arange(GRID, dtype=jnp.float32) + 0.5) / GRID
    gy, gx = jnp.meshgrid(g, g, indexing='ij')
    coords = jnp.stack([gx, gy], axis=-1).reshape(-1, 2)              # (TOK, 2)
    c = coords * 2.0 - 1.0
    proj = (c @ params['pe_gauss']) * (2.0 * np.pi)
    return jnp.concatenate([jnp.sin(proj), jnp.cos(proj)], axis=-1)   # (TOK, C)


def prompt_encoder_batched(packed, coords, labels):
    """coords: (B,P,2) pixel xy, labels: (B,P) -> sparse (B,P,C)."""
    coords01 = (coords.astype(jnp.float32) + 0.5) / float(IMG)
    c = coords01 * 2.0 - 1.0
    proj = jnp.einsum('bpc,cd->bpd', c, packed['pe_gauss']) * (2.0 * np.pi)
    sparse = jnp.concatenate([jnp.sin(proj), jnp.cos(proj)], axis=-1)  # (B,P,C)
    lab = (labels[..., None] == 1)
    sparse = sparse + jnp.where(lab, packed['point_embed_pos'][None, None, :],
                                packed['point_embed_neg'][None, None, :])
    return sparse


# ------------------------- host-side weight repacking -------------------------
def pack_weights(p):
    """One-time (outside jit) repack: bf16 casts, per-head splits, block-diag
       conv-T weights, and the packed bias/LN vector slab."""
    bf = lambda a: a.astype(jnp.bfloat16)
    expand = jnp.asarray(_EXPAND_NP)

    vecs = {
        'patch_b': p['patch_b'], 'ln1_g': p['ln1_g'], 'ln1_b': p['ln1_b'],
        'b_proj': p['b_proj'], 'ln2_g': p['ln2_g'], 'ln2_b': p['ln2_b'],
        'b_mlp1': p['b_mlp1'], 'b_mlp2': p['b_mlp2'],
        'ln_neck_g': p['ln_neck_g'], 'ln_neck_b': p['ln_neck_b'],
        'no_mask': p['no_mask_embed'],
        'iou_token': p['iou_token'], 'mask_token': p['mask_token'],
        'dec_bq': p['dec_bq'], 'dec_bk': p['dec_bk'],
        'dec_bv': p['dec_bv'], 'dec_bo': p['dec_bo'],
        'dec_ln1_g': p['dec_ln1_g'], 'dec_ln1_b': p['dec_ln1_b'],
        'dec_b1': p['dec_b1'], 'dec_b2': p['dec_b2'],
        'dec_ln2_g': p['dec_ln2_g'], 'dec_ln2_b': p['dec_ln2_b'],
        'up1_b': p['up1_b'], 'b2_all': _make_b2_all(p['up2_b']),
        'hyper_b0': p['hyper_b0'], 'hyper_b1': p['hyper_b1'],
        'hb2e': p['hyper_b2'] @ expand,
        'iou_b0': p['iou_b0'], 'iou_b1': p['iou_b1'],
        'iou_w2': p['iou_w2'][:, 0], 'iou_b2': p['iou_b2'],
    }
    for h in range(HEADS):
        vecs[f'bq{h}'] = p['b_qkv'][h * HEAD_DIM:(h + 1) * HEAD_DIM]
        vecs[f'bk{h}'] = p['b_qkv'][ENC_DIM + h * HEAD_DIM:ENC_DIM + (h + 1) * HEAD_DIM]
        vecs[f'bv{h}'] = p['b_qkv'][2 * ENC_DIM + h * HEAD_DIM:2 * ENC_DIM + (h + 1) * HEAD_DIM]
    slab = jnp.zeros((SLAB_ROWS, SLAB_LANES), jnp.float32)
    for name, n in VEC_SPECS:
        slab = slab.at[VEC_ROW[name], :n].set(vecs[name].astype(jnp.float32))

    qkv_w = jnp.stack(
        [p['w_qkv'][:, part * ENC_DIM + h * HEAD_DIM: part * ENC_DIM + (h + 1) * HEAD_DIM]
         for h in range(HEADS) for part in range(3)], axis=0)          # (6, D, HD)
    proj_w = jnp.stack([p['w_proj'][h * HEAD_DIM:(h + 1) * HEAD_DIM, :]
                        for h in range(HEADS)], axis=0)                # (2, HD, D)
    dec_sq = jnp.stack([p['dec_wq'], p['dec_wk'], p['dec_wv'], p['dec_wo'],
                        p['hyper_w0'], p['hyper_w1'],
                        p['iou_w0'], p['iou_w1']], axis=0)             # (8, C, C)

    return {
        'slab': slab,
        'patch_w': bf(p['patch_w']), 'pos': p['pos_embed'],
        'qkv_w': bf(qkv_w), 'proj_w': bf(proj_w),
        'mlp1': bf(p['w_mlp1']), 'mlp2': bf(p['w_mlp2']), 'neck': bf(p['w_neck']),
        'pe': dense_pe(p),
        'dec_sq': bf(dec_sq), 'dec_w1': bf(p['dec_w1']), 'dec_w2': bf(p['dec_w2']),
        'up1_w': bf(p['up1_w']), 'bd2': bf(_make_bd2(p['up2_w'])),
        'hw2e': bf(p['hyper_w2'] @ expand),
        'selt': bf(jnp.asarray(_SELT_NP)),
        'rh_planes': bf(jnp.asarray(_RH_PLANES_NP)),
        'rwt_planes': bf(jnp.asarray(_RWT_PLANES_NP)),
        'pe_gauss': p['pe_gauss'],
        'point_embed_pos': p['point_embed_pos'],
        'point_embed_neg': p['point_embed_neg'],
    }


# ----------------------------------- forward ---------------------------------
def forward(packed, images, prompts):
    b = images.shape[0]
    # patch extraction (pure data movement) left to XLA
    patches = images.reshape(b, 3, GRID, PATCH, GRID, PATCH)
    patches = patches.transpose(0, 2, 4, 1, 3, 5).reshape(b, TOK, 3 * PATCH * PATCH)
    patches = patches.astype(jnp.bfloat16)

    coords = jnp.stack([pr['points'][0][0] for pr in prompts], axis=0)   # (B, P, 2)
    labels = jnp.stack([pr['points'][1][0] for pr in prompts], axis=0)   # (B, P)
    sparse = prompt_encoder_batched(packed, coords, labels)             # (B, P, C)

    vt, iou = sam_core(packed, patches, sparse)                          # fused enc+dec
    masks = mask_upsample(packed, vt)                                    # (B, IMG, IMG)

    pred_masks = [masks[i][None] for i in range(b)]                      # (1, H, W) each
    ious = [iou[i] for i in range(b)]                                    # (1, 1) each
    return pred_masks, ious


# ------------------------------------ main ------------------------------------
if __name__ == "__main__":
    key = jax.random.PRNGKey(0)
    pk, ik, ck = jax.random.split(key, 3)
    params = init_params(pk)
    packed = pack_weights(params)

    images = jax.random.normal(ik, (B, 3, IMG, IMG), jnp.float32)
    coords = jax.random.uniform(ck, (B, 1, NPTS, 2), minval=0.0, maxval=float(IMG))
    labels = jnp.ones((B, 1, NPTS), jnp.int32)
    prompts = [{'points': (coords[b], labels[b])} for b in range(B)]

    fwd = jax.jit(forward)
    pred_masks, ious = fwd(packed, images, prompts)
    jax.block_until_ready((pred_masks, ious))

    assert len(pred_masks) == B and len(ious) == B
    assert pred_masks[0].shape == (1, IMG, IMG)
    assert ious[0].shape == (1, 1)
    assert all(bool(jnp.all(jnp.isfinite(m))) for m in pred_masks)
    assert all(bool(jnp.all(jnp.isfinite(i))) for i in ious)
    print("KERNEL_OK")
</pallas_src>

<mosaic_0001>
module attributes {stable_mosaic.version = 11 : i64} {
  func.func @_sam_core_kernel(%arg0: i32, %arg1: memref<1x64x768xbf16, #tpu.memory_space<vmem>>, %arg2: memref<1x2x32xf32, #tpu.memory_space<vmem>>, %arg3: memref<40x128xf32, #tpu.memory_space<vmem>>, %arg4: memref<768x64xbf16, #tpu.memory_space<vmem>>, %arg5: memref<64x64xf32, #tpu.memory_space<vmem>>, %arg6: memref<6x64x32xbf16, #tpu.memory_space<vmem>>, %arg7: memref<2x32x64xbf16, #tpu.memory_space<vmem>>, %arg8: memref<64x128xbf16, #tpu.memory_space<vmem>>, %arg9: memref<128x64xbf16, #tpu.memory_space<vmem>>, %arg10: memref<64x32xbf16, #tpu.memory_space<vmem>>, %arg11: memref<64x32xf32, #tpu.memory_space<vmem>>, %arg12: memref<8x32x32xbf16, #tpu.memory_space<vmem>>, %arg13: memref<32x128xbf16, #tpu.memory_space<vmem>>, %arg14: memref<128x32xbf16, #tpu.memory_space<vmem>>, %arg15: memref<32x64xbf16, #tpu.memory_space<vmem>>, %arg16: memref<64x128xbf16, #tpu.memory_space<vmem>>, %arg17: memref<32x128xbf16, #tpu.memory_space<vmem>>, %arg18: memref<16x128xbf16, #tpu.memory_space<vmem>>, %arg19: memref<1x16x64xf32, #tpu.memory_space<vmem>>, %arg20: memref<1x1x1xf32, #tpu.memory_space<vmem>>) attributes {dimension_semantics = [#tpu.dimension_semantics<parallel>], iteration_bounds = array<i64: 2>, scalar_prefetch = 0 : i64, scratch_operands = 0 : i64, tpu.core_type = #tpu.core_type<tc>, window_params = [{transform_indices = @transform_0, window_bounds = array<i64: 1, 64, 768>}, {transform_indices = @transform_1, window_bounds = array<i64: 1, 2, 32>}, {pipeline_mode = #tpu.pipeline_mode<synchronous>, transform_indices = @transform_2, window_bounds = array<i64: 40, 128>}, {pipeline_mode = #tpu.pipeline_mode<synchronous>, transform_indices = @transform_3, window_bounds = array<i64: 768, 64>}, {pipeline_mode = #tpu.pipeline_mode<synchronous>, transform_indices = @transform_4, window_bounds = array<i64: 64, 64>}, {pipeline_mode = #tpu.pipeline_mode<synchronous>, transform_indices = @transform_5, window_bounds = array<i64: 6, 64, 32>}, {pipeline_mode = #tpu.pipeline_mode<synchronous>, transform_indices = @transform_6, window_bounds = array<i64: 2, 32, 64>}, {pipeline_mode = #tpu.pipeline_mode<synchronous>, transform_indices = @transform_7, window_bounds = array<i64: 64, 128>}, {pipeline_mode = #tpu.pipeline_mode<synchronous>, transform_indices = @transform_8, window_bounds = array<i64: 128, 64>}, {pipeline_mode = #tpu.pipeline_mode<synchronous>, transform_indices = @transform_9, window_bounds = array<i64: 64, 32>}, {pipeline_mode = #tpu.pipeline_mode<synchronous>, transform_indices = @transform_10, window_bounds = array<i64: 64, 32>}, {pipeline_mode = #tpu.pipeline_mode<synchronous>, transform_indices = @transform_11, window_bounds = array<i64: 8, 32, 32>}, {pipeline_mode = #tpu.pipeline_mode<synchronous>, transform_indices = @transform_12, window_bounds = array<i64: 32, 128>}, {pipeline_mode = #tpu.pipeline_mode<synchronous>, transform_indices = @transform_13, window_bounds = array<i64: 128, 32>}, {pipeline_mode = #tpu.pipeline_mode<synchronous>, transform_indices = @transform_14, window_bounds = array<i64: 32, 64>}, {pipeline_mode = #tpu.pipeline_mode<synchronous>, transform_indices = @transform_15, window_bounds = array<i64: 64, 128>}, {pipeline_mode = #tpu.pipeline_mode<synchronous>, transform_indices = @transform_16, window_bounds = array<i64: 32, 128>}, {pipeline_mode = #tpu.pipeline_mode<synchronous>, transform_indices = @transform_17, window_bounds = array<i64: 16, 128>}, {transform_indices = @transform_18, window_bounds = array<i64: 1, 16, 64>}, {transform_indices = @transform_19, window_bounds = array<i64: 1, 1, 1>}]} {
    %c0 = arith.constant 0 : index
    %c0_0 = arith.constant 0 : index
    %c0_1 = arith.constant 0 : index
    %0 = vector.load %arg1[%c0, %c0_0, %c0_1] : memref<1x64x768xbf16, #tpu.memory_space<vmem>>, vector<1x64x768xbf16>
    %1 = vector.shape_cast %0 : vector<1x64x768xbf16> to vector<64x768xbf16>
    %c0_2 = arith.constant 0 : index
    %c0_3 = arith.constant 0 : index
    %2 = vector.load %arg4[%c0_2, %c0_3] : memref<768x64xbf16, #tpu.memory_space<vmem>>, vector<768x64xbf16>
    %cst = arith.constant dense<0.000000e+00> : vector<64x64xf32>
    %3 = tpu.matmul %1, %2, %cst {dimension_numbers = #tpu.dot_dimension_numbers<[1], [0], [0], [1], [0, 0, 1, 1], [], []>} : vector<64x768xbf16>, vector<768x64xbf16>, vector<64x64xf32> -> vector<64x64xf32>
    %c0_4 = arith.constant 0 : index
    %c0_5 = arith.constant 0 : index
    %4 = vector.load %arg3[%c0_4, %c0_5] : memref<40x128xf32, #tpu.memory_space<vmem>>, vector<1x64xf32>
    %5 = vector.broadcast %4 : vector<1x64xf32> to vector<64x64xf32>
    %6 = arith.addf %3, %5 : vector<64x64xf32>
    %c0_6 = arith.constant 0 : index
    %c0_7 = arith.constant 0 : index
    %7 = vector.load %arg5[%c0_6, %c0_7] : memref<64x64xf32, #tpu.memory_space<vmem>>, vector<64x64xf32>
    %8 = arith.addf %6, %7 : vector<64x64xf32>
    %c1 = arith.constant 1 : index
    %c0_8 = arith.constant 0 : index
    %9 = vector.load %arg3[%c1, %c0_8] : memref<40x128xf32, #tpu.memory_space<vmem>>, vector<1x64xf32>
    %c2 = arith.constant 2 : index
    %c0_9 = arith.constant 0 : index
    %10 = vector.load %arg3[%c2, %c0_9] : memref<40x128xf32, #tpu.memory_space<vmem>>, vector<1x64xf32>
    %cst_10 = arith.constant dense<0.000000e+00> : vector<64xf32>
    %11 = vector.multi_reduction <add>, %8, %cst_10 [1] : vector<64x64xf32> to vector<64xf32>
    %12 = vector.shape_cast %11 : vector<64xf32> to vector<64x1xf32>
    %cst_11 = arith.constant 6.400000e+01 : f32
    %13 = vector.broadcast %cst_11 : f32 to vector<64x1xf32>
    %14 = arith.divf %12, %13 : vector<64x1xf32>
    %15 = vector.broadcast %14 : vector<64x1xf32> to vector<64x64xf32>
    %16 = arith.subf %8, %15 : vector<64x64xf32>
    %17 = arith.mulf %16, %16 : vector<64x64xf32>
    %cst_12 = arith.constant dense<0.000000e+00> : vector<64xf32>
    %18 = vector.multi_reduction <add>, %17, %cst_12 [1] : vector<64x64xf32> to vector<64xf32>
    %19 = vector.shape_cast %18 : vector<64xf32> to vector<64x1xf32>
    %cst_13 = arith.constant 6.400000e+01 : f32
    %20 = vector.broadcast %cst_13 : f32 to vector<64x1xf32>
    %21 = arith.divf %19, %20 : vector<64x1xf32>
    %22 = vector.broadcast %14 : vector<64x1xf32> to vector<64x64xf32>
    %23 = arith.subf %8, %22 : vector<64x64xf32>
    %cst_14 = arith.constant 9.99999997E-7 : f32
    %24 = vector.broadcast %cst_14 : f32 to vector<64x1xf32>
    %25 = arith.addf %21, %24 : vector<64x1xf32>
    %26 = math.rsqrt %25 : vector<64x1xf32>
    %27 = vector.broadcast %26 : vector<64x1xf32> to vector<64x64xf32>
    %28 = arith.mulf %23, %27 : vector<64x64xf32>
    %29 = vector.broadcast %9 : vector<1x64xf32> to vector<64x64xf32>
    %30 = arith.mulf %28, %29 : vector<64x64xf32>
    %31 = vector.broadcast %10 : vector<1x64xf32> to vector<64x64xf32>
    %32 = arith.addf %30, %31 : vector<64x64xf32>
    %33 = arith.truncf %32 : vector<64x64xf32> to vector<64x64xbf16>
    %c0_15 = arith.constant 0 : index
    %c0_16 = arith.constant 0 : index
    %c0_17 = arith.constant 0 : index
    %34 = vector.load %arg6[%c0_15, %c0_16, %c0_17] : memref<6x64x32xbf16, #tpu.memory_space<vmem>>, vector<1x64x32xbf16>
    %35 = vector.shape_cast %34 : vector<1x64x32xbf16> to vector<64x32xbf16>
    %cst_18 = arith.constant dense<0.000000e+00> : vector<64x32xf32>
    %36 = tpu.matmul %33, %35, %cst_18 {dimension_numbers = #tpu.dot_dimension_numbers<[1], [0], [0], [1], [0, 0, 1, 1], [], []>} : vector<64x64xbf16>, vector<64x32xbf16>, vector<64x32xf32> -> vector<64x32xf32>
    %c3 = arith.constant 3 : index
    %c0_19 = arith.constant 0 : index
    %37 = vector.load %arg3[%c3, %c0_19] : memref<40x128xf32, #tpu.memory_space<vmem>>, vector<1x32xf32>
    %38 = vector.broadcast %37 : vector<1x32xf32> to vector<64x32xf32>
    %39 = arith.addf %36, %38 : vector<64x32xf32>
    %c1_20 = arith.constant 1 : index
    %c0_21 = arith.constant 0 : index
    %c0_22 = arith.constant 0 : index
    %40 = vector.load %arg6[%c1_20, %c0_21, %c0_22] : memref<6x64x32xbf16, #tpu.memory_space<vmem>>, vector<1x64x32xbf16>
    %41 = vector.shape_cast %40 : vector<1x64x32xbf16> to vector<64x32xbf16>
    %cst_23 = arith.constant dense<0.000000e+00> : vector<64x32xf32>
    %42 = tpu.matmul %33, %41, %cst_23 {dimension_numbers = #tpu.dot_dimension_numbers<[1], [0], [0], [1], [0, 0, 1, 1], [], []>} : vector<64x64xbf16>, vector<64x32xbf16>, vector<64x32xf32> -> vector<64x32xf32>
    %c4 = arith.constant 4 : index
    %c0_24 = arith.constant 0 : index
    %43 = vector.load %arg3[%c4, %c0_24] : memref<40x128xf32, #tpu.memory_space<vmem>>, vector<1x32xf32>
    %44 = vector.broadcast %43 : vector<1x32xf32> to vector<64x32xf32>
    %45 = arith.addf %42, %44 : vector<64x32xf32>
    %c2_25 = arith.constant 2 : index
    %c0_26 = arith.constant 0 : index
    %c0_27 = arith.constant 0 : index
    %46 = vector.load %arg6[%c2_25, %c0_26, %c0_27] : memref<6x64x32xbf16, #tpu.memory_space<vmem>>, vector<1x64x32xbf16>
    %47 = vector.shape_cast %46 : vector<1x64x32xbf16> to vector<64x32xbf16>
    %cst_28 = arith.constant dense<0.000000e+00> : vector<64x32xf32>
    %48 = tpu.matmul %33, %47, %cst_28 {dimension_numbers = #tpu.dot_dimension_numbers<[1], [0], [0], [1], [0, 0, 1, 1], [], []>} : vector<64x64xbf16>, vector<64x32xbf16>, vector<64x32xf32> -> vector<64x32xf32>
    %c5 = arith.constant 5 : index
    %c0_29 = arith.constant 0 : index
    %49 = vector.load %arg3[%c5, %c0_29] : memref<40x128xf32, #tpu.memory_space<vmem>>, vector<1x32xf32>
    %50 = vector.broadcast %49 : vector<1x32xf32> to vector<64x32xf32>
    %51 = arith.addf %48, %50 : vector<64x32xf32>
    %52 = arith.truncf %39 : vector<64x32xf32> to vector<64x32xbf16>
    %53 = arith.truncf %45 : vector<64x32xf32> to vector<64x32xbf16>
    %cst_30 = arith.constant dense<0.000000e+00> : vector<64x64xf32>
    %54 = tpu.matmul %52, %53, %cst_30 {dimension_numbers = #tpu.dot_dimension_numbers<[1], [1], [0], [0], [0, 0, 1, 0], [], []>} : vector<64x32xbf16>, vector<64x32xbf16>, vector<64x64xf32> -> vector<64x64xf32>
    %cst_31 = arith.constant 0.176776692 : f32
    %55 = vector.broadcast %cst_31 : f32 to vector<64x64xf32>
    %56 = arith.mulf %54, %55 : vector<64x64xf32>
    %cst_32 = arith.constant dense<0xFF800000> : vector<64xf32>
    %57 = vector.multi_reduction <maximumf>, %56, %cst_32 [1] : vector<64x64xf32> to vector<64xf32>
    %58 = vector.shape_cast %57 : vector<64xf32> to vector<64x1xf32>
    %59 = vector.broadcast %58 : vector<64x1xf32> to vector<64x64xf32>
    %60 = arith.subf %56, %59 : vector<64x64xf32>
    %61 = math.exp %60 : vector<64x64xf32>
    %cst_33 = arith.constant dense<0.000000e+00> : vector<64xf32>
    %62 = vector.multi_reduction <add>, %61, %cst_33 [1] : vector<64x64xf32> to vector<64xf32>
    %63 = vector.shape_cast %62 : vector<64xf32> to vector<64x1xf32>
    %64 = tpu.reciprocal %63 {approx = true} : vector<64x1xf32> -> vector<64x1xf32>
    %65 = vector.broadcast %64 : vector<64x1xf32> to vector<64x64xf32>
    %66 = arith.mulf %61, %65 : vector<64x64xf32>
    %67 = arith.truncf %66 : vector<64x64xf32> to vector<64x64xbf16>
    %68 = arith.truncf %51 : vector<64x32xf32> to vector<64x32xbf16>
    %cst_34 = arith.constant dense<0.000000e+00> : vector<64x32xf32>
    %69 = tpu.matmul %67, %68, %cst_34 {dimension_numbers = #tpu.dot_dimension_numbers<[1], [0], [0], [1], [0, 0, 1, 1], [], []>} : vector<64x64xbf16>, vector<64x32xbf16>, vector<64x32xf32> -> vector<64x32xf32>
    %70 = arith.truncf %69 : vector<64x32xf32> to vector<64x32xbf16>
    %c0_35 = arith.constant 0 : index
    %c0_36 = arith.constant 0 : index
    %c0_37 = arith.constant 0 : index
    %71 = vector.load %arg7[%c0_35, %c0_36, %c0_37] : memref<2x32x64xbf16, #tpu.memory_space<vmem>>, vector<1x32x64xbf16>
    %72 = vector.shape_cast %71 : vector<1x32x64xbf16> to vector<32x64xbf16>
    %cst_38 = arith.constant dense<0.000000e+00> : vector<64x64xf32>
    %73 = tpu.matmul %70, %72, %cst_38 {dimension_numbers = #tpu.dot_dimension_numbers<[1], [0], [0], [1], [0, 0, 1, 1], [], []>} : vector<64x32xbf16>, vector<32x64xbf16>, vector<64x64xf32> -> vector<64x64xf32>
    %c3_39 = arith.constant 3 : index
    %c0_40 = arith.constant 0 : index
    %c0_41 = arith.constant 0 : index
    %74 = vector.load %arg6[%c3_39, %c0_40, %c0_41] : memref<6x64x32xbf16, #tpu.memory_space<vmem>>, vector<1x64x32xbf16>
    %75 = vector.shape_cast %74 : vector<1x64x32xbf16> to vector<64x32xbf16>
    %cst_42 = arith.constant dense<0.000000e+00> : vector<64x32xf32>
    %76 = tpu.matmul %33, %75, %cst_42 {dimension_numbers = #tpu.dot_dimension_numbers<[1], [0], [0], [1], [0, 0, 1, 1], [], []>} : vector<64x64xbf16>, vector<64x32xbf16>, vector<64x32xf32> -> vector<64x32xf32>
    %c6 = arith.constant 6 : index
    %c0_43 = arith.constant 0 : index
    %77 = vector.load %arg3[%c6, %c0_43] : memref<40x128xf32, #tpu.memory_space<vmem>>, vector<1x32xf32>
    %78 = vector.broadcast %77 : vector<1x32xf32> to vector<64x32xf32>
    %79 = arith.addf %76, %78 : vector<64x32xf32>
    %c4_44 = arith.constant 4 : index
    %c0_45 = arith.constant 0 : index
    %c0_46 = arith.constant 0 : index
    %80 = vector.load %arg6[%c4_44, %c0_45, %c0_46] : memref<6x64x32xbf16, #tpu.memory_space<vmem>>, vector<1x64x32xbf16>
    %81 = vector.shape_cast %80 : vector<1x64x32xbf16> to vector<64x32xbf16>
    %cst_47 = arith.constant dense<0.000000e+00> : vector<64x32xf32>
    %82 = tpu.matmul %33, %81, %cst_47 {dimension_numbers = #tpu.dot_dimension_numbers<[1], [0], [0], [1], [0, 0, 1, 1], [], []>} : vector<64x64xbf16>, vector<64x32xbf16>, vector<64x32xf32> -> vector<64x32xf32>
    %c7 = arith.constant 7 : index
    %c0_48 = arith.constant 0 : index
    %83 = vector.load %arg3[%c7, %c0_48] : memref<40x128xf32, #tpu.memory_space<vmem>>, vector<1x32xf32>
    %84 = vector.broadcast %83 : vector<1x32xf32> to vector<64x32xf32>
    %85 = arith.addf %82, %84 : vector<64x32xf32>
    %c5_49 = arith.constant 5 : index
    %c0_50 = arith.constant 0 : index
    %c0_51 = arith.constant 0 : index
    %86 = vector.load %arg6[%c5_49, %c0_50, %c0_51] : memref<6x64x32xbf16, #tpu.memory_space<vmem>>, vector<1x64x32xbf16>
    %87 = vector.shape_cast %86 : vector<1x64x32xbf16> to vector<64x32xbf16>
    %cst_52 = arith.constant dense<0.000000e+00> : vector<64x32xf32>
    %88 = tpu.matmul %33, %87, %cst_52 {dimension_numbers = #tpu.dot_dimension_numbers<[1], [0], [0], [1], [0, 0, 1, 1], [], []>} : vector<64x64xbf16>, vector<64x32xbf16>, vector<64x32xf32> -> vector<64x32xf32>
    %c8 = arith.constant 8 : index
    %c0_53 = arith.constant 0 : index
    %89 = vector.load %arg3[%c8, %c0_53] : memref<40x128xf32, #tpu.memory_space<vmem>>, vector<1x32xf32>
    %90 = vector.broadcast %89 : vector<1x32xf32> to vector<64x32xf32>
    %91 = arith.addf %88, %90 : vector<64x32xf32>
    %92 = arith.truncf %79 : vector<64x32xf32> to vector<64x32xbf16>
    %93 = arith.truncf %85 : vector<64x32xf32> to vector<64x32xbf16>
    %cst_54 = arith.constant dense<0.000000e+00> : vector<64x64xf32>
    %94 = tpu.matmul %92, %93, %cst_54 {dimension_numbers = #tpu.dot_dimension_numbers<[1], [1], [0], [0], [0, 0, 1, 0], [], []>} : vector<64x32xbf16>, vector<64x32xbf16>, vector<64x64xf32> -> vector<64x64xf32>
    %cst_55 = arith.constant 0.176776692 : f32
    %95 = vector.broadcast %cst_55 : f32 to vector<64x64xf32>
    %96 = arith.mulf %94, %95 : vector<64x64xf32>
    %cst_56 = arith.constant dense<0xFF800000> : vector<64xf32>
    %97 = vector.multi_reduction <maximumf>, %96, %cst_56 [1] : vector<64x64xf32> to vector<64xf32>
    %98 = vector.shape_cast %97 : vector<64xf32> to vector<64x1xf32>
    %99 = vector.broadcast %98 : vector<64x1xf32> to vector<64x64xf32>
    %100 = arith.subf %96, %99 : vector<64x64xf32>
    %101 = math.exp %100 : vector<64x64xf32>
    %cst_57 = arith.constant dense<0.000000e+00> : vector<64xf32>
    %102 = vector.multi_reduction <add>, %101, %cst_57 [1] : vector<64x64xf32> to vector<64xf32>
    %103 = vector.shape_cast %102 : vector<64xf32> to vector<64x1xf32>
    %104 = tpu.reciprocal %103 {approx = true} : vector<64x1xf32> -> vector<64x1xf32>
    %105 = vector.broadcast %104 : vector<64x1xf32> to vector<64x64xf32>
    %106 = arith.mulf %101, %105 : vector<64x64xf32>
    %107 = arith.truncf %106 : vector<64x64xf32> to vector<64x64xbf16>
    %108 = arith.truncf %91 : vector<64x32xf32> to vector<64x32xbf16>
    %cst_58 = arith.constant dense<0.000000e+00> : vector<64x32xf32>
    %109 = tpu.matmul %107, %108, %cst_58 {dimension_numbers = #tpu.dot_dimension_numbers<[1], [0], [0], [1], [0, 0, 1, 1], [], []>} : vector<64x64xbf16>, vector<64x32xbf16>, vector<64x32xf32> -> vector<64x32xf32>
    %110 = arith.truncf %109 : vector<64x32xf32> to vector<64x32xbf16>
    %c1_59 = arith.constant 1 : index
    %c0_60 = arith.constant 0 : index
    %c0_61 = arith.constant 0 : index
    %111 = vector.load %arg7[%c1_59, %c0_60, %c0_61] : memref<2x32x64xbf16, #tpu.memory_space<vmem>>, vector<1x32x64xbf16>
    %112 = vector.shape_cast %111 : vector<1x32x64xbf16> to vector<32x64xbf16>
    %cst_62 = arith.constant dense<0.000000e+00> : vector<64x64xf32>
    %113 = tpu.matmul %110, %112, %cst_62 {dimension_numbers = #tpu.dot_dimension_numbers<[1], [0], [0], [1], [0, 0, 1, 1], [], []>} : vector<64x32xbf16>, vector<32x64xbf16>, vector<64x64xf32> -> vector<64x64xf32>
    %114 = arith.addf %73, %113 : vector<64x64xf32>
    %115 = arith.addf %8, %114 : vector<64x64xf32>
    %c9 = arith.constant 9 : index
    %c0_63 = arith.constant 0 : index
    %116 = vector.load %arg3[%c9, %c0_63] : memref<40x128xf32, #tpu.memory_space<vmem>>, vector<1x64xf32>
    %117 = vector.broadcast %116 : vector<1x64xf32> to vector<64x64xf32>
    %118 = arith.addf %115, %117 : vector<64x64xf32>
    %c10 = arith.constant 10 : index
    %c0_64 = arith.constant 0 : index
    %119 = vector.load %arg3[%c10, %c0_64] : memref<40x128xf32, #tpu.memory_space<vmem>>, vector<1x64xf32>
    %c11 = arith.constant 11 : index
    %c0_65 = arith.constant 0 : index
    %120 = vector.load %arg3[%c11, %c0_65] : memref<40x128xf32, #tpu.memory_space<vmem>>, vector<1x64xf32>
    %cst_66 = arith.constant dense<0.000000e+00> : vector<64xf32>
    %121 = vector.multi_reduction <add>, %118, %cst_66 [1] : vector<64x64xf32> to vector<64xf32>
    %122 = vector.shape_cast %121 : vector<64xf32> to vector<64x1xf32>
    %cst_67 = arith.constant 6.400000e+01 : f32
    %123 = vector.broadcast %cst_67 : f32 to vector<64x1xf32>
    %124 = arith.divf %122, %123 : vector<64x1xf32>
    %125 = vector.broadcast %124 : vector<64x1xf32> to vector<64x64xf32>
    %126 = arith.subf %118, %125 : vector<64x64xf32>
    %127 = arith.mulf %126, %126 : vector<64x64xf32>
    %cst_68 = arith.constant dense<0.000000e+00> : vector<64xf32>
    %128 = vector.multi_reduction <add>, %127, %cst_68 [1] : vector<64x64xf32> to vector<64xf32>
    %129 = vector.shape_cast %128 : vector<64xf32> to vector<64x1xf32>
    %cst_69 = arith.constant 6.400000e+01 : f32
    %130 = vector.broadcast %cst_69 : f32 to vector<64x1xf32>
    %131 = arith.divf %129, %130 : vector<64x1xf32>
    %132 = vector.broadcast %124 : vector<64x1xf32> to vector<64x64xf32>
    %133 = arith.subf %118, %132 : vector<64x64xf32>
    %cst_70 = arith.constant 9.99999997E-7 : f32
    %134 = vector.broadcast %cst_70 : f32 to vector<64x1xf32>
    %135 = arith.addf %131, %134 : vector<64x1xf32>
    %136 = math.rsqrt %135 : vector<64x1xf32>
    %137 = vector.broadcast %136 : vector<64x1xf32> to vector<64x64xf32>
    %138 = arith.mulf %133, %137 : vector<64x64xf32>
    %139 = vector.broadcast %119 : vector<1x64xf32> to vector<64x64xf32>
    %140 = arith.mulf %138, %139 : vector<64x64xf32>
    %141 = vector.broadcast %120 : vector<1x64xf32> to vector<64x64xf32>
    %142 = arith.addf %140, %141 : vector<64x64xf32>
    %c0_71 = arith.constant 0 : index
    %c0_72 = arith.constant 0 : index
    %143 = vector.load %arg8[%c0_71, %c0_72] : memref<64x128xbf16, #tpu.memory_space<vmem>>, vector<64x128xbf16>
    %144 = arith.truncf %142 : vector<64x64xf32> to vector<64x64xbf16>
    %cst_73 = arith.constant dense<0.000000e+00> : vector<64x128xf32>
    %145 = tpu.matmul %144, %143, %cst_73 {dimension_numbers = #tpu.dot_dimension_numbers<[1], [0], [0], [1], [0, 0, 1, 1], [], []>} : vector<64x64xbf16>, vector<64x128xbf16>, vector<64x128xf32> -> vector<64x128xf32>
    %c12 = arith.constant 12 : index
    %c0_74 = arith.constant 0 : index
    %146 = vector.load %arg3[%c12, %c0_74] : memref<40x128xf32, #tpu.memory_space<vmem>>, vector<1x128xf32>
    %147 = vector.broadcast %146 : vector<1x128xf32> to vector<64x128xf32>
    %148 = arith.addf %145, %147 : vector<64x128xf32>
    %149 = arith.mulf %148, %148 : vector<64x128xf32>
    %150 = arith.mulf %148, %149 : vector<64x128xf32>
    %cst_75 = arith.constant 4.471500e-02 : f32
    %151 = vector.broadcast %cst_75 : f32 to vector<64x128xf32>
    %152 = arith.mulf %151, %150 : vector<64x128xf32>
    %153 = arith.addf %148, %152 : vector<64x128xf32>
    %cst_76 = arith.constant 0.797884583 : f32
    %154 = vector.broadcast %cst_76 : f32 to vector<64x128xf32>
    %155 = arith.mulf %154, %153 : vector<64x128xf32>
    %156 = math.tanh %155 : vector<64x128xf32>
    %cst_77 = arith.constant 1.000000e+00 : f32
    %157 = vector.broadcast %cst_77 : f32 to vector<64x128xf32>
    %158 = arith.addf %157, %156 : vector<64x128xf32>
    %cst_78 = arith.constant 5.000000e-01 : f32
    %159 = vector.broadcast %cst_78 : f32 to vector<64x128xf32>
    %160 = arith.mulf %159, %158 : vector<64x128xf32>
    %161 = arith.mulf %148, %160 : vector<64x128xf32>
    %c0_79 = arith.constant 0 : index
    %c0_80 = arith.constant 0 : index
    %162 = vector.load %arg9[%c0_79, %c0_80] : memref<128x64xbf16, #tpu.memory_space<vmem>>, vector<128x64xbf16>
    %163 = arith.truncf %161 : vector<64x128xf32> to vector<64x128xbf16>
    %cst_81 = arith.constant dense<0.000000e+00> : vector<64x64xf32>
    %164 = tpu.matmul %163, %162, %cst_81 {dimension_numbers = #tpu.dot_dimension_numbers<[1], [0], [0], [1], [0, 0, 1, 1], [], []>} : vector<64x128xbf16>, vector<128x64xbf16>, vector<64x64xf32> -> vector<64x64xf32>
    %165 = arith.addf %118, %164 : vector<64x64xf32>
    %c13 = arith.constant 13 : index
    %c0_82 = arith.constant 0 : index
    %166 = vector.load %arg3[%c13, %c0_82] : memref<40x128xf32, #tpu.memory_space<vmem>>, vector<1x64xf32>
    %167 = vector.broadcast %166 : vector<1x64xf32> to vector<64x64xf32>
    %168 = arith.addf %165, %167 : vector<64x64xf32>
    %c0_83 = arith.constant 0 : index
    %c0_84 = arith.constant 0 : index
    %169 = vector.load %arg10[%c0_83, %c0_84] : memref<64x32xbf16, #tpu.memory_space<vmem>>, vector<64x32xbf16>
    %170 = arith.truncf %168 : vector<64x64xf32> to vector<64x64xbf16>
    %cst_85 = arith.constant dense<0.000000e+00> : vector<64x32xf32>
    %171 = tpu.matmul %170, %169, %cst_85 {dimension_numbers = #tpu.dot_dimension_numbers<[1], [0], [0], [1], [0, 0, 1, 1], [], []>} : vector<64x64xbf16>, vector<64x32xbf16>, vector<64x32xf32> -> vector<64x32xf32>
    %c14 = arith.constant 14 : index
    %c0_86 = arith.constant 0 : index
    %172 = vector.load %arg3[%c14, %c0_86] : memref<40x128xf32, #tpu.memory_space<vmem>>, vector<1x32xf32>
    %c15 = arith.constant 15 : index
    %c0_87 = arith.constant 0 : index
    %173 = vector.load %arg3[%c15, %c0_87] : memref<40x128xf32, #tpu.memory_space<vmem>>, vector<1x32xf32>
    %cst_88 = arith.constant dense<0.000000e+00> : vector<64xf32>
    %174 = vector.multi_reduction <add>, %171, %cst_88 [1] : vector<64x32xf32> to vector<64xf32>
    %175 = vector.shape_cast %174 : vector<64xf32> to vector<64x1xf32>
    %cst_89 = arith.constant 3.200000e+01 : f32
    %176 = vector.broadcast %cst_89 : f32 to vector<64x1xf32>
    %177 = arith.divf %175, %176 : vector<64x1xf32>
    %178 = vector.broadcast %177 : vector<64x1xf32> to vector<64x32xf32>
    %179 = arith.subf %171, %178 : vector<64x32xf32>
    %180 = arith.mulf %179, %179 : vector<64x32xf32>
    %cst_90 = arith.constant dense<0.000000e+00> : vector<64xf32>
    %181 = vector.multi_reduction <add>, %180, %cst_90 [1] : vector<64x32xf32> to vector<64xf32>
    %182 = vector.shape_cast %181 : vector<64xf32> to vector<64x1xf32>
    %cst_91 = arith.constant 3.200000e+01 : f32
    %183 = vector.broadcast %cst_91 : f32 to vector<64x1xf32>
    %184 = arith.divf %182, %183 : vector<64x1xf32>
    %185 = vector.broadcast %177 : vector<64x1xf32> to vector<64x32xf32>
    %186 = arith.subf %171, %185 : vector<64x32xf32>
    %cst_92 = arith.constant 9.99999997E-7 : f32
    %187 = vector.broadcast %cst_92 : f32 to vector<64x1xf32>
    %188 = arith.addf %184, %187 : vector<64x1xf32>
    %189 = math.rsqrt %188 : vector<64x1xf32>
    %190 = vector.broadcast %189 : vector<64x1xf32> to vector<64x32xf32>
    %191 = arith.mulf %186, %190 : vector<64x32xf32>
    %192 = vector.broadcast %172 : vector<1x32xf32> to vector<64x32xf32>
    %193 = arith.mulf %191, %192 : vector<64x32xf32>
    %194 = vector.broadcast %173 : vector<1x32xf32> to vector<64x32xf32>
    %195 = arith.addf %193, %194 : vector<64x32xf32>
    %c16 = arith.constant 16 : index
    %c0_93 = arith.constant 0 : index
    %196 = vector.load %arg3[%c16, %c0_93] : memref<40x128xf32, #tpu.memory_space<vmem>>, vector<1x32xf32>
    %197 = vector.broadcast %196 : vector<1x32xf32> to vector<64x32xf32>
    %198 = arith.addf %195, %197 : vector<64x32xf32>
    %c0_94 = arith.constant 0 : index
    %c0_95 = arith.constant 0 : index
    %199 = vector.load %arg11[%c0_94, %c0_95] : memref<64x32xf32, #tpu.memory_space<vmem>>, vector<64x32xf32>
    %c17 = arith.constant 17 : index
    %c0_96 = arith.constant 0 : index
    %200 = vector.load %arg3[%c17, %c0_96] : memref<40x128xf32, #tpu.memory_space<vmem>>, vector<1x32xf32>
    %c18 = arith.constant 18 : index
    %c0_97 = arith.constant 0 : index
    %201 = vector.load %arg3[%c18, %c0_97] : memref<40x128xf32, #tpu.memory_space<vmem>>, vector<1x32xf32>
    %c0_98 = arith.constant 0 : index
    %c0_99 = arith.constant 0 : index
    %c0_100 = arith.constant 0 : index
    %202 = vector.load %arg2[%c0_98, %c0_99, %c0_100] : memref<1x2x32xf32, #tpu.memory_space<vmem>>, vector<1x2x32xf32>
    %203 = vector.shape_cast %202 : vector<1x2x32xf32> to vector<2x32xf32>
    %204 = tpu.concatenate %200, %201, %203 in 0 : vector<1x32xf32>, vector<1x32xf32>, vector<2x32xf32> -> vector<4x32xf32>
    %c0_101 = arith.constant 0 : index
    %c0_102 = arith.constant 0 : index
    %c0_103 = arith.constant 0 : index
    %205 = vector.load %arg12[%c0_101, %c0_102, %c0_103] : memref<8x32x32xbf16, #tpu.memory_space<vmem>>, vector<1x32x32xbf16>
    %206 = vector.shape_cast %205 : vector<1x32x32xbf16> to vector<32x32xbf16>
    %207 = arith.truncf %204 : vector<4x32xf32> to vector<4x32xbf16>
    %cst_104 = arith.constant dense<0.000000e+00> : vector<4x32xf32>
    %208 = tpu.matmul %207, %206, %cst_104 {dimension_numbers = #tpu.dot_dimension_numbers<[1], [0], [0], [1], [0, 0, 1, 1], [], []>} : vector<4x32xbf16>, vector<32x32xbf16>, vector<4x32xf32> -> vector<4x32xf32>
    %c19 = arith.constant 19 : index
    %c0_105 = arith.constant 0 : index
    %209 = vector.load %arg3[%c19, %c0_105] : memref<40x128xf32, #tpu.memory_space<vmem>>, vector<1x32xf32>
    %210 = vector.broadcast %209 : vector<1x32xf32> to vector<4x32xf32>
    %211 = arith.addf %208, %210 : vector<4x32xf32>
    %212 = arith.addf %198, %199 : vector<64x32xf32>
    %c1_106 = arith.constant 1 : index
    %c0_107 = arith.constant 0 : index
    %c0_108 = arith.constant 0 : index
    %213 = vector.load %arg12[%c1_106, %c0_107, %c0_108] : memref<8x32x32xbf16, #tpu.memory_space<vmem>>, vector<1x32x32xbf16>
    %214 = vector.shape_cast %213 : vector<1x32x32xbf16> to vector<32x32xbf16>
    %215 = arith.truncf %212 : vector<64x32xf32> to vector<64x32xbf16>
    %cst_109 = arith.constant dense<0.000000e+00> : vector<64x32xf32>
    %216 = tpu.matmul %215, %214, %cst_109 {dimension_numbers = #tpu.dot_dimension_numbers<[1], [0], [0], [1], [0, 0, 1, 1], [], []>} : vector<64x32xbf16>, vector<32x32xbf16>, vector<64x32xf32> -> vector<64x32xf32>
    %c20 = arith.constant 20 : index
    %c0_110 = arith.constant 0 : index
    %217 = vector.load %arg3[%c20, %c0_110] : memref<40x128xf32, #tpu.memory_space<vmem>>, vector<1x32xf32>
    %218 = vector.broadcast %217 : vector<1x32xf32> to vector<64x32xf32>
    %219 = arith.addf %216, %218 : vector<64x32xf32>
    %c2_111 = arith.constant 2 : index
    %c0_112 = arith.constant 0 : index
    %c0_113 = arith.constant 0 : index
    %220 = vector.load %arg12[%c2_111, %c0_112, %c0_113] : memref<8x32x32xbf16, #tpu.memory_space<vmem>>, vector<1x32x32xbf16>
    %221 = vector.shape_cast %220 : vector<1x32x32xbf16> to vector<32x32xbf16>
    %222 = arith.truncf %198 : vector<64x32xf32> to vector<64x32xbf16>
    %cst_114 = arith.constant dense<0.000000e+00> : vector<64x32xf32>
    %223 = tpu.matmul %222, %221, %cst_114 {dimension_numbers = #tpu.dot_dimension_numbers<[1], [0], [0], [1], [0, 0, 1, 1], [], []>} : vector<64x32xbf16>, vector<32x32xbf16>, vector<64x32xf32> -> vector<64x32xf32>
    %c21 = arith.constant 21 : index
    %c0_115 = arith.constant 0 : index
    %224 = vector.load %arg3[%c21, %c0_115] : memref<40x128xf32, #tpu.memory_space<vmem>>, vector<1x32xf32>
    %225 = vector.broadcast %224 : vector<1x32xf32> to vector<64x32xf32>
    %226 = arith.addf %223, %225 : vector<64x32xf32>
    %227 = arith.truncf %211 : vector<4x32xf32> to vector<4x32xbf16>
    %228 = arith.truncf %219 : vector<64x32xf32> to vector<64x32xbf16>
    %cst_116 = arith.constant dense<0.000000e+00> : vector<4x64xf32>
    %229 = tpu.matmul %227, %228, %cst_116 {dimension_numbers = #tpu.dot_dimension_numbers<[1], [1], [0], [0], [0, 0, 1, 0], [], []>} : vector<4x32xbf16>, vector<64x32xbf16>, vector<4x64xf32> -> vector<4x64xf32>
    %cst_117 = arith.constant 0.176776692 : f32
    %230 = vector.broadcast %cst_117 : f32 to vector<4x64xf32>
    %231 = arith.mulf %229, %230 : vector<4x64xf32>
    %cst_118 = arith.constant dense<0xFF800000> : vector<4xf32>
    %232 = vector.multi_reduction <maximumf>, %231, %cst_118 [1] : vector<4x64xf32> to vector<4xf32>
    %233 = vector.shape_cast %232 : vector<4xf32> to vector<4x1xf32>
    %234 = vector.broadcast %233 : vector<4x1xf32> to vector<4x64xf32>
    %235 = arith.subf %231, %234 : vector<4x64xf32>
    %236 = math.exp %235 : vector<4x64xf32>
    %cst_119 = arith.constant dense<0.000000e+00> : vector<4xf32>
    %237 = vector.multi_reduction <add>, %236, %cst_119 [1] : vector<4x64xf32> to vector<4xf32>
    %238 = vector.shape_cast %237 : vector<4xf32> to vector<4x1xf32>
    %239 = tpu.reciprocal %238 {approx = true} : vector<4x1xf32> -> vector<4x1xf32>
    %240 = vector.broadcast %239 : vector<4x1xf32> to vector<4x64xf32>
    %241 = arith.mulf %236, %240 : vector<4x64xf32>
    %242 = arith.truncf %241 : vector<4x64xf32> to vector<4x64xbf16>
    %243 = arith.truncf %226 : vector<64x32xf32> to vector<64x32xbf16>
    %cst_120 = arith.constant dense<0.000000e+00> : vector<4x32xf32>
    %244 = tpu.matmul %242, %243, %cst_120 {dimension_numbers = #tpu.dot_dimension_numbers<[1], [0], [0], [1], [0, 0, 1, 1], [], []>} : vector<4x64xbf16>, vector<64x32xbf16>, vector<4x32xf32> -> vector<4x32xf32>
    %c3_121 = arith.constant 3 : index
    %c0_122 = arith.constant 0 : index
    %c0_123 = arith.constant 0 : index
    %245 = vector.load %arg12[%c3_121, %c0_122, %c0_123] : memref<8x32x32xbf16, #tpu.memory_space<vmem>>, vector<1x32x32xbf16>
    %246 = vector.shape_cast %245 : vector<1x32x32xbf16> to vector<32x32xbf16>
    %247 = arith.truncf %244 : vector<4x32xf32> to vector<4x32xbf16>
    %cst_124 = arith.constant dense<0.000000e+00> : vector<4x32xf32>
    %248 = tpu.matmul %247, %246, %cst_124 {dimension_numbers = #tpu.dot_dimension_numbers<[1], [0], [0], [1], [0, 0, 1, 1], [], []>} : vector<4x32xbf16>, vector<32x32xbf16>, vector<4x32xf32> -> vector<4x32xf32>
    %c22 = arith.constant 22 : index
    %c0_125 = arith.constant 0 : index
    %249 = vector.load %arg3[%c22, %c0_125] : memref<40x128xf32, #tpu.memory_space<vmem>>, vector<1x32xf32>
    %250 = vector.broadcast %249 : vector<1x32xf32> to vector<4x32xf32>
    %251 = arith.addf %248, %250 : vector<4x32xf32>
    %252 = arith.addf %204, %251 : vector<4x32xf32>
    %c23 = arith.constant 23 : index
    %c0_126 = arith.constant 0 : index
    %253 = vector.load %arg3[%c23, %c0_126] : memref<40x128xf32, #tpu.memory_space<vmem>>, vector<1x32xf32>
    %c24 = arith.constant 24 : index
    %c0_127 = arith.constant 0 : index
    %254 = vector.load %arg3[%c24, %c0_127] : memref<40x128xf32, #tpu.memory_space<vmem>>, vector<1x32xf32>
    %cst_128 = arith.constant dense<0.000000e+00> : vector<4xf32>
    %255 = vector.multi_reduction <add>, %252, %cst_128 [1] : vector<4x32xf32> to vector<4xf32>
    %256 = vector.shape_cast %255 : vector<4xf32> to vector<4x1xf32>
    %cst_129 = arith.constant 3.200000e+01 : f32
    %257 = vector.broadcast %cst_129 : f32 to vector<4x1xf32>
    %258 = arith.divf %256, %257 : vector<4x1xf32>
    %259 = vector.broadcast %258 : vector<4x1xf32> to vector<4x32xf32>
    %260 = arith.subf %252, %259 : vector<4x32xf32>
    %261 = arith.mulf %260, %260 : vector<4x32xf32>
    %cst_130 = arith.constant dense<0.000000e+00> : vector<4xf32>
    %262 = vector.multi_reduction <add>, %261, %cst_130 [1] : vector<4x32xf32> to vector<4xf32>
    %263 = vector.shape_cast %262 : vector<4xf32> to vector<4x1xf32>
    %cst_131 = arith.constant 3.200000e+01 : f32
    %264 = vector.broadcast %cst_131 : f32 to vector<4x1xf32>
    %265 = arith.divf %263, %264 : vector<4x1xf32>
    %266 = vector.broadcast %258 : vector<4x1xf32> to vector<4x32xf32>
    %267 = arith.subf %252, %266 : vector<4x32xf32>
    %cst_132 = arith.constant 9.99999997E-7 : f32
    %268 = vector.broadcast %cst_132 : f32 to vector<4x1xf32>
    %269 = arith.addf %265, %268 : vector<4x1xf32>
    %270 = math.rsqrt %269 : vector<4x1xf32>
    %271 = vector.broadcast %270 : vector<4x1xf32> to vector<4x32xf32>
    %272 = arith.mulf %267, %271 : vector<4x32xf32>
    %273 = vector.broadcast %253 : vector<1x32xf32> to vector<4x32xf32>
    %274 = arith.mulf %272, %273 : vector<4x32xf32>
    %275 = vector.broadcast %254 : vector<1x32xf32> to vector<4x32xf32>
    %276 = arith.addf %274, %275 : vector<4x32xf32>
    %c0_133 = arith.constant 0 : index
    %c0_134 = arith.constant 0 : index
    %277 = vector.load %arg13[%c0_133, %c0_134] : memref<32x128xbf16, #tpu.memory_space<vmem>>, vector<32x128xbf16>
    %278 = arith.truncf %276 : vector<4x32xf32> to vector<4x32xbf16>
    %cst_135 = arith.constant dense<0.000000e+00> : vector<4x128xf32>
    %279 = tpu.matmul %278, %277, %cst_135 {dimension_numbers = #tpu.dot_dimension_numbers<[1], [0], [0], [1], [0, 0, 1, 1], [], []>} : vector<4x32xbf16>, vector<32x128xbf16>, vector<4x128xf32> -> vector<4x128xf32>
    %c25 = arith.constant 25 : index
    %c0_136 = arith.constant 0 : index
    %280 = vector.load %arg3[%c25, %c0_136] : memref<40x128xf32, #tpu.memory_space<vmem>>, vector<1x128xf32>
    %281 = vector.broadcast %280 : vector<1x128xf32> to vector<4x128xf32>
    %282 = arith.addf %279, %281 : vector<4x128xf32>
    %283 = arith.mulf %282, %282 : vector<4x128xf32>
    %284 = arith.mulf %282, %283 : vector<4x128xf32>
    %cst_137 = arith.constant 4.471500e-02 : f32
    %285 = vector.broadcast %cst_137 : f32 to vector<4x128xf32>
    %286 = arith.mulf %285, %284 : vector<4x128xf32>
    %287 = arith.addf %282, %286 : vector<4x128xf32>
    %cst_138 = arith.constant 0.797884583 : f32
    %288 = vector.broadcast %cst_138 : f32 to vector<4x128xf32>
    %289 = arith.mulf %288, %287 : vector<4x128xf32>
    %290 = math.tanh %289 : vector<4x128xf32>
    %cst_139 = arith.constant 1.000000e+00 : f32
    %291 = vector.broadcast %cst_139 : f32 to vector<4x128xf32>
    %292 = arith.addf %291, %290 : vector<4x128xf32>
    %cst_140 = arith.constant 5.000000e-01 : f32
    %293 = vector.broadcast %cst_140 : f32 to vector<4x128xf32>
    %294 = arith.mulf %293, %292 : vector<4x128xf32>
    %295 = arith.mulf %282, %294 : vector<4x128xf32>
    %c0_141 = arith.constant 0 : index
    %c0_142 = arith.constant 0 : index
    %296 = vector.load %arg14[%c0_141, %c0_142] : memref<128x32xbf16, #tpu.memory_space<vmem>>, vector<128x32xbf16>
    %297 = arith.truncf %295 : vector<4x128xf32> to vector<4x128xbf16>
    %cst_143 = arith.constant dense<0.000000e+00> : vector<4x32xf32>
    %298 = tpu.matmul %297, %296, %cst_143 {dimension_numbers = #tpu.dot_dimension_numbers<[1], [0], [0], [1], [0, 0, 1, 1], [], []>} : vector<4x128xbf16>, vector<128x32xbf16>, vector<4x32xf32> -> vector<4x32xf32>
    %c26 = arith.constant 26 : index
    %c0_144 = arith.constant 0 : index
    %299 = vector.load %arg3[%c26, %c0_144] : memref<40x128xf32, #tpu.memory_space<vmem>>, vector<1x32xf32>
    %300 = vector.broadcast %299 : vector<1x32xf32> to vector<4x32xf32>
    %301 = arith.addf %298, %300 : vector<4x32xf32>
    %302 = arith.addf %276, %301 : vector<4x32xf32>
    %c27 = arith.constant 27 : index
    %c0_145 = arith.constant 0 : index
    %303 = vector.load %arg3[%c27, %c0_145] : memref<40x128xf32, #tpu.memory_space<vmem>>, vector<1x32xf32>
    %c28 = arith.constant 28 : index
    %c0_146 = arith.constant 0 : index
    %304 = vector.load %arg3[%c28, %c0_146] : memref<40x128xf32, #tpu.memory_space<vmem>>, vector<1x32xf32>
    %cst_147 = arith.constant dense<0.000000e+00> : vector<4xf32>
    %305 = vector.multi_reduction <add>, %302, %cst_147 [1] : vector<4x32xf32> to vector<4xf32>
    %306 = vector.shape_cast %305 : vector<4xf32> to vector<4x1xf32>
    %cst_148 = arith.constant 3.200000e+01 : f32
    %307 = vector.broadcast %cst_148 : f32 to vector<4x1xf32>
    %308 = arith.divf %306, %307 : vector<4x1xf32>
    %309 = vector.broadcast %308 : vector<4x1xf32> to vector<4x32xf32>
    %310 = arith.subf %302, %309 : vector<4x32xf32>
    %311 = arith.mulf %310, %310 : vector<4x32xf32>
    %cst_149 = arith.constant dense<0.000000e+00> : vector<4xf32>
    %312 = vector.multi_reduction <add>, %311, %cst_149 [1] : vector<4x32xf32> to vector<4xf32>
    %313 = vector.shape_cast %312 : vector<4xf32> to vector<4x1xf32>
    %cst_150 = arith.constant 3.200000e+01 : f32
    %314 = vector.broadcast %cst_150 : f32 to vector<4x1xf32>
    %315 = arith.divf %313, %314 : vector<4x1xf32>
    %316 = vector.broadcast %308 : vector<4x1xf32> to vector<4x32xf32>
    %317 = arith.subf %302, %316 : vector<4x32xf32>
    %cst_151 = arith.constant 9.99999997E-7 : f32
    %318 = vector.broadcast %cst_151 : f32 to vector<4x1xf32>
    %319 = arith.addf %315, %318 : vector<4x1xf32>
    %320 = math.rsqrt %319 : vector<4x1xf32>
    %321 = vector.broadcast %320 : vector<4x1xf32> to vector<4x32xf32>
    %322 = arith.mulf %317, %321 : vector<4x32xf32>
    %323 = vector.broadcast %303 : vector<1x32xf32> to vector<4x32xf32>
    %324 = arith.mulf %322, %323 : vector<4x32xf32>
    %325 = vector.broadcast %304 : vector<1x32xf32> to vector<4x32xf32>
    %326 = arith.addf %324, %325 : vector<4x32xf32>
    %327 = vector.extract_strided_slice %326 {offsets = [1, 0], sizes = [1, 32], strides = [1, 1]} : vector<4x32xf32> to vector<1x32xf32>
    %c4_152 = arith.constant 4 : index
    %c0_153 = arith.constant 0 : index
    %c0_154 = arith.constant 0 : index
    %328 = vector.load %arg12[%c4_152, %c0_153, %c0_154] : memref<8x32x32xbf16, #tpu.memory_space<vmem>>, vector<1x32x32xbf16>
    %329 = vector.shape_cast %328 : vector<1x32x32xbf16> to vector<32x32xbf16>
    %330 = arith.truncf %327 : vector<1x32xf32> to vector<1x32xbf16>
    %cst_155 = arith.constant dense<0.000000e+00> : vector<1x32xf32>
    %331 = tpu.matmul %330, %329, %cst_155 {dimension_numbers = #tpu.dot_dimension_numbers<[1], [0], [0], [1], [0, 0, 1, 1], [], []>} : vector<1x32xbf16>, vector<32x32xbf16>, vector<1x32xf32> -> vector<1x32xf32>
    %c31 = arith.constant 31 : index
    %c0_156 = arith.constant 0 : index
    %332 = vector.load %arg3[%c31, %c0_156] : memref<40x128xf32, #tpu.memory_space<vmem>>, vector<1x32xf32>
    %333 = arith.addf %331, %332 : vector<1x32xf32>
    %cst_157 = arith.constant 0.000000e+00 : f32
    %334 = vector.broadcast %cst_157 : f32 to vector<1x32xf32>
    %335 = arith.maximumf %333, %334 : vector<1x32xf32>
    %c5_158 = arith.constant 5 : index
    %c0_159 = arith.constant 0 : index
    %c0_160 = arith.constant 0 : index
    %336 = vector.load %arg12[%c5_158, %c0_159, %c0_160] : memref<8x32x32xbf16, #tpu.memory_space<vmem>>, vector<1x32x32xbf16>
    %337 = vector.shape_cast %336 : vector<1x32x32xbf16> to vector<32x32xbf16>
    %338 = arith.truncf %335 : vector<1x32xf32> to vector<1x32xbf16>
    %cst_161 = arith.constant dense<0.000000e+00> : vector<1x32xf32>
    %339 = tpu.matmul %338, %337, %cst_161 {dimension_numbers = #tpu.dot_dimension_numbers<[1], [0], [0], [1], [0, 0, 1, 1], [], []>} : vector<1x32xbf16>, vector<32x32xbf16>, vector<1x32xf32> -> vector<1x32xf32>
    %c32 = arith.constant 32 : index
    %c0_162 = arith.constant 0 : index
    %340 = vector.load %arg3[%c32, %c0_162] : memref<40x128xf32, #tpu.memory_space<vmem>>, vector<1x32xf32>
    %341 = arith.addf %339, %340 : vector<1x32xf32>
    %cst_163 = arith.constant 0.000000e+00 : f32
    %342 = vector.broadcast %cst_163 : f32 to vector<1x32xf32>
    %343 = arith.maximumf %341, %342 : vector<1x32xf32>
    %c0_164 = arith.constant 0 : index
    %c0_165 = arith.constant 0 : index
    %344 = vector.load %arg17[%c0_164, %c0_165] : memref<32x128xbf16, #tpu.memory_space<vmem>>, vector<32x128xbf16>
    %345 = arith.truncf %343 : vector<1x32xf32> to vector<1x32xbf16>
    %cst_166 = arith.constant dense<0.000000e+00> : vector<1x128xf32>
    %346 = tpu.matmul %345, %344, %cst_166 {dimension_numbers = #tpu.dot_dimension_numbers<[1], [0], [0], [1], [0, 0, 1, 1], [], []>} : vector<1x32xbf16>, vector<32x128xbf16>, vector<1x128xf32> -> vector<1x128xf32>
    %c33 = arith.constant 33 : index
    %c0_167 = arith.constant 0 : index
    %347 = vector.load %arg3[%c33, %c0_167] : memref<40x128xf32, #tpu.memory_space<vmem>>, vector<1x128xf32>
    %348 = arith.addf %346, %347 : vector<1x128xf32>
    %349 = vector.extract_strided_slice %326 {offsets = [0, 0], sizes = [1, 32], strides = [1, 1]} : vector<4x32xf32> to vector<1x32xf32>
    %c6_168 = arith.constant 6 : index
    %c0_169 = arith.constant 0 : index
    %c0_170 = arith.constant 0 : index
    %350 = vector.load %arg12[%c6_168, %c0_169, %c0_170] : memref<8x32x32xbf16, #tpu.memory_space<vmem>>, vector<1x32x32xbf16>
    %351 = vector.shape_cast %350 : vector<1x32x32xbf16> to vector<32x32xbf16>
    %352 = arith.truncf %349 : vector<1x32xf32> to vector<1x32xbf16>
    %cst_171 = arith.constant dense<0.000000e+00> : vector<1x32xf32>
    %353 = tpu.matmul %352, %351, %cst_171 {dimension_numbers = #tpu.dot_dimension_numbers<[1], [0], [0], [1], [0, 0, 1, 1], [], []>} : vector<1x32xbf16>, vector<32x32xbf16>, vector<1x32xf32> -> vector<1x32xf32>
    %c34 = arith.constant 34 : index
    %c0_172 = arith.constant 0 : index
    %354 = vector.load %arg3[%c34, %c0_172] : memref<40x128xf32, #tpu.memory_space<vmem>>, vector<1x32xf32>
    %355 = arith.addf %353, %354 : vector<1x32xf32>
    %cst_173 = arith.constant 0.000000e+00 : f32
    %356 = vector.broadcast %cst_173 : f32 to vector<1x32xf32>
    %357 = arith.maximumf %355, %356 : vector<1x32xf32>
    %c7_174 = arith.constant 7 : index
    %c0_175 = arith.constant 0 : index
    %c0_176 = arith.constant 0 : index
    %358 = vector.load %arg12[%c7_174, %c0_175, %c0_176] : memref<8x32x32xbf16, #tpu.memory_space<vmem>>, vector<1x32x32xbf16>
    %359 = vector.shape_cast %358 : vector<1x32x32xbf16> to vector<32x32xbf16>
    %360 = arith.truncf %357 : vector<1x32xf32> to vector<1x32xbf16>
    %cst_177 = arith.constant dense<0.000000e+00> : vector<1x32xf32>
    %361 = tpu.matmul %360, %359, %cst_177 {dimension_numbers = #tpu.dot_dimension_numbers<[1], [0], [0], [1], [0, 0, 1, 1], [], []>} : vector<1x32xbf16>, vector<32x32xbf16>, vector<1x32xf32> -> vector<1x32xf32>
    %c35 = arith.constant 35 : index
    %c0_178 = arith.constant 0 : index
    %362 = vector.load %arg3[%c35, %c0_178] : memref<40x128xf32, #tpu.memory_space<vmem>>, vector<1x32xf32>
    %363 = arith.addf %361, %362 : vector<1x32xf32>
    %cst_179 = arith.constant 0.000000e+00 : f32
    %364 = vector.broadcast %cst_179 : f32 to vector<1x32xf32>
    %365 = arith.maximumf %363, %364 : vector<1x32xf32>
    %c36 = arith.constant 36 : index
    %c0_180 = arith.constant 0 : index
    %366 = vector.load %arg3[%c36, %c0_180] : memref<40x128xf32, #tpu.memory_space<vmem>>, vector<1x32xf32>
    %367 = arith.mulf %365, %366 : vector<1x32xf32>
    %cst_181 = arith.constant dense<0.000000e+00> : vector<1xf32>
    %368 = vector.multi_reduction <add>, %367, %cst_181 [1] : vector<1x32xf32> to vector<1xf32>
    %369 = vector.shape_cast %368 : vector<1xf32> to vector<1x1xf32>
    %c37 = arith.constant 37 : index
    %c0_182 = arith.constant 0 : index
    %370 = vector.load %arg3[%c37, %c0_182] : memref<40x128xf32, #tpu.memory_space<vmem>>, vector<1x1xf32>
    %371 = arith.addf %369, %370 : vector<1x1xf32>
    %c0_183 = arith.constant 0 : index
    %c0_184 = arith.constant 0 : index
    %c0_185 = arith.constant 0 : index
    %372 = vector.load %arg20[%c0_183, %c0_184, %c0_185] : memref<1x1x1xf32, #tpu.memory_space<vmem>>, vector<1x1x1xf32>
    %373 = vector.shape_cast %372 : vector<1x1x1xf32> to vector<1x1xf32>
    %374 = vector.shape_cast %371 : vector<1x1xf32> to vector<1x1x1xf32>
    tpu.vector_store %arg20[%c0_183, %c0_184, %c0_185], %374 {strides = array<i32>} : memref<1x1x1xf32, #tpu.memory_space<vmem>>, vector<1x1x1xf32>,
    %c0_186 = arith.constant 0 : index
    %c0_187 = arith.constant 0 : index
    %375 = vector.load %arg15[%c0_186, %c0_187] : memref<32x64xbf16, #tpu.memory_space<vmem>>, vector<32x64xbf16>
    %376 = arith.truncf %198 : vector<64x32xf32> to vector<64x32xbf16>
    %cst_188 = arith.constant dense<0.000000e+00> : vector<64x64xf32>
    %377 = tpu.matmul %376, %375, %cst_188 {dimension_numbers = #tpu.dot_dimension_numbers<[1], [0], [0], [1], [0, 0, 1, 1], [], []>} : vector<64x32xbf16>, vector<32x64xbf16>, vector<64x64xf32> -> vector<64x64xf32>
    %c29 = arith.constant 29 : index
    %c0_189 = arith.constant 0 : index
    %378 = vector.load %arg3[%c29, %c0_189] : memref<40x128xf32, #tpu.memory_space<vmem>>, vector<1x64xf32>
    %379 = vector.broadcast %378 : vector<1x64xf32> to vector<64x64xf32>
    %380 = arith.addf %377, %379 : vector<64x64xf32>
    %381 = arith.mulf %380, %380 : vector<64x64xf32>
    %382 = arith.mulf %380, %381 : vector<64x64xf32>
    %cst_190 = arith.constant 4.471500e-02 : f32
    %383 = vector.broadcast %cst_190 : f32 to vector<64x64xf32>
    %384 = arith.mulf %383, %382 : vector<64x64xf32>
    %385 = arith.addf %380, %384 : vector<64x64xf32>
    %cst_191 = arith.constant 0.797884583 : f32
    %386 = vector.broadcast %cst_191 : f32 to vector<64x64xf32>
    %387 = arith.mulf %386, %385 : vector<64x64xf32>
    %388 = math.tanh %387 : vector<64x64xf32>
    %cst_192 = arith.constant 1.000000e+00 : f32
    %389 = vector.broadcast %cst_192 : f32 to vector<64x64xf32>
    %390 = arith.addf %389, %388 : vector<64x64xf32>
    %cst_193 = arith.constant 5.000000e-01 : f32
    %391 = vector.broadcast %cst_193 : f32 to vector<64x64xf32>
    %392 = arith.mulf %391, %390 : vector<64x64xf32>
    %393 = arith.mulf %380, %392 : vector<64x64xf32>
    %c0_194 = arith.constant 0 : index
    %c0_195 = arith.constant 0 : index
    %394 = vector.load %arg16[%c0_194, %c0_195] : memref<64x128xbf16, #tpu.memory_space<vmem>>, vector<64x128xbf16>
    %395 = arith.truncf %393 : vector<64x64xf32> to vector<64x64xbf16>
    %cst_196 = arith.constant dense<0.000000e+00> : vector<64x128xf32>
    %396 = tpu.matmul %395, %394, %cst_196 {dimension_numbers = #tpu.dot_dimension_numbers<[1], [0], [0], [1], [0, 0, 1, 1], [], []>} : vector<64x64xbf16>, vector<64x128xbf16>, vector<64x128xf32> -> vector<64x128xf32>
    %c30 = arith.constant 30 : index
    %c0_197 = arith.constant 0 : index
    %397 = vector.load %arg3[%c30, %c0_197] : memref<40x128xf32, #tpu.memory_space<vmem>>, vector<1x128xf32>
    %398 = vector.broadcast %397 : vector<1x128xf32> to vector<64x128xf32>
    %399 = arith.addf %396, %398 : vector<64x128xf32>
    %400 = arith.mulf %399, %399 : vector<64x128xf32>
    %401 = arith.mulf %399, %400 : vector<64x128xf32>
    %cst_198 = arith.constant 4.471500e-02 : f32
    %402 = vector.broadcast %cst_198 : f32 to vector<64x128xf32>
    %403 = arith.mulf %402, %401 : vector<64x128xf32>
    %404 = arith.addf %399, %403 : vector<64x128xf32>
    %cst_199 = arith.constant 0.797884583 : f32
    %405 = vector.broadcast %cst_199 : f32 to vector<64x128xf32>
    %406 = arith.mulf %405, %404 : vector<64x128xf32>
    %407 = math.tanh %406 : vector<64x128xf32>
    %cst_200 = arith.constant 1.000000e+00 : f32
    %408 = vector.broadcast %cst_200 : f32 to vector<64x128xf32>
    %409 = arith.addf %408, %407 : vector<64x128xf32>
    %cst_201 = arith.constant 5.000000e-01 : f32
    %410 = vector.broadcast %cst_201 : f32 to vector<64x128xf32>
    %411 = arith.mulf %410, %409 : vector<64x128xf32>
    %412 = arith.mulf %399, %411 : vector<64x128xf32>
    %413 = vector.broadcast %348 : vector<1x128xf32> to vector<64x128xf32>
    %414 = arith.mulf %412, %413 : vector<64x128xf32>
    %c0_202 = arith.constant 0 : index
    %c0_203 = arith.constant 0 : index
    %415 = vector.load %arg18[%c0_202, %c0_203] : memref<16x128xbf16, #tpu.memory_space<vmem>>, vector<16x128xbf16>
    %416 = arith.truncf %414 : vector<64x128xf32> to vector<64x128xbf16>
    %cst_204 = arith.constant dense<0.000000e+00> : vector<16x64xf32>
    %417 = tpu.matmul %415, %416, %cst_204 {dimension_numbers = #tpu.dot_dimension_numbers<[1], [1], [0], [0], [0, 0, 1, 0], [], []>} : vector<16x128xbf16>, vector<64x128xbf16>, vector<16x64xf32> -> vector<16x64xf32>
    %c0_205 = arith.constant 0 : index
    %c0_206 = arith.constant 0 : index
    %c0_207 = arith.constant 0 : index
    %418 = vector.load %arg19[%c0_205, %c0_206, %c0_207] : memref<1x16x64xf32, #tpu.memory_space<vmem>>, vector<1x16x64xf32>
    %419 = vector.shape_cast %418 : vector<1x16x64xf32> to vector<16x64xf32>
    %420 = vector.shape_cast %417 : vector<16x64xf32> to vector<1x16x64xf32>
    tpu.vector_store %arg19[%c0_205, %c0_206, %c0_207], %420 {strides = array<i32>} : memref<1x16x64xf32, #tpu.memory_space<vmem>>, vector<1x16x64xf32>,
    return
  }
  func.func @transform_0(%arg0: i32) -> (i32, i32, i32) {
    %c0_i32 = arith.constant 0 : i32
    %c0_i32_0 = arith.constant 0 : i32
    %c0_i32_1 = arith.constant 0 : i32
    return %arg0, %c0_i32, %c0_i32_0 : i32, i32, i32
  }
  func.func @transform_1(%arg0: i32) -> (i32, i32, i32) {
    %c0_i32 = arith.constant 0 : i32
    %c0_i32_0 = arith.constant 0 : i32
    %c0_i32_1 = arith.constant 0 : i32
    return %arg0, %c0_i32, %c0_i32_0 : i32, i32, i32
  }
  func.func @transform_2(%arg0: i32) -> (i32, i32) {
    %c0_i32 = arith.constant 0 : i32
    %c0_i32_0 = arith.constant 0 : i32
    %c0_i32_1 = arith.constant 0 : i32
    return %c0_i32, %c0_i32_0 : i32, i32
  }
  func.func @transform_3(%arg0: i32) -> (i32, i32) {
    %c0_i32 = arith.constant 0 : i32
    %c0_i32_0 = arith.constant 0 : i32
    %c0_i32_1 = arith.constant 0 : i32
    return %c0_i32, %c0_i32_0 : i32, i32
  }
  func.func @transform_4(%arg0: i32) -> (i32, i32) {
    %c0_i32 = arith.constant 0 : i32
    %c0_i32_0 = arith.constant 0 : i32
    %c0_i32_1 = arith.constant 0 : i32
    return %c0_i32, %c0_i32_0 : i32, i32
  }
  func.func @transform_5(%arg0: i32) -> (i32, i32, i32) {
    %c0_i32 = arith.constant 0 : i32
    %c0_i32_0 = arith.constant 0 : i32
    %c0_i32_1 = arith.constant 0 : i32
    %c0_i32_2 = arith.constant 0 : i32
    return %c0_i32, %c0_i32_0, %c0_i32_1 : i32, i32, i32
  }
  func.func @transform_6(%arg0: i32) -> (i32, i32, i32) {
    %c0_i32 = arith.constant 0 : i32
    %c0_i32_0 = arith.constant 0 : i32
    %c0_i32_1 = arith.constant 0 : i32
    %c0_i32_2 = arith.constant 0 : i32
    return %c0_i32, %c0_i32_0, %c0_i32_1 : i32, i32, i32
  }
  func.func @transform_7(%arg0: i32) -> (i32, i32) {
    %c0_i32 = arith.constant 0 : i32
    %c0_i32_0 = arith.constant 0 : i32
    %c0_i32_1 = arith.constant 0 : i32
    return %c0_i32, %c0_i32_0 : i32, i32
  }
  func.func @transform_8(%arg0: i32) -> (i32, i32) {
    %c0_i32 = arith.constant 0 : i32
    %c0_i32_0 = arith.constant 0 : i32
    %c0_i32_1 = arith.constant 0 : i32
    return %c0_i32, %c0_i32_0 : i32, i32
  }
  func.func @transform_9(%arg0: i32) -> (i32, i32) {
    %c0_i32 = arith.constant 0 : i32
    %c0_i32_0 = arith.constant 0 : i32
    %c0_i32_1 = arith.constant 0 : i32
    return %c0_i32, %c0_i32_0 : i32, i32
  }
  func.func @transform_10(%arg0: i32) -> (i32, i32) {
    %c0_i32 = arith.constant 0 : i32
    %c0_i32_0 = arith.constant 0 : i32
    %c0_i32_1 = arith.constant 0 : i32
    return %c0_i32, %c0_i32_0 : i32, i32
  }
  func.func @transform_11(%arg0: i32) -> (i32, i32, i32) {
    %c0_i32 = arith.constant 0 : i32
    %c0_i32_0 = arith.constant 0 : i32
    %c0_i32_1 = arith.constant 0 : i32
    %c0_i32_2 = arith.constant 0 : i32
    return %c0_i32, %c0_i32_0, %c0_i32_1 : i32, i32, i32
  }
  func.func @transform_12(%arg0: i32) -> (i32, i32) {
    %c0_i32 = arith.constant 0 : i32
    %c0_i32_0 = arith.constant 0 : i32
    %c0_i32_1 = arith.constant 0 : i32
    return %c0_i32, %c0_i32_0 : i32, i32
  }
  func.func @transform_13(%arg0: i32) -> (i32, i32) {
    %c0_i32 = arith.constant 0 : i32
    %c0_i32_0 = arith.constant 0 : i32
    %c0_i32_1 = arith.constant 0 : i32
    return %c0_i32, %c0_i32_0 : i32, i32
  }
  func.func @transform_14(%arg0: i32) -> (i32, i32) {
    %c0_i32 = arith.constant 0 : i32
    %c0_i32_0 = arith.constant 0 : i32
    %c0_i32_1 = arith.constant 0 : i32
    return %c0_i32, %c0_i32_0 : i32, i32
  }
  func.func @transform_15(%arg0: i32) -> (i32, i32) {
    %c0_i32 = arith.constant 0 : i32
    %c0_i32_0 = arith.constant 0 : i32
    %c0_i32_1 = arith.constant 0 : i32
    return %c0_i32, %c0_i32_0 : i32, i32
  }
  func.func @transform_16(%arg0: i32) -> (i32, i32) {
    %c0_i32 = arith.constant 0 : i32
    %c0_i32_0 = arith.constant 0 : i32
    %c0_i32_1 = arith.constant 0 : i32
    return %c0_i32, %c0_i32_0 : i32, i32
  }
  func.func @transform_17(%arg0: i32) -> (i32, i32) {
    %c0_i32 = arith.constant 0 : i32
    %c0_i32_0 = arith.constant 0 : i32
    %c0_i32_1 = arith.constant 0 : i32
    return %c0_i32, %c0_i32_0 : i32, i32
  }
  func.func @transform_18(%arg0: i32) -> (i32, i32, i32) {
    %c0_i32 = arith.constant 0 : i32
    %c0_i32_0 = arith.constant 0 : i32
    %c0_i32_1 = arith.constant 0 : i32
    return %arg0, %c0_i32, %c0_i32_0 : i32, i32, i32
  }
  func.func @transform_19(%arg0: i32) -> (i32, i32, i32) {
    %c0_i32 = arith.constant 0 : i32
    %c0_i32_0 = arith.constant 0 : i32
    %c0_i32_1 = arith.constant 0 : i32
    return %arg0, %c0_i32, %c0_i32_0 : i32, i32, i32
  }
}

module attributes {stable_mosaic.version = 11 : i64} {
  func.func @_mask_upsample_kernel(%arg0: i32, %arg1: memref<1x16x8x8xf32, #tpu.memory_space<vmem>>, %arg2: memref<4x128x8xbf16, #tpu.memory_space<vmem>>, %arg3: memref<4x8x128xbf16, #tpu.memory_space<vmem>>, %arg4: memref<1x128x128xf32, #tpu.memory_space<vmem>>) attributes {dimension_semantics = [#tpu.dimension_semantics<parallel>], iteration_bounds = array<i64: 2>, scalar_prefetch = 0 : i64, scratch_operands = 0 : i64, tpu.core_type = #tpu.core_type<tc>, window_params = [{transform_indices = @transform_0, window_bounds = array<i64: 1, 16, 8, 8>}, {pipeline_mode = #tpu.pipeline_mode<synchronous>, transform_indices = @transform_1, window_bounds = array<i64: 4, 128, 8>}, {pipeline_mode = #tpu.pipeline_mode<synchronous>, transform_indices = @transform_2, window_bounds = array<i64: 4, 8, 128>}, {transform_indices = @transform_3, window_bounds = array<i64: 1, 128, 128>}]} {
    %c0 = arith.constant 0 : index
    %c0_0 = arith.constant 0 : index
    %c0_1 = arith.constant 0 : index
    %c0_2 = arith.constant 0 : index
    %0 = vector.load %arg1[%c0, %c0_0, %c0_1, %c0_2] : memref<1x16x8x8xf32, #tpu.memory_space<vmem>>, vector<1x1x8x8xf32>
    %1 = vector.shape_cast %0 : vector<1x1x8x8xf32> to vector<8x8xf32>
    %2 = arith.truncf %1 : vector<8x8xf32> to vector<8x8xbf16>
    %c0_3 = arith.constant 0 : index
    %c0_4 = arith.constant 0 : index
    %c0_5 = arith.constant 0 : index
    %3 = vector.load %arg3[%c0_3, %c0_4, %c0_5] : memref<4x8x128xbf16, #tpu.memory_space<vmem>>, vector<1x8x128xbf16>
    %4 = vector.shape_cast %3 : vector<1x8x128xbf16> to vector<8x128xbf16>
    %cst = arith.constant dense<0.000000e+00> : vector<8x128xf32>
    %5 = tpu.matmul %2, %4, %cst {dimension_numbers = #tpu.dot_dimension_numbers<[1], [0], [0], [1], [0, 0, 1, 1], [], []>} : vector<8x8xbf16>, vector<8x128xbf16>, vector<8x128xf32> -> vector<8x128xf32>
    %c0_6 = arith.constant 0 : index
    %c1 = arith.constant 1 : index
    %c0_7 = arith.constant 0 : index
    %c0_8 = arith.constant 0 : index
    %6 = vector.load %arg1[%c0_6, %c1, %c0_7, %c0_8] : memref<1x16x8x8xf32, #tpu.memory_space<vmem>>, vector<1x1x8x8xf32>
    %7 = vector.shape_cast %6 : vector<1x1x8x8xf32> to vector<8x8xf32>
    %8 = arith.truncf %7 : vector<8x8xf32> to vector<8x8xbf16>
    %c1_9 = arith.constant 1 : index
    %c0_10 = arith.constant 0 : index
    %c0_11 = arith.constant 0 : index
    %9 = vector.load %arg3[%c1_9, %c0_10, %c0_11] : memref<4x8x128xbf16, #tpu.memory_space<vmem>>, vector<1x8x128xbf16>
    %10 = vector.shape_cast %9 : vector<1x8x128xbf16> to vector<8x128xbf16>
    %cst_12 = arith.constant dense<0.000000e+00> : vector<8x128xf32>
    %11 = tpu.matmul %8, %10, %cst_12 {dimension_numbers = #tpu.dot_dimension_numbers<[1], [0], [0], [1], [0, 0, 1, 1], [], []>} : vector<8x8xbf16>, vector<8x128xbf16>, vector<8x128xf32> -> vector<8x128xf32>
    %12 = arith.addf %5, %11 : vector<8x128xf32>
    %c0_13 = arith.constant 0 : index
    %c2 = arith.constant 2 : index
    %c0_14 = arith.constant 0 : index
    %c0_15 = arith.constant 0 : index
    %13 = vector.load %arg1[%c0_13, %c2, %c0_14, %c0_15] : memref<1x16x8x8xf32, #tpu.memory_space<vmem>>, vector<1x1x8x8xf32>
    %14 = vector.shape_cast %13 : vector<1x1x8x8xf32> to vector<8x8xf32>
    %15 = arith.truncf %14 : vector<8x8xf32> to vector<8x8xbf16>
    %c2_16 = arith.constant 2 : index
    %c0_17 = arith.constant 0 : index
    %c0_18 = arith.constant 0 : index
    %16 = vector.load %arg3[%c2_16, %c0_17, %c0_18] : memref<4x8x128xbf16, #tpu.memory_space<vmem>>, vector<1x8x128xbf16>
    %17 = vector.shape_cast %16 : vector<1x8x128xbf16> to vector<8x128xbf16>
    %cst_19 = arith.constant dense<0.000000e+00> : vector<8x128xf32>
    %18 = tpu.matmul %15, %17, %cst_19 {dimension_numbers = #tpu.dot_dimension_numbers<[1], [0], [0], [1], [0, 0, 1, 1], [], []>} : vector<8x8xbf16>, vector<8x128xbf16>, vector<8x128xf32> -> vector<8x128xf32>
    %19 = arith.addf %12, %18 : vector<8x128xf32>
    %c0_20 = arith.constant 0 : index
    %c3 = arith.constant 3 : index
    %c0_21 = arith.constant 0 : index
    %c0_22 = arith.constant 0 : index
    %20 = vector.load %arg1[%c0_20, %c3, %c0_21, %c0_22] : memref<1x16x8x8xf32, #tpu.memory_space<vmem>>, vector<1x1x8x8xf32>
    %21 = vector.shape_cast %20 : vector<1x1x8x8xf32> to vector<8x8xf32>
    %22 = arith.truncf %21 : vector<8x8xf32> to vector<8x8xbf16>
    %c3_23 = arith.constant 3 : index
    %c0_24 = arith.constant 0 : index
    %c0_25 = arith.constant 0 : index
    %23 = vector.load %arg3[%c3_23, %c0_24, %c0_25] : memref<4x8x128xbf16, #tpu.memory_space<vmem>>, vector<1x8x128xbf16>
    %24 = vector.shape_cast %23 : vector<1x8x128xbf16> to vector<8x128xbf16>
    %cst_26 = arith.constant dense<0.000000e+00> : vector<8x128xf32>
    %25 = tpu.matmul %22, %24, %cst_26 {dimension_numbers = #tpu.dot_dimension_numbers<[1], [0], [0], [1], [0, 0, 1, 1], [], []>} : vector<8x8xbf16>, vector<8x128xbf16>, vector<8x128xf32> -> vector<8x128xf32>
    %26 = arith.addf %19, %25 : vector<8x128xf32>
    %c0_27 = arith.constant 0 : index
    %c0_28 = arith.constant 0 : index
    %c0_29 = arith.constant 0 : index
    %27 = vector.load %arg2[%c0_27, %c0_28, %c0_29] : memref<4x128x8xbf16, #tpu.memory_space<vmem>>, vector<1x128x8xbf16>
    %28 = vector.shape_cast %27 : vector<1x128x8xbf16> to vector<128x8xbf16>
    %29 = arith.truncf %26 : vector<8x128xf32> to vector<8x128xbf16>
    %cst_30 = arith.constant dense<0.000000e+00> : vector<128x128xf32>
    %30 = tpu.matmul %28, %29, %cst_30 {dimension_numbers = #tpu.dot_dimension_numbers<[1], [0], [0], [1], [0, 0, 1, 1], [], []>} : vector<128x8xbf16>, vector<8x128xbf16>, vector<128x128xf32> -> vector<128x128xf32>
    %c0_31 = arith.constant 0 : index
    %c4 = arith.constant 4 : index
    %c0_32 = arith.constant 0 : index
    %c0_33 = arith.constant 0 : index
    %31 = vector.load %arg1[%c0_31, %c4, %c0_32, %c0_33] : memref<1x16x8x8xf32, #tpu.memory_space<vmem>>, vector<1x1x8x8xf32>
    %32 = vector.shape_cast %31 : vector<1x1x8x8xf32> to vector<8x8xf32>
    %33 = arith.truncf %32 : vector<8x8xf32> to vector<8x8xbf16>
    %c0_34 = arith.constant 0 : index
    %c0_35 = arith.constant 0 : index
    %c0_36 = arith.constant 0 : index
    %34 = vector.load %arg3[%c0_34, %c0_35, %c0_36] : memref<4x8x128xbf16, #tpu.memory_space<vmem>>, vector<1x8x128xbf16>
    %35 = vector.shape_cast %34 : vector<1x8x128xbf16> to vector<8x128xbf16>
    %cst_37 = arith.constant dense<0.000000e+00> : vector<8x128xf32>
    %36 = tpu.matmul %33, %35, %cst_37 {dimension_numbers = #tpu.dot_dimension_numbers<[1], [0], [0], [1], [0, 0, 1, 1], [], []>} : vector<8x8xbf16>, vector<8x128xbf16>, vector<8x128xf32> -> vector<8x128xf32>
    %c0_38 = arith.constant 0 : index
    %c5 = arith.constant 5 : index
    %c0_39 = arith.constant 0 : index
    %c0_40 = arith.constant 0 : index
    %37 = vector.load %arg1[%c0_38, %c5, %c0_39, %c0_40] : memref<1x16x8x8xf32, #tpu.memory_space<vmem>>, vector<1x1x8x8xf32>
    %38 = vector.shape_cast %37 : vector<1x1x8x8xf32> to vector<8x8xf32>
    %39 = arith.truncf %38 : vector<8x8xf32> to vector<8x8xbf16>
    %c1_41 = arith.constant 1 : index
    %c0_42 = arith.constant 0 : index
    %c0_43 = arith.constant 0 : index
    %40 = vector.load %arg3[%c1_41, %c0_42, %c0_43] : memref<4x8x128xbf16, #tpu.memory_space<vmem>>, vector<1x8x128xbf16>
    %41 = vector.shape_cast %40 : vector<1x8x128xbf16> to vector<8x128xbf16>
    %cst_44 = arith.constant dense<0.000000e+00> : vector<8x128xf32>
    %42 = tpu.matmul %39, %41, %cst_44 {dimension_numbers = #tpu.dot_dimension_numbers<[1], [0], [0], [1], [0, 0, 1, 1], [], []>} : vector<8x8xbf16>, vector<8x128xbf16>, vector<8x128xf32> -> vector<8x128xf32>
    %43 = arith.addf %36, %42 : vector<8x128xf32>
    %c0_45 = arith.constant 0 : index
    %c6 = arith.constant 6 : index
    %c0_46 = arith.constant 0 : index
    %c0_47 = arith.constant 0 : index
    %44 = vector.load %arg1[%c0_45, %c6, %c0_46, %c0_47] : memref<1x16x8x8xf32, #tpu.memory_space<vmem>>, vector<1x1x8x8xf32>
    %45 = vector.shape_cast %44 : vector<1x1x8x8xf32> to vector<8x8xf32>
    %46 = arith.truncf %45 : vector<8x8xf32> to vector<8x8xbf16>
    %c2_48 = arith.constant 2 : index
    %c0_49 = arith.constant 0 : index
    %c0_50 = arith.constant 0 : index
    %47 = vector.load %arg3[%c2_48, %c0_49, %c0_50] : memref<4x8x128xbf16, #tpu.memory_space<vmem>>, vector<1x8x128xbf16>
    %48 = vector.shape_cast %47 : vector<1x8x128xbf16> to vector<8x128xbf16>
    %cst_51 = arith.constant dense<0.000000e+00> : vector<8x128xf32>
    %49 = tpu.matmul %46, %48, %cst_51 {dimension_numbers = #tpu.dot_dimension_numbers<[1], [0], [0], [1], [0, 0, 1, 1], [], []>} : vector<8x8xbf16>, vector<8x128xbf16>, vector<8x128xf32> -> vector<8x128xf32>
    %50 = arith.addf %43, %49 : vector<8x128xf32>
    %c0_52 = arith.constant 0 : index
    %c7 = arith.constant 7 : index
    %c0_53 = arith.constant 0 : index
    %c0_54 = arith.constant 0 : index
    %51 = vector.load %arg1[%c0_52, %c7, %c0_53, %c0_54] : memref<1x16x8x8xf32, #tpu.memory_space<vmem>>, vector<1x1x8x8xf32>
    %52 = vector.shape_cast %51 : vector<1x1x8x8xf32> to vector<8x8xf32>
    %53 = arith.truncf %52 : vector<8x8xf32> to vector<8x8xbf16>
    %c3_55 = arith.constant 3 : index
    %c0_56 = arith.constant 0 : index
    %c0_57 = arith.constant 0 : index
    %54 = vector.load %arg3[%c3_55, %c0_56, %c0_57] : memref<4x8x128xbf16, #tpu.memory_space<vmem>>, vector<1x8x128xbf16>
    %55 = vector.shape_cast %54 : vector<1x8x128xbf16> to vector<8x128xbf16>
    %cst_58 = arith.constant dense<0.000000e+00> : vector<8x128xf32>
    %56 = tpu.matmul %53, %55, %cst_58 {dimension_numbers = #tpu.dot_dimension_numbers<[1], [0], [0], [1], [0, 0, 1, 1], [], []>} : vector<8x8xbf16>, vector<8x128xbf16>, vector<8x128xf32> -> vector<8x128xf32>
    %57 = arith.addf %50, %56 : vector<8x128xf32>
    %c1_59 = arith.constant 1 : index
    %c0_60 = arith.constant 0 : index
    %c0_61 = arith.constant 0 : index
    %58 = vector.load %arg2[%c1_59, %c0_60, %c0_61] : memref<4x128x8xbf16, #tpu.memory_space<vmem>>, vector<1x128x8xbf16>
    %59 = vector.shape_cast %58 : vector<1x128x8xbf16> to vector<128x8xbf16>
    %60 = arith.truncf %57 : vector<8x128xf32> to vector<8x128xbf16>
    %cst_62 = arith.constant dense<0.000000e+00> : vector<128x128xf32>
    %61 = tpu.matmul %59, %60, %cst_62 {dimension_numbers = #tpu.dot_dimension_numbers<[1], [0], [0], [1], [0, 0, 1, 1], [], []>} : vector<128x8xbf16>, vector<8x128xbf16>, vector<128x128xf32> -> vector<128x128xf32>
    %62 = arith.addf %30, %61 : vector<128x128xf32>
    %c0_63 = arith.constant 0 : index
    %c8 = arith.constant 8 : index
    %c0_64 = arith.constant 0 : index
    %c0_65 = arith.constant 0 : index
    %63 = vector.load %arg1[%c0_63, %c8, %c0_64, %c0_65] : memref<1x16x8x8xf32, #tpu.memory_space<vmem>>, vector<1x1x8x8xf32>
    %64 = vector.shape_cast %63 : vector<1x1x8x8xf32> to vector<8x8xf32>
    %65 = arith.truncf %64 : vector<8x8xf32> to vector<8x8xbf16>
    %c0_66 = arith.constant 0 : index
    %c0_67 = arith.constant 0 : index
    %c0_68 = arith.constant 0 : index
    %66 = vector.load %arg3[%c0_66, %c0_67, %c0_68] : memref<4x8x128xbf16, #tpu.memory_space<vmem>>, vector<1x8x128xbf16>
    %67 = vector.shape_cast %66 : vector<1x8x128xbf16> to vector<8x128xbf16>
    %cst_69 = arith.constant dense<0.000000e+00> : vector<8x128xf32>
    %68 = tpu.matmul %65, %67, %cst_69 {dimension_numbers = #tpu.dot_dimension_numbers<[1], [0], [0], [1], [0, 0, 1, 1], [], []>} : vector<8x8xbf16>, vector<8x128xbf16>, vector<8x128xf32> -> vector<8x128xf32>
    %c0_70 = arith.constant 0 : index
    %c9 = arith.constant 9 : index
    %c0_71 = arith.constant 0 : index
    %c0_72 = arith.constant 0 : index
    %69 = vector.load %arg1[%c0_70, %c9, %c0_71, %c0_72] : memref<1x16x8x8xf32, #tpu.memory_space<vmem>>, vector<1x1x8x8xf32>
    %70 = vector.shape_cast %69 : vector<1x1x8x8xf32> to vector<8x8xf32>
    %71 = arith.truncf %70 : vector<8x8xf32> to vector<8x8xbf16>
    %c1_73 = arith.constant 1 : index
    %c0_74 = arith.constant 0 : index
    %c0_75 = arith.constant 0 : index
    %72 = vector.load %arg3[%c1_73, %c0_74, %c0_75] : memref<4x8x128xbf16, #tpu.memory_space<vmem>>, vector<1x8x128xbf16>
    %73 = vector.shape_cast %72 : vector<1x8x128xbf16> to vector<8x128xbf16>
    %cst_76 = arith.constant dense<0.000000e+00> : vector<8x128xf32>
    %74 = tpu.matmul %71, %73, %cst_76 {dimension_numbers = #tpu.dot_dimension_numbers<[1], [0], [0], [1], [0, 0, 1, 1], [], []>} : vector<8x8xbf16>, vector<8x128xbf16>, vector<8x128xf32> -> vector<8x128xf32>
    %75 = arith.addf %68, %74 : vector<8x128xf32>
    %c0_77 = arith.constant 0 : index
    %c10 = arith.constant 10 : index
    %c0_78 = arith.constant 0 : index
    %c0_79 = arith.constant 0 : index
    %76 = vector.load %arg1[%c0_77, %c10, %c0_78, %c0_79] : memref<1x16x8x8xf32, #tpu.memory_space<vmem>>, vector<1x1x8x8xf32>
    %77 = vector.shape_cast %76 : vector<1x1x8x8xf32> to vector<8x8xf32>
    %78 = arith.truncf %77 : vector<8x8xf32> to vector<8x8xbf16>
    %c2_80 = arith.constant 2 : index
    %c0_81 = arith.constant 0 : index
    %c0_82 = arith.constant 0 : index
    %79 = vector.load %arg3[%c2_80, %c0_81, %c0_82] : memref<4x8x128xbf16, #tpu.memory_space<vmem>>, vector<1x8x128xbf16>
    %80 = vector.shape_cast %79 : vector<1x8x128xbf16> to vector<8x128xbf16>
    %cst_83 = arith.constant dense<0.000000e+00> : vector<8x128xf32>
    %81 = tpu.matmul %78, %80, %cst_83 {dimension_numbers = #tpu.dot_dimension_numbers<[1], [0], [0], [1], [0, 0, 1, 1], [], []>} : vector<8x8xbf16>, vector<8x128xbf16>, vector<8x128xf32> -> vector<8x128xf32>
    %82 = arith.addf %75, %81 : vector<8x128xf32>
    %c0_84 = arith.constant 0 : index
    %c11 = arith.constant 11 : index
    %c0_85 = arith.constant 0 : index
    %c0_86 = arith.constant 0 : index
    %83 = vector.load %arg1[%c0_84, %c11, %c0_85, %c0_86] : memref<1x16x8x8xf32, #tpu.memory_space<vmem>>, vector<1x1x8x8xf32>
    %84 = vector.shape_cast %83 : vector<1x1x8x8xf32> to vector<8x8xf32>
    %85 = arith.truncf %84 : vector<8x8xf32> to vector<8x8xbf16>
    %c3_87 = arith.constant 3 : index
    %c0_88 = arith.constant 0 : index
    %c0_89 = arith.constant 0 : index
    %86 = vector.load %arg3[%c3_87, %c0_88, %c0_89] : memref<4x8x128xbf16, #tpu.memory_space<vmem>>, vector<1x8x128xbf16>
    %87 = vector.shape_cast %86 : vector<1x8x128xbf16> to vector<8x128xbf16>
    %cst_90 = arith.constant dense<0.000000e+00> : vector<8x128xf32>
    %88 = tpu.matmul %85, %87, %cst_90 {dimension_numbers = #tpu.dot_dimension_numbers<[1], [0], [0], [1], [0, 0, 1, 1], [], []>} : vector<8x8xbf16>, vector<8x128xbf16>, vector<8x128xf32> -> vector<8x128xf32>
    %89 = arith.addf %82, %88 : vector<8x128xf32>
    %c2_91 = arith.constant 2 : index
    %c0_92 = arith.constant 0 : index
    %c0_93 = arith.constant 0 : index
    %90 = vector.load %arg2[%c2_91, %c0_92, %c0_93] : memref<4x128x8xbf16, #tpu.memory_space<vmem>>, vector<1x128x8xbf16>
    %91 = vector.shape_cast %90 : vector<1x128x8xbf16> to vector<128x8xbf16>
    %92 = arith.truncf %89 : vector<8x128xf32> to vector<8x128xbf16>
    %cst_94 = arith.constant dense<0.000000e+00> : vector<128x128xf32>
    %93 = tpu.matmul %91, %92, %cst_94 {dimension_numbers = #tpu.dot_dimension_numbers<[1], [0], [0], [1], [0, 0, 1, 1], [], []>} : vector<128x8xbf16>, vector<8x128xbf16>, vector<128x128xf32> -> vector<128x128xf32>
    %94 = arith.addf %62, %93 : vector<128x128xf32>
    %c0_95 = arith.constant 0 : index
    %c12 = arith.constant 12 : index
    %c0_96 = arith.constant 0 : index
    %c0_97 = arith.constant 0 : index
    %95 = vector.load %arg1[%c0_95, %c12, %c0_96, %c0_97] : memref<1x16x8x8xf32, #tpu.memory_space<vmem>>, vector<1x1x8x8xf32>
    %96 = vector.shape_cast %95 : vector<1x1x8x8xf32> to vector<8x8xf32>
    %97 = arith.truncf %96 : vector<8x8xf32> to vector<8x8xbf16>
    %c0_98 = arith.constant 0 : index
    %c0_99 = arith.constant 0 : index
    %c0_100 = arith.constant 0 : index
    %98 = vector.load %arg3[%c0_98, %c0_99, %c0_100] : memref<4x8x128xbf16, #tpu.memory_space<vmem>>, vector<1x8x128xbf16>
    %99 = vector.shape_cast %98 : vector<1x8x128xbf16> to vector<8x128xbf16>
    %cst_101 = arith.constant dense<0.000000e+00> : vector<8x128xf32>
    %100 = tpu.matmul %97, %99, %cst_101 {dimension_numbers = #tpu.dot_dimension_numbers<[1], [0], [0], [1], [0, 0, 1, 1], [], []>} : vector<8x8xbf16>, vector<8x128xbf16>, vector<8x128xf32> -> vector<8x128xf32>
    %c0_102 = arith.constant 0 : index
    %c13 = arith.constant 13 : index
    %c0_103 = arith.constant 0 : index
    %c0_104 = arith.constant 0 : index
    %101 = vector.load %arg1[%c0_102, %c13, %c0_103, %c0_104] : memref<1x16x8x8xf32, #tpu.memory_space<vmem>>, vector<1x1x8x8xf32>
    %102 = vector.shape_cast %101 : vector<1x1x8x8xf32> to vector<8x8xf32>
    %103 = arith.truncf %102 : vector<8x8xf32> to vector<8x8xbf16>
    %c1_105 = arith.constant 1 : index
    %c0_106 = arith.constant 0 : index
    %c0_107 = arith.constant 0 : index
    %104 = vector.load %arg3[%c1_105, %c0_106, %c0_107] : memref<4x8x128xbf16, #tpu.memory_space<vmem>>, vector<1x8x128xbf16>
    %105 = vector.shape_cast %104 : vector<1x8x128xbf16> to vector<8x128xbf16>
    %cst_108 = arith.constant dense<0.000000e+00> : vector<8x128xf32>
    %106 = tpu.matmul %103, %105, %cst_108 {dimension_numbers = #tpu.dot_dimension_numbers<[1], [0], [0], [1], [0, 0, 1, 1], [], []>} : vector<8x8xbf16>, vector<8x128xbf16>, vector<8x128xf32> -> vector<8x128xf32>
    %107 = arith.addf %100, %106 : vector<8x128xf32>
    %c0_109 = arith.constant 0 : index
    %c14 = arith.constant 14 : index
    %c0_110 = arith.constant 0 : index
    %c0_111 = arith.constant 0 : index
    %108 = vector.load %arg1[%c0_109, %c14, %c0_110, %c0_111] : memref<1x16x8x8xf32, #tpu.memory_space<vmem>>, vector<1x1x8x8xf32>
    %109 = vector.shape_cast %108 : vector<1x1x8x8xf32> to vector<8x8xf32>
    %110 = arith.truncf %109 : vector<8x8xf32> to vector<8x8xbf16>
    %c2_112 = arith.constant 2 : index
    %c0_113 = arith.constant 0 : index
    %c0_114 = arith.constant 0 : index
    %111 = vector.load %arg3[%c2_112, %c0_113, %c0_114] : memref<4x8x128xbf16, #tpu.memory_space<vmem>>, vector<1x8x128xbf16>
    %112 = vector.shape_cast %111 : vector<1x8x128xbf16> to vector<8x128xbf16>
    %cst_115 = arith.constant dense<0.000000e+00> : vector<8x128xf32>
    %113 = tpu.matmul %110, %112, %cst_115 {dimension_numbers = #tpu.dot_dimension_numbers<[1], [0], [0], [1], [0, 0, 1, 1], [], []>} : vector<8x8xbf16>, vector<8x128xbf16>, vector<8x128xf32> -> vector<8x128xf32>
    %114 = arith.addf %107, %113 : vector<8x128xf32>
    %c0_116 = arith.constant 0 : index
    %c15 = arith.constant 15 : index
    %c0_117 = arith.constant 0 : index
    %c0_118 = arith.constant 0 : index
    %115 = vector.load %arg1[%c0_116, %c15, %c0_117, %c0_118] : memref<1x16x8x8xf32, #tpu.memory_space<vmem>>, vector<1x1x8x8xf32>
    %116 = vector.shape_cast %115 : vector<1x1x8x8xf32> to vector<8x8xf32>
    %117 = arith.truncf %116 : vector<8x8xf32> to vector<8x8xbf16>
    %c3_119 = arith.constant 3 : index
    %c0_120 = arith.constant 0 : index
    %c0_121 = arith.constant 0 : index
    %118 = vector.load %arg3[%c3_119, %c0_120, %c0_121] : memref<4x8x128xbf16, #tpu.memory_space<vmem>>, vector<1x8x128xbf16>
    %119 = vector.shape_cast %118 : vector<1x8x128xbf16> to vector<8x128xbf16>
    %cst_122 = arith.constant dense<0.000000e+00> : vector<8x128xf32>
    %120 = tpu.matmul %117, %119, %cst_122 {dimension_numbers = #tpu.dot_dimension_numbers<[1], [0], [0], [1], [0, 0, 1, 1], [], []>} : vector<8x8xbf16>, vector<8x128xbf16>, vector<8x128xf32> -> vector<8x128xf32>
    %121 = arith.addf %114, %120 : vector<8x128xf32>
    %c3_123 = arith.constant 3 : index
    %c0_124 = arith.constant 0 : index
    %c0_125 = arith.constant 0 : index
    %122 = vector.load %arg2[%c3_123, %c0_124, %c0_125] : memref<4x128x8xbf16, #tpu.memory_space<vmem>>, vector<1x128x8xbf16>
    %123 = vector.shape_cast %122 : vector<1x128x8xbf16> to vector<128x8xbf16>
    %124 = arith.truncf %121 : vector<8x128xf32> to vector<8x128xbf16>
    %cst_126 = arith.constant dense<0.000000e+00> : vector<128x128xf32>
    %125 = tpu.matmul %123, %124, %cst_126 {dimension_numbers = #tpu.dot_dimension_numbers<[1], [0], [0], [1], [0, 0, 1, 1], [], []>} : vector<128x8xbf16>, vector<8x128xbf16>, vector<128x128xf32> -> vector<128x128xf32>
    %126 = arith.addf %94, %125 : vector<128x128xf32>
    %c0_127 = arith.constant 0 : index
    %c0_128 = arith.constant 0 : index
    %c0_129 = arith.constant 0 : index
    %127 = vector.load %arg4[%c0_127, %c0_128, %c0_129] : memref<1x128x128xf32, #tpu.memory_space<vmem>>, vector<1x128x128xf32>
    %128 = vector.shape_cast %127 : vector<1x128x128xf32> to vector<128x128xf32>
    %129 = vector.shape_cast %126 : vector<128x128xf32> to vector<1x128x128xf32>
    tpu.vector_store %arg4[%c0_127, %c0_128, %c0_129], %129 {strides = array<i32>} : memref<1x128x128xf32, #tpu.memory_space<vmem>>, vector<1x128x128xf32>,
    return
  }
  func.func @transform_0(%arg0: i32) -> (i32, i32, i32, i32) {
    %c0_i32 = arith.constant 0 : i32
    %c0_i32_0 = arith.constant 0 : i32
    %c0_i32_1 = arith.constant 0 : i32
    %c0_i32_2 = arith.constant 0 : i32
    return %arg0, %c0_i32, %c0_i32_0, %c0_i32_1 : i32, i32, i32, i32
  }
  func.func @transform_1(%arg0: i32) -> (i32, i32, i32) {
    %c0_i32 = arith.constant 0 : i32
    %c0_i32_0 = arith.constant 0 : i32
    %c0_i32_1 = arith.constant 0 : i32
    %c0_i32_2 = arith.constant 0 : i32
    return %c0_i32, %c0_i32_0, %c0_i32_1 : i32, i32, i32
  }
  func.func @transform_2(%arg0: i32) -> (i32, i32, i32) {
    %c0_i32 = arith.constant 0 : i32
    %c0_i32_0 = arith.constant 0 : i32
    %c0_i32_1 = arith.constant 0 : i32
    %c0_i32_2 = arith.constant 0 : i32
    return %c0_i32, %c0_i32_0, %c0_i32_1 : i32, i32, i32
  }
  func.func @transform_3(%arg0: i32) -> (i32, i32, i32) {
    %c0_i32 = arith.constant 0 : i32
    %c0_i32_0 = arith.constant 0 : i32
    %c0_i32_1 = arith.constant 0 : i32
    return %arg0, %c0_i32, %c0_i32_0 : i32, i32, i32
  }
}

</mosaic_0001>

<llo_original>
// kernel: forward.3
$region0: #{forward.3}
  #allocation0 [shape = 'u32[]', space=smem, size = 0x4, offset = 0x4, fixed_abs, tag = 'smem constant byte address 0x4 - core index']
  #allocation1 [shape = 'u32[72,128]{1,0:T(1,128)}', space=vmem, size = 0x9000, scoped, tag = 'internal scratch']
  %s0 = inlined_call_operand.vmem [shape: f32[2,16,8,8], index: 0, kind: input, shape index: {}]
  %s1 = inlined_call_operand.vmem [shape: bf16[4,128,8], index: 1, kind: input, shape index: {}]
  %s2 = inlined_call_operand.vmem [shape: bf16[4,8,128], index: 2, kind: input, shape index: {}]
  %s3 = inlined_call_operand.vmem [shape: f32[2,128,128], index: 3, kind: output, shape index: {}]
  %s4 = sld [smem:[#allocation0]]
  $region45: #{forward.3} parent=0
    _
  %s6 = ssub.s32 1, %s4
  %s7 = scalar_select 0, %s6, %s4
  loop: start=0, step=1, limit=4
  $region2: #{forward.3} parent=0 // loop_pre_header
    _
  $region3: #{forward.3} parent=0 // loop_header
    %s9 = sphi 0, %s13
    %p10 = scmp.ge.s32.totalorder %s9, 4
    %s19 = sphi 0, %s21
    %s22 = sphi 0, %s19
    %s23 = sphi 0, %s22
    %s39 = sphi 0, %s23
    %s43 = sphi 0, %s43
    %s45 = sphi 0, %s43
    %s46 = sphi 0, %s45
    %s60 = sphi 0, %s46
    %s64 = sphi 0, %s64
    %s66 = sphi 0, %s64
    %s67 = sphi 0, %s66
    %s81 = sphi 0, %s67
    %s87 = sphi 0, %s89
    %s90 = sphi 0, %s87
    %s91 = sphi 0, %s90
    %s107 = sphi 0, %s91
  $region4: #{forward.3} parent=0 // loop_header_branch
    %12 = sbr.rel (%p10) target = $region8
  $region5: #{forward.3} parent=0 // loop_body
    %s14 = ssub.s32 %s9, 1
    %s15 = ssub.s32 %s9, 2
    %s16 = sadd.s32 %s9, 1
    %s17 = ssub.s32 %s9, %s16
    %p18 = scmp.eq.s32.totalorder %s17, 0
    %s20 = sadd.s32 %s19, 1
    %s21 = scalar_select %p18, %s19, %s20
    %p24 = pneg %p18
    %p25 = scmp.eq.s32.totalorder %s9, 1
    %p26 = por %p24, %p25
    %p27 = scmp.ne.s32.totalorder %s19, %s22
    %p28 = scmp.eq.s32.totalorder %s9, 0
    %p29 = por %p27, %p28
    %p30 = scmp.ne.s32.totalorder %s19, %s22
    %p31 = scmp.eq.s32.totalorder %s14, 1
    %p32 = por %p30, %p31
    %p33 = scmp.ne.s32.totalorder %s22, %s23
    %p34 = scmp.eq.s32.totalorder %s14, 0
    %p35 = por %p33, %p34
    %p36 = scmp.ne.s32.totalorder %s22, %s23
    %p37 = scmp.eq.s32.totalorder %s15, 1
    %p38 = por %p36, %p37
    %p40 = scmp.ne.s32.totalorder %s23, %s39
    %p41 = scmp.eq.s32.totalorder %s15, 0
    %p42 = por %p40, %p41
    %s44 = sadd.s32 %s43, 1
    %p47 = scmp.eq.s32.totalorder %s9, 1
    %p48 = scmp.ne.s32.totalorder %s43, %s45
    %p49 = scmp.eq.s32.totalorder %s9, 0
    %p50 = por %p48, %p49
    %p51 = scmp.ne.s32.totalorder %s43, %s45
    %p52 = scmp.eq.s32.totalorder %s14, 1
    %p53 = por %p51, %p52
    %p54 = scmp.ne.s32.totalorder %s45, %s46
    %p55 = scmp.eq.s32.totalorder %s14, 0
    %p56 = por %p54, %p55
    %p57 = scmp.ne.s32.totalorder %s45, %s46
    %p58 = scmp.eq.s32.totalorder %s15, 1
    %p59 = por %p57, %p58
    %p61 = scmp.ne.s32.totalorder %s46, %s60
    %p62 = scmp.eq.s32.totalorder %s15, 0
    %p63 = por %p61, %p62
    %s65 = sadd.s32 %s64, 1
    %p68 = scmp.eq.s32.totalorder %s9, 1
    %p69 = scmp.ne.s32.totalorder %s64, %s66
    %p70 = scmp.eq.s32.totalorder %s9, 0
    %p71 = por %p69, %p70
    %p72 = scmp.ne.s32.totalorder %s64, %s66
    %p73 = scmp.eq.s32.totalorder %s14, 1
    %p74 = por %p72, %p73
    %p75 = scmp.ne.s32.totalorder %s66, %s67
    %p76 = scmp.eq.s32.totalorder %s14, 0
    %p77 = por %p75, %p76
    %p78 = scmp.ne.s32.totalorder %s66, %s67
    %p79 = scmp.eq.s32.totalorder %s15, 1
    %p80 = por %p78, %p79
    %p82 = scmp.ne.s32.totalorder %s67, %s81
    %p83 = scmp.eq.s32.totalorder %s15, 0
    %p84 = por %p82, %p83
    %s85 = ssub.s32 %s9, %s16
    %p86 = scmp.eq.s32.totalorder %s85, 0
    %s88 = sadd.s32 %s87, 1
    %s89 = scalar_select %p86, %s87, %s88
    %p92 = pneg %p86
    %p93 = scmp.eq.s32.totalorder %s9, 1
    %p94 = por %p92, %p93
    %p95 = scmp.ne.s32.totalorder %s87, %s90
    %p96 = scmp.eq.s32.totalorder %s9, 0
    %p97 = por %p95, %p96
    %p98 = scmp.ne.s32.totalorder %s87, %s90
    %p99 = scmp.eq.s32.totalorder %s14, 1
    %p100 = por %p98, %p99
    %p101 = scmp.ne.s32.totalorder %s90, %s91
    %p102 = scmp.eq.s32.totalorder %s14, 0
    %p103 = por %p101, %p102
    %p104 = scmp.ne.s32.totalorder %s90, %s91
    %p105 = scmp.eq.s32.totalorder %s15, 1
    %p106 = por %p104, %p105
    %p108 = scmp.ne.s32.totalorder %s91, %s107
    %p109 = scmp.eq.s32.totalorder %s15, 0
    %p110 = por %p108, %p109
    %p111 = scmp.le.s32.totalorder 1, %s9
    %p112 = scmp.lt.s32.totalorder %s9, 3
    %p113 = pnand %p111, %p112
    %p114 = pneg %p113
    // Predicated region
    $region9: #{forward.3} parent=5 // pred_check
      _
    $region10: #{forward.3} parent=5 // pred_check_branch
      %116 = sbr.rel (%p113) target = $region12
    $region11: #{forward.3} parent=5 // pred_region
      %s117 = ssub.s32 %s9, 1
      // Predicated region
      $region13: #{forward.3} parent=11 // pred_check
        %p118 = pneg %p56
      $region14: #{forward.3} parent=11 // pred_check_branch
        %120 = sbr.rel (%p118) target = $region16
      $region15: #{forward.3} parent=11 // pred_region
        _
      $region16: #{forward.3} parent=11 // pred_fallthru
        _
      // Predicated region
      $region17: #{forward.3} parent=11 // pred_check
        %p121 = pneg %p77
      $region18: #{forward.3} parent=11 // pred_check_branch
        %123 = sbr.rel (%p121) target = $region20
      $region19: #{forward.3} parent=11 // pred_region
        _
      $region20: #{forward.3} parent=11 // pred_fallthru
        _
    $region12: #{forward.3} parent=5 // pred_fallthru
      _
    %p124 = scmp.lt.s32.totalorder %s9, 2
    // Predicated region
    $region21: #{forward.3} parent=5 // pred_check
      %p125 = pneg %p124
    $region22: #{forward.3} parent=5 // pred_check_branch
      %127 = sbr.rel (%p125) target = $region24
    $region23: #{forward.3} parent=5 // pred_region
      // Predicated region
      $region25: #{forward.3} parent=23 // pred_check
        %p128 = pneg %p29
      $region26: #{forward.3} parent=23 // pred_check_branch
        %130 = sbr.rel (%p128) target = $region28
      $region27: #{forward.3} parent=23 // pred_region
        %p131 = scmp.lt.s32.totalorder %s9, 1
        %s132 = scalar_select %p131, %s9, 1
        %s133 = smul.addr %s132, 16
        %s134 = smul.addr %s133, 8
        %s135 = scalar_lea.vmem %s0, %s134
      $region28: #{forward.3} parent=23 // pred_fallthru
        _
    $region24: #{forward.3} parent=5 // pred_fallthru
      _
    %p136 = scmp.le.s32.totalorder 1, %s9
    %p137 = scmp.lt.s32.totalorder %s9, 3
    %p138 = pnand %p136, %p137
    %p139 = pneg %p138
    // Predicated region
    $region29: #{forward.3} parent=5 // pred_check
      _
    $region30: #{forward.3} parent=5 // pred_check_branch
      %141 = sbr.rel (%p138) target = $region32
    $region31: #{forward.3} parent=5 // pred_region
      %s142 = ssub.s32 %s9, 1
      %p143 = scmp.lt.s32.totalorder %s14, 1
      %s144 = scalar_select %p143, %s14, 1
      %s145 = smul.addr %s144, 16
      %s146 = smul.addr %s145, 8
      %s147 = scalar_lea.vmem %s0, %s146
      %p148 = pneg %p35
      %p149 = pneg %p32
      %p150 = pneg %p56
      %p151 = pneg %p53
      %p152 = pneg %p77
      %p153 = pneg %p74
      %p154 = pneg %p103
      %p155 = pneg %p100
      %p156 = scmp.lt.s32.totalorder %s14, 1
      %s157 = scalar_select %p156, %s14, 1
      %s158 = smul.addr %s157, 16
      %s159 = smul.addr %s158, 8
      %s160 = scalar_lea.vmem %s3, %s159
      %p161 = scmp.lt.s32.totalorder %s14, 1
      %s162 = scalar_select %p161, %s14, 1
      %s163 = smul.addr %s162, 16
      %s164 = smul.addr %s163, 8
      %s165 = scalar_lea.vmem %s0, %s164
      %p166 = scmp.lt.s32.totalorder %s14, 1
      %s167 = scalar_select %p166, %s14, 1
      %s168 = smul.addr %s167, 16
      %s169 = smul.addr %s168, 8
      %s170 = scalar_lea.vmem %s3, %s169
      %v172 = vld [vmem:[%s165] sm:$0xff]
      %v173 = vpack.c.bf16 %v172, %v172
      %v174 = vld [vmem:[%s2] sm:$0xf]
      %s175 = scalar_lea.vmem %s165, 8
      %v176 = vld [vmem:[%s175] sm:$0xff]
      %v177 = vpack.c.bf16 %v176, %v176
      %s178 = scalar_lea.vmem %s2, 4
      %v179 = vld [vmem:[%s178] sm:$0xf]
      %vm180 = vcmask 64512
      %v182 = vsel %vm180, %v177, 0
      %vm184 = vcmask 1043456
      %v186 = vsel %vm184, %v179, 0
      %188 = vmatpush.bf16.msra.mxu0 0
      %189 = vmatpush.bf16.msra.mxu0 0
      %190 = vmatpush.bf16.msra.mxu0 0
      %191 = vmatpush.bf16.msra.mxu0 0
      %192 = vmatpush.bf16.msra.mxu0 0
      %193 = vmatpush.bf16.msra.mxu0 0
      %194 = vmatpush.bf16.msra.mxu0 0
      %195 = vmatpush.bf16.msra.mxu0 %v186
      %196 = vmatmul.bf16.gmra.mxu0 %v182
      %v197 = vpop.f32.mrf.mxu0
      %v198 = vadd.f32 0.0, %v197
      %v199 = vpop.f32.mrf.mxu0
      %200 = vdwg.mxu0
      %v202 = vsel %vm180, %v173, 0
      %v205 = vsel %vm184, %v174, 0
      %207 = vmatpush.bf16.msra.mxu0 0
      %208 = vmatpush.bf16.msra.mxu0 0
      %209 = vmatpush.bf16.msra.mxu0 0
      %210 = vmatpush.bf16.msra.mxu0 0
      %211 = vmatpush.bf16.msra.mxu0 0
      %212 = vmatpush.bf16.msra.mxu0 0
      %213 = vmatpush.bf16.msra.mxu0 0
      %214 = vmatpush.bf16.msra.mxu0 %v205
      %215 = vmatmul.bf16.gmra.mxu0 %v202
      %v216 = vpop.f32.mrf.mxu0
      %v217 = vadd.f32 %v198, %v216
      %v218 = vpop.f32.mrf.mxu0
      %219 = vdwg.mxu0
      %s220 = scalar_lea.vmem %s165, 16
      %v221 = vld [vmem:[%s220] sm:$0xff]
      %v222 = vpack.c.bf16 %v221, %v221
      %s223 = scalar_lea.vmem %s2, 8
      %v224 = vld [vmem:[%s223] sm:$0xf]
      %v226 = vsel %vm180, %v222, 0
      %v229 = vsel %vm184, %v224, 0
      %231 = vmatpush.bf16.msra.mxu0 0
      %232 = vmatpush.bf16.msra.mxu0 0
      %233 = vmatpush.bf16.msra.mxu0 0
      %234 = vmatpush.bf16.msra.mxu0 0
      %235 = vmatpush.bf16.msra.mxu0 0
      %236 = vmatpush.bf16.msra.mxu0 0
      %237 = vmatpush.bf16.msra.mxu0 0
      %238 = vmatpush.bf16.msra.mxu0 %v229
      %239 = vmatmul.bf16.gmra.mxu0 %v226
      %v240 = vpop.f32.mrf.mxu0
      %v241 = vadd.f32 0.0, %v240
      %v242 = vpop.f32.mrf.mxu0
      %243 = vdwg.mxu0
      %v244 = vadd.f32 %v217, %v241
      %s245 = scalar_lea.vmem %s165, 24
      %v246 = vld [vmem:[%s245] sm:$0xff]
      %v247 = vpack.c.bf16 %v246, %v246
      %s248 = scalar_lea.vmem %s2, 12
      %v249 = vld [vmem:[%s248] sm:$0xf]
      %v251 = vsel %vm180, %v247, 0
      %v254 = vsel %vm184, %v249, 0
      %256 = vmatpush.bf16.msra.mxu0 0
      %257 = vmatpush.bf16.msra.mxu0 0
      %258 = vmatpush.bf16.msra.mxu0 0
      %259 = vmatpush.bf16.msra.mxu0 0
      %260 = vmatpush.bf16.msra.mxu0 0
      %261 = vmatpush.bf16.msra.mxu0 0
      %262 = vmatpush.bf16.msra.mxu0 0
      %263 = vmatpush.bf16.msra.mxu0 %v254
      %264 = vmatmul.bf16.gmra.mxu0 %v251
      %v265 = vpop.f32.mrf.mxu0
      %v266 = vadd.f32 0.0, %v265
      %v267 = vpop.f32.mrf.mxu0
      %268 = vdwg.mxu0
      %v269 = vadd.f32 %v244, %v266
      %v270 = vld [vmem:[%s1] sm:$0xf]
      %v271 = vld [vmem:[%s1 + $0x4] sm:$0xf]
      %v272 = vld [vmem:[%s1 + $0x8] sm:$0xf]
      %v273 = vld [vmem:[%s1 + $0xc] sm:$0xf]
      %v274 = vld [vmem:[%s1 + $0x10] sm:$0xf]
      %v275 = vld [vmem:[%s1 + $0x14] sm:$0xf]
      %v276 = vld [vmem:[%s1 + $0x18] sm:$0xf]
      %v277 = vld [vmem:[%s1 + $0x1c] sm:$0xf]
      %v278 = vld [vmem:[%s1 + $0x20] sm:$0xf]
      %v279 = vld [vmem:[%s1 + $0x24] sm:$0xf]
      %v280 = vld [vmem:[%s1 + $0x28] sm:$0xf]
      %v281 = vld [vmem:[%s1 + $0x2c] sm:$0xf]
      %v282 = vld [vmem:[%s1 + $0x30] sm:$0xf]
      %v283 = vld [vmem:[%s1 + $0x34] sm:$0xf]
      %v284 = vld [vmem:[%s1 + $0x38] sm:$0xf]
      %v285 = vld [vmem:[%s1 + $0x3c] sm:$0xf]
      %v286 = vpack.c.bf16 %v269, %v269
      %s287 = scalar_lea.vmem %s165, 32
      %v288 = vld [vmem:[%s287] sm:$0xff]
      %v289 = vpack.c.bf16 %v288, %v288
      %s290 = scalar_lea.vmem %s165, 40
      %v291 = vld [vmem:[%s290] sm:$0xff]
      %v292 = vpack.c.bf16 %v291, %v291
      %v294 = vsel %vm180, %v292, 0
      %296 = vmatpush.bf16.msra.mxu0 0
      %297 = vmatpush.bf16.msra.mxu0 0
      %298 = vmatpush.bf16.msra.mxu0 0
      %299 = vmatpush.bf16.msra.mxu0 0
      %300 = vmatpush.bf16.msra.mxu0 0
      %301 = vmatpush.bf16.msra.mxu0 0
      %302 = vmatpush.bf16.msra.mxu0 0
      %303 = vmatpush.bf16.msra.mxu0 %v186
      %304 = vmatmul.bf16.gmra.mxu0 %v294
      %v305 = vpop.f32.mrf.mxu0
      %v306 = vadd.f32 0.0, %v305
      %v307 = vpop.f32.mrf.mxu0
      %308 = vdwg.mxu0
      %v310 = vsel %vm180, %v289, 0
      %312 = vmatpush.bf16.msra.mxu0 0
      %313 = vmatpush.bf16.msra.mxu0 0
      %314 = vmatpush.bf16.msra.mxu0 0
      %315 = vmatpush.bf16.msra.mxu0 0
      %316 = vmatpush.bf16.msra.mxu0 0
      %317 = vmatpush.bf16.msra.mxu0 0
      %318 = vmatpush.bf16.msra.mxu0 0
      %319 = vmatpush.bf16.msra.mxu0 %v205
      %320 = vmatmul.bf16.gmra.mxu0 %v310
      %v321 = vpop.f32.mrf.mxu0
      %v322 = vadd.f32 %v306, %v321
      %v323 = vpop.f32.mrf.mxu0
      %324 = vdwg.mxu0
      %s325 = scalar_lea.vmem %s165, 48
      %v326 = vld [vmem:[%s325] sm:$0xff]
      %v327 = vpack.c.bf16 %v326, %v326
      %v329 = vsel %vm180, %v327, 0
      %331 = vmatpush.bf16.msra.mxu0 0
      %332 = vmatpush.bf16.msra.mxu0 0
      %333 = vmatpush.bf16.msra.mxu0 0
      %334 = vmatpush.bf16.msra.mxu0 0
      %335 = vmatpush.bf16.msra.mxu0 0
      %336 = vmatpush.bf16.msra.mxu0 0
      %337 = vmatpush.bf16.msra.mxu0 0
      %338 = vmatpush.bf16.msra.mxu0 %v229
      %339 = vmatmul.bf16.gmra.mxu0 %v329
      %v340 = vpop.f32.mrf.mxu0
      %v341 = vadd.f32 0.0, %v340
      %v342 = vpop.f32.mrf.mxu0
      %343 = vdwg.mxu0
      %v344 = vadd.f32 %v322, %v341
      %s345 = scalar_lea.vmem %s165, 56
      %v346 = vld [vmem:[%s345] sm:$0xff]
      %v347 = vpack.c.bf16 %v346, %v346
      %v349 = vsel %vm180, %v347, 0
      %351 = vmatpush.bf16.msra.mxu0 0
      %352 = vmatpush.bf16.msra.mxu0 0
      %353 = vmatpush.bf16.msra.mxu0 0
      %354 = vmatpush.bf16.msra.mxu0 0
      %355 = vmatpush.bf16.msra.mxu0 0
      %356 = vmatpush.bf16.msra.mxu0 0
      %357 = vmatpush.bf16.msra.mxu0 0
      %358 = vmatpush.bf16.msra.mxu0 %v254
      %359 = vmatmul.bf16.gmra.mxu0 %v349
      %v360 = vpop.f32.mrf.mxu0
      %v361 = vadd.f32 0.0, %v360
      %v362 = vpop.f32.mrf.mxu0
      %363 = vdwg.mxu0
      %v364 = vadd.f32 %v344, %v361
      %s365 = scalar_lea.vmem %s1, 64
      %v366 = vld [vmem:[%s365] sm:$0xf]
      %v367 = vld [vmem:[%s365 + $0x4] sm:$0xf]
      %v368 = vld [vmem:[%s365 + $0x8] sm:$0xf]
      %v369 = vld [vmem:[%s365 + $0xc] sm:$0xf]
      %v370 = vld [vmem:[%s365 + $0x10] sm:$0xf]
      %v371 = vld [vmem:[%s365 + $0x14] sm:$0xf]
      %v372 = vld [vmem:[%s365 + $0x18] sm:$0xf]
      %v373 = vld [vmem:[%s365 + $0x1c] sm:$0xf]
      %v374 = vld [vmem:[%s365 + $0x20] sm:$0xf]
      %v375 = vld [vmem:[%s365 + $0x24] sm:$0xf]
      %v376 = vld [vmem:[%s365 + $0x28] sm:$0xf]
      %v377 = vld [vmem:[%s365 + $0x2c] sm:$0xf]
      %v378 = vld [vmem:[%s365 + $0x30] sm:$0xf]
      %v379 = vld [vmem:[%s365 + $0x34] sm:$0xf]
      %v380 = vld [vmem:[%s365 + $0x38] sm:$0xf]
      %v381 = vld [vmem:[%s365 + $0x3c] sm:$0xf]
      %v382 = vpack.c.bf16 %v364, %v364
      %v399 = vunpack.c.l.b16 %v366
      %v400 = vunpack.c.l.b16 %v367
      %v401 = vunpack.c.l.b16 %v368
      %v402 = vunpack.c.l.b16 %v369
      %v403 = vunpack.c.l.b16 %v370
      %v404 = vunpack.c.l.b16 %v371
      %v405 = vunpack.c.l.b16 %v372
      %v406 = vunpack.c.l.b16 %v373
      %v407 = vunpack.c.l.b16 %v374
      %v408 = vunpack.c.l.b16 %v375
      %v409 = vunpack.c.l.b16 %v376
      %v410 = vunpack.c.l.b16 %v377
      %v411 = vunpack.c.l.b16 %v378
      %v412 = vunpack.c.l.b16 %v379
      %v413 = vunpack.c.l.b16 %v380
      %v414 = vunpack.c.l.b16 %v381
      %v415 = vpack.c.b16 %v400, %v399
      %v416 = vpack.c.b16 %v402, %v401
      %v417 = vpack.c.b16 %v404, %v403
      %v418 = vpack.c.b16 %v406, %v405
      %v419 = vpack.c.b16 %v408, %v407
      %v420 = vpack.c.b16 %v410, %v409
      %v421 = vpack.c.b16 %v412, %v411
      %v422 = vpack.c.b16 %v414, %v413
      %v424 = vsel %vm180, %v415, 0
      %v427 = vsel %vm180, %v416, 0
      %v430 = vsel %vm180, %v417, 0
      %v433 = vsel %vm180, %v418, 0
      %v436 = vsel %vm180, %v419, 0
      %v439 = vsel %vm180, %v420, 0
      %v442 = vsel %vm180, %v421, 0
      %v445 = vsel %vm180, %v422, 0
      %v448 = vsel %vm184, %v382, 0
      %450 = vmatpush.bf16.msra.mxu0 0
      %451 = vmatpush.bf16.msra.mxu0 0
      %452 = vmatpush.bf16.msra.mxu0 0
      %453 = vmatpush.bf16.msra.mxu0 0
      %454 = vmatpush.bf16.msra.mxu0 0
      %455 = vmatpush.bf16.msra.mxu0 0
      %456 = vmatpush.bf16.msra.mxu0 0
      %457 = vmatpush.bf16.msra.mxu0 %v448
      %458 = vmatmul.bf16.gmra.mxu0 %v424
      %v459 = vpop.f32.mrf.mxu0
      %v460 = vadd.f32 0.0, %v459
      %v461 = vpop.f32.mrf.mxu0
      %v462 = vadd.f32 0.0, %v461
      %463 = vmatmul.bf16.gmra.mxu0 %v427
      %v464 = vpop.f32.mrf.mxu0
      %v465 = vadd.f32 0.0, %v464
      %v466 = vpop.f32.mrf.mxu0
      %v467 = vadd.f32 0.0, %v466
      %468 = vmatmul.bf16.gmra.mxu0 %v430
      %v469 = vpop.f32.mrf.mxu0
      %v470 = vadd.f32 0.0, %v469
      %v471 = vpop.f32.mrf.mxu0
      %v472 = vadd.f32 0.0, %v471
      %473 = vmatmul.bf16.gmra.mxu0 %v433
      %v474 = vpop.f32.mrf.mxu0
      %v475 = vadd.f32 0.0, %v474
      %v476 = vpop.f32.mrf.mxu0
      %v477 = vadd.f32 0.0, %v476
      %478 = vmatmul.bf16.gmra.mxu0 %v436
      %v479 = vpop.f32.mrf.mxu0
      %v480 = vadd.f32 0.0, %v479
      %v481 = vpop.f32.mrf.mxu0
      %v482 = vadd.f32 0.0, %v481
      %483 = vmatmul.bf16.gmra.mxu0 %v439
      %v484 = vpop.f32.mrf.mxu0
      %v485 = vadd.f32 0.0, %v484
      %v486 = vpop.f32.mrf.mxu0
      %v487 = vadd.f32 0.0, %v486
      %488 = vmatmul.bf16.gmra.mxu0 %v442
      %v489 = vpop.f32.mrf.mxu0
      %v490 = vadd.f32 0.0, %v489
      %v491 = vpop.f32.mrf.mxu0
      %v492 = vadd.f32 0.0, %v491
      %493 = vmatmul.bf16.gmra.mxu0 %v445
      %v494 = vpop.f32.mrf.mxu0
      %v495 = vadd.f32 0.0, %v494
      %v496 = vpop.f32.mrf.mxu0
      %v497 = vadd.f32 0.0, %v496
      %498 = vdwg.mxu0
      %v515 = vunpack.c.l.b16 %v270
      %v516 = vunpack.c.l.b16 %v271
      %v517 = vunpack.c.l.b16 %v272
      %v518 = vunpack.c.l.b16 %v273
      %v519 = vunpack.c.l.b16 %v274
      %v520 = vunpack.c.l.b16 %v275
      %v521 = vunpack.c.l.b16 %v276
      %v522 = vunpack.c.l.b16 %v277
      %v523 = vunpack.c.l.b16 %v278
      %v524 = vunpack.c.l.b16 %v279
      %v525 = vunpack.c.l.b16 %v280
      %v526 = vunpack.c.l.b16 %v281
      %v527 = vunpack.c.l.b16 %v282
      %v528 = vunpack.c.l.b16 %v283
      %v529 = vunpack.c.l.b16 %v284
      %v530 = vunpack.c.l.b16 %v285
      %v531 = vpack.c.b16 %v516, %v515
      %v532 = vpack.c.b16 %v518, %v517
      %v533 = vpack.c.b16 %v520, %v519
      %v534 = vpack.c.b16 %v522, %v521
      %v535 = vpack.c.b16 %v524, %v523
      %v536 = vpack.c.b16 %v526, %v525
      %v537 = vpack.c.b16 %v528, %v527
      %v538 = vpack.c.b16 %v530, %v529
      %v540 = vsel %vm180, %v531, 0
      %v543 = vsel %vm180, %v532, 0
      %v546 = vsel %vm180, %v533, 0
      %v549 = vsel %vm180, %v534, 0
      %v552 = vsel %vm180, %v535, 0
      %v555 = vsel %vm180, %v536, 0
      %v558 = vsel %vm180, %v537, 0
      %v561 = vsel %vm180, %v538, 0
      %v564 = vsel %vm184, %v286, 0
      %566 = vmatpush.bf16.msra.mxu0 0
      %567 = vmatpush.bf16.msra.mxu0 0
      %568 = vmatpush.bf16.msra.mxu0 0
      %569 = vmatpush.bf16.msra.mxu0 0
      %570 = vmatpush.bf16.msra.mxu0 0
      %571 = vmatpush.bf16.msra.mxu0 0
      %572 = vmatpush.bf16.msra.mxu0 0
      %573 = vmatpush.bf16.msra.mxu0 %v564
      %574 = vmatmul.bf16.gmra.mxu0 %v540
      %v575 = vpop.f32.mrf.mxu0
      %v576 = vadd.f32 %v460, %v575
      %v577 = vpop.f32.mrf.mxu0
      %v578 = vadd.f32 %v462, %v577
      %579 = vmatmul.bf16.gmra.mxu0 %v543
      %v580 = vpop.f32.mrf.mxu0
      %v581 = vadd.f32 %v465, %v580
      %v582 = vpop.f32.mrf.mxu0
      %v583 = vadd.f32 %v467, %v582
      %584 = vmatmul.bf16.gmra.mxu0 %v546
      %v585 = vpop.f32.mrf.mxu0
      %v586 = vadd.f32 %v470, %v585
      %v587 = vpop.f32.mrf.mxu0
      %v588 = vadd.f32 %v472, %v587
      %589 = vmatmul.bf16.gmra.mxu0 %v549
      %v590 = vpop.f32.mrf.mxu0
      %v591 = vadd.f32 %v475, %v590
      %v592 = vpop.f32.mrf.mxu0
      %v593 = vadd.f32 %v477, %v592
      %594 = vmatmul.bf16.gmra.mxu0 %v552
      %v595 = vpop.f32.mrf.mxu0
      %v596 = vadd.f32 %v480, %v595
      %v597 = vpop.f32.mrf.mxu0
      %v598 = vadd.f32 %v482, %v597
      %599 = vmatmul.bf16.gmra.mxu0 %v555
      %v600 = vpop.f32.mrf.mxu0
      %v601 = vadd.f32 %v485, %v600
      %v602 = vpop.f32.mrf.mxu0
      %v603 = vadd.f32 %v487, %v602
      %604 = vmatmul.bf16.gmra.mxu0 %v558
      %v605 = vpop.f32.mrf.mxu0
      %v606 = vadd.f32 %v490, %v605
      %v607 = vpop.f32.mrf.mxu0
      %v608 = vadd.f32 %v492, %v607
      %609 = vmatmul.bf16.gmra.mxu0 %v561
      %v610 = vpop.f32.mrf.mxu0
      %v611 = vadd.f32 %v495, %v610
      %v612 = vpop.f32.mrf.mxu0
      %v613 = vadd.f32 %v497, %v612
      %614 = vdwg.mxu0
      %s615 = scalar_lea.vmem %s165, 64
      %v616 = vld [vmem:[%s615] sm:$0xff]
      %v617 = vpack.c.bf16 %v616, %v616
      %s618 = scalar_lea.vmem %s165, 72
      %v619 = vld [vmem:[%s618] sm:$0xff]
      %v620 = vpack.c.bf16 %v619, %v619
      %v622 = vsel %vm180, %v620, 0
      %624 = vmatpush.bf16.msra.mxu0 0
      %625 = vmatpush.bf16.msra.mxu0 0
      %626 = vmatpush.bf16.msra.mxu0 0
      %627 = vmatpush.bf16.msra.mxu0 0
      %628 = vmatpush.bf16.msra.mxu0 0
      %629 = vmatpush.bf16.msra.mxu0 0
      %630 = vmatpush.bf16.msra.mxu0 0
      %631 = vmatpush.bf16.msra.mxu0 %v186
      %632 = vmatmul.bf16.gmra.mxu0 %v622
      %v633 = vpop.f32.mrf.mxu0
      %v634 = vadd.f32 0.0, %v633
      %v635 = vpop.f32.mrf.mxu0
      %636 = vdwg.mxu0
      %v638 = vsel %vm180, %v617, 0
      %640 = vmatpush.bf16.msra.mxu0 0
      %641 = vmatpush.bf16.msra.mxu0 0
      %642 = vmatpush.bf16.msra.mxu0 0
      %643 = vmatpush.bf16.msra.mxu0 0
      %644 = vmatpush.bf16.msra.mxu0 0
      %645 = vmatpush.bf16.msra.mxu0 0
      %646 = vmatpush.bf16.msra.mxu0 0
      %647 = vmatpush.bf16.msra.mxu0 %v205
      %648 = vmatmul.bf16.gmra.mxu0 %v638
      %v649 = vpop.f32.mrf.mxu0
      %v650 = vadd.f32 %v634, %v649
      %v651 = vpop.f32.mrf.mxu0
      %652 = vdwg.mxu0
      %s653 = scalar_lea.vmem %s165, 80
      %v654 = vld [vmem:[%s653] sm:$0xff]
      %v655 = vpack.c.bf16 %v654, %v654
      %v657 = vsel %vm180, %v655, 0
      %659 = vmatpush.bf16.msra.mxu0 0
      %660 = vmatpush.bf16.msra.mxu0 0
      %661 = vmatpush.bf16.msra.mxu0 0
      %662 = vmatpush.bf16.msra.mxu0 0
      %663 = vmatpush.bf16.msra.mxu0 0
      %664 = vmatpush.bf16.msra.mxu0 0
      %665 = vmatpush.bf16.msra.mxu0 0
      %666 = vmatpush.bf16.msra.mxu0 %v229
      %667 = vmatmul.bf16.gmra.mxu0 %v657
      %v668 = vpop.f32.mrf.mxu0
      %v669 = vadd.f32 0.0, %v668
      %v670 = vpop.f32.mrf.mxu0
      %671 = vdwg.mxu0
      %v672 = vadd.f32 %v650, %v669
      %s673 = scalar_lea.vmem %s165, 88
      %v674 = vld [vmem:[%s673] sm:$0xff]
      %v675 = vpack.c.bf16 %v674, %v674
      %v677 = vsel %vm180, %v675, 0
      %679 = vmatpush.bf16.msra.mxu0 0
      %680 = vmatpush.bf16.msra.mxu0 0
      %681 = vmatpush.bf16.msra.mxu0 0
      %682 = vmatpush.bf16.msra.mxu0 0
      %683 = vmatpush.bf16.msra.mxu0 0
      %684 = vmatpush.bf16.msra.mxu0 0
      %685 = vmatpush.bf16.msra.mxu0 0
      %686 = vmatpush.bf16.msra.mxu0 %v254
      %687 = vmatmul.bf16.gmra.mxu0 %v677
      %v688 = vpop.f32.mrf.mxu0
      %v689 = vadd.f32 0.0, %v688
      %v690 = vpop.f32.mrf.mxu0
      %691 = vdwg.mxu0
      %v692 = vadd.f32 %v672, %v689
      %s693 = scalar_lea.vmem %s1, 128
      %v694 = vld [vmem:[%s693] sm:$0xf]
      %v695 = vld [vmem:[%s693 + $0x4] sm:$0xf]
      %v696 = vld [vmem:[%s693 + $0x8] sm:$0xf]
      %v697 = vld [vmem:[%s693 + $0xc] sm:$0xf]
      %v698 = vld [vmem:[%s693 + $0x10] sm:$0xf]
      %v699 = vld [vmem:[%s693 + $0x14] sm:$0xf]
      %v700 = vld [vmem:[%s693 + $0x18] sm:$0xf]
      %v701 = vld [vmem:[%s693 + $0x1c] sm:$0xf]
      %v702 = vld [vmem:[%s693 + $0x20] sm:$0xf]
      %v703 = vld [vmem:[%s693 + $0x24] sm:$0xf]
      %v704 = vld [vmem:[%s693 + $0x28] sm:$0xf]
      %v705 = vld [vmem:[%s693 + $0x2c] sm:$0xf]
      %v706 = vld [vmem:[%s693 + $0x30] sm:$0xf]
      %v707 = vld [vmem:[%s693 + $0x34] sm:$0xf]
      %v708 = vld [vmem:[%s693 + $0x38] sm:$0xf]
      %v709 = vld [vmem:[%s693 + $0x3c] sm:$0xf]
      %v710 = vpack.c.bf16 %v692, %v692
      %v727 = vunpack.c.l.b16 %v694
      %v728 = vunpack.c.l.b16 %v695
      %v729 = vunpack.c.l.b16 %v696
      %v730 = vunpack.c.l.b16 %v697
      %v731 = vunpack.c.l.b16 %v698
      %v732 = vunpack.c.l.b16 %v699
      %v733 = vunpack.c.l.b16 %v700
      %v734 = vunpack.c.l.b16 %v701
      %v735 = vunpack.c.l.b16 %v702
      %v736 = vunpack.c.l.b16 %v703
      %v737 = vunpack.c.l.b16 %v704
      %v738 = vunpack.c.l.b16 %v705
      %v739 = vunpack.c.l.b16 %v706
      %v740 = vunpack.c.l.b16 %v707
      %v741 = vunpack.c.l.b16 %v708
      %v742 = vunpack.c.l.b16 %v709
      %v743 = vpack.c.b16 %v728, %v727
      %v744 = vpack.c.b16 %v730, %v729
      %v745 = vpack.c.b16 %v732, %v731
      %v746 = vpack.c.b16 %v734, %v733
      %v747 = vpack.c.b16 %v736, %v735
      %v748 = vpack.c.b16 %v738, %v737
      %v749 = vpack.c.b16 %v740, %v739
      %v750 = vpack.c.b16 %v742, %v741
      %v752 = vsel %vm180, %v743, 0
      %v755 = vsel %vm180, %v744, 0
      %v758 = vsel %vm180, %v745, 0
      %v761 = vsel %vm180, %v746, 0
      %v764 = vsel %vm180, %v747, 0
      %v767 = vsel %vm180, %v748, 0
      %v770 = vsel %vm180, %v749, 0
      %v773 = vsel %vm180, %v750, 0
      %v776 = vsel %vm184, %v710, 0
      %778 = vmatpush.bf16.msra.mxu0 0
      %779 = vmatpush.bf16.msra.mxu0 0
      %780 = vmatpush.bf16.msra.mxu0 0
      %781 = vmatpush.bf16.msra.mxu0 0
      %782 = vmatpush.bf16.msra.mxu0 0
      %783 = vmatpush.bf16.msra.mxu0 0
      %784 = vmatpush.bf16.msra.mxu0 0
      %785 = vmatpush.bf16.msra.mxu0 %v776
      %786 = vmatmul.bf16.gmra.mxu0 %v752
      %v787 = vpop.f32.mrf.mxu0
      %v788 = vadd.f32 0.0, %v787
      %v789 = vpop.f32.mrf.mxu0
      %v790 = vadd.f32 0.0, %v789
      %791 = vmatmul.bf16.gmra.mxu0 %v755
      %v792 = vpop.f32.mrf.mxu0
      %v793 = vadd.f32 0.0, %v792
      %v794 = vpop.f32.mrf.mxu0
      %v795 = vadd.f32 0.0, %v794
      %796 = vmatmul.bf16.gmra.mxu0 %v758
      %v797 = vpop.f32.mrf.mxu0
      %v798 = vadd.f32 0.0, %v797
      %v799 = vpop.f32.mrf.mxu0
      %v800 = vadd.f32 0.0, %v799
      %801 = vmatmul.bf16.gmra.mxu0 %v761
      %v802 = vpop.f32.mrf.mxu0
      %v803 = vadd.f32 0.0, %v802
      %v804 = vpop.f32.mrf.mxu0
      %v805 = vadd.f32 0.0, %v804
      %806 = vmatmul.bf16.gmra.mxu0 %v764
      %v807 = vpop.f32.mrf.mxu0
      %v808 = vadd.f32 0.0, %v807
      %v809 = vpop.f32.mrf.mxu0
      %v810 = vadd.f32 0.0, %v809
      %811 = vmatmul.bf16.gmra.mxu0 %v767
      %v812 = vpop.f32.mrf.mxu0
      %v813 = vadd.f32 0.0, %v812
      %v814 = vpop.f32.mrf.mxu0
      %v815 = vadd.f32 0.0, %v814
      %816 = vmatmul.bf16.gmra.mxu0 %v770
      %v817 = vpop.f32.mrf.mxu0
      %v818 = vadd.f32 0.0, %v817
      %v819 = vpop.f32.mrf.mxu0
      %v820 = vadd.f32 0.0, %v819
      %821 = vmatmul.bf16.gmra.mxu0 %v773
      %v822 = vpop.f32.mrf.mxu0
      %v823 = vadd.f32 0.0, %v822
      %v824 = vpop.f32.mrf.mxu0
      %v825 = vadd.f32 0.0, %v824
      %826 = vdwg.mxu0
      %v827 = vadd.f32 %v576, %v788
      %v828 = vadd.f32 %v578, %v790
      %v829 = vadd.f32 %v581, %v793
      %v830 = vadd.f32 %v583, %v795
      %v831 = vadd.f32 %v586, %v798
      %v832 = vadd.f32 %v588, %v800
      %v833 = vadd.f32 %v591, %v803
      %v834 = vadd.f32 %v593, %v805
      %v835 = vadd.f32 %v596, %v808
      %v836 = vadd.f32 %v598, %v810
      %v837 = vadd.f32 %v601, %v813
      %v838 = vadd.f32 %v603, %v815
      %v839 = vadd.f32 %v606, %v818
      %v840 = vadd.f32 %v608, %v820
      %v841 = vadd.f32 %v611, %v823
      %v842 = vadd.f32 %v613, %v825
      %s843 = scalar_lea.vmem %s165, 96
      %v844 = vld [vmem:[%s843] sm:$0xff]
      %v845 = vpack.c.bf16 %v844, %v844
      %s846 = scalar_lea.vmem %s165, 104
      %v847 = vld [vmem:[%s846] sm:$0xff]
      %v848 = vpack.c.bf16 %v847, %v847
      %v850 = vsel %vm180, %v848, 0
      %852 = vmatpush.bf16.msra.mxu0 0
      %853 = vmatpush.bf16.msra.mxu0 0
      %854 = vmatpush.bf16.msra.mxu0 0
      %855 = vmatpush.bf16.msra.mxu0 0
      %856 = vmatpush.bf16.msra.mxu0 0
      %857 = vmatpush.bf16.msra.mxu0 0
      %858 = vmatpush.bf16.msra.mxu0 0
      %859 = vmatpush.bf16.msra.mxu0 %v186
      %860 = vmatmul.bf16.gmra.mxu0 %v850
      %v861 = vpop.f32.mrf.mxu0
      %v862 = vadd.f32 0.0, %v861
      %v863 = vpop.f32.mrf.mxu0
      %864 = vdwg.mxu0
      %v866 = vsel %vm180, %v845, 0
      %868 = vmatpush.bf16.msra.mxu0 0
      %869 = vmatpush.bf16.msra.mxu0 0
      %870 = vmatpush.bf16.msra.mxu0 0
      %871 = vmatpush.bf16.msra.mxu0 0
      %872 = vmatpush.bf16.msra.mxu0 0
      %873 = vmatpush.bf16.msra.mxu0 0
      %874 = vmatpush.bf16.msra.mxu0 0
      %875 = vmatpush.bf16.msra.mxu0 %v205
      %876 = vmatmul.bf16.gmra.mxu0 %v866
      %v877 = vpop.f32.mrf.mxu0
      %v878 = vadd.f32 %v862, %v877
      %v879 = vpop.f32.mrf.mxu0
      %880 = vdwg.mxu0
      %s881 = scalar_lea.vmem %s165, 112
      %v882 = vld [vmem:[%s881] sm:$0xff]
      %v883 = vpack.c.bf16 %v882, %v882
      %v885 = vsel %vm180, %v883, 0
      %887 = vmatpush.bf16.msra.mxu0 0
      %888 = vmatpush.bf16.msra.mxu0 0
      %889 = vmatpush.bf16.msra.mxu0 0
      %890 = vmatpush.bf16.msra.mxu0 0
      %891 = vmatpush.bf16.msra.mxu0 0
      %892 = vmatpush.bf16.msra.mxu0 0
      %893 = vmatpush.bf16.msra.mxu0 0
      %894 = vmatpush.bf16.msra.mxu0 %v229
      %895 = vmatmul.bf16.gmra.mxu0 %v885
      %v896 = vpop.f32.mrf.mxu0
      %v897 = vadd.f32 0.0, %v896
      %v898 = vpop.f32.mrf.mxu0
      %899 = vdwg.mxu0
      %v900 = vadd.f32 %v878, %v897
      %s901 = scalar_lea.vmem %s165, 120
      %v902 = vld [vmem:[%s901] sm:$0xff]
      %v903 = vpack.c.bf16 %v902, %v902
      %v905 = vsel %vm180, %v903, 0
      %907 = vmatpush.bf16.msra.mxu0 0
      %908 = vmatpush.bf16.msra.mxu0 0
      %909 = vmatpush.bf16.msra.mxu0 0
      %910 = vmatpush.bf16.msra.mxu0 0
      %911 = vmatpush.bf16.msra.mxu0 0
      %912 = vmatpush.bf16.msra.mxu0 0
      %913 = vmatpush.bf16.msra.mxu0 0
      %914 = vmatpush.bf16.msra.mxu0 %v254
      %915 = vmatmul.bf16.gmra.mxu0 %v905
      %v916 = vpop.f32.mrf.mxu0
      %v917 = vadd.f32 0.0, %v916
      %v918 = vpop.f32.mrf.mxu0
      %919 = vdwg.mxu0
      %v920 = vadd.f32 %v900, %v917
      %s921 = scalar_lea.vmem %s1, 192
      %v922 = vld [vmem:[%s921] sm:$0xf]
      %v923 = vld [vmem:[%s921 + $0x4] sm:$0xf]
      %v924 = vld [vmem:[%s921 + $0x8] sm:$0xf]
      %v925 = vld [vmem:[%s921 + $0xc] sm:$0xf]
      %v926 = vld [vmem:[%s921 + $0x10] sm:$0xf]
      %v927 = vld [vmem:[%s921 + $0x14] sm:$0xf]
      %v928 = vld [vmem:[%s921 + $0x18] sm:$0xf]
      %v929 = vld [vmem:[%s921 + $0x1c] sm:$0xf]
      %v930 = vld [vmem:[%s921 + $0x20] sm:$0xf]
      %v931 = vld [vmem:[%s921 + $0x24] sm:$0xf]
      %v932 = vld [vmem:[%s921 + $0x28] sm:$0xf]
      %v933 = vld [vmem:[%s921 + $0x2c] sm:$0xf]
      %v934 = vld [vmem:[%s921 + $0x30] sm:$0xf]
      %v935 = vld [vmem:[%s921 + $0x34] sm:$0xf]
      %v936 = vld [vmem:[%s921 + $0x38] sm:$0xf]
      %v937 = vld [vmem:[%s921 + $0x3c] sm:$0xf]
      %v938 = vpack.c.bf16 %v920, %v920
      %v955 = vunpack.c.l.b16 %v922
      %v956 = vunpack.c.l.b16 %v923
      %v957 = vunpack.c.l.b16 %v924
      %v958 = vunpack.c.l.b16 %v925
      %v959 = vunpack.c.l.b16 %v926
      %v960 = vunpack.c.l.b16 %v927
      %v961 = vunpack.c.l.b16 %v928
      %v962 = vunpack.c.l.b16 %v929
      %v963 = vunpack.c.l.b16 %v930
      %v964 = vunpack.c.l.b16 %v931
      %v965 = vunpack.c.l.b16 %v932
      %v966 = vunpack.c.l.b16 %v933
      %v967 = vunpack.c.l.b16 %v934
      %v968 = vunpack.c.l.b16 %v935
      %v969 = vunpack.c.l.b16 %v936
      %v970 = vunpack.c.l.b16 %v937
      %v971 = vpack.c.b16 %v956, %v955
      %v972 = vpack.c.b16 %v958, %v957
      %v973 = vpack.c.b16 %v960, %v959
      %v974 = vpack.c.b16 %v962, %v961
      %v975 = vpack.c.b16 %v964, %v963
      %v976 = vpack.c.b16 %v966, %v965
      %v977 = vpack.c.b16 %v968, %v967
      %v978 = vpack.c.b16 %v970, %v969
      %v980 = vsel %vm180, %v971, 0
      %v983 = vsel %vm180, %v972, 0
      %v986 = vsel %vm180, %v973, 0
      %v989 = vsel %vm180, %v974, 0
      %v992 = vsel %vm180, %v975, 0
      %v995 = vsel %vm180, %v976, 0
      %v998 = vsel %vm180, %v977, 0
      %v1001 = vsel %vm180, %v978, 0
      %v1004 = vsel %vm184, %v938, 0
      %1006 = vmatpush.bf16.msra.mxu0 0
      %1007 = vmatpush.bf16.msra.mxu0 0
      %1008 = vmatpush.bf16.msra.mxu0 0
      %1009 = vmatpush.bf16.msra.mxu0 0
      %1010 = vmatpush.bf16.msra.mxu0 0
      %1011 = vmatpush.bf16.msra.mxu0 0
      %1012 = vmatpush.bf16.msra.mxu0 0
      %1013 = vmatpush.bf16.msra.mxu0 %v1004
      %1014 = vmatmul.bf16.gmra.mxu0 %v980
      %v1015 = vpop.f32.mrf.mxu0
      %v1016 = vadd.f32 0.0, %v1015
      %v1017 = vpop.f32.mrf.mxu0
      %v1018 = vadd.f32 0.0, %v1017
      %1019 = vmatmul.bf16.gmra.mxu0 %v983
      %v1020 = vpop.f32.mrf.mxu0
      %v1021 = vadd.f32 0.0, %v1020
      %v1022 = vpop.f32.mrf.mxu0
      %v1023 = vadd.f32 0.0, %v1022
      %1024 = vmatmul.bf16.gmra.mxu0 %v986
      %v1025 = vpop.f32.mrf.mxu0
      %v1026 = vadd.f32 0.0, %v1025
      %v1027 = vpop.f32.mrf.mxu0
      %v1028 = vadd.f32 0.0, %v1027
      %1029 = vmatmul.bf16.gmra.mxu0 %v989
      %v1030 = vpop.f32.mrf.mxu0
      %v1031 = vadd.f32 0.0, %v1030
      %v1032 = vpop.f32.mrf.mxu0
      %v1033 = vadd.f32 0.0, %v1032
      %1034 = vmatmul.bf16.gmra.mxu0 %v992
      %v1035 = vpop.f32.mrf.mxu0
      %v1036 = vadd.f32 0.0, %v1035
      %v1037 = vpop.f32.mrf.mxu0
      %v1038 = vadd.f32 0.0, %v1037
      %1039 = vmatmul.bf16.gmra.mxu0 %v995
      %v1040 = vpop.f32.mrf.mxu0
      %v1041 = vadd.f32 0.0, %v1040
      %v1042 = vpop.f32.mrf.mxu0
      %v1043 = vadd.f32 0.0, %v1042
      %1044 = vmatmul.bf16.gmra.mxu0 %v998
      %v1045 = vpop.f32.mrf.mxu0
      %v1046 = vadd.f32 0.0, %v1045
      %v1047 = vpop.f32.mrf.mxu0
      %v1048 = vadd.f32 0.0, %v1047
      %1049 = vmatmul.bf16.gmra.mxu0 %v1001
      %v1050 = vpop.f32.mrf.mxu0
      %v1051 = vadd.f32 0.0, %v1050
      %v1052 = vpop.f32.mrf.mxu0
      %v1053 = vadd.f32 0.0, %v1052
      %1054 = vdwg.mxu0
      %v1055 = vadd.f32 %v827, %v1016
      %v1056 = vadd.f32 %v828, %v1018
      %v1057 = vadd.f32 %v829, %v1021
      %v1058 = vadd.f32 %v830, %v1023
      %v1059 = vadd.f32 %v831, %v1026
      %v1060 = vadd.f32 %v832, %v1028
      %v1061 = vadd.f32 %v833, %v1031
      %v1062 = vadd.f32 %v834, %v1033
      %v1063 = vadd.f32 %v835, %v1036
      %v1064 = vadd.f32 %v836, %v1038
      %v1065 = vadd.f32 %v837, %v1041
      %v1066 = vadd.f32 %v838, %v1043
      %v1067 = vadd.f32 %v839, %v1046
      %v1068 = vadd.f32 %v840, %v1048
      %v1069 = vadd.f32 %v841, %v1051
      %v1070 = vadd.f32 %v842, %v1053
      %1071 = vst [vmem:[%s170] sm:$0xff] %v1055
      %1072 = vst [vmem:[%s170 + $0x8] sm:$0xff] %v1056
      %1073 = vst [vmem:[%s170 + $0x10] sm:$0xff] %v1057
      %1074 = vst [vmem:[%s170 + $0x18] sm:$0xff] %v1058
      %1075 = vst [vmem:[%s170 + $0x20] sm:$0xff] %v1059
      %1076 = vst [vmem:[%s170 + $0x28] sm:$0xff] %v1060
      %1077 = vst [vmem:[%s170 + $0x30] sm:$0xff] %v1061
      %1078 = vst [vmem:[%s170 + $0x38] sm:$0xff] %v1062
      %1079 = vst [vmem:[%s170 + $0x40] sm:$0xff] %v1063
      %1080 = vst [vmem:[%s170 + $0x48] sm:$0xff] %v1064
      %1081 = vst [vmem:[%s170 + $0x50] sm:$0xff] %v1065
      %1082 = vst [vmem:[%s170 + $0x58] sm:$0xff] %v1066
      %1083 = vst [vmem:[%s170 + $0x60] sm:$0xff] %v1067
      %1084 = vst [vmem:[%s170 + $0x68] sm:$0xff] %v1068
      %1085 = vst [vmem:[%s170 + $0x70] sm:$0xff] %v1069
      %1086 = vst [vmem:[%s170 + $0x78] sm:$0xff] %v1070
      %p1087 = scmp.lt.s32.totalorder %s14, 1
      %s1088 = scalar_select %p1087, %s14, 1
      %s1089 = smul.addr %s1088, 16
      %s1090 = smul.addr %s1089, 8
      %s1091 = scalar_lea.vmem %s3, %s1090
      // Predicated region
      $region33: #{forward.3} parent=31 // pred_check
        %p1092 = pneg %p100
      $region34: #{forward.3} parent=31 // pred_check_branch
        %1094 = sbr.rel (%p1092) target = $region36
      $region35: #{forward.3} parent=31 // pred_region
        _
      $region36: #{forward.3} parent=31 // pred_fallthru
        _
    $region32: #{forward.3} parent=5 // pred_fallthru
      _
    %p1095 = scmp.le.s32.totalorder 2, %s9
    // Predicated region
    $region37: #{forward.3} parent=5 // pred_check
      %p1096 = pneg %p1095
    $region38: #{forward.3} parent=5 // pred_check_branch
      %1098 = sbr.rel (%p1096) target = $region40
    $region39: #{forward.3} parent=5 // pred_region
      %s1099 = ssub.s32 %s9, 2
      // Predicated region
      $region41: #{forward.3} parent=39 // pred_check
        %p1100 = pneg %p106
      $region42: #{forward.3} parent=39 // pred_check_branch
        %1102 = sbr.rel (%p1100) target = $region44
      $region43: #{forward.3} parent=39 // pred_region
        %p1103 = scmp.lt.s32.totalorder %s15, 1
        %s1104 = scalar_select %p1103, %s15, 1
        %s1105 = smul.addr %s1104, 16
        %s1106 = smul.addr %s1105, 8
        %s1107 = scalar_lea.vmem %s3, %s1106
      $region44: #{forward.3} parent=39 // pred_fallthru
        _
    $region40: #{forward.3} parent=5 // pred_fallthru
      _
  $region6: #{forward.3} parent=0 // loop_footer
    %s13 = sadd.s32 1, %s9
  $region7: #{forward.3} parent=0 // loop_footer_branch
    %8 = sbr.rel target = $region3
  $region8: #{forward.3} parent=0 // loop_exit
    _

// kernel: forward.2
$region0: #{forward.2}
  #allocation0 [shape = 'u32[]', space=smem, size = 0x4, offset = 0x4, fixed_abs, tag = 'smem constant byte address 0x4 - core index']
  #allocation1 [shape = 'u32[72,128]{1,0:T(1,128)}', space=vmem, size = 0x9000, scoped, tag = 'internal scratch']
  %s0 = inlined_call_operand.vmem [shape: bf16[2,64,768], index: 0, kind: input, shape index: {}]
  %s1 = inlined_call_operand.vmem [shape: f32[2,2,32], index: 1, kind: input, shape index: {}]
  %s2 = inlined_call_operand.vmem [shape: f32[40,128], index: 2, kind: input, shape index: {}]
  %s3 = inlined_call_operand.vmem [shape: bf16[768,64], index: 3, kind: input, shape index: {}]
  %s4 = inlined_call_operand.vmem [shape: f32[64,64], index: 4, kind: input, shape index: {}]
  %s5 = inlined_call_operand.vmem [shape: bf16[6,64,32], index: 5, kind: input, shape index: {}]
  %s6 = inlined_call_operand.vmem [shape: bf16[2,32,64], index: 6, kind: input, shape index: {}]
  %s7 = inlined_call_operand.vmem [shape: bf16[64,128], index: 7, kind: input, shape index: {}]
  %s8 = inlined_call_operand.vmem [shape: bf16[128,64], index: 8, kind: input, shape index: {}]
  %s9 = inlined_call_operand.vmem [shape: bf16[64,32], index: 9, kind: input, shape index: {}]
  %s10 = inlined_call_operand.vmem [shape: f32[64,32], index: 10, kind: input, shape index: {}]
  %s11 = inlined_call_operand.vmem [shape: bf16[8,32,32], index: 11, kind: input, shape index: {}]
  %s12 = inlined_call_operand.vmem [shape: bf16[32,128], index: 12, kind: input, shape index: {}]
  %s13 = inlined_call_operand.vmem [shape: bf16[128,32], index: 13, kind: input, shape index: {}]
  %s14 = inlined_call_operand.vmem [shape: bf16[32,64], index: 14, kind: input, shape index: {}]
  %s15 = inlined_call_operand.vmem [shape: bf16[64,128], index: 15, kind: input, shape index: {}]
  %s16 = inlined_call_operand.vmem [shape: bf16[32,128], index: 16, kind: input, shape index: {}]
  %s17 = inlined_call_operand.vmem [shape: bf16[16,128], index: 17, kind: input, shape index: {}]
  %s18 = inlined_call_operand.vmem [shape: f32[2,16,64], index: 18, kind: output, shape index: {0}]
  %s19 = inlined_call_operand.vmem [shape: f32[2,1,1], index: 19, kind: output, shape index: {1}]
  %20 = xla_tuple %s18, %s19
  %s21 = sld [smem:[#allocation0]]
  $region113: #{forward.2} parent=0
    _
  %s23 = ssub.s32 1, %s21
  %s24 = scalar_select 0, %s23, %s21
  loop: start=0, step=1, limit=4
  $region2: #{forward.2} parent=0 // loop_pre_header
    _
  $region3: #{forward.2} parent=0 // loop_header
    %s26 = sphi 0, %s30
    %p27 = scmp.ge.s32.totalorder %s26, 4
    %s36 = sphi 0, %s38
    %s39 = sphi 0, %s36
    %s40 = sphi 0, %s39
    %s56 = sphi 0, %s40
    %s62 = sphi 0, %s64
    %s65 = sphi 0, %s62
    %s66 = sphi 0, %s65
    %s82 = sphi 0, %s66
    %s86 = sphi 0, %s86
    %s88 = sphi 0, %s86
    %s89 = sphi 0, %s88
    %s103 = sphi 0, %s89
    %s107 = sphi 0, %s107
    %s109 = sphi 0, %s107
    %s110 = sphi 0, %s109
    %s124 = sphi 0, %s110
    %s128 = sphi 0, %s128
    %s130 = sphi 0, %s128
    %s131 = sphi 0, %s130
    %s145 = sphi 0, %s131
    %s149 = sphi 0, %s149
    %s151 = sphi 0, %s149
    %s152 = sphi 0, %s151
    %s166 = sphi 0, %s152
    %s170 = sphi 0, %s170
    %s172 = sphi 0, %s170
    %s173 = sphi 0, %s172
    %s187 = sphi 0, %s173
    %s191 = sphi 0, %s191
    %s193 = sphi 0, %s191
    %s194 = sphi 0, %s193
    %s208 = sphi 0, %s194
    %s212 = sphi 0, %s212
    %s214 = sphi 0, %s212
    %s215 = sphi 0, %s214
    %s229 = sphi 0, %s215
    %s233 = sphi 0, %s233
    %s235 = sphi 0, %s233
    %s236 = sphi 0, %s235
    %s250 = sphi 0, %s236
    %s254 = sphi 0, %s254
    %s256 = sphi 0, %s254
    %s257 = sphi 0, %s256
    %s271 = sphi 0, %s257
    %s275 = sphi 0, %s275
    %s277 = sphi 0, %s275
    %s278 = sphi 0, %s277
    %s292 = sphi 0, %s278
    %s296 = sphi 0, %s296
    %s298 = sphi 0, %s296
    %s299 = sphi 0, %s298
    %s313 = sphi 0, %s299
    %s317 = sphi 0, %s317
    %s319 = sphi 0, %s317
    %s320 = sphi 0, %s319
    %s334 = sphi 0, %s320
    %s338 = sphi 0, %s338
    %s340 = sphi 0, %s338
    %s341 = sphi 0, %s340
    %s355 = sphi 0, %s341
    %s359 = sphi 0, %s359
    %s361 = sphi 0, %s359
    %s362 = sphi 0, %s361
    %s376 = sphi 0, %s362
    %s380 = sphi 0, %s380
    %s382 = sphi 0, %s380
    %s383 = sphi 0, %s382
    %s397 = sphi 0, %s383
    %s401 = sphi 0, %s401
    %s403 = sphi 0, %s401
    %s404 = sphi 0, %s403
    %s418 = sphi 0, %s404
    %s424 = sphi 0, %s426
    %s427 = sphi 0, %s424
    %s428 = sphi 0, %s427
    %s444 = sphi 0, %s428
    %s450 = sphi 0, %s452
    %s453 = sphi 0, %s450
    %s454 = sphi 0, %s453
    %s470 = sphi 0, %s454
  $region4: #{forward.2} parent=0 // loop_header_branch
    %29 = sbr.rel (%p27) target = $region8
  $region5: #{forward.2} parent=0 // loop_body
    %s31 = ssub.s32 %s26, 1
    %s32 = ssub.s32 %s26, 2
    %s33 = sadd.s32 %s26, 1
    %s34 = ssub.s32 %s26, %s33
    %p35 = scmp.eq.s32.totalorder %s34, 0
    %s37 = sadd.s32 %s36, 1
    %s38 = scalar_select %p35, %s36, %s37
    %p41 = pneg %p35
    %p42 = scmp.eq.s32.totalorder %s26, 1
    %p43 = por %p41, %p42
    %p44 = scmp.ne.s32.totalorder %s36, %s39
    %p45 = scmp.eq.s32.totalorder %s26, 0
    %p46 = por %p44, %p45
    %p47 = scmp.ne.s32.totalorder %s36, %s39
    %p48 = scmp.eq.s32.totalorder %s31, 1
    %p49 = por %p47, %p48
    %p50 = scmp.ne.s32.totalorder %s39, %s40
    %p51 = scmp.eq.s32.totalorder %s31, 0
    %p52 = por %p50, %p51
    %p53 = scmp.ne.s32.totalorder %s39, %s40
    %p54 = scmp.eq.s32.totalorder %s32, 1
    %p55 = por %p53, %p54
    %p57 = scmp.ne.s32.totalorder %s40, %s56
    %p58 = scmp.eq.s32.totalorder %s32, 0
    %p59 = por %p57, %p58
    %s60 = ssub.s32 %s26, %s33
    %p61 = scmp.eq.s32.totalorder %s60, 0
    %s63 = sadd.s32 %s62, 1
    %s64 = scalar_select %p61, %s62, %s63
    %p67 = pneg %p61
    %p68 = scmp.eq.s32.totalorder %s26, 1
    %p69 = por %p67, %p68
    %p70 = scmp.ne.s32.totalorder %s62, %s65
    %p71 = scmp.eq.s32.totalorder %s26, 0
    %p72 = por %p70, %p71
    %p73 = scmp.ne.s32.totalorder %s62, %s65
    %p74 = scmp.eq.s32.totalorder %s31, 1
    %p75 = por %p73, %p74
    %p76 = scmp.ne.s32.totalorder %s65, %s66
    %p77 = scmp.eq.s32.totalorder %s31, 0
    %p78 = por %p76, %p77
    %p79 = scmp.ne.s32.totalorder %s65, %s66
    %p80 = scmp.eq.s32.totalorder %s32, 1
    %p81 = por %p79, %p80
    %p83 = scmp.ne.s32.totalorder %s66, %s82
    %p84 = scmp.eq.s32.totalorder %s32, 0
    %p85 = por %p83, %p84
    %s87 = sadd.s32 %s86, 1
    %p90 = scmp.eq.s32.totalorder %s26, 1
    %p91 = scmp.ne.s32.totalorder %s86, %s88
    %p92 = scmp.eq.s32.totalorder %s26, 0
    %p93 = por %p91, %p92
    %p94 = scmp.ne.s32.totalorder %s86, %s88
    %p95 = scmp.eq.s32.totalorder %s31, 1
    %p96 = por %p94, %p95
    %p97 = scmp.ne.s32.totalorder %s88, %s89
    %p98 = scmp.eq.s32.totalorder %s31, 0
    %p99 = por %p97, %p98
    %p100 = scmp.ne.s32.totalorder %s88, %s89
    %p101 = scmp.eq.s32.totalorder %s32, 1
    %p102 = por %p100, %p101
    %p104 = scmp.ne.s32.totalorder %s89, %s103
    %p105 = scmp.eq.s32.totalorder %s32, 0
    %p106 = por %p104, %p105
    %s108 = sadd.s32 %s107, 1
    %p111 = scmp.eq.s32.totalorder %s26, 1
    %p112 = scmp.ne.s32.totalorder %s107, %s109
    %p113 = scmp.eq.s32.totalorder %s26, 0
    %p114 = por %p112, %p113
    %p115 = scmp.ne.s32.totalorder %s107, %s109
    %p116 = scmp.eq.s32.totalorder %s31, 1
    %p117 = por %p115, %p116
    %p118 = scmp.ne.s32.totalorder %s109, %s110
    %p119 = scmp.eq.s32.totalorder %s31, 0
    %p120 = por %p118, %p119
    %p121 = scmp.ne.s32.totalorder %s109, %s110
    %p122 = scmp.eq.s32.totalorder %s32, 1
    %p123 = por %p121, %p122
    %p125 = scmp.ne.s32.totalorder %s110, %s124
    %p126 = scmp.eq.s32.totalorder %s32, 0
    %p127 = por %p125, %p126
    %s129 = sadd.s32 %s128, 1
    %p132 = scmp.eq.s32.totalorder %s26, 1
    %p133 = scmp.ne.s32.totalorder %s128, %s130
    %p134 = scmp.eq.s32.totalorder %s26, 0
    %p135 = por %p133, %p134
    %p136 = scmp.ne.s32.totalorder %s128, %s130
    %p137 = scmp.eq.s32.totalorder %s31, 1
    %p138 = por %p136, %p137
    %p139 = scmp.ne.s32.totalorder %s130, %s131
    %p140 = scmp.eq.s32.totalorder %s31, 0
    %p141 = por %p139, %p140
    %p142 = scmp.ne.s32.totalorder %s130, %s131
    %p143 = scmp.eq.s32.totalorder %s32, 1
    %p144 = por %p142, %p143
    %p146 = scmp.ne.s32.totalorder %s131, %s145
    %p147 = scmp.eq.s32.totalorder %s32, 0
    %p148 = por %p146, %p147
    %s150 = sadd.s32 %s149, 1
    %p153 = scmp.eq.s32.totalorder %s26, 1
    %p154 = scmp.ne.s32.totalorder %s149, %s151
    %p155 = scmp.eq.s32.totalorder %s26, 0
    %p156 = por %p154, %p155
    %p157 = scmp.ne.s32.totalorder %s149, %s151
    %p158 = scmp.eq.s32.totalorder %s31, 1
    %p159 = por %p157, %p158
    %p160 = scmp.ne.s32.totalorder %s151, %s152
    %p161 = scmp.eq.s32.totalorder %s31, 0
    %p162 = por %p160, %p161
    %p163 = scmp.ne.s32.totalorder %s151, %s152
    %p164 = scmp.eq.s32.totalorder %s32, 1
    %p165 = por %p163, %p164
    %p167 = scmp.ne.s32.totalorder %s152, %s166
    %p168 = scmp.eq.s32.totalorder %s32, 0
    %p169 = por %p167, %p168
    %s171 = sadd.s32 %s170, 1
    %p174 = scmp.eq.s32.totalorder %s26, 1
    %p175 = scmp.ne.s32.totalorder %s170, %s172
    %p176 = scmp.eq.s32.totalorder %s26, 0
    %p177 = por %p175, %p176
    %p178 = scmp.ne.s32.totalorder %s170, %s172
    %p179 = scmp.eq.s32.totalorder %s31, 1
    %p180 = por %p178, %p179
    %p181 = scmp.ne.s32.totalorder %s172, %s173
    %p182 = scmp.eq.s32.totalorder %s31, 0
    %p183 = por %p181, %p182
    %p184 = scmp.ne.s32.totalorder %s172, %s173
    %p185 = scmp.eq.s32.totalorder %s32, 1
    %p186 = por %p184, %p185
    %p188 = scmp.ne.s32.totalorder %s173, %s187
    %p189 = scmp.eq.s32.totalorder %s32, 0
    %p190 = por %p188, %p189
    %s192 = sadd.s32 %s191, 1
    %p195 = scmp.eq.s32.totalorder %s26, 1
    %p196 = scmp.ne.s32.totalorder %s191, %s193
    %p197 = scmp.eq.s32.totalorder %s26, 0
    %p198 = por %p196, %p197
    %p199 = scmp.ne.s32.totalorder %s191, %s193
    %p200 = scmp.eq.s32.totalorder %s31, 1
    %p201 = por %p199, %p200
    %p202 = scmp.ne.s32.totalorder %s193, %s194
    %p203 = scmp.eq.s32.totalorder %s31, 0
    %p204 = por %p202, %p203
    %p205 = scmp.ne.s32.totalorder %s193, %s194
    %p206 = scmp.eq.s32.totalorder %s32, 1
    %p207 = por %p205, %p206
    %p209 = scmp.ne.s32.totalorder %s194, %s208
    %p210 = scmp.eq.s32.totalorder %s32, 0
    %p211 = por %p209, %p210
    %s213 = sadd.s32 %s212, 1
    %p216 = scmp.eq.s32.totalorder %s26, 1
    %p217 = scmp.ne.s32.totalorder %s212, %s214
    %p218 = scmp.eq.s32.totalorder %s26, 0
    %p219 = por %p217, %p218
    %p220 = scmp.ne.s32.totalorder %s212, %s214
    %p221 = scmp.eq.s32.totalorder %s31, 1
    %p222 = por %p220, %p221
    %p223 = scmp.ne.s32.totalorder %s214, %s215
    %p224 = scmp.eq.s32.totalorder %s31, 0
    %p225 = por %p223, %p224
    %p226 = scmp.ne.s32.totalorder %s214, %s215
    %p227 = scmp.eq.s32.totalorder %s32, 1
    %p228 = por %p226, %p227
    %p230 = scmp.ne.s32.totalorder %s215, %s229
    %p231 = scmp.eq.s32.totalorder %s32, 0
    %p232 = por %p230, %p231
    %s234 = sadd.s32 %s233, 1
    %p237 = scmp.eq.s32.totalorder %s26, 1
    %p238 = scmp.ne.s32.totalorder %s233, %s235
    %p239 = scmp.eq.s32.totalorder %s26, 0
    %p240 = por %p238, %p239
    %p241 = scmp.ne.s32.totalorder %s233, %s235
    %p242 = scmp.eq.s32.totalorder %s31, 1
    %p243 = por %p241, %p242
    %p244 = scmp.ne.s32.totalorder %s235, %s236
    %p245 = scmp.eq.s32.totalorder %s31, 0
    %p246 = por %p244, %p245
    %p247 = scmp.ne.s32.totalorder %s235, %s236
    %p248 = scmp.eq.s32.totalorder %s32, 1
    %p249 = por %p247, %p248
    %p251 = scmp.ne.s32.totalorder %s236, %s250
    %p252 = scmp.eq.s32.totalorder %s32, 0
    %p253 = por %p251, %p252
    %s255 = sadd.s32 %s254, 1
    %p258 = scmp.eq.s32.totalorder %s26, 1
    %p259 = scmp.ne.s32.totalorder %s254, %s256
    %p260 = scmp.eq.s32.totalorder %s26, 0
    %p261 = por %p259, %p260
    %p262 = scmp.ne.s32.totalorder %s254, %s256
    %p263 = scmp.eq.s32.totalorder %s31, 1
    %p264 = por %p262, %p263
    %p265 = scmp.ne.s32.totalorder %s256, %s257
    %p266 = scmp.eq.s32.totalorder %s31, 0
    %p267 = por %p265, %p266
    %p268 = scmp.ne.s32.totalorder %s256, %s257
    %p269 = scmp.eq.s32.totalorder %s32, 1
    %p270 = por %p268, %p269
    %p272 = scmp.ne.s32.totalorder %s257, %s271
    %p273 = scmp.eq.s32.totalorder %s32, 0
    %p274 = por %p272, %p273
    %s276 = sadd.s32 %s275, 1
    %p279 = scmp.eq.s32.totalorder %s26, 1
    %p280 = scmp.ne.s32.totalorder %s275, %s277
    %p281 = scmp.eq.s32.totalorder %s26, 0
    %p282 = por %p280, %p281
    %p283 = scmp.ne.s32.totalorder %s275, %s277
    %p284 = scmp.eq.s32.totalorder %s31, 1
    %p285 = por %p283, %p284
    %p286 = scmp.ne.s32.totalorder %s277, %s278
    %p287 = scmp.eq.s32.totalorder %s31, 0
    %p288 = por %p286, %p287
    %p289 = scmp.ne.s32.totalorder %s277, %s278
    %p290 = scmp.eq.s32.totalorder %s32, 1
    %p291 = por %p289, %p290
    %p293 = scmp.ne.s32.totalorder %s278, %s292
    %p294 = scmp.eq.s32.totalorder %s32, 0
    %p295 = por %p293, %p294
    %s297 = sadd.s32 %s296, 1
    %p300 = scmp.eq.s32.totalorder %s26, 1
    %p301 = scmp.ne.s32.totalorder %s296, %s298
    %p302 = scmp.eq.s32.totalorder %s26, 0
    %p303 = por %p301, %p302
    %p304 = scmp.ne.s32.totalorder %s296, %s298
    %p305 = scmp.eq.s32.totalorder %s31, 1
    %p306 = por %p304, %p305
    %p307 = scmp.ne.s32.totalorder %s298, %s299
    %p308 = scmp.eq.s32.totalorder %s31, 0
    %p309 = por %p307, %p308
    %p310 = scmp.ne.s32.totalorder %s298, %s299
    %p311 = scmp.eq.s32.totalorder %s32, 1
    %p312 = por %p310, %p311
    %p314 = scmp.ne.s32.totalorder %s299, %s313
    %p315 = scmp.eq.s32.totalorder %s32, 0
    %p316 = por %p314, %p315
    %s318 = sadd.s32 %s317, 1
    %p321 = scmp.eq.s32.totalorder %s26, 1
    %p322 = scmp.ne.s32.totalorder %s317, %s319
    %p323 = scmp.eq.s32.totalorder %s26, 0
    %p324 = por %p322, %p323
    %p325 = scmp.ne.s32.totalorder %s317, %s319
    %p326 = scmp.eq.s32.totalorder %s31, 1
    %p327 = por %p325, %p326
    %p328 = scmp.ne.s32.totalorder %s319, %s320
    %p329 = scmp.eq.s32.totalorder %s31, 0
    %p330 = por %p328, %p329
    %p331 = scmp.ne.s32.totalorder %s319, %s320
    %p332 = scmp.eq.s32.totalorder %s32, 1
    %p333 = por %p331, %p332
    %p335 = scmp.ne.s32.totalorder %s320, %s334
    %p336 = scmp.eq.s32.totalorder %s32, 0
    %p337 = por %p335, %p336
    %s339 = sadd.s32 %s338, 1
    %p342 = scmp.eq.s32.totalorder %s26, 1
    %p343 = scmp.ne.s32.totalorder %s338, %s340
    %p344 = scmp.eq.s32.totalorder %s26, 0
    %p345 = por %p343, %p344
    %p346 = scmp.ne.s32.totalorder %s338, %s340
    %p347 = scmp.eq.s32.totalorder %s31, 1
    %p348 = por %p346, %p347
    %p349 = scmp.ne.s32.totalorder %s340, %s341
    %p350 = scmp.eq.s32.totalorder %s31, 0
    %p351 = por %p349, %p350
    %p352 = scmp.ne.s32.totalorder %s340, %s341
    %p353 = scmp.eq.s32.totalorder %s32, 1
    %p354 = por %p352, %p353
    %p356 = scmp.ne.s32.totalorder %s341, %s355
    %p357 = scmp.eq.s32.totalorder %s32, 0
    %p358 = por %p356, %p357
    %s360 = sadd.s32 %s359, 1
    %p363 = scmp.eq.s32.totalorder %s26, 1
    %p364 = scmp.ne.s32.totalorder %s359, %s361
    %p365 = scmp.eq.s32.totalorder %s26, 0
    %p366 = por %p364, %p365
    %p367 = scmp.ne.s32.totalorder %s359, %s361
    %p368 = scmp.eq.s32.totalorder %s31, 1
    %p369 = por %p367, %p368
    %p370 = scmp.ne.s32.totalorder %s361, %s362
    %p371 = scmp.eq.s32.totalorder %s31, 0
    %p372 = por %p370, %p371
    %p373 = scmp.ne.s32.totalorder %s361, %s362
    %p374 = scmp.eq.s32.totalorder %s32, 1
    %p375 = por %p373, %p374
    %p377 = scmp.ne.s32.totalorder %s362, %s376
    %p378 = scmp.eq.s32.totalorder %s32, 0
    %p379 = por %p377, %p378
    %s381 = sadd.s32 %s380, 1
    %p384 = scmp.eq.s32.totalorder %s26, 1
    %p385 = scmp.ne.s32.totalorder %s380, %s382
    %p386 = scmp.eq.s32.totalorder %s26, 0
    %p387 = por %p385, %p386
    %p388 = scmp.ne.s32.totalorder %s380, %s382
    %p389 = scmp.eq.s32.totalorder %s31, 1
    %p390 = por %p388, %p389
    %p391 = scmp.ne.s32.totalorder %s382, %s383
    %p392 = scmp.eq.s32.totalorder %s31, 0
    %p393 = por %p391, %p392
    %p394 = scmp.ne.s32.totalorder %s382, %s383
    %p395 = scmp.eq.s32.totalorder %s32, 1
    %p396 = por %p394, %p395
    %p398 = scmp.ne.s32.totalorder %s383, %s397
    %p399 = scmp.eq.s32.totalorder %s32, 0
    %p400 = por %p398, %p399
    %s402 = sadd.s32 %s401, 1
    %p405 = scmp.eq.s32.totalorder %s26, 1
    %p406 = scmp.ne.s32.totalorder %s401, %s403
    %p407 = scmp.eq.s32.totalorder %s26, 0
    %p408 = por %p406, %p407
    %p409 = scmp.ne.s32.totalorder %s401, %s403
    %p410 = scmp.eq.s32.totalorder %s31, 1
    %p411 = por %p409, %p410
    %p412 = scmp.ne.s32.totalorder %s403, %s404
    %p413 = scmp.eq.s32.totalorder %s31, 0
    %p414 = por %p412, %p413
    %p415 = scmp.ne.s32.totalorder %s403, %s404
    %p416 = scmp.eq.s32.totalorder %s32, 1
    %p417 = por %p415, %p416
    %p419 = scmp.ne.s32.totalorder %s404, %s418
    %p420 = scmp.eq.s32.totalorder %s32, 0
    %p421 = por %p419, %p420
    %s422 = ssub.s32 %s26, %s33
    %p423 = scmp.eq.s32.totalorder %s422, 0
    %s425 = sadd.s32 %s424, 1
    %s426 = scalar_select %p423, %s424, %s425
    %p429 = pneg %p423
    %p430 = scmp.eq.s32.totalorder %s26, 1
    %p431 = por %p429, %p430
    %p432 = scmp.ne.s32.totalorder %s424, %s427
    %p433 = scmp.eq.s32.totalorder %s26, 0
    %p434 = por %p432, %p433
    %p435 = scmp.ne.s32.totalorder %s424, %s427
    %p436 = scmp.eq.s32.totalorder %s31, 1
    %p437 = por %p435, %p436
    %p438 = scmp.ne.s32.totalorder %s427, %s428
    %p439 = scmp.eq.s32.totalorder %s31, 0
    %p440 = por %p438, %p439
    %p441 = scmp.ne.s32.totalorder %s427, %s428
    %p442 = scmp.eq.s32.totalorder %s32, 1
    %p443 = por %p441, %p442
    %p445 = scmp.ne.s32.totalorder %s428, %s444
    %p446 = scmp.eq.s32.totalorder %s32, 0
    %p447 = por %p445, %p446
    %s448 = ssub.s32 %s26, %s33
    %p449 = scmp.eq.s32.totalorder %s448, 0
    %s451 = sadd.s32 %s450, 1
    %s452 = scalar_select %p449, %s450, %s451
    %p455 = pneg %p449
    %p456 = scmp.eq.s32.totalorder %s26, 1
    %p457 = por %p455, %p456
    %p458 = scmp.ne.s32.totalorder %s450, %s453
    %p459 = scmp.eq.s32.totalorder %s26, 0
    %p460 = por %p458, %p459
    %p461 = scmp.ne.s32.totalorder %s450, %s453
    %p462 = scmp.eq.s32.totalorder %s31, 1
    %p463 = por %p461, %p462
    %p464 = scmp.ne.s32.totalorder %s453, %s454
    %p465 = scmp.eq.s32.totalorder %s31, 0
    %p466 = por %p464, %p465
    %p467 = scmp.ne.s32.totalorder %s453, %s454
    %p468 = scmp.eq.s32.totalorder %s32, 1
    %p469 = por %p467, %p468
    %p471 = scmp.ne.s32.totalorder %s454, %s470
    %p472 = scmp.eq.s32.totalorder %s32, 0
    %p473 = por %p471, %p472
    %p474 = scmp.le.s32.totalorder 1, %s26
    %p475 = scmp.lt.s32.totalorder %s26, 3
    %p476 = pnand %p474, %p475
    %p477 = pneg %p476
    // Predicated region
    $region9: #{forward.2} parent=5 // pred_check
      _
    $region10: #{forward.2} parent=5 // pred_check_branch
      %479 = sbr.rel (%p476) target = $region12
    $region11: #{forward.2} parent=5 // pred_region
      %s480 = ssub.s32 %s26, 1
      // Predicated region
      $region13: #{forward.2} parent=11 // pred_check
        %p481 = pneg %p99
      $region14: #{forward.2} parent=11 // pred_check_branch
        %483 = sbr.rel (%p481) target = $region16
      $region15: #{forward.2} parent=11 // pred_region
        _
      $region16: #{forward.2} parent=11 // pred_fallthru
        _
      // Predicated region
      $region17: #{forward.2} parent=11 // pred_check
        %p484 = pneg %p120
      $region18: #{forward.2} parent=11 // pred_check_branch
        %486 = sbr.rel (%p484) target = $region20
      $region19: #{forward.2} parent=11 // pred_region
        _
      $region20: #{forward.2} parent=11 // pred_fallthru
        _
      // Predicated region
      $region21: #{forward.2} parent=11 // pred_check
        %p487 = pneg %p141
      $region22: #{forward.2} parent=11 // pred_check_branch
        %489 = sbr.rel (%p487) target = $region24
      $region23: #{forward.2} parent=11 // pred_region
        _
      $region24: #{forward.2} parent=11 // pred_fallthru
        _
      // Predicated region
      $region25: #{forward.2} parent=11 // pred_check
        %p490 = pneg %p162
      $region26: #{forward.2} parent=11 // pred_check_branch
        %492 = sbr.rel (%p490) target = $region28
      $region27: #{forward.2} parent=11 // pred_region
        _
      $region28: #{forward.2} parent=11 // pred_fallthru
        _
      // Predicated region
      $region29: #{forward.2} parent=11 // pred_check
        %p493 = pneg %p183
      $region30: #{forward.2} parent=11 // pred_check_branch
        %495 = sbr.rel (%p493) target = $region32
      $region31: #{forward.2} parent=11 // pred_region
        _
      $region32: #{forward.2} parent=11 // pred_fallthru
        _
      // Predicated region
      $region33: #{forward.2} parent=11 // pred_check
        %p496 = pneg %p204
      $region34: #{forward.2} parent=11 // pred_check_branch
        %498 = sbr.rel (%p496) target = $region36
      $region35: #{forward.2} parent=11 // pred_region
        _
      $region36: #{forward.2} parent=11 // pred_fallthru
        _
      // Predicated region
      $region37: #{forward.2} parent=11 // pred_check
        %p499 = pneg %p225
      $region38: #{forward.2} parent=11 // pred_check_branch
        %501 = sbr.rel (%p499) target = $region40
      $region39: #{forward.2} parent=11 // pred_region
        _
      $region40: #{forward.2} parent=11 // pred_fallthru
        _
      // Predicated region
      $region41: #{forward.2} parent=11 // pred_check
        %p502 = pneg %p246
      $region42: #{forward.2} parent=11 // pred_check_branch
        %504 = sbr.rel (%p502) target = $region44
      $region43: #{forward.2} parent=11 // pred_region
        _
      $region44: #{forward.2} parent=11 // pred_fallthru
        _
      // Predicated region
      $region45: #{forward.2} parent=11 // pred_check
        %p505 = pneg %p267
      $region46: #{forward.2} parent=11 // pred_check_branch
        %507 = sbr.rel (%p505) target = $region48
      $region47: #{forward.2} parent=11 // pred_region
        _
      $region48: #{forward.2} parent=11 // pred_fallthru
        _
      // Predicated region
      $region49: #{forward.2} parent=11 // pred_check
        %p508 = pneg %p288
      $region50: #{forward.2} parent=11 // pred_check_branch
        %510 = sbr.rel (%p508) target = $region52
      $region51: #{forward.2} parent=11 // pred_region
        _
      $region52: #{forward.2} parent=11 // pred_fallthru
        _
      // Predicated region
      $region53: #{forward.2} parent=11 // pred_check
        %p511 = pneg %p309
      $region54: #{forward.2} parent=11 // pred_check_branch
        %513 = sbr.rel (%p511) target = $region56
      $region55: #{forward.2} parent=11 // pred_region
        _
      $region56: #{forward.2} parent=11 // pred_fallthru
        _
      // Predicated region
      $region57: #{forward.2} parent=11 // pred_check
        %p514 = pneg %p330
      $region58: #{forward.2} parent=11 // pred_check_branch
        %516 = sbr.rel (%p514) target = $region60
      $region59: #{forward.2} parent=11 // pred_region
        _
      $region60: #{forward.2} parent=11 // pred_fallthru
        _
      // Predicated region
      $region61: #{forward.2} parent=11 // pred_check
        %p517 = pneg %p351
      $region62: #{forward.2} parent=11 // pred_check_branch
        %519 = sbr.rel (%p517) target = $region64
      $region63: #{forward.2} parent=11 // pred_region
        _
      $region64: #{forward.2} parent=11 // pred_fallthru
        _
      // Predicated region
      $region65: #{forward.2} parent=11 // pred_check
        %p520 = pneg %p372
      $region66: #{forward.2} parent=11 // pred_check_branch
        %522 = sbr.rel (%p520) target = $region68
      $region67: #{forward.2} parent=11 // pred_region
        _
      $region68: #{forward.2} parent=11 // pred_fallthru
        _
      // Predicated region
      $region69: #{forward.2} parent=11 // pred_check
        %p523 = pneg %p393
      $region70: #{forward.2} parent=11 // pred_check_branch
        %525 = sbr.rel (%p523) target = $region72
      $region71: #{forward.2} parent=11 // pred_region
        _
      $region72: #{forward.2} parent=11 // pred_fallthru
        _
      // Predicated region
      $region73: #{forward.2} parent=11 // pred_check
        %p526 = pneg %p414
      $region74: #{forward.2} parent=11 // pred_check_branch
        %528 = sbr.rel (%p526) target = $region76
      $region75: #{forward.2} parent=11 // pred_region
        _
      $region76: #{forward.2} parent=11 // pred_fallthru
        _
    $region12: #{forward.2} parent=5 // pred_fallthru
      _
    %p529 = scmp.lt.s32.totalorder %s26, 2
    // Predicated region
    $region77: #{forward.2} parent=5 // pred_check
      %p530 = pneg %p529
    $region78: #{forward.2} parent=5 // pred_check_branch
      %532 = sbr.rel (%p530) target = $region80
    $region79: #{forward.2} parent=5 // pred_region
      // Predicated region
      $region81: #{forward.2} parent=79 // pred_check
        %p533 = pneg %p46
      $region82: #{forward.2} parent=79 // pred_check_branch
        %535 = sbr.rel (%p533) target = $region84
      $region83: #{forward.2} parent=79 // pred_region
        %p536 = scmp.lt.s32.totalorder %s26, 1
        %s537 = scalar_select %p536, %s26, 1
        %s538 = smul.addr %s537, 48
        %s539 = smul.addr %s538, 4
        %s540 = scalar_lea.vmem %s0, %s539
      $region84: #{forward.2} parent=79 // pred_fallthru
        _
      // Predicated region
      $region85: #{forward.2} parent=79 // pred_check
        %p541 = pneg %p72
      $region86: #{forward.2} parent=79 // pred_check_branch
        %543 = sbr.rel (%p541) target = $region88
      $region87: #{forward.2} parent=79 // pred_region
        %p544 = scmp.lt.s32.totalorder %s26, 1
        %s545 = scalar_select %p544, %s26, 1
        %s546 = smul.addr %s545, 2
        %s547 = scalar_lea.vmem %s1, %s546
      $region88: #{forward.2} parent=79 // pred_fallthru
        _
    $region80: #{forward.2} parent=5 // pred_fallthru
      _
    %p548 = scmp.le.s32.totalorder 1, %s26
    %p549 = scmp.lt.s32.totalorder %s26, 3
    %p550 = pnand %p548, %p549
    %p551 = pneg %p550
    // Predicated region
    $region89: #{forward.2} parent=5 // pred_check
      _
    $region90: #{forward.2} parent=5 // pred_check_branch
      %553 = sbr.rel (%p550) target = $region92
    $region91: #{forward.2} parent=5 // pred_region
      %s554 = ssub.s32 %s26, 1
      %p555 = scmp.lt.s32.totalorder %s31, 1
      %s556 = scalar_select %p555, %s31, 1
      %s557 = smul.addr %s556, 48
      %s558 = smul.addr %s557, 4
      %s559 = scalar_lea.vmem %s0, %s558
      %p560 = pneg %p52
      %p561 = pneg %p49
      %p562 = scmp.lt.s32.totalorder %s31, 1
      %s563 = scalar_select %p562, %s31, 1
      %s564 = smul.addr %s563, 2
      %s565 = scalar_lea.vmem %s1, %s564
      %p566 = pneg %p78
      %p567 = pneg %p75
      %p568 = pneg %p99
      %p569 = pneg %p96
      %p570 = pneg %p120
      %p571 = pneg %p117
      %p572 = pneg %p141
      %p573 = pneg %p138
      %p574 = pneg %p162
      %p575 = pneg %p159
      %p576 = pneg %p183
      %p577 = pneg %p180
      %p578 = pneg %p204
      %p579 = pneg %p201
      %p580 = pneg %p225
      %p581 = pneg %p222
      %p582 = pneg %p246
      %p583 = pneg %p243
      %p584 = pneg %p267
      %p585 = pneg %p264
      %p586 = pneg %p288
      %p587 = pneg %p285
      %p588 = pneg %p309
      %p589 = pneg %p306
      %p590 = pneg %p330
      %p591 = pneg %p327
      %p592 = pneg %p351
      %p593 = pneg %p348
      %p594 = pneg %p372
      %p595 = pneg %p369
      %p596 = pneg %p393
      %p597 = pneg %p390
      %p598 = pneg %p414
      %p599 = pneg %p411
      %p600 = pneg %p440
      %p601 = pneg %p437
      %p602 = scmp.lt.s32.totalorder %s31, 1
      %s603 = scalar_select %p602, %s31, 1
      %s604 = smul.addr %s603, 2
      %s605 = smul.addr %s604, 8
      %s606 = scalar_lea.vmem %s18, %s605
      %p607 = pneg %p466
      %p608 = pneg %p463
      %p609 = scmp.lt.s32.totalorder %s31, 1
      %s610 = scalar_select %p609, %s31, 1
      %s611 = scalar_lea.vmem %s19, %s610
      %p612 = scmp.lt.s32.totalorder %s31, 1
      %s613 = scalar_select %p612, %s31, 1
      %s614 = smul.addr %s613, 48
      %s615 = smul.addr %s614, 4
      %s616 = scalar_lea.vmem %s0, %s615
      %p617 = scmp.lt.s32.totalorder %s31, 1
      %s618 = scalar_select %p617, %s31, 1
      %s619 = smul.addr %s618, 2
      %s620 = scalar_lea.vmem %s1, %s619
      %p621 = scmp.lt.s32.totalorder %s31, 1
      %s622 = scalar_select %p621, %s31, 1
      %s623 = smul.addr %s622, 2
      %s624 = smul.addr %s623, 8
      %s625 = scalar_lea.vmem %s18, %s624
      %p626 = scmp.lt.s32.totalorder %s31, 1
      %s627 = scalar_select %p626, %s31, 1
      %s628 = scalar_lea.vmem %s19, %s627
      %v630 = vld [vmem:[%s616] sm:$0xff]
      %v631 = vld [vmem:[%s616 + $0x8] sm:$0xff]
      %v632 = vld [vmem:[%s616 + $0x10] sm:$0xff]
      %v633 = vld [vmem:[%s616 + $0x18] sm:$0xff]
      %v634 = vld [vmem:[%s616 + $0x20] sm:$0xff]
      %v635 = vld [vmem:[%s616 + $0x28] sm:$0xff]
      %v636 = vld [vmem:[%s616 + $0x30] sm:$0xff]
      %v637 = vld [vmem:[%s616 + $0x38] sm:$0xff]
      %v638 = vld [vmem:[%s616 + $0x40] sm:$0xff]
      %v639 = vld [vmem:[%s616 + $0x48] sm:$0xff]
      %v640 = vld [vmem:[%s616 + $0x50] sm:$0xff]
      %v641 = vld [vmem:[%s616 + $0x58] sm:$0xff]
      %v642 = vld [vmem:[%s616 + $0x60] sm:$0xff]
      %v643 = vld [vmem:[%s616 + $0x68] sm:$0xff]
      %v644 = vld [vmem:[%s616 + $0x70] sm:$0xff]
      %v645 = vld [vmem:[%s616 + $0x78] sm:$0xff]
      %v646 = vld [vmem:[%s616 + $0x80] sm:$0xff]
      %v647 = vld [vmem:[%s616 + $0x88] sm:$0xff]
      %v648 = vld [vmem:[%s616 + $0x90] sm:$0xff]
      %v649 = vld [vmem:[%s616 + $0x98] sm:$0xff]
      %v650 = vld [vmem:[%s616 + $0xa0] sm:$0xff]
      %v651 = vld [vmem:[%s616 + $0xa8] sm:$0xff]
      %v652 = vld [vmem:[%s616 + $0xb0] sm:$0xff]
      %v653 = vld [vmem:[%s616 + $0xb8] sm:$0xff]
      %v654 = vld [vmem:[%s3] sm:$0xf]
      %v655 = vld [vmem:[%s3 + $0x4] sm:$0xf]
      %v656 = vld [vmem:[%s3 + $0x8] sm:$0xf]
      %v657 = vld [vmem:[%s3 + $0xc] sm:$0xf]
      %v658 = vld [vmem:[%s3 + $0x10] sm:$0xf]
      %v659 = vld [vmem:[%s3 + $0x14] sm:$0xf]
      %v660 = vld [vmem:[%s3 + $0x18] sm:$0xf]
      %v661 = vld [vmem:[%s3 + $0x1c] sm:$0xf]
      %v662 = vld [vmem:[%s3 + $0x20] sm:$0xf]
      %v663 = vld [vmem:[%s3 + $0x24] sm:$0xf]
      %v664 = vld [vmem:[%s3 + $0x28] sm:$0xf]
      %v665 = vld [vmem:[%s3 + $0x2c] sm:$0xf]
      %v666 = vld [vmem:[%s3 + $0x30] sm:$0xf]
      %v667 = vld [vmem:[%s3 + $0x34] sm:$0xf]
      %v668 = vld [vmem:[%s3 + $0x38] sm:$0xf]
      %v669 = vld [vmem:[%s3 + $0x3c] sm:$0xf]
      %v670 = vld [vmem:[%s3 + $0x40] sm:$0xf]
      %v671 = vld [vmem:[%s3 + $0x44] sm:$0xf]
      %v672 = vld [vmem:[%s3 + $0x48] sm:$0xf]
      %v673 = vld [vmem:[%s3 + $0x4c] sm:$0xf]
      %v674 = vld [vmem:[%s3 + $0x50] sm:$0xf]
      %v675 = vld [vmem:[%s3 + $0x54] sm:$0xf]
      %v676 = vld [vmem:[%s3 + $0x58] sm:$0xf]
      %v677 = vld [vmem:[%s3 + $0x5c] sm:$0xf]
      %v678 = vld [vmem:[%s3 + $0x60] sm:$0xf]
      %v679 = vld [vmem:[%s3 + $0x64] sm:$0xf]
      %v680 = vld [vmem:[%s3 + $0x68] sm:$0xf]
      %v681 = vld [vmem:[%s3 + $0x6c] sm:$0xf]
      %v682 = vld [vmem:[%s3 + $0x70] sm:$0xf]
      %v683 = vld [vmem:[%s3 + $0x74] sm:$0xf]
      %v684 = vld [vmem:[%s3 + $0x78] sm:$0xf]
      %v685 = vld [vmem:[%s3 + $0x7c] sm:$0xf]
      %v686 = vld [vmem:[%s3 + $0x80] sm:$0xf]
      %v687 = vld [vmem:[%s3 + $0x84] sm:$0xf]
      %v688 = vld [vmem:[%s3 + $0x88] sm:$0xf]
      %v689 = vld [vmem:[%s3 + $0x8c] sm:$0xf]
      %v690 = vld [vmem:[%s3 + $0x90] sm:$0xf]
      %v691 = vld [vmem:[%s3 + $0x94] sm:$0xf]
      %v692 = vld [vmem:[%s3 + $0x98] sm:$0xf]
      %v693 = vld [vmem:[%s3 + $0x9c] sm:$0xf]
      %v694 = vld [vmem:[%s3 + $0xa0] sm:$0xf]
      %v695 = vld [vmem:[%s3 + $0xa4] sm:$0xf]
      %v696 = vld [vmem:[%s3 + $0xa8] sm:$0xf]
      %v697 = vld [vmem:[%s3 + $0xac] sm:$0xf]
      %v698 = vld [vmem:[%s3 + $0xb0] sm:$0xf]
      %v699 = vld [vmem:[%s3 + $0xb4] sm:$0xf]
      %v700 = vld [vmem:[%s3 + $0xb8] sm:$0xf]
      %v701 = vld [vmem:[%s3 + $0xbc] sm:$0xf]
      %v702 = vld [vmem:[%s3 + $0xc0] sm:$0xf]
      %v703 = vld [vmem:[%s3 + $0xc4] sm:$0xf]
      %v704 = vld [vmem:[%s3 + $0xc8] sm:$0xf]
      %v705 = vld [vmem:[%s3 + $0xcc] sm:$0xf]
      %v706 = vld [vmem:[%s3 + $0xd0] sm:$0xf]
      %v707 = vld [vmem:[%s3 + $0xd4] sm:$0xf]
      %v708 = vld [vmem:[%s3 + $0xd8] sm:$0xf]
      %v709 = vld [vmem:[%s3 + $0xdc] sm:$0xf]
      %v710 = vld [vmem:[%s3 + $0xe0] sm:$0xf]
      %v711 = vld [vmem:[%s3 + $0xe4] sm:$0xf]
      %v712 = vld [vmem:[%s3 + $0xe8] sm:$0xf]
      %v713 = vld [vmem:[%s3 + $0xec] sm:$0xf]
      %v714 = vld [vmem:[%s3 + $0xf0] sm:$0xf]
      %v715 = vld [vmem:[%s3 + $0xf4] sm:$0xf]
      %v716 = vld [vmem:[%s3 + $0xf8] sm:$0xf]
      %v717 = vld [vmem:[%s3 + $0xfc] sm:$0xf]
      %v718 = vld [vmem:[%s3 + $0x100] sm:$0xf]
      %v719 = vld [vmem:[%s3 + $0x104] sm:$0xf]
      %v720 = vld [vmem:[%s3 + $0x108] sm:$0xf]
      %v721 = vld [vmem:[%s3 + $0x10c] sm:$0xf]
      %v722 = vld [vmem:[%s3 + $0x110] sm:$0xf]
      %v723 = vld [vmem:[%s3 + $0x114] sm:$0xf]
      %v724 = vld [vmem:[%s3 + $0x118] sm:$0xf]
      %v725 = vld [vmem:[%s3 + $0x11c] sm:$0xf]
      %v726 = vld [vmem:[%s3 + $0x120] sm:$0xf]
      %v727 = vld [vmem:[%s3 + $0x124] sm:$0xf]
      %v728 = vld [vmem:[%s3 + $0x128] sm:$0xf]
      %v729 = vld [vmem:[%s3 + $0x12c] sm:$0xf]
      %v730 = vld [vmem:[%s3 + $0x130] sm:$0xf]
      %v731 = vld [vmem:[%s3 + $0x134] sm:$0xf]
      %v732 = vld [vmem:[%s3 + $0x138] sm:$0xf]
      %v733 = vld [vmem:[%s3 + $0x13c] sm:$0xf]
      %v734 = vld [vmem:[%s3 + $0x140] sm:$0xf]
      %v735 = vld [vmem:[%s3 + $0x144] sm:$0xf]
      %v736 = vld [vmem:[%s3 + $0x148] sm:$0xf]
      %v737 = vld [vmem:[%s3 + $0x14c] sm:$0xf]
      %v738 = vld [vmem:[%s3 + $0x150] sm:$0xf]
      %v739 = vld [vmem:[%s3 + $0x154] sm:$0xf]
      %v740 = vld [vmem:[%s3 + $0x158] sm:$0xf]
      %v741 = vld [vmem:[%s3 + $0x15c] sm:$0xf]
      %v742 = vld [vmem:[%s3 + $0x160] sm:$0xf]
      %v743 = vld [vmem:[%s3 + $0x164] sm:$0xf]
      %v744 = vld [vmem:[%s3 + $0x168] sm:$0xf]
      %v745 = vld [vmem:[%s3 + $0x16c] sm:$0xf]
      %v746 = vld [vmem:[%s3 + $0x170] sm:$0xf]
      %v747 = vld [vmem:[%s3 + $0x174] sm:$0xf]
      %v748 = vld [vmem:[%s3 + $0x178] sm:$0xf]
      %v749 = vld [vmem:[%s3 + $0x17c] sm:$0xf]
      %v750 = vld [vmem:[%s2] sm:$0x1]
      %v751 = vperm.slane %v750, 0
      %v776 = vunpack.c.l.b16 %v630
      %v777 = vunpack.c.h.b16 %v630
      %v778 = vunpack.c.l.b16 %v631
      %v779 = vunpack.c.h.b16 %v631
      %v780 = vunpack.c.l.b16 %v632
      %v781 = vunpack.c.h.b16 %v632
      %v782 = vunpack.c.l.b16 %v633
      %v783 = vunpack.c.h.b16 %v633
      %v784 = vunpack.c.l.b16 %v634
      %v785 = vunpack.c.h.b16 %v634
      %v786 = vunpack.c.l.b16 %v635
      %v787 = vunpack.c.h.b16 %v635
      %v788 = vunpack.c.l.b16 %v636
      %v789 = vunpack.c.h.b16 %v636
      %v790 = vunpack.c.l.b16 %v637
      %v791 = vunpack.c.h.b16 %v637
      %v792 = vunpack.c.l.b16 %v638
      %v793 = vunpack.c.h.b16 %v638
      %v794 = vunpack.c.l.b16 %v639
      %v795 = vunpack.c.h.b16 %v639
      %v796 = vunpack.c.l.b16 %v640
      %v797 = vunpack.c.h.b16 %v640
      %v798 = vunpack.c.l.b16 %v641
      %v799 = vunpack.c.h.b16 %v641
      %v800 = vunpack.c.l.b16 %v642
      %v801 = vunpack.c.h.b16 %v642
      %v802 = vunpack.c.l.b16 %v643
      %v803 = vunpack.c.h.b16 %v643
      %v804 = vunpack.c.l.b16 %v644
      %v805 = vunpack.c.h.b16 %v644
      %v806 = vunpack.c.l.b16 %v645
      %v807 = vunpack.c.h.b16 %v645
      %v808 = vunpack.c.l.b16 %v646
      %v809 = vunpack.c.h.b16 %v646
      %v810 = vunpack.c.l.b16 %v647
      %v811 = vunpack.c.h.b16 %v647
      %v812 = vunpack.c.l.b16 %v648
      %v813 = vunpack.c.h.b16 %v648
      %v814 = vunpack.c.l.b16 %v649
      %v815 = vunpack.c.h.b16 %v649
      %v816 = vunpack.c.l.b16 %v650
      %v817 = vunpack.c.h.b16 %v650
      %v818 = vunpack.c.l.b16 %v651
      %v819 = vunpack.c.h.b16 %v651
      %v820 = vunpack.c.l.b16 %v652
      %v821 = vunpack.c.h.b16 %v652
      %v822 = vunpack.c.l.b16 %v653
      %v823 = vunpack.c.h.b16 %v653
      %v824 = vpack.c.b16 %v782, %v776
      %v825 = vpack.c.b16 %v783, %v777
      %v826 = vpack.c.b16 %v784, %v778
      %v827 = vpack.c.b16 %v785, %v779
      %v828 = vpack.c.b16 %v786, %v780
      %v829 = vpack.c.b16 %v787, %v781
      %v830 = vpack.c.b16 %v794, %v788
      %v831 = vpack.c.b16 %v795, %v789
      %v832 = vpack.c.b16 %v796, %v790
      %v833 = vpack.c.b16 %v797, %v791
      %v834 = vpack.c.b16 %v798, %v792
      %v835 = vpack.c.b16 %v799, %v793
      %v836 = vpack.c.b16 %v806, %v800
      %v837 = vpack.c.b16 %v807, %v801
      %v838 = vpack.c.b16 %v808, %v802
      %v839 = vpack.c.b16 %v809, %v803
      %v840 = vpack.c.b16 %v810, %v804
      %v841 = vpack.c.b16 %v811, %v805
      %v842 = vpack.c.b16 %v818, %v812
      %v843 = vpack.c.b16 %v819, %v813
      %v844 = vpack.c.b16 %v820, %v814
      %v845 = vpack.c.b16 %v821, %v815
      %v846 = vpack.c.b16 %v822, %v816
      %v847 = vpack.c.b16 %v823, %v817
      %v968 = vunpack.c.l.b16 %v654
      %v969 = vunpack.c.l.b16 %v655
      %v970 = vunpack.c.l.b16 %v656
      %v971 = vunpack.c.l.b16 %v657
      %v972 = vunpack.c.l.b16 %v658
      %v973 = vunpack.c.l.b16 %v659
      %v974 = vunpack.c.l.b16 %v660
      %v975 = vunpack.c.l.b16 %v661
      %v976 = vunpack.c.l.b16 %v662
      %v977 = vunpack.c.l.b16 %v663
      %v978 = vunpack.c.l.b16 %v664
      %v979 = vunpack.c.l.b16 %v665
      %v980 = vunpack.c.l.b16 %v666
      %v981 = vunpack.c.l.b16 %v667
      %v982 = vunpack.c.l.b16 %v668
      %v983 = vunpack.c.l.b16 %v669
      %v984 = vunpack.c.l.b16 %v670
      %v985 = vunpack.c.l.b16 %v671
      %v986 = vunpack.c.l.b16 %v672
      %v987 = vunpack.c.l.b16 %v673
      %v988 = vunpack.c.l.b16 %v674
      %v989 = vunpack.c.l.b16 %v675
      %v990 = vunpack.c.l.b16 %v676
      %v991 = vunpack.c.l.b16 %v677
      %v992 = vunpack.c.l.b16 %v678
      %v993 = vunpack.c.l.b16 %v679
      %v994 = vunpack.c.l.b16 %v680
      %v995 = vunpack.c.l.b16 %v681
      %v996 = vunpack.c.l.b16 %v682
      %v997 = vunpack.c.l.b16 %v683
      %v998 = vunpack.c.l.b16 %v684
      %v999 = vunpack.c.l.b16 %v685
      %v1000 = vunpack.c.l.b16 %v686
      %v1001 = vunpack.c.l.b16 %v687
      %v1002 = vunpack.c.l.b16 %v688
      %v1003 = vunpack.c.l.b16 %v689
      %v1004 = vunpack.c.l.b16 %v690
      %v1005 = vunpack.c.l.b16 %v691
      %v1006 = vunpack.c.l.b16 %v692
      %v1007 = vunpack.c.l.b16 %v693
      %v1008 = vunpack.c.l.b16 %v694
      %v1009 = vunpack.c.l.b16 %v695
      %v1010 = vunpack.c.l.b16 %v696
      %v1011 = vunpack.c.l.b16 %v697
      %v1012 = vunpack.c.l.b16 %v698
      %v1013 = vunpack.c.l.b16 %v699
      %v1014 = vunpack.c.l.b16 %v700
      %v1015 = vunpack.c.l.b16 %v701
      %v1016 = vunpack.c.l.b16 %v702
      %v1017 = vunpack.c.l.b16 %v703
      %v1018 = vunpack.c.l.b16 %v704
      %v1019 = vunpack.c.l.b16 %v705
      %v1020 = vunpack.c.l.b16 %v706
      %v1021 = vunpack.c.l.b16 %v707
      %v1022 = vunpack.c.l.b16 %v708
      %v1023 = vunpack.c.l.b16 %v709
      %v1024 = vunpack.c.l.b16 %v710
      %v1025 = vunpack.c.l.b16 %v711
      %v1026 = vunpack.c.l.b16 %v712
      %v1027 = vunpack.c.l.b16 %v713
      %v1028 = vunpack.c.l.b16 %v714
      %v1029 = vunpack.c.l.b16 %v715
      %v1030 = vunpack.c.l.b16 %v716
      %v1031 = vunpack.c.l.b16 %v717
      %v1032 = vunpack.c.l.b16 %v718
      %v1033 = vunpack.c.l.b16 %v719
      %v1034 = vunpack.c.l.b16 %v720
      %v1035 = vunpack.c.l.b16 %v721
      %v1036 = vunpack.c.l.b16 %v722
      %v1037 = vunpack.c.l.b16 %v723
      %v1038 = vunpack.c.l.b16 %v724
      %v1039 = vunpack.c.l.b16 %v725
      %v1040 = vunpack.c.l.b16 %v726
      %v1041 = vunpack.c.l.b16 %v727
      %v1042 = vunpack.c.l.b16 %v728
      %v1043 = vunpack.c.l.b16 %v729
      %v1044 = vunpack.c.l.b16 %v730
      %v1045 = vunpack.c.l.b16 %v731
      %v1046 = vunpack.c.l.b16 %v732
      %v1047 = vunpack.c.l.b16 %v733
      %v1048 = vunpack.c.l.b16 %v734
      %v1049 = vunpack.c.l.b16 %v735
      %v1050 = vunpack.c.l.b16 %v736
      %v1051 = vunpack.c.l.b16 %v737
      %v1052 = vunpack.c.l.b16 %v738
      %v1053 = vunpack.c.l.b16 %v739
      %v1054 = vunpack.c.l.b16 %v740
      %v1055 = vunpack.c.l.b16 %v741
      %v1056 = vunpack.c.l.b16 %v742
      %v1057 = vunpack.c.l.b16 %v743
      %v1058 = vunpack.c.l.b16 %v744
      %v1059 = vunpack.c.l.b16 %v745
      %v1060 = vunpack.c.l.b16 %v746
      %v1061 = vunpack.c.l.b16 %v747
      %v1062 = vunpack.c.l.b16 %v748
      %v1063 = vunpack.c.l.b16 %v749
      %v1064 = vpack.c.b16 %v969, %v968
      %v1065 = vpack.c.b16 %v971, %v970
      %v1066 = vpack.c.b16 %v973, %v972
      %v1067 = vpack.c.b16 %v975, %v974
      %v1068 = vpack.c.b16 %v977, %v976
      %v1069 = vpack.c.b16 %v979, %v978
      %v1070 = vpack.c.b16 %v981, %v980
      %v1071 = vpack.c.b16 %v983, %v982
      %v1072 = vpack.c.b16 %v985, %v984
      %v1073 = vpack.c.b16 %v987, %v986
      %v1074 = vpack.c.b16 %v989, %v988
      %v1075 = vpack.c.b16 %v991, %v990
      %v1076 = vpack.c.b16 %v993, %v992
      %v1077 = vpack.c.b16 %v995, %v994
      %v1078 = vpack.c.b16 %v997, %v996
      %v1079 = vpack.c.b16 %v999, %v998
      %v1080 = vpack.c.b16 %v1001, %v1000
      %v1081 = vpack.c.b16 %v1003, %v1002
      %v1082 = vpack.c.b16 %v1005, %v1004
      %v1083 = vpack.c.b16 %v1007, %v1006
      %v1084 = vpack.c.b16 %v1009, %v1008
      %v1085 = vpack.c.b16 %v1011, %v1010
      %v1086 = vpack.c.b16 %v1013, %v1012
      %v1087 = vpack.c.b16 %v1015, %v1014
      %v1088 = vpack.c.b16 %v1017, %v1016
      %v1089 = vpack.c.b16 %v1019, %v1018
      %v1090 = vpack.c.b16 %v1021, %v1020
      %v1091 = vpack.c.b16 %v1023, %v1022
      %v1092 = vpack.c.b16 %v1025, %v1024
      %v1093 = vpack.c.b16 %v1027, %v1026
      %v1094 = vpack.c.b16 %v1029, %v1028
      %v1095 = vpack.c.b16 %v1031, %v1030
      %v1096 = vpack.c.b16 %v1033, %v1032
      %v1097 = vpack.c.b16 %v1035, %v1034
      %v1098 = vpack.c.b16 %v1037, %v1036
      %v1099 = vpack.c.b16 %v1039, %v1038
      %v1100 = vpack.c.b16 %v1041, %v1040
      %v1101 = vpack.c.b16 %v1043, %v1042
      %v1102 = vpack.c.b16 %v1045, %v1044
      %v1103 = vpack.c.b16 %v1047, %v1046
      %v1104 = vpack.c.b16 %v1049, %v1048
      %v1105 = vpack.c.b16 %v1051, %v1050
      %v1106 = vpack.c.b16 %v1053, %v1052
      %v1107 = vpack.c.b16 %v1055, %v1054
      %v1108 = vpack.c.b16 %v1057, %v1056
      %v1109 = vpack.c.b16 %v1059, %v1058
      %v1110 = vpack.c.b16 %v1061, %v1060
      %v1111 = vpack.c.b16 %v1063, %v1062
      %1160 = vmatpush.bf16.msra.mxu0 %v1071
      %1161 = vmatpush.bf16.msra.mxu0 %v1070
      %1162 = vmatpush.bf16.msra.mxu0 %v1069
      %1163 = vmatpush.bf16.msra.mxu0 %v1068
      %1164 = vmatpush.bf16.msra.mxu0 %v1067
      %1165 = vmatpush.bf16.msra.mxu0 %v1066
      %1166 = vmatpush.bf16.msra.mxu0 %v1065
      %1167 = vmatpush.bf16.msra.mxu0 %v1064
      %1168 = vmatmul.bf16.gmra.mxu0 %v824
      %v1169 = vpop.f32.mrf.mxu0
      %v1170 = vadd.f32 %v751, %v1169
      %v1171 = vpop.f32.mrf.mxu0
      %v1172 = vadd.f32 %v751, %v1171
      %1173 = vmatmul.bf16.gmra.mxu0 %v830
      %v1174 = vpop.f32.mrf.mxu0
      %v1175 = vadd.f32 %v751, %v1174
      %v1176 = vpop.f32.mrf.mxu0
      %v1177 = vadd.f32 %v751, %v1176
      %1178 = vmatmul.bf16.gmra.mxu0 %v836
      %v1179 = vpop.f32.mrf.mxu0
      %v1180 = vadd.f32 %v751, %v1179
      %v1181 = vpop.f32.mrf.mxu0
      %v1182 = vadd.f32 %v751, %v1181
      %1183 = vmatmul.bf16.gmra.mxu0 %v842
      %v1184 = vpop.f32.mrf.mxu0
      %v1185 = vadd.f32 %v751, %v1184
      %v1186 = vpop.f32.mrf.mxu0
      %v1187 = vadd.f32 %v751, %v1186
      %1188 = vdwg.mxu0
      %1189 = vmatpush.bf16.msra.mxu0 %v1079
      %1190 = vmatpush.bf16.msra.mxu0 %v1078
      %1191 = vmatpush.bf16.msra.mxu0 %v1077
      %1192 = vmatpush.bf16.msra.mxu0 %v1076
      %1193 = vmatpush.bf16.msra.mxu0 %v1075
      %1194 = vmatpush.bf16.msra.mxu0 %v1074
      %1195 = vmatpush.bf16.msra.mxu0 %v1073
      %1196 = vmatpush.bf16.msra.mxu0 %v1072
      %1197 = vmatmul.bf16.gmra.mxu0 %v825
      %v1198 = vpop.f32.mrf.mxu0
      %v1199 = vadd.f32 %v1170, %v1198
      %v1200 = vpop.f32.mrf.mxu0
      %v1201 = vadd.f32 %v1172, %v1200
      %1202 = vmatmul.bf16.gmra.mxu0 %v831
      %v1203 = vpop.f32.mrf.mxu0
      %v1204 = vadd.f32 %v1175, %v1203
      %v1205 = vpop.f32.mrf.mxu0
      %v1206 = vadd.f32 %v1177, %v1205
      %1207 = vmatmul.bf16.gmra.mxu0 %v837
      %v1208 = vpop.f32.mrf.mxu0
      %v1209 = vadd.f32 %v1180, %v1208
      %v1210 = vpop.f32.mrf.mxu0
      %v1211 = vadd.f32 %v1182, %v1210
      %1212 = vmatmul.bf16.gmra.mxu0 %v843
      %v1213 = vpop.f32.mrf.mxu0
      %v1214 = vadd.f32 %v1185, %v1213
      %v1215 = vpop.f32.mrf.mxu0
      %v1216 = vadd.f32 %v1187, %v1215
      %1217 = vdwg.mxu0
      %1218 = vmatpush.bf16.msra.mxu0 %v1087
      %1219 = vmatpush.bf16.msra.mxu0 %v1086
      %1220 = vmatpush.bf16.msra.mxu0 %v1085
      %1221 = vmatpush.bf16.msra.mxu0 %v1084
      %1222 = vmatpush.bf16.msra.mxu0 %v1083
      %1223 = vmatpush.bf16.msra.mxu0 %v1082
      %1224 = vmatpush.bf16.msra.mxu0 %v1081
      %1225 = vmatpush.bf16.msra.mxu0 %v1080
      %1226 = vmatmul.bf16.gmra.mxu0 %v826
      %v1227 = vpop.f32.mrf.mxu0
      %v1228 = vadd.f32 %v1199, %v1227
      %v1229 = vpop.f32.mrf.mxu0
      %v1230 = vadd.f32 %v1201, %v1229
      %1231 = vmatmul.bf16.gmra.mxu0 %v832
      %v1232 = vpop.f32.mrf.mxu0
      %v1233 = vadd.f32 %v1204, %v1232
      %v1234 = vpop.f32.mrf.mxu0
      %v1235 = vadd.f32 %v1206, %v1234
      %1236 = vmatmul.bf16.gmra.mxu0 %v838
      %v1237 = vpop.f32.mrf.mxu0
      %v1238 = vadd.f32 %v1209, %v1237
      %v1239 = vpop.f32.mrf.mxu0
      %v1240 = vadd.f32 %v1211, %v1239
      %1241 = vmatmul.bf16.gmra.mxu0 %v844
      %v1242 = vpop.f32.mrf.mxu0
      %v1243 = vadd.f32 %v1214, %v1242
      %v1244 = vpop.f32.mrf.mxu0
      %v1245 = vadd.f32 %v1216, %v1244
      %1246 = vdwg.mxu0
      %1247 = vmatpush.bf16.msra.mxu0 %v1095
      %1248 = vmatpush.bf16.msra.mxu0 %v1094
      %1249 = vmatpush.bf16.msra.mxu0 %v1093
      %1250 = vmatpush.bf16.msra.mxu0 %v1092
      %1251 = vmatpush.bf16.msra.mxu0 %v1091
      %1252 = vmatpush.bf16.msra.mxu0 %v1090
      %1253 = vmatpush.bf16.msra.mxu0 %v1089
      %1254 = vmatpush.bf16.msra.mxu0 %v1088
      %1255 = vmatmul.bf16.gmra.mxu0 %v827
      %v1256 = vpop.f32.mrf.mxu0
      %v1257 = vadd.f32 %v1228, %v1256
      %v1258 = vpop.f32.mrf.mxu0
      %v1259 = vadd.f32 %v1230, %v1258
      %1260 = vmatmul.bf16.gmra.mxu0 %v833
      %v1261 = vpop.f32.mrf.mxu0
      %v1262 = vadd.f32 %v1233, %v1261
      %v1263 = vpop.f32.mrf.mxu0
      %v1264 = vadd.f32 %v1235, %v1263
      %1265 = vmatmul.bf16.gmra.mxu0 %v839
      %v1266 = vpop.f32.mrf.mxu0
      %v1267 = vadd.f32 %v1238, %v1266
      %v1268 = vpop.f32.mrf.mxu0
      %v1269 = vadd.f32 %v1240, %v1268
      %1270 = vmatmul.bf16.gmra.mxu0 %v845
      %v1271 = vpop.f32.mrf.mxu0
      %v1272 = vadd.f32 %v1243, %v1271
      %v1273 = vpop.f32.mrf.mxu0
      %v1274 = vadd.f32 %v1245, %v1273
      %1275 = vdwg.mxu0
      %1276 = vmatpush.bf16.msra.mxu0 %v1103
      %1277 = vmatpush.bf16.msra.mxu0 %v1102
      %1278 = vmatpush.bf16.msra.mxu0 %v1101
      %1279 = vmatpush.bf16.msra.mxu0 %v1100
      %1280 = vmatpush.bf16.msra.mxu0 %v1099
      %1281 = vmatpush.bf16.msra.mxu0 %v1098
      %1282 = vmatpush.bf16.msra.mxu0 %v1097
      %1283 = vmatpush.bf16.msra.mxu0 %v1096
      %1284 = vmatmul.bf16.gmra.mxu0 %v828
      %v1285 = vpop.f32.mrf.mxu0
      %v1286 = vadd.f32 %v1257, %v1285
      %v1287 = vpop.f32.mrf.mxu0
      %v1288 = vadd.f32 %v1259, %v1287
      %1289 = vmatmul.bf16.gmra.mxu0 %v834
      %v1290 = vpop.f32.mrf.mxu0
      %v1291 = vadd.f32 %v1262, %v1290
      %v1292 = vpop.f32.mrf.mxu0
      %v1293 = vadd.f32 %v1264, %v1292
      %1294 = vmatmul.bf16.gmra.mxu0 %v840
      %v1295 = vpop.f32.mrf.mxu0
      %v1296 = vadd.f32 %v1267, %v1295
      %v1297 = vpop.f32.mrf.mxu0
      %v1298 = vadd.f32 %v1269, %v1297
      %1299 = vmatmul.bf16.gmra.mxu0 %v846
      %v1300 = vpop.f32.mrf.mxu0
      %v1301 = vadd.f32 %v1272, %v1300
      %v1302 = vpop.f32.mrf.mxu0
      %v1303 = vadd.f32 %v1274, %v1302
      %1304 = vdwg.mxu0
      %1305 = vmatpush.bf16.msra.mxu0 %v1111
      %1306 = vmatpush.bf16.msra.mxu0 %v1110
      %1307 = vmatpush.bf16.msra.mxu0 %v1109
      %1308 = vmatpush.bf16.msra.mxu0 %v1108
      %1309 = vmatpush.bf16.msra.mxu0 %v1107
      %1310 = vmatpush.bf16.msra.mxu0 %v1106
      %1311 = vmatpush.bf16.msra.mxu0 %v1105
      %1312 = vmatpush.bf16.msra.mxu0 %v1104
      %1313 = vmatmul.bf16.gmra.mxu0 %v829
      %v1314 = vpop.f32.mrf.mxu0
      %v1315 = vadd.f32 %v1286, %v1314
      %v1316 = vpop.f32.mrf.mxu0
      %v1317 = vadd.f32 %v1288, %v1316
      %1318 = vmatmul.bf16.gmra.mxu0 %v835
      %v1319 = vpop.f32.mrf.mxu0
      %v1320 = vadd.f32 %v1291, %v1319
      %v1321 = vpop.f32.mrf.mxu0
      %v1322 = vadd.f32 %v1293, %v1321
      %1323 = vmatmul.bf16.gmra.mxu0 %v841
      %v1324 = vpop.f32.mrf.mxu0
      %v1325 = vadd.f32 %v1296, %v1324
      %v1326 = vpop.f32.mrf.mxu0
      %v1327 = vadd.f32 %v1298, %v1326
      %1328 = vmatmul.bf16.gmra.mxu0 %v847
      %v1329 = vpop.f32.mrf.mxu0
      %v1330 = vadd.f32 %v1301, %v1329
      %v1331 = vpop.f32.mrf.mxu0
      %v1332 = vadd.f32 %v1303, %v1331
      %1333 = vdwg.mxu0
      %v1334 = vld [vmem:[%s4] sm:$0xff]
      %v1335 = vld [vmem:[%s4 + $0x8] sm:$0xff]
      %v1336 = vld [vmem:[%s4 + $0x10] sm:$0xff]
      %v1337 = vld [vmem:[%s4 + $0x18] sm:$0xff]
      %v1338 = vld [vmem:[%s4 + $0x20] sm:$0xff]
      %v1339 = vld [vmem:[%s4 + $0x28] sm:$0xff]
      %v1340 = vld [vmem:[%s4 + $0x30] sm:$0xff]
      %v1341 = vld [vmem:[%s4 + $0x38] sm:$0xff]
      %v1342 = vadd.f32 %v1315, %v1334
      %v1343 = vadd.f32 %v1317, %v1335
      %v1344 = vadd.f32 %v1320, %v1336
      %v1345 = vadd.f32 %v1322, %v1337
      %v1346 = vadd.f32 %v1325, %v1338
      %v1347 = vadd.f32 %v1327, %v1339
      %v1348 = vadd.f32 %v1330, %v1340
      %v1349 = vadd.f32 %v1332, %v1341
      %v1350 = vld [vmem:[%s2 + $0x1] sm:$0x1]
      %v1351 = vld [vmem:[%s2 + $0x2] sm:$0x1]
      %vm1352 = vcmask 523264
      %v1353 = vsel %vm1352, %v1342, 0.0
      %1354 = vadd.xlane.f32.xlu0 %v1353
      %v1355 = vpop.xlane.xlu0 %1354
      %v1356 = vsel %vm1352, %v1343, 0.0
      %1357 = vadd.xlane.f32.xlu0 %v1356
      %v1358 = vpop.xlane.xlu0 %1357
      %v1359 = vsel %vm1352, %v1344, 0.0
      %1360 = vadd.xlane.f32.xlu0 %v1359
      %v1361 = vpop.xlane.xlu0 %1360
      %v1362 = vsel %vm1352, %v1345, 0.0
      %1363 = vadd.xlane.f32.xlu0 %v1362
      %v1364 = vpop.xlane.xlu0 %1363
      %v1365 = vsel %vm1352, %v1346, 0.0
      %1366 = vadd.xlane.f32.xlu0 %v1365
      %v1367 = vpop.xlane.xlu0 %1366
      %v1368 = vsel %vm1352, %v1347, 0.0
      %1369 = vadd.xlane.f32.xlu0 %v1368
      %v1370 = vpop.xlane.xlu0 %1369
      %v1371 = vsel %vm1352, %v1348, 0.0
      %1372 = vadd.xlane.f32.xlu0 %v1371
      %v1373 = vpop.xlane.xlu0 %1372
      %v1374 = vsel %vm1352, %v1349, 0.0
      %1375 = vadd.xlane.f32.xlu0 %v1374
      %v1376 = vpop.xlane.xlu0 %1375
      %v1377 = vrcp.pop 64.0
      %v1378 = vmul.f32 64.0, %v1377
      %v1379 = vsub.f32 1.0, %v1378
      %v1380 = vmul.f32 %v1377, %v1379
      %v1381 = vadd.f32 %v1377, %v1380
      %vm1382 = vweird.f32 %v1377
      %v1383 = vsel %vm1382, %v1377, %v1381
      %v1384 = vmul.f32 %v1355, %v1383
      %v1385 = vmul.f32 %v1358, %v1383
      %v1386 = vmul.f32 %v1361, %v1383
      %v1387 = vmul.f32 %v1364, %v1383
      %v1388 = vmul.f32 %v1367, %v1383
      %v1389 = vmul.f32 %v1370, %v1383
      %v1390 = vmul.f32 %v1373, %v1383
      %v1391 = vmul.f32 %v1376, %v1383
      %v1392 = vsub.f32 %v1342, %v1384
      %v1393 = vsub.f32 %v1343, %v1385
      %v1394 = vsub.f32 %v1344, %v1386
      %v1395 = vsub.f32 %v1345, %v1387
      %v1396 = vsub.f32 %v1346, %v1388
      %v1397 = vsub.f32 %v1347, %v1389
      %v1398 = vsub.f32 %v1348, %v1390
      %v1399 = vsub.f32 %v1349, %v1391
      %v1400 = vmul.f32 %v1392, %v1392
      %v1401 = vmul.f32 %v1393, %v1393
      %v1402 = vmul.f32 %v1394, %v1394
      %v1403 = vmul.f32 %v1395, %v1395
      %v1404 = vmul.f32 %v1396, %v1396
      %v1405 = vmul.f32 %v1397, %v1397
      %v1406 = vmul.f32 %v1398, %v1398
      %v1407 = vmul.f32 %v1399, %v1399
      %v1408 = vsel %vm1352, %v1400, 0.0
      %1409 = vadd.xlane.f32.xlu0 %v1408
      %v1410 = vpop.xlane.xlu0 %1409
      %v1411 = vsel %vm1352, %v1401, 0.0
      %1412 = vadd.xlane.f32.xlu0 %v1411
      %v1413 = vpop.xlane.xlu0 %1412
      %v1414 = vsel %vm1352, %v1402, 0.0
      %1415 = vadd.xlane.f32.xlu0 %v1414
      %v1416 = vpop.xlane.xlu0 %1415
      %v1417 = vsel %vm1352, %v1403, 0.0
      %1418 = vadd.xlane.f32.xlu0 %v1417
      %v1419 = vpop.xlane.xlu0 %1418
      %v1420 = vsel %vm1352, %v1404, 0.0
      %1421 = vadd.xlane.f32.xlu0 %v1420
      %v1422 = vpop.xlane.xlu0 %1421
      %v1423 = vsel %vm1352, %v1405, 0.0
      %1424 = vadd.xlane.f32.xlu0 %v1423
      %v1425 = vpop.xlane.xlu0 %1424
      %v1426 = vsel %vm1352, %v1406, 0.0
      %1427 = vadd.xlane.f32.xlu0 %v1426
      %v1428 = vpop.xlane.xlu0 %1427
      %v1429 = vsel %vm1352, %v1407, 0.0
      %1430 = vadd.xlane.f32.xlu0 %v1429
      %v1431 = vpop.xlane.xlu0 %1430
      %v1432 = vmul.f32 %v1410, %v1383
      %v1433 = vmul.f32 %v1413, %v1383
      %v1434 = vmul.f32 %v1416, %v1383
      %v1435 = vmul.f32 %v1419, %v1383
      %v1436 = vmul.f32 %v1422, %v1383
      %v1437 = vmul.f32 %v1425, %v1383
      %v1438 = vmul.f32 %v1428, %v1383
      %v1439 = vmul.f32 %v1431, %v1383
      %v1440 = vadd.f32 %v1432, 1e-06
      %v1441 = vadd.f32 %v1433, 1e-06
      %v1442 = vadd.f32 %v1434, 1e-06
      %v1443 = vadd.f32 %v1435, 1e-06
      %v1444 = vadd.f32 %v1436, 1e-06
      %v1445 = vadd.f32 %v1437, 1e-06
      %v1446 = vadd.f32 %v1438, 1e-06
      %v1447 = vadd.f32 %v1439, 1e-06
      %v1448 = vrsqrt.pop %v1440
      %v1449 = vmul.f32 %v1448, %v1440
      %v1450 = vmul.f32 %v1449, %v1448
      %v1451 = vmul.f32 0.5, %v1450
      %v1452 = vsub.f32 1.5, %v1451
      %v1453 = vmul.f32 %v1448, %v1452
      %vm1454 = vweird.f32 %v1440
      %vm1455 = vweird.f32 %v1448
      %vm1456 = vmor %vm1454, %vm1455
      %v1457 = vsel %vm1456, %v1448, %v1453
      %v1458 = vrsqrt.pop %v1441
      %v1459 = vmul.f32 %v1458, %v1441
      %v1460 = vmul.f32 %v1459, %v1458
      %v1461 = vmul.f32 0.5, %v1460
      %v1462 = vsub.f32 1.5, %v1461
      %v1463 = vmul.f32 %v1458, %v1462
      %vm1464 = vweird.f32 %v1441
      %vm1465 = vweird.f32 %v1458
      %vm1466 = vmor %vm1464, %vm1465
      %v1467 = vsel %vm1466, %v1458, %v1463
      %v1468 = vrsqrt.pop %v1442
      %v1469 = vmul.f32 %v1468, %v1442
      %v1470 = vmul.f32 %v1469, %v1468
      %v1471 = vmul.f32 0.5, %v1470
      %v1472 = vsub.f32 1.5, %v1471
      %v1473 = vmul.f32 %v1468, %v1472
      %vm1474 = vweird.f32 %v1442
      %vm1475 = vweird.f32 %v1468
      %vm1476 = vmor %vm1474, %vm1475
      %v1477 = vsel %vm1476, %v1468, %v1473
      %v1478 = vrsqrt.pop %v1443
      %v1479 = vmul.f32 %v1478, %v1443
      %v1480 = vmul.f32 %v1479, %v1478
      %v1481 = vmul.f32 0.5, %v1480
      %v1482 = vsub.f32 1.5, %v1481
      %v1483 = vmul.f32 %v1478, %v1482
      %vm1484 = vweird.f32 %v1443
      %vm1485 = vweird.f32 %v1478
      %vm1486 = vmor %vm1484, %vm1485
      %v1487 = vsel %vm1486, %v1478, %v1483
      %v1488 = vrsqrt.pop %v1444
      %v1489 = vmul.f32 %v1488, %v1444
      %v1490 = vmul.f32 %v1489, %v1488
      %v1491 = vmul.f32 0.5, %v1490
      %v1492 = vsub.f32 1.5, %v1491
      %v1493 = vmul.f32 %v1488, %v1492
      %vm1494 = vweird.f32 %v1444
      %vm1495 = vweird.f32 %v1488
      %vm1496 = vmor %vm1494, %vm1495
      %v1497 = vsel %vm1496, %v1488, %v1493
      %v1498 = vrsqrt.pop %v1445
      %v1499 = vmul.f32 %v1498, %v1445
      %v1500 = vmul.f32 %v1499, %v1498
      %v1501 = vmul.f32 0.5, %v1500
      %v1502 = vsub.f32 1.5, %v1501
      %v1503 = vmul.f32 %v1498, %v1502
      %vm1504 = vweird.f32 %v1445
      %vm1505 = vweird.f32 %v1498
      %vm1506 = vmor %vm1504, %vm1505
      %v1507 = vsel %vm1506, %v1498, %v1503
      %v1508 = vrsqrt.pop %v1446
      %v1509 = vmul.f32 %v1508, %v1446
      %v1510 = vmul.f32 %v1509, %v1508
      %v1511 = vmul.f32 0.5, %v1510
      %v1512 = vsub.f32 1.5, %v1511
      %v1513 = vmul.f32 %v1508, %v1512
      %vm1514 = vweird.f32 %v1446
      %vm1515 = vweird.f32 %v1508
      %vm1516 = vmor %vm1514, %vm1515
      %v1517 = vsel %vm1516, %v1508, %v1513
      %v1518 = vrsqrt.pop %v1447
      %v1519 = vmul.f32 %v1518, %v1447
      %v1520 = vmul.f32 %v1519, %v1518
      %v1521 = vmul.f32 0.5, %v1520
      %v1522 = vsub.f32 1.5, %v1521
      %v1523 = vmul.f32 %v1518, %v1522
      %vm1524 = vweird.f32 %v1447
      %vm1525 = vweird.f32 %v1518
      %vm1526 = vmor %vm1524, %vm1525
      %v1527 = vsel %vm1526, %v1518, %v1523
      %v1528 = vmul.f32 %v1392, %v1457
      %v1529 = vmul.f32 %v1393, %v1467
      %v1530 = vmul.f32 %v1394, %v1477
      %v1531 = vmul.f32 %v1395, %v1487
      %v1532 = vmul.f32 %v1396, %v1497
      %v1533 = vmul.f32 %v1397, %v1507
      %v1534 = vmul.f32 %v1398, %v1517
      %v1535 = vmul.f32 %v1399, %v1527
      %v1536 = vperm.slane %v1350, 0
      %v1537 = vmul.f32 %v1528, %v1536
      %v1538 = vmul.f32 %v1529, %v1536
      %v1539 = vmul.f32 %v1530, %v1536
      %v1540 = vmul.f32 %v1531, %v1536
      %v1541 = vmul.f32 %v1532, %v1536
      %v1542 = vmul.f32 %v1533, %v1536
      %v1543 = vmul.f32 %v1534, %v1536
      %v1544 = vmul.f32 %v1535, %v1536
      %v1545 = vperm.slane %v1351, 0
      %v1546 = vadd.f32 %v1537, %v1545
      %v1547 = vadd.f32 %v1538, %v1545
      %v1548 = vadd.f32 %v1539, %v1545
      %v1549 = vadd.f32 %v1540, %v1545
      %v1550 = vadd.f32 %v1541, %v1545
      %v1551 = vadd.f32 %v1542, %v1545
      %v1552 = vadd.f32 %v1543, %v1545
      %v1553 = vadd.f32 %v1544, %v1545
      %v1554 = vpack.c.bf16 %v1547, %v1546
      %v1555 = vpack.c.bf16 %v1549, %v1548
      %v1556 = vpack.c.bf16 %v1551, %v1550
      %v1557 = vpack.c.bf16 %v1553, %v1552
      %v1558 = vld [vmem:[%s5] sm:$0xf]
      %v1559 = vld [vmem:[%s5 + $0x4] sm:$0xf]
      %v1560 = vld [vmem:[%s5 + $0x8] sm:$0xf]
      %v1561 = vld [vmem:[%s5 + $0xc] sm:$0xf]
      %v1562 = vld [vmem:[%s5 + $0x10] sm:$0xf]
      %v1563 = vld [vmem:[%s5 + $0x14] sm:$0xf]
      %v1564 = vld [vmem:[%s5 + $0x18] sm:$0xf]
      %v1565 = vld [vmem:[%s5 + $0x1c] sm:$0xf]
      %v1566 = vld [vmem:[%s2 + $0x3] sm:$0x1]
      %v1567 = vperm.slane %v1566, 0
      %v1576 = vunpack.c.l.b16 %v1558
      %v1577 = vunpack.c.l.b16 %v1559
      %v1578 = vunpack.c.l.b16 %v1560
      %v1579 = vunpack.c.l.b16 %v1561
      %v1580 = vunpack.c.l.b16 %v1562
      %v1581 = vunpack.c.l.b16 %v1563
      %v1582 = vunpack.c.l.b16 %v1564
      %v1583 = vunpack.c.l.b16 %v1565
      %v1584 = vpack.c.b16 %v1577, %v1576
      %v1585 = vpack.c.b16 %v1579, %v1578
      %v1586 = vpack.c.b16 %v1581, %v1580
      %v1587 = vpack.c.b16 %v1583, %v1582
      %v1593 = vsel %vm1352, %v1554, 0
      %v1596 = vsel %vm1352, %v1555, 0
      %v1599 = vsel %vm1352, %v1556, 0
      %v1602 = vsel %vm1352, %v1557, 0
      %1604 = vmatpush.bf16.msra.mxu0 0
      %1605 = vmatpush.bf16.msra.mxu0 0
      %1606 = vmatpush.bf16.msra.mxu0 0
      %1607 = vmatpush.bf16.msra.mxu0 0
      %1608 = vmatpush.bf16.msra.mxu0 %v1587
      %1609 = vmatpush.bf16.msra.mxu0 %v1586
      %1610 = vmatpush.bf16.msra.mxu0 %v1585
      %1611 = vmatpush.bf16.msra.mxu0 %v1584
      %1612 = vmatmul.bf16.gmra.mxu0 %v1593
      %v1613 = vpop.f32.mrf.mxu0
      %v1614 = vadd.f32 %v1567, %v1613
      %v1615 = vpop.f32.mrf.mxu0
      %v1616 = vadd.f32 %v1567, %v1615
      %1617 = vmatmul.bf16.gmra.mxu0 %v1596
      %v1618 = vpop.f32.mrf.mxu0
      %v1619 = vadd.f32 %v1567, %v1618
      %v1620 = vpop.f32.mrf.mxu0
      %v1621 = vadd.f32 %v1567, %v1620
      %1622 = vmatmul.bf16.gmra.mxu0 %v1599
      %v1623 = vpop.f32.mrf.mxu0
      %v1624 = vadd.f32 %v1567, %v1623
      %v1625 = vpop.f32.mrf.mxu0
      %v1626 = vadd.f32 %v1567, %v1625
      %1627 = vmatmul.bf16.gmra.mxu0 %v1602
      %v1628 = vpop.f32.mrf.mxu0
      %v1629 = vadd.f32 %v1567, %v1628
      %v1630 = vpop.f32.mrf.mxu0
      %v1631 = vadd.f32 %v1567, %v1630
      %1632 = vdwg.mxu0
      %s1633 = scalar_lea.vmem %s5, 32
      %v1634 = vld [vmem:[%s1633] sm:$0xf]
      %v1635 = vld [vmem:[%s1633 + $0x4] sm:$0xf]
      %v1636 = vld [vmem:[%s1633 + $0x8] sm:$0xf]
      %v1637 = vld [vmem:[%s1633 + $0xc] sm:$0xf]
      %v1638 = vld [vmem:[%s1633 + $0x10] sm:$0xf]
      %v1639 = vld [vmem:[%s1633 + $0x14] sm:$0xf]
      %v1640 = vld [vmem:[%s1633 + $0x18] sm:$0xf]
      %v1641 = vld [vmem:[%s1633 + $0x1c] sm:$0xf]
      %v1642 = vld [vmem:[%s2 + $0x4] sm:$0x1]
      %v1643 = vperm.slane %v1642, 0
      %v1652 = vunpack.c.l.b16 %v1634
      %v1653 = vunpack.c.l.b16 %v1635
      %v1654 = vunpack.c.l.b16 %v1636
      %v1655 = vunpack.c.l.b16 %v1637
      %v1656 = vunpack.c.l.b16 %v1638
      %v1657 = vunpack.c.l.b16 %v1639
      %v1658 = vunpack.c.l.b16 %v1640
      %v1659 = vunpack.c.l.b16 %v1641
      %v1660 = vpack.c.b16 %v1653, %v1652
      %v1661 = vpack.c.b16 %v1655, %v1654
      %v1662 = vpack.c.b16 %v1657, %v1656
      %v1663 = vpack.c.b16 %v1659, %v1658
      %1668 = vmatpush.bf16.msra.mxu0 0
      %1669 = vmatpush.bf16.msra.mxu0 0
      %1670 = vmatpush.bf16.msra.mxu0 0
      %1671 = vmatpush.bf16.msra.mxu0 0
      %1672 = vmatpush.bf16.msra.mxu0 %v1663
      %1673 = vmatpush.bf16.msra.mxu0 %v1662
      %1674 = vmatpush.bf16.msra.mxu0 %v1661
      %1675 = vmatpush.bf16.msra.mxu0 %v1660
      %1676 = vmatmul.bf16.gmra.mxu0 %v1593
      %v1677 = vpop.f32.mrf.mxu0
      %v1678 = vadd.f32 %v1643, %v1677
      %v1679 = vpop.f32.mrf.mxu0
      %v1680 = vadd.f32 %v1643, %v1679
      %1681 = vmatmul.bf16.gmra.mxu0 %v1596
      %v1682 = vpop.f32.mrf.mxu0
      %v1683 = vadd.f32 %v1643, %v1682
      %v1684 = vpop.f32.mrf.mxu0
      %v1685 = vadd.f32 %v1643, %v1684
      %1686 = vmatmul.bf16.gmra.mxu0 %v1599
      %v1687 = vpop.f32.mrf.mxu0
      %v1688 = vadd.f32 %v1643, %v1687
      %v1689 = vpop.f32.mrf.mxu0
      %v1690 = vadd.f32 %v1643, %v1689
      %1691 = vmatmul.bf16.gmra.mxu0 %v1602
      %v1692 = vpop.f32.mrf.mxu0
      %v1693 = vadd.f32 %v1643, %v1692
      %v1694 = vpop.f32.mrf.mxu0
      %v1695 = vadd.f32 %v1643, %v1694
      %1696 = vdwg.mxu0
      %s1697 = scalar_lea.vmem %s5, 64
      %v1698 = vld [vmem:[%s1697] sm:$0xf]
      %v1699 = vld [vmem:[%s1697 + $0x4] sm:$0xf]
      %v1700 = vld [vmem:[%s1697 + $0x8] sm:$0xf]
      %v1701 = vld [vmem:[%s1697 + $0xc] sm:$0xf]
      %v1702 = vld [vmem:[%s1697 + $0x10] sm:$0xf]
      %v1703 = vld [vmem:[%s1697 + $0x14] sm:$0xf]
      %v1704 = vld [vmem:[%s1697 + $0x18] sm:$0xf]
      %v1705 = vld [vmem:[%s1697 + $0x1c] sm:$0xf]
      %v1706 = vld [vmem:[%s2 + $0x5] sm:$0x1]
      %v1707 = vperm.slane %v1706, 0
      %v1716 = vunpack.c.l.b16 %v1698
      %v1717 = vunpack.c.l.b16 %v1699
      %v1718 = vunpack.c.l.b16 %v1700
      %v1719 = vunpack.c.l.b16 %v1701
      %v1720 = vunpack.c.l.b16 %v1702
      %v1721 = vunpack.c.l.b16 %v1703
      %v1722 = vunpack.c.l.b16 %v1704
      %v1723 = vunpack.c.l.b16 %v1705
      %v1724 = vpack.c.b16 %v1717, %v1716
      %v1725 = vpack.c.b16 %v1719, %v1718
      %v1726 = vpack.c.b16 %v1721, %v1720
      %v1727 = vpack.c.b16 %v1723, %v1722
      %1732 = vmatpush.bf16.msra.mxu0 0
      %1733 = vmatpush.bf16.msra.mxu0 0
      %1734 = vmatpush.bf16.msra.mxu0 0
      %1735 = vmatpush.bf16.msra.mxu0 0
      %1736 = vmatpush.bf16.msra.mxu0 %v1727
      %1737 = vmatpush.bf16.msra.mxu0 %v1726
      %1738 = vmatpush.bf16.msra.mxu0 %v1725
      %1739 = vmatpush.bf16.msra.mxu0 %v1724
      %1740 = vmatmul.bf16.gmra.mxu0 %v1593
      %v1741 = vpop.f32.mrf.mxu0
      %v1742 = vadd.f32 %v1707, %v1741
      %v1743 = vpop.f32.mrf.mxu0
      %v1744 = vadd.f32 %v1707, %v1743
      %1745 = vmatmul.bf16.gmra.mxu0 %v1596
      %v1746 = vpop.f32.mrf.mxu0
      %v1747 = vadd.f32 %v1707, %v1746
      %v1748 = vpop.f32.mrf.mxu0
      %v1749 = vadd.f32 %v1707, %v1748
      %1750 = vmatmul.bf16.gmra.mxu0 %v1599
      %v1751 = vpop.f32.mrf.mxu0
      %v1752 = vadd.f32 %v1707, %v1751
      %v1753 = vpop.f32.mrf.mxu0
      %v1754 = vadd.f32 %v1707, %v1753
      %1755 = vmatmul.bf16.gmra.mxu0 %v1602
      %v1756 = vpop.f32.mrf.mxu0
      %v1757 = vadd.f32 %v1707, %v1756
      %v1758 = vpop.f32.mrf.mxu0
      %v1759 = vadd.f32 %v1707, %v1758
      %1760 = vdwg.mxu0
      %v1761 = vpack.c.bf16 %v1616, %v1614
      %v1762 = vpack.c.bf16 %v1621, %v1619
      %v1763 = vpack.c.bf16 %v1626, %v1624
      %v1764 = vpack.c.bf16 %v1631, %v1629
      %v1765 = vpack.c.bf16 %v1680, %v1678
      %v1766 = vpack.c.bf16 %v1685, %v1683
      %v1767 = vpack.c.bf16 %v1690, %v1688
      %v1768 = vpack.c.bf16 %v1695, %v1693
      %vm1769 = vcmask 261120
      %v1771 = vsel %vm1769, %v1761, 0
      %v1774 = vsel %vm1769, %v1762, 0
      %v1777 = vsel %vm1769, %v1763, 0
      %v1780 = vsel %vm1769, %v1764, 0
      %v1783 = vsel %vm1769, %v1765, 0
      %v1786 = vsel %vm1769, %v1766, 0
      %v1789 = vsel %vm1769, %v1767, 0
      %v1792 = vsel %vm1769, %v1768, 0
      %1794 = vmatpush.bf16.xpose.msra.mxu0 0
      %1795 = vmatpush.bf16.xpose.msra.mxu0 0
      %1796 = vmatpush.bf16.xpose.msra.mxu0 0
      %1797 = vmatpush.bf16.xpose.msra.mxu0 0
      %1798 = vmatpush.bf16.xpose.msra.mxu0 %v1792
      %1799 = vmatpush.bf16.xpose.msra.mxu0 %v1789
      %1800 = vmatpush.bf16.xpose.msra.mxu0 %v1786
      %1801 = vmatpush.bf16.xpose.msra.mxu0 %v1783
      %1802 = vmatmul.bf16.gmra.mxu0 %v1771
      %v1803 = vpop.f32.mrf.mxu0
      %v1804 = vadd.f32 0.0, %v1803
      %v1805 = vpop.f32.mrf.mxu0
      %v1806 = vadd.f32 0.0, %v1805
      %1807 = vmatmul.bf16.gmra.mxu0 %v1774
      %v1808 = vpop.f32.mrf.mxu0
      %v1809 = vadd.f32 0.0, %v1808
      %v1810 = vpop.f32.mrf.mxu0
      %v1811 = vadd.f32 0.0, %v1810
      %1812 = vmatmul.bf16.gmra.mxu0 %v1777
      %v1813 = vpop.f32.mrf.mxu0
      %v1814 = vadd.f32 0.0, %v1813
      %v1815 = vpop.f32.mrf.mxu0
      %v1816 = vadd.f32 0.0, %v1815
      %1817 = vmatmul.bf16.gmra.mxu0 %v1780
      %v1818 = vpop.f32.mrf.mxu0
      %v1819 = vadd.f32 0.0, %v1818
      %v1820 = vpop.f32.mrf.mxu0
      %v1821 = vadd.f32 0.0, %v1820
      %1822 = vdwg.mxu0
      %v1823 = vmul.f32 %v1804, 0.17677669
      %v1824 = vmul.f32 %v1806, 0.17677669
      %v1825 = vmul.f32 %v1809, 0.17677669
      %v1826 = vmul.f32 %v1811, 0.17677669
      %v1827 = vmul.f32 %v1814, 0.17677669
      %v1828 = vmul.f32 %v1816, 0.17677669
      %v1829 = vmul.f32 %v1819, 0.17677669
      %v1830 = vmul.f32 %v1821, 0.17677669
      %v1831 = vsel %vm1352, %v1823, -inf
      %1832 = vmax.xlane.f32.xlu0 %v1831
      %v1833 = vpop.xlane.xlu0 %1832
      %v1834 = vsel %vm1352, %v1824, -inf
      %1835 = vmax.xlane.f32.xlu0 %v1834
      %v1836 = vpop.xlane.xlu0 %1835
      %v1837 = vsel %vm1352, %v1825, -inf
      %1838 = vmax.xlane.f32.xlu0 %v1837
      %v1839 = vpop.xlane.xlu0 %1838
      %v1840 = vsel %vm1352, %v1826, -inf
      %1841 = vmax.xlane.f32.xlu0 %v1840
      %v1842 = vpop.xlane.xlu0 %1841
      %v1843 = vsel %vm1352, %v1827, -inf
      %1844 = vmax.xlane.f32.xlu0 %v1843
      %v1845 = vpop.xlane.xlu0 %1844
      %v1846 = vsel %vm1352, %v1828, -inf
      %1847 = vmax.xlane.f32.xlu0 %v1846
      %v1848 = vpop.xlane.xlu0 %1847
      %v1849 = vsel %vm1352, %v1829, -inf
      %1850 = vmax.xlane.f32.xlu0 %v1849
      %v1851 = vpop.xlane.xlu0 %1850
      %v1852 = vsel %vm1352, %v1830, -inf
      %1853 = vmax.xlane.f32.xlu0 %v1852
      %v1854 = vpop.xlane.xlu0 %1853
      %v1855 = vsub.f32 %v1823, %v1833
      %v1856 = vsub.f32 %v1824, %v1836
      %v1857 = vsub.f32 %v1825, %v1839
      %v1858 = vsub.f32 %v1826, %v1842
      %v1859 = vsub.f32 %v1827, %v1845
      %v1860 = vsub.f32 %v1828, %v1848
      %v1861 = vsub.f32 %v1829, %v1851
      %v1862 = vsub.f32 %v1830, %v1854
      %v1863 = vmul.f32 %v1855, 1.442695
      %v1864 = vpow.pop %v1863
      %v1865 = vmul.f32 %v1856, 1.442695
      %v1866 = vpow.pop %v1865
      %v1867 = vmul.f32 %v1857, 1.442695
      %v1868 = vpow.pop %v1867
      %v1869 = vmul.f32 %v1858, 1.442695
      %v1870 = vpow.pop %v1869
      %v1871 = vmul.f32 %v1859, 1.442695
      %v1872 = vpow.pop %v1871
      %v1873 = vmul.f32 %v1860, 1.442695
      %v1874 = vpow.pop %v1873
      %v1875 = vmul.f32 %v1861, 1.442695
      %v1876 = vpow.pop %v1875
      %v1877 = vmul.f32 %v1862, 1.442695
      %v1878 = vpow.pop %v1877
      %v1879 = vsel %vm1352, %v1864, 0.0
      %1880 = vadd.xlane.f32.xlu0 %v1879
      %v1881 = vpop.xlane.xlu0 %1880
      %v1882 = vsel %vm1352, %v1866, 0.0
      %1883 = vadd.xlane.f32.xlu0 %v1882
      %v1884 = vpop.xlane.xlu0 %1883
      %v1885 = vsel %vm1352, %v1868, 0.0
      %1886 = vadd.xlane.f32.xlu0 %v1885
      %v1887 = vpop.xlane.xlu0 %1886
      %v1888 = vsel %vm1352, %v1870, 0.0
      %1889 = vadd.xlane.f32.xlu0 %v1888
      %v1890 = vpop.xlane.xlu0 %1889
      %v1891 = vsel %vm1352, %v1872, 0.0
      %1892 = vadd.xlane.f32.xlu0 %v1891
      %v1893 = vpop.xlane.xlu0 %1892
      %v1894 = vsel %vm1352, %v1874, 0.0
      %1895 = vadd.xlane.f32.xlu0 %v1894
      %v1896 = vpop.xlane.xlu0 %1895
      %v1897 = vsel %vm1352, %v1876, 0.0
      %1898 = vadd.xlane.f32.xlu0 %v1897
      %v1899 = vpop.xlane.xlu0 %1898
      %v1900 = vsel %vm1352, %v1878, 0.0
      %1901 = vadd.xlane.f32.xlu0 %v1900
      %v1902 = vpop.xlane.xlu0 %1901
      %v1903 = vrcp.pop %v1881
      %v1904 = vrcp.pop %v1884
      %v1905 = vrcp.pop %v1887
      %v1906 = vrcp.pop %v1890
      %v1907 = vrcp.pop %v1893
      %v1908 = vrcp.pop %v1896
      %v1909 = vrcp.pop %v1899
      %v1910 = vrcp.pop %v1902
      %v1911 = vmul.f32 %v1864, %v1903
      %v1912 = vmul.f32 %v1866, %v1904
      %v1913 = vmul.f32 %v1868, %v1905
      %v1914 = vmul.f32 %v1870, %v1906
      %v1915 = vmul.f32 %v1872, %v1907
      %v1916 = vmul.f32 %v1874, %v1908
      %v1917 = vmul.f32 %v1876, %v1909
      %v1918 = vmul.f32 %v1878, %v1910
      %v1919 = vpack.c.bf16 %v1912, %v1911
      %v1920 = vpack.c.bf16 %v1914, %v1913
      %v1921 = vpack.c.bf16 %v1916, %v1915
      %v1922 = vpack.c.bf16 %v1918, %v1917
      %v1923 = vpack.c.bf16 %v1744, %v1742
      %v1924 = vpack.c.bf16 %v1749, %v1747
      %v1925 = vpack.c.bf16 %v1754, %v1752
      %v1926 = vpack.c.bf16 %v1759, %v1757
      %v1928 = vsel %vm1352, %v1919, 0
      %v1931 = vsel %vm1352, %v1920, 0
      %v1934 = vsel %vm1352, %v1921, 0
      %v1937 = vsel %vm1352, %v1922, 0
      %1939 = vmatpush.bf16.msra.mxu0 0
      %1940 = vmatpush.bf16.msra.mxu0 0
      %1941 = vmatpush.bf16.msra.mxu0 0
      %1942 = vmatpush.bf16.msra.mxu0 0
      %1943 = vmatpush.bf16.msra.mxu0 %v1926
      %1944 = vmatpush.bf16.msra.mxu0 %v1925
      %1945 = vmatpush.bf16.msra.mxu0 %v1924
      %1946 = vmatpush.bf16.msra.mxu0 %v1923
      %1947 = vmatmul.bf16.gmra.mxu0 %v1928
      %v1948 = vpop.f32.mrf.mxu0
      %v1949 = vadd.f32 0.0, %v1948
      %v1950 = vpop.f32.mrf.mxu0
      %v1951 = vadd.f32 0.0, %v1950
      %1952 = vmatmul.bf16.gmra.mxu0 %v1931
      %v1953 = vpop.f32.mrf.mxu0
      %v1954 = vadd.f32 0.0, %v1953
      %v1955 = vpop.f32.mrf.mxu0
      %v1956 = vadd.f32 0.0, %v1955
      %1957 = vmatmul.bf16.gmra.mxu0 %v1934
      %v1958 = vpop.f32.mrf.mxu0
      %v1959 = vadd.f32 0.0, %v1958
      %v1960 = vpop.f32.mrf.mxu0
      %v1961 = vadd.f32 0.0, %v1960
      %1962 = vmatmul.bf16.gmra.mxu0 %v1937
      %v1963 = vpop.f32.mrf.mxu0
      %v1964 = vadd.f32 0.0, %v1963
      %v1965 = vpop.f32.mrf.mxu0
      %v1966 = vadd.f32 0.0, %v1965
      %1967 = vdwg.mxu0
      %v1968 = vpack.c.bf16 %v1951, %v1949
      %v1969 = vpack.c.bf16 %v1956, %v1954
      %v1970 = vpack.c.bf16 %v1961, %v1959
      %v1971 = vpack.c.bf16 %v1966, %v1964
      %v1972 = vld [vmem:[%s6] sm:$0xf]
      %v1973 = vld [vmem:[%s6 + $0x4] sm:$0xf]
      %v1974 = vld [vmem:[%s6 + $0x8] sm:$0xf]
      %v1975 = vld [vmem:[%s6 + $0xc] sm:$0xf]
      %s1976 = scalar_lea.vmem %s5, 96
      %v1977 = vld [vmem:[%s1976] sm:$0xf]
      %v1978 = vld [vmem:[%s1976 + $0x4] sm:$0xf]
      %v1979 = vld [vmem:[%s1976 + $0x8] sm:$0xf]
      %v1980 = vld [vmem:[%s1976 + $0xc] sm:$0xf]
      %v1981 = vld [vmem:[%s1976 + $0x10] sm:$0xf]
      %v1982 = vld [vmem:[%s1976 + $0x14] sm:$0xf]
      %v1983 = vld [vmem:[%s1976 + $0x18] sm:$0xf]
      %v1984 = vld [vmem:[%s1976 + $0x1c] sm:$0xf]
      %v1985 = vld [vmem:[%s2 + $0x6] sm:$0x1]
      %v1986 = vperm.slane %v1985, 0
      %v1995 = vunpack.c.l.b16 %v1977
      %v1996 = vunpack.c.l.b16 %v1978
      %v1997 = vunpack.c.l.b16 %v1979
      %v1998 = vunpack.c.l.b16 %v1980
      %v1999 = vunpack.c.l.b16 %v1981
      %v2000 = vunpack.c.l.b16 %v1982
      %v2001 = vunpack.c.l.b16 %v1983
      %v2002 = vunpack.c.l.b16 %v1984
      %v2003 = vpack.c.b16 %v1996, %v1995
      %v2004 = vpack.c.b16 %v1998, %v1997
      %v2005 = vpack.c.b16 %v2000, %v1999
      %v2006 = vpack.c.b16 %v2002, %v2001
      %2011 = vmatpush.bf16.msra.mxu0 0
      %2012 = vmatpush.bf16.msra.mxu0 0
      %2013 = vmatpush.bf16.msra.mxu0 0
      %2014 = vmatpush.bf16.msra.mxu0 0
      %2015 = vmatpush.bf16.msra.mxu0 %v2006
      %2016 = vmatpush.bf16.msra.mxu0 %v2005
      %2017 = vmatpush.bf16.msra.mxu0 %v2004
      %2018 = vmatpush.bf16.msra.mxu0 %v2003
      %2019 = vmatmul.bf16.gmra.mxu0 %v1593
      %v2020 = vpop.f32.mrf.mxu0
      %v2021 = vadd.f32 %v1986, %v2020
      %v2022 = vpop.f32.mrf.mxu0
      %v2023 = vadd.f32 %v1986, %v2022
      %2024 = vmatmul.bf16.gmra.mxu0 %v1596
      %v2025 = vpop.f32.mrf.mxu0
      %v2026 = vadd.f32 %v1986, %v2025
      %v2027 = vpop.f32.mrf.mxu0
      %v2028 = vadd.f32 %v1986, %v2027
      %2029 = vmatmul.bf16.gmra.mxu0 %v1599
      %v2030 = vpop.f32.mrf.mxu0
      %v2031 = vadd.f32 %v1986, %v2030
      %v2032 = vpop.f32.mrf.mxu0
      %v2033 = vadd.f32 %v1986, %v2032
      %2034 = vmatmul.bf16.gmra.mxu0 %v1602
      %v2035 = vpop.f32.mrf.mxu0
      %v2036 = vadd.f32 %v1986, %v2035
      %v2037 = vpop.f32.mrf.mxu0
      %v2038 = vadd.f32 %v1986, %v2037
      %2039 = vdwg.mxu0
      %s2040 = scalar_lea.vmem %s5, 128
      %v2041 = vld [vmem:[%s2040] sm:$0xf]
      %v2042 = vld [vmem:[%s2040 + $0x4] sm:$0xf]
      %v2043 = vld [vmem:[%s2040 + $0x8] sm:$0xf]
      %v2044 = vld [vmem:[%s2040 + $0xc] sm:$0xf]
      %v2045 = vld [vmem:[%s2040 + $0x10] sm:$0xf]
      %v2046 = vld [vmem:[%s2040 + $0x14] sm:$0xf]
      %v2047 = vld [vmem:[%s2040 + $0x18] sm:$0xf]
      %v2048 = vld [vmem:[%s2040 + $0x1c] sm:$0xf]
      %v2049 = vld [vmem:[%s2 + $0x7] sm:$0x1]
      %v2050 = vperm.slane %v2049, 0
      %v2059 = vunpack.c.l.b16 %v2041
      %v2060 = vunpack.c.l.b16 %v2042
      %v2061 = vunpack.c.l.b16 %v2043
      %v2062 = vunpack.c.l.b16 %v2044
      %v2063 = vunpack.c.l.b16 %v2045
      %v2064 = vunpack.c.l.b16 %v2046
      %v2065 = vunpack.c.l.b16 %v2047
      %v2066 = vunpack.c.l.b16 %v2048
      %v2067 = vpack.c.b16 %v2060, %v2059
      %v2068 = vpack.c.b16 %v2062, %v2061
      %v2069 = vpack.c.b16 %v2064, %v2063
      %v2070 = vpack.c.b16 %v2066, %v2065
      %2075 = vmatpush.bf16.msra.mxu0 0
      %2076 = vmatpush.bf16.msra.mxu0 0
      %2077 = vmatpush.bf16.msra.mxu0 0
      %2078 = vmatpush.bf16.msra.mxu0 0
      %2079 = vmatpush.bf16.msra.mxu0 %v2070
      %2080 = vmatpush.bf16.msra.mxu0 %v2069
      %2081 = vmatpush.bf16.msra.mxu0 %v2068
      %2082 = vmatpush.bf16.msra.mxu0 %v2067
      %2083 = vmatmul.bf16.gmra.mxu0 %v1593
      %v2084 = vpop.f32.mrf.mxu0
      %v2085 = vadd.f32 %v2050, %v2084
      %v2086 = vpop.f32.mrf.mxu0
      %v2087 = vadd.f32 %v2050, %v2086
      %2088 = vmatmul.bf16.gmra.mxu0 %v1596
      %v2089 = vpop.f32.mrf.mxu0
      %v2090 = vadd.f32 %v2050, %v2089
      %v2091 = vpop.f32.mrf.mxu0
      %v2092 = vadd.f32 %v2050, %v2091
      %2093 = vmatmul.bf16.gmra.mxu0 %v1599
      %v2094 = vpop.f32.mrf.mxu0
      %v2095 = vadd.f32 %v2050, %v2094
      %v2096 = vpop.f32.mrf.mxu0
      %v2097 = vadd.f32 %v2050, %v2096
      %2098 = vmatmul.bf16.gmra.mxu0 %v1602
      %v2099 = vpop.f32.mrf.mxu0
      %v2100 = vadd.f32 %v2050, %v2099
      %v2101 = vpop.f32.mrf.mxu0
      %v2102 = vadd.f32 %v2050, %v2101
      %2103 = vdwg.mxu0
      %s2104 = scalar_lea.vmem %s5, 160
      %v2105 = vld [vmem:[%s2104] sm:$0xf]
      %v2106 = vld [vmem:[%s2104 + $0x4] sm:$0xf]
      %v2107 = vld [vmem:[%s2104 + $0x8] sm:$0xf]
      %v2108 = vld [vmem:[%s2104 + $0xc] sm:$0xf]
      %v2109 = vld [vmem:[%s2104 + $0x10] sm:$0xf]
      %v2110 = vld [vmem:[%s2104 + $0x14] sm:$0xf]
      %v2111 = vld [vmem:[%s2104 + $0x18] sm:$0xf]
      %v2112 = vld [vmem:[%s2104 + $0x1c] sm:$0xf]
      %v2113 = vld [vmem:[%s2 + $0x8] sm:$0x1]
      %v2114 = vperm.slane %v2113, 0
      %v2123 = vunpack.c.l.b16 %v2105
      %v2124 = vunpack.c.l.b16 %v2106
      %v2125 = vunpack.c.l.b16 %v2107
      %v2126 = vunpack.c.l.b16 %v2108
      %v2127 = vunpack.c.l.b16 %v2109
      %v2128 = vunpack.c.l.b16 %v2110
      %v2129 = vunpack.c.l.b16 %v2111
      %v2130 = vunpack.c.l.b16 %v2112
      %v2131 = vpack.c.b16 %v2124, %v2123
      %v2132 = vpack.c.b16 %v2126, %v2125
      %v2133 = vpack.c.b16 %v2128, %v2127
      %v2134 = vpack.c.b16 %v2130, %v2129
      %2139 = vmatpush.bf16.msra.mxu0 0
      %2140 = vmatpush.bf16.msra.mxu0 0
      %2141 = vmatpush.bf16.msra.mxu0 0
      %2142 = vmatpush.bf16.msra.mxu0 0
      %2143 = vmatpush.bf16.msra.mxu0 %v2134
      %2144 = vmatpush.bf16.msra.mxu0 %v2133
      %2145 = vmatpush.bf16.msra.mxu0 %v2132
      %2146 = vmatpush.bf16.msra.mxu0 %v2131
      %2147 = vmatmul.bf16.gmra.mxu0 %v1593
      %v2148 = vpop.f32.mrf.mxu0
      %v2149 = vadd.f32 %v2114, %v2148
      %v2150 = vpop.f32.mrf.mxu0
      %v2151 = vadd.f32 %v2114, %v2150
      %2152 = vmatmul.bf16.gmra.mxu0 %v1596
      %v2153 = vpop.f32.mrf.mxu0
      %v2154 = vadd.f32 %v2114, %v2153
      %v2155 = vpop.f32.mrf.mxu0
      %v2156 = vadd.f32 %v2114, %v2155
      %2157 = vmatmul.bf16.gmra.mxu0 %v1599
      %v2158 = vpop.f32.mrf.mxu0
      %v2159 = vadd.f32 %v2114, %v2158
      %v2160 = vpop.f32.mrf.mxu0
      %v2161 = vadd.f32 %v2114, %v2160
      %2162 = vmatmul.bf16.gmra.mxu0 %v1602
      %v2163 = vpop.f32.mrf.mxu0
      %v2164 = vadd.f32 %v2114, %v2163
      %v2165 = vpop.f32.mrf.mxu0
      %v2166 = vadd.f32 %v2114, %v2165
      %2167 = vdwg.mxu0
      %v2168 = vpack.c.bf16 %v2023, %v2021
      %v2169 = vpack.c.bf16 %v2028, %v2026
      %v2170 = vpack.c.bf16 %v2033, %v2031
      %v2171 = vpack.c.bf16 %v2038, %v2036
      %v2172 = vpack.c.bf16 %v2087, %v2085
      %v2173 = vpack.c.bf16 %v2092, %v2090
      %v2174 = vpack.c.bf16 %v2097, %v2095
      %v2175 = vpack.c.bf16 %v2102, %v2100
      %v2177 = vsel %vm1769, %v2168, 0
      %v2180 = vsel %vm1769, %v2169, 0
      %v2183 = vsel %vm1769, %v2170, 0
      %v2186 = vsel %vm1769, %v2171, 0
      %v2189 = vsel %vm1769, %v2172, 0
      %v2192 = vsel %vm1769, %v2173, 0
      %v2195 = vsel %vm1769, %v2174, 0
      %v2198 = vsel %vm1769, %v2175, 0
      %2200 = vmatpush.bf16.xpose.msra.mxu0 0
      %2201 = vmatpush.bf16.xpose.msra.mxu0 0
      %2202 = vmatpush.bf16.xpose.msra.mxu0 0
      %2203 = vmatpush.bf16.xpose.msra.mxu0 0
      %2204 = vmatpush.bf16.xpose.msra.mxu0 %v2198
      %2205 = vmatpush.bf16.xpose.msra.mxu0 %v2195
      %2206 = vmatpush.bf16.xpose.msra.mxu0 %v2192
      %2207 = vmatpush.bf16.xpose.msra.mxu0 %v2189
      %2208 = vmatmul.bf16.gmra.mxu0 %v2177
      %v2209 = vpop.f32.mrf.mxu0
      %v2210 = vadd.f32 0.0, %v2209
      %v2211 = vpop.f32.mrf.mxu0
      %v2212 = vadd.f32 0.0, %v2211
      %2213 = vmatmul.bf16.gmra.mxu0 %v2180
      %v2214 = vpop.f32.mrf.mxu0
      %v2215 = vadd.f32 0.0, %v2214
      %v2216 = vpop.f32.mrf.mxu0
      %v2217 = vadd.f32 0.0, %v2216
      %2218 = vmatmul.bf16.gmra.mxu0 %v2183
      %v2219 = vpop.f32.mrf.mxu0
      %v2220 = vadd.f32 0.0, %v2219
      %v2221 = vpop.f32.mrf.mxu0
      %v2222 = vadd.f32 0.0, %v2221
      %2223 = vmatmul.bf16.gmra.mxu0 %v2186
      %v2224 = vpop.f32.mrf.mxu0
      %v2225 = vadd.f32 0.0, %v2224
      %v2226 = vpop.f32.mrf.mxu0
      %v2227 = vadd.f32 0.0, %v2226
      %2228 = vdwg.mxu0
      %v2229 = vmul.f32 %v2210, 0.17677669
      %v2230 = vmul.f32 %v2212, 0.17677669
      %v2231 = vmul.f32 %v2215, 0.17677669
      %v2232 = vmul.f32 %v2217, 0.17677669
      %v2233 = vmul.f32 %v2220, 0.17677669
      %v2234 = vmul.f32 %v2222, 0.17677669
      %v2235 = vmul.f32 %v2225, 0.17677669
      %v2236 = vmul.f32 %v2227, 0.17677669
      %v2237 = vsel %vm1352, %v2229, -inf
      %2238 = vmax.xlane.f32.xlu0 %v2237
      %v2239 = vpop.xlane.xlu0 %2238
      %v2240 = vsel %vm1352, %v2230, -inf
      %2241 = vmax.xlane.f32.xlu0 %v2240
      %v2242 = vpop.xlane.xlu0 %2241
      %v2243 = vsel %vm1352, %v2231, -inf
      %2244 = vmax.xlane.f32.xlu0 %v2243
      %v2245 = vpop.xlane.xlu0 %2244
      %v2246 = vsel %vm1352, %v2232, -inf
      %2247 = vmax.xlane.f32.xlu0 %v2246
      %v2248 = vpop.xlane.xlu0 %2247
      %v2249 = vsel %vm1352, %v2233, -inf
      %2250 = vmax.xlane.f32.xlu0 %v2249
      %v2251 = vpop.xlane.xlu0 %2250
      %v2252 = vsel %vm1352, %v2234, -inf
      %2253 = vmax.xlane.f32.xlu0 %v2252
      %v2254 = vpop.xlane.xlu0 %2253
      %v2255 = vsel %vm1352, %v2235, -inf
      %2256 = vmax.xlane.f32.xlu0 %v2255
      %v2257 = vpop.xlane.xlu0 %2256
      %v2258 = vsel %vm1352, %v2236, -inf
      %2259 = vmax.xlane.f32.xlu0 %v2258
      %v2260 = vpop.xlane.xlu0 %2259
      %v2261 = vsub.f32 %v2229, %v2239
      %v2262 = vsub.f32 %v2230, %v2242
      %v2263 = vsub.f32 %v2231, %v2245
      %v2264 = vsub.f32 %v2232, %v2248
      %v2265 = vsub.f32 %v2233, %v2251
      %v2266 = vsub.f32 %v2234, %v2254
      %v2267 = vsub.f32 %v2235, %v2257
      %v2268 = vsub.f32 %v2236, %v2260
      %v2269 = vmul.f32 %v2261, 1.442695
      %v2270 = vpow.pop %v2269
      %v2271 = vmul.f32 %v2262, 1.442695
      %v2272 = vpow.pop %v2271
      %v2273 = vmul.f32 %v2263, 1.442695
      %v2274 = vpow.pop %v2273
      %v2275 = vmul.f32 %v2264, 1.442695
      %v2276 = vpow.pop %v2275
      %v2277 = vmul.f32 %v2265, 1.442695
      %v2278 = vpow.pop %v2277
      %v2279 = vmul.f32 %v2266, 1.442695
      %v2280 = vpow.pop %v2279
      %v2281 = vmul.f32 %v2267, 1.442695
      %v2282 = vpow.pop %v2281
      %v2283 = vmul.f32 %v2268, 1.442695
      %v2284 = vpow.pop %v2283
      %v2285 = vsel %vm1352, %v2270, 0.0
      %2286 = vadd.xlane.f32.xlu0 %v2285
      %v2287 = vpop.xlane.xlu0 %2286
      %v2288 = vsel %vm1352, %v2272, 0.0
      %2289 = vadd.xlane.f32.xlu0 %v2288
      %v2290 = vpop.xlane.xlu0 %2289
      %v2291 = vsel %vm1352, %v2274, 0.0
      %2292 = vadd.xlane.f32.xlu0 %v2291
      %v2293 = vpop.xlane.xlu0 %2292
      %v2294 = vsel %vm1352, %v2276, 0.0
      %2295 = vadd.xlane.f32.xlu0 %v2294
      %v2296 = vpop.xlane.xlu0 %2295
      %v2297 = vsel %vm1352, %v2278, 0.0
      %2298 = vadd.xlane.f32.xlu0 %v2297
      %v2299 = vpop.xlane.xlu0 %2298
      %v2300 = vsel %vm1352, %v2280, 0.0
      %2301 = vadd.xlane.f32.xlu0 %v2300
      %v2302 = vpop.xlane.xlu0 %2301
      %v2303 = vsel %vm1352, %v2282, 0.0
      %2304 = vadd.xlane.f32.xlu0 %v2303
      %v2305 = vpop.xlane.xlu0 %2304
      %v2306 = vsel %vm1352, %v2284, 0.0
      %2307 = vadd.xlane.f32.xlu0 %v2306
      %v2308 = vpop.xlane.xlu0 %2307
      %v2309 = vrcp.pop %v2287
      %v2310 = vrcp.pop %v2290
      %v2311 = vrcp.pop %v2293
      %v2312 = vrcp.pop %v2296
      %v2313 = vrcp.pop %v2299
      %v2314 = vrcp.pop %v2302
      %v2315 = vrcp.pop %v2305
      %v2316 = vrcp.pop %v2308
      %v2317 = vmul.f32 %v2270, %v2309
      %v2318 = vmul.f32 %v2272, %v2310
      %v2319 = vmul.f32 %v2274, %v2311
      %v2320 = vmul.f32 %v2276, %v2312
      %v2321 = vmul.f32 %v2278, %v2313
      %v2322 = vmul.f32 %v2280, %v2314
      %v2323 = vmul.f32 %v2282, %v2315
      %v2324 = vmul.f32 %v2284, %v2316
      %v2325 = vpack.c.bf16 %v2318, %v2317
      %v2326 = vpack.c.bf16 %v2320, %v2319
      %v2327 = vpack.c.bf16 %v2322, %v2321
      %v2328 = vpack.c.bf16 %v2324, %v2323
      %v2329 = vpack.c.bf16 %v2151, %v2149
      %v2330 = vpack.c.bf16 %v2156, %v2154
      %v2331 = vpack.c.bf16 %v2161, %v2159
      %v2332 = vpack.c.bf16 %v2166, %v2164
      %v2334 = vsel %vm1352, %v2325, 0
      %v2337 = vsel %vm1352, %v2326, 0
      %v2340 = vsel %vm1352, %v2327, 0
      %v2343 = vsel %vm1352, %v2328, 0
      %2345 = vmatpush.bf16.msra.mxu0 0
      %2346 = vmatpush.bf16.msra.mxu0 0
      %2347 = vmatpush.bf16.msra.mxu0 0
      %2348 = vmatpush.bf16.msra.mxu0 0
      %2349 = vmatpush.bf16.msra.mxu0 %v2332
      %2350 = vmatpush.bf16.msra.mxu0 %v2331
      %2351 = vmatpush.bf16.msra.mxu0 %v2330
      %2352 = vmatpush.bf16.msra.mxu0 %v2329
      %2353 = vmatmul.bf16.gmra.mxu0 %v2334
      %v2354 = vpop.f32.mrf.mxu0
      %v2355 = vadd.f32 0.0, %v2354
      %v2356 = vpop.f32.mrf.mxu0
      %v2357 = vadd.f32 0.0, %v2356
      %2358 = vmatmul.bf16.gmra.mxu0 %v2337
      %v2359 = vpop.f32.mrf.mxu0
      %v2360 = vadd.f32 0.0, %v2359
      %v2361 = vpop.f32.mrf.mxu0
      %v2362 = vadd.f32 0.0, %v2361
      %2363 = vmatmul.bf16.gmra.mxu0 %v2340
      %v2364 = vpop.f32.mrf.mxu0
      %v2365 = vadd.f32 0.0, %v2364
      %v2366 = vpop.f32.mrf.mxu0
      %v2367 = vadd.f32 0.0, %v2366
      %2368 = vmatmul.bf16.gmra.mxu0 %v2343
      %v2369 = vpop.f32.mrf.mxu0
      %v2370 = vadd.f32 0.0, %v2369
      %v2371 = vpop.f32.mrf.mxu0
      %v2372 = vadd.f32 0.0, %v2371
      %2373 = vdwg.mxu0
      %v2374 = vpack.c.bf16 %v2357, %v2355
      %v2375 = vpack.c.bf16 %v2362, %v2360
      %v2376 = vpack.c.bf16 %v2367, %v2365
      %v2377 = vpack.c.bf16 %v2372, %v2370
      %s2378 = scalar_lea.vmem %s6, 16
      %v2379 = vld [vmem:[%s2378] sm:$0xf]
      %v2380 = vld [vmem:[%s2378 + $0x4] sm:$0xf]
      %v2381 = vld [vmem:[%s2378 + $0x8] sm:$0xf]
      %v2382 = vld [vmem:[%s2378 + $0xc] sm:$0xf]
      %v2387 = vunpack.c.l.b16 %v2379
      %v2388 = vunpack.c.l.b16 %v2380
      %v2389 = vunpack.c.l.b16 %v2381
      %v2390 = vunpack.c.l.b16 %v2382
      %v2391 = vpack.c.b16 %v2388, %v2387
      %v2392 = vpack.c.b16 %v2390, %v2389
      %v2396 = vsel %vm1769, %v2374, 0
      %v2399 = vsel %vm1769, %v2375, 0
      %v2402 = vsel %vm1769, %v2376, 0
      %v2405 = vsel %vm1769, %v2377, 0
      %2407 = vmatpush.bf16.msra.mxu0 0
      %2408 = vmatpush.bf16.msra.mxu0 0
      %2409 = vmatpush.bf16.msra.mxu0 0
      %2410 = vmatpush.bf16.msra.mxu0 0
      %2411 = vmatpush.bf16.msra.mxu0 0
      %2412 = vmatpush.bf16.msra.mxu0 0
      %2413 = vmatpush.bf16.msra.mxu0 %v2392
      %2414 = vmatpush.bf16.msra.mxu0 %v2391
      %2415 = vmatmul.bf16.gmra.mxu0 %v2396
      %v2416 = vpop.f32.mrf.mxu0
      %v2417 = vadd.f32 0.0, %v2416
      %v2418 = vpop.f32.mrf.mxu0
      %v2419 = vadd.f32 0.0, %v2418
      %2420 = vmatmul.bf16.gmra.mxu0 %v2399
      %v2421 = vpop.f32.mrf.mxu0
      %v2422 = vadd.f32 0.0, %v2421
      %v2423 = vpop.f32.mrf.mxu0
      %v2424 = vadd.f32 0.0, %v2423
      %2425 = vmatmul.bf16.gmra.mxu0 %v2402
      %v2426 = vpop.f32.mrf.mxu0
      %v2427 = vadd.f32 0.0, %v2426
      %v2428 = vpop.f32.mrf.mxu0
      %v2429 = vadd.f32 0.0, %v2428
      %2430 = vmatmul.bf16.gmra.mxu0 %v2405
      %v2431 = vpop.f32.mrf.mxu0
      %v2432 = vadd.f32 0.0, %v2431
      %v2433 = vpop.f32.mrf.mxu0
      %v2434 = vadd.f32 0.0, %v2433
      %2435 = vdwg.mxu0
      %v2440 = vunpack.c.l.b16 %v1972
      %v2441 = vunpack.c.l.b16 %v1973
      %v2442 = vunpack.c.l.b16 %v1974
      %v2443 = vunpack.c.l.b16 %v1975
      %v2444 = vpack.c.b16 %v2441, %v2440
      %v2445 = vpack.c.b16 %v2443, %v2442
      %v2449 = vsel %vm1769, %v1968, 0
      %v2452 = vsel %vm1769, %v1969, 0
      %v2455 = vsel %vm1769, %v1970, 0
      %v2458 = vsel %vm1769, %v1971, 0
      %2460 = vmatpush.bf16.msra.mxu0 0
      %2461 = vmatpush.bf16.msra.mxu0 0
      %2462 = vmatpush.bf16.msra.mxu0 0
      %2463 = vmatpush.bf16.msra.mxu0 0
      %2464 = vmatpush.bf16.msra.mxu0 0
      %2465 = vmatpush.bf16.msra.mxu0 0
      %2466 = vmatpush.bf16.msra.mxu0 %v2445
      %2467 = vmatpush.bf16.msra.mxu0 %v2444
      %2468 = vmatmul.bf16.gmra.mxu0 %v2449
      %v2469 = vpop.f32.mrf.mxu0
      %v2470 = vadd.f32 %v2417, %v2469
      %v2471 = vpop.f32.mrf.mxu0
      %v2472 = vadd.f32 %v2419, %v2471
      %2473 = vmatmul.bf16.gmra.mxu0 %v2452
      %v2474 = vpop.f32.mrf.mxu0
      %v2475 = vadd.f32 %v2422, %v2474
      %v2476 = vpop.f32.mrf.mxu0
      %v2477 = vadd.f32 %v2424, %v2476
      %2478 = vmatmul.bf16.gmra.mxu0 %v2455
      %v2479 = vpop.f32.mrf.mxu0
      %v2480 = vadd.f32 %v2427, %v2479
      %v2481 = vpop.f32.mrf.mxu0
      %v2482 = vadd.f32 %v2429, %v2481
      %2483 = vmatmul.bf16.gmra.mxu0 %v2458
      %v2484 = vpop.f32.mrf.mxu0
      %v2485 = vadd.f32 %v2432, %v2484
      %v2486 = vpop.f32.mrf.mxu0
      %v2487 = vadd.f32 %v2434, %v2486
      %2488 = vdwg.mxu0
      %v2489 = vadd.f32 %v1342, %v2470
      %v2490 = vadd.f32 %v1343, %v2472
      %v2491 = vadd.f32 %v1344, %v2475
      %v2492 = vadd.f32 %v1345, %v2477
      %v2493 = vadd.f32 %v1346, %v2480
      %v2494 = vadd.f32 %v1347, %v2482
      %v2495 = vadd.f32 %v1348, %v2485
      %v2496 = vadd.f32 %v1349, %v2487
      %v2497 = vld [vmem:[%s2 + $0x9] sm:$0x1]
      %v2498 = vperm.slane %v2497, 0
      %v2499 = vadd.f32 %v2489, %v2498
      %v2500 = vadd.f32 %v2490, %v2498
      %v2501 = vadd.f32 %v2491, %v2498
      %v2502 = vadd.f32 %v2492, %v2498
      %v2503 = vadd.f32 %v2493, %v2498
      %v2504 = vadd.f32 %v2494, %v2498
      %v2505 = vadd.f32 %v2495, %v2498
      %v2506 = vadd.f32 %v2496, %v2498
      %v2507 = vld [vmem:[%s2 + $0xa] sm:$0x1]
      %v2508 = vld [vmem:[%s2 + $0xb] sm:$0x1]
      %v2509 = vsel %vm1352, %v2499, 0.0
      %2510 = vadd.xlane.f32.xlu0 %v2509
      %v2511 = vpop.xlane.xlu0 %2510
      %v2512 = vsel %vm1352, %v2500, 0.0
      %2513 = vadd.xlane.f32.xlu0 %v2512
      %v2514 = vpop.xlane.xlu0 %2513
      %v2515 = vsel %vm1352, %v2501, 0.0
      %2516 = vadd.xlane.f32.xlu0 %v2515
      %v2517 = vpop.xlane.xlu0 %2516
      %v2518 = vsel %vm1352, %v2502, 0.0
      %2519 = vadd.xlane.f32.xlu0 %v2518
      %v2520 = vpop.xlane.xlu0 %2519
      %v2521 = vsel %vm1352, %v2503, 0.0
      %2522 = vadd.xlane.f32.xlu0 %v2521
      %v2523 = vpop.xlane.xlu0 %2522
      %v2524 = vsel %vm1352, %v2504, 0.0
      %2525 = vadd.xlane.f32.xlu0 %v2524
      %v2526 = vpop.xlane.xlu0 %2525
      %v2527 = vsel %vm1352, %v2505, 0.0
      %2528 = vadd.xlane.f32.xlu0 %v2527
      %v2529 = vpop.xlane.xlu0 %2528
      %v2530 = vsel %vm1352, %v2506, 0.0
      %2531 = vadd.xlane.f32.xlu0 %v2530
      %v2532 = vpop.xlane.xlu0 %2531
      %v2533 = vmul.f32 %v2511, %v1383
      %v2534 = vmul.f32 %v2514, %v1383
      %v2535 = vmul.f32 %v2517, %v1383
      %v2536 = vmul.f32 %v2520, %v1383
      %v2537 = vmul.f32 %v2523, %v1383
      %v2538 = vmul.f32 %v2526, %v1383
      %v2539 = vmul.f32 %v2529, %v1383
      %v2540 = vmul.f32 %v2532, %v1383
      %v2541 = vsub.f32 %v2499, %v2533
      %v2542 = vsub.f32 %v2500, %v2534
      %v2543 = vsub.f32 %v2501, %v2535
      %v2544 = vsub.f32 %v2502, %v2536
      %v2545 = vsub.f32 %v2503, %v2537
      %v2546 = vsub.f32 %v2504, %v2538
      %v2547 = vsub.f32 %v2505, %v2539
      %v2548 = vsub.f32 %v2506, %v2540
      %v2549 = vmul.f32 %v2541, %v2541
      %v2550 = vmul.f32 %v2542, %v2542
      %v2551 = vmul.f32 %v2543, %v2543
      %v2552 = vmul.f32 %v2544, %v2544
      %v2553 = vmul.f32 %v2545, %v2545
      %v2554 = vmul.f32 %v2546, %v2546
      %v2555 = vmul.f32 %v2547, %v2547
      %v2556 = vmul.f32 %v2548, %v2548
      %v2557 = vsel %vm1352, %v2549, 0.0
      %2558 = vadd.xlane.f32.xlu0 %v2557
      %v2559 = vpop.xlane.xlu0 %2558
      %v2560 = vsel %vm1352, %v2550, 0.0
      %2561 = vadd.xlane.f32.xlu0 %v2560
      %v2562 = vpop.xlane.xlu0 %2561
      %v2563 = vsel %vm1352, %v2551, 0.0
      %2564 = vadd.xlane.f32.xlu0 %v2563
      %v2565 = vpop.xlane.xlu0 %2564
      %v2566 = vsel %vm1352, %v2552, 0.0
      %2567 = vadd.xlane.f32.xlu0 %v2566
      %v2568 = vpop.xlane.xlu0 %2567
      %v2569 = vsel %vm1352, %v2553, 0.0
      %2570 = vadd.xlane.f32.xlu0 %v2569
      %v2571 = vpop.xlane.xlu0 %2570
      %v2572 = vsel %vm1352, %v2554, 0.0
      %2573 = vadd.xlane.f32.xlu0 %v2572
      %v2574 = vpop.xlane.xlu0 %2573
      %v2575 = vsel %vm1352, %v2555, 0.0
      %2576 = vadd.xlane.f32.xlu0 %v2575
      %v2577 = vpop.xlane.xlu0 %2576
      %v2578 = vsel %vm1352, %v2556, 0.0
      %2579 = vadd.xlane.f32.xlu0 %v2578
      %v2580 = vpop.xlane.xlu0 %2579
      %v2581 = vmul.f32 %v2559, %v1383
      %v2582 = vmul.f32 %v2562, %v1383
      %v2583 = vmul.f32 %v2565, %v1383
      %v2584 = vmul.f32 %v2568, %v1383
      %v2585 = vmul.f32 %v2571, %v1383
      %v2586 = vmul.f32 %v2574, %v1383
      %v2587 = vmul.f32 %v2577, %v1383
      %v2588 = vmul.f32 %v2580, %v1383
      %v2589 = vadd.f32 %v2581, 1e-06
      %v2590 = vadd.f32 %v2582, 1e-06
      %v2591 = vadd.f32 %v2583, 1e-06
      %v2592 = vadd.f32 %v2584, 1e-06
      %v2593 = vadd.f32 %v2585, 1e-06
      %v2594 = vadd.f32 %v2586, 1e-06
      %v2595 = vadd.f32 %v2587, 1e-06
      %v2596 = vadd.f32 %v2588, 1e-06
      %v2597 = vrsqrt.pop %v2589
      %v2598 = vmul.f32 %v2597, %v2589
      %v2599 = vmul.f32 %v2598, %v2597
      %v2600 = vmul.f32 0.5, %v2599
      %v2601 = vsub.f32 1.5, %v2600
      %v2602 = vmul.f32 %v2597, %v2601
      %vm2603 = vweird.f32 %v2589
      %vm2604 = vweird.f32 %v2597
      %vm2605 = vmor %vm2603, %vm2604
      %v2606 = vsel %vm2605, %v2597, %v2602
      %v2607 = vrsqrt.pop %v2590
      %v2608 = vmul.f32 %v2607, %v2590
      %v2609 = vmul.f32 %v2608, %v2607
      %v2610 = vmul.f32 0.5, %v2609
      %v2611 = vsub.f32 1.5, %v2610
      %v2612 = vmul.f32 %v2607, %v2611
      %vm2613 = vweird.f32 %v2590
      %vm2614 = vweird.f32 %v2607
      %vm2615 = vmor %vm2613, %vm2614
      %v2616 = vsel %vm2615, %v2607, %v2612
      %v2617 = vrsqrt.pop %v2591
      %v2618 = vmul.f32 %v2617, %v2591
      %v2619 = vmul.f32 %v2618, %v2617
      %v2620 = vmul.f32 0.5, %v2619
      %v2621 = vsub.f32 1.5, %v2620
      %v2622 = vmul.f32 %v2617, %v2621
      %vm2623 = vweird.f32 %v2591
      %vm2624 = vweird.f32 %v2617
      %vm2625 = vmor %vm2623, %vm2624
      %v2626 = vsel %vm2625, %v2617, %v2622
      %v2627 = vrsqrt.pop %v2592
      %v2628 = vmul.f32 %v2627, %v2592
      %v2629 = vmul.f32 %v2628, %v2627
      %v2630 = vmul.f32 0.5, %v2629
      %v2631 = vsub.f32 1.5, %v2630
      %v2632 = vmul.f32 %v2627, %v2631
      %vm2633 = vweird.f32 %v2592
      %vm2634 = vweird.f32 %v2627
      %vm2635 = vmor %vm2633, %vm2634
      %v2636 = vsel %vm2635, %v2627, %v2632
      %v2637 = vrsqrt.pop %v2593
      %v2638 = vmul.f32 %v2637, %v2593
      %v2639 = vmul.f32 %v2638, %v2637
      %v2640 = vmul.f32 0.5, %v2639
      %v2641 = vsub.f32 1.5, %v2640
      %v2642 = vmul.f32 %v2637, %v2641
      %vm2643 = vweird.f32 %v2593
      %vm2644 = vweird.f32 %v2637
      %vm2645 = vmor %vm2643, %vm2644
      %v2646 = vsel %vm2645, %v2637, %v2642
      %v2647 = vrsqrt.pop %v2594
      %v2648 = vmul.f32 %v2647, %v2594
      %v2649 = vmul.f32 %v2648, %v2647
      %v2650 = vmul.f32 0.5, %v2649
      %v2651 = vsub.f32 1.5, %v2650
      %v2652 = vmul.f32 %v2647, %v2651
      %vm2653 = vweird.f32 %v2594
      %vm2654 = vweird.f32 %v2647
      %vm2655 = vmor %vm2653, %vm2654
      %v2656 = vsel %vm2655, %v2647, %v2652
      %v2657 = vrsqrt.pop %v2595
      %v2658 = vmul.f32 %v2657, %v2595
      %v2659 = vmul.f32 %v2658, %v2657
      %v2660 = vmul.f32 0.5, %v2659
      %v2661 = vsub.f32 1.5, %v2660
      %v2662 = vmul.f32 %v2657, %v2661
      %vm2663 = vweird.f32 %v2595
      %vm2664 = vweird.f32 %v2657
      %vm2665 = vmor %vm2663, %vm2664
      %v2666 = vsel %vm2665, %v2657, %v2662
      %v2667 = vrsqrt.pop %v2596
      %v2668 = vmul.f32 %v2667, %v2596
      %v2669 = vmul.f32 %v2668, %v2667
      %v2670 = vmul.f32 0.5, %v2669
      %v2671 = vsub.f32 1.5, %v2670
      %v2672 = vmul.f32 %v2667, %v2671
      %vm2673 = vweird.f32 %v2596
      %vm2674 = vweird.f32 %v2667
      %vm2675 = vmor %vm2673, %vm2674
      %v2676 = vsel %vm2675, %v2667, %v2672
      %v2677 = vmul.f32 %v2541, %v2606
      %v2678 = vmul.f32 %v2542, %v2616
      %v2679 = vmul.f32 %v2543, %v2626
      %v2680 = vmul.f32 %v2544, %v2636
      %v2681 = vmul.f32 %v2545, %v2646
      %v2682 = vmul.f32 %v2546, %v2656
      %v2683 = vmul.f32 %v2547, %v2666
      %v2684 = vmul.f32 %v2548, %v2676
      %v2685 = vperm.slane %v2507, 0
      %v2686 = vmul.f32 %v2677, %v2685
      %v2687 = vmul.f32 %v2678, %v2685
      %v2688 = vmul.f32 %v2679, %v2685
      %v2689 = vmul.f32 %v2680, %v2685
      %v2690 = vmul.f32 %v2681, %v2685
      %v2691 = vmul.f32 %v2682, %v2685
      %v2692 = vmul.f32 %v2683, %v2685
      %v2693 = vmul.f32 %v2684, %v2685
      %v2694 = vperm.slane %v2508, 0
      %v2695 = vadd.f32 %v2686, %v2694
      %v2696 = vadd.f32 %v2687, %v2694
      %v2697 = vadd.f32 %v2688, %v2694
      %v2698 = vadd.f32 %v2689, %v2694
      %v2699 = vadd.f32 %v2690, %v2694
      %v2700 = vadd.f32 %v2691, %v2694
      %v2701 = vadd.f32 %v2692, %v2694
      %v2702 = vadd.f32 %v2693, %v2694
      %v2703 = vld [vmem:[%s7] sm:$0xf]
      %v2704 = vld [vmem:[%s7 + $0x4] sm:$0xf]
      %v2705 = vld [vmem:[%s7 + $0x8] sm:$0xf]
      %v2706 = vld [vmem:[%s7 + $0xc] sm:$0xf]
      %v2707 = vld [vmem:[%s7 + $0x10] sm:$0xf]
      %v2708 = vld [vmem:[%s7 + $0x14] sm:$0xf]
      %v2709 = vld [vmem:[%s7 + $0x18] sm:$0xf]
      %v2710 = vld [vmem:[%s7 + $0x1c] sm:$0xf]
      %v2711 = vpack.c.bf16 %v2696, %v2695
      %v2712 = vpack.c.bf16 %v2698, %v2697
      %v2713 = vpack.c.bf16 %v2700, %v2699
      %v2714 = vpack.c.bf16 %v2702, %v2701
      %v2715 = vld [vmem:[%s2 + $0xc] sm:$0x1]
      %v2716 = vperm.slane %v2715, 0
      %v2725 = vunpack.c.l.b16 %v2703
      %v2726 = vunpack.c.l.b16 %v2704
      %v2727 = vunpack.c.l.b16 %v2705
      %v2728 = vunpack.c.l.b16 %v2706
      %v2729 = vunpack.c.l.b16 %v2707
      %v2730 = vunpack.c.l.b16 %v2708
      %v2731 = vunpack.c.l.b16 %v2709
      %v2732 = vunpack.c.l.b16 %v2710
      %v2733 = vpack.c.b16 %v2726, %v2725
      %v2734 = vpack.c.b16 %v2728, %v2727
      %v2735 = vpack.c.b16 %v2730, %v2729
      %v2736 = vpack.c.b16 %v2732, %v2731
      %v2742 = vsel %vm1352, %v2711, 0
      %v2745 = vsel %vm1352, %v2712, 0
      %v2748 = vsel %vm1352, %v2713, 0
      %v2751 = vsel %vm1352, %v2714, 0
      %2753 = vmatpush.bf16.msra.mxu0 0
      %2754 = vmatpush.bf16.msra.mxu0 0
      %2755 = vmatpush.bf16.msra.mxu0 0
      %2756 = vmatpush.bf16.msra.mxu0 0
      %2757 = vmatpush.bf16.msra.mxu0 %v2736
      %2758 = vmatpush.bf16.msra.mxu0 %v2735
      %2759 = vmatpush.bf16.msra.mxu0 %v2734
      %2760 = vmatpush.bf16.msra.mxu0 %v2733
      %2761 = vmatmul.bf16.gmra.mxu0 %v2742
      %v2762 = vpop.f32.mrf.mxu0
      %v2763 = vadd.f32 %v2716, %v2762
      %v2764 = vpop.f32.mrf.mxu0
      %v2765 = vadd.f32 %v2716, %v2764
      %2766 = vmatmul.bf16.gmra.mxu0 %v2745
      %v2767 = vpop.f32.mrf.mxu0
      %v2768 = vadd.f32 %v2716, %v2767
      %v2769 = vpop.f32.mrf.mxu0
      %v2770 = vadd.f32 %v2716, %v2769
      %2771 = vmatmul.bf16.gmra.mxu0 %v2748
      %v2772 = vpop.f32.mrf.mxu0
      %v2773 = vadd.f32 %v2716, %v2772
      %v2774 = vpop.f32.mrf.mxu0
      %v2775 = vadd.f32 %v2716, %v2774
      %2776 = vmatmul.bf16.gmra.mxu0 %v2751
      %v2777 = vpop.f32.mrf.mxu0
      %v2778 = vadd.f32 %v2716, %v2777
      %v2779 = vpop.f32.mrf.mxu0
      %v2780 = vadd.f32 %v2716, %v2779
      %2781 = vdwg.mxu0
      %v2782 = vmul.f32 %v2763, %v2763
      %v2783 = vmul.f32 %v2765, %v2765
      %v2784 = vmul.f32 %v2768, %v2768
      %v2785 = vmul.f32 %v2770, %v2770
      %v2786 = vmul.f32 %v2773, %v2773
      %v2787 = vmul.f32 %v2775, %v2775
      %v2788 = vmul.f32 %v2778, %v2778
      %v2789 = vmul.f32 %v2780, %v2780
      %v2790 = vmul.f32 %v2763, %v2782
      %v2791 = vmul.f32 %v2765, %v2783
      %v2792 = vmul.f32 %v2768, %v2784
      %v2793 = vmul.f32 %v2770, %v2785
      %v2794 = vmul.f32 %v2773, %v2786
      %v2795 = vmul.f32 %v2775, %v2787
      %v2796 = vmul.f32 %v2778, %v2788
      %v2797 = vmul.f32 %v2780, %v2789
      %v2798 = vmul.f32 %v2790, 0.044715
      %v2799 = vmul.f32 %v2791, 0.044715
      %v2800 = vmul.f32 %v2792, 0.044715
      %v2801 = vmul.f32 %v2793, 0.044715
      %v2802 = vmul.f32 %v2794, 0.044715
      %v2803 = vmul.f32 %v2795, 0.044715
      %v2804 = vmul.f32 %v2796, 0.044715
      %v2805 = vmul.f32 %v2797, 0.044715
      %v2806 = vadd.f32 %v2763, %v2798
      %v2807 = vadd.f32 %v2765, %v2799
      %v2808 = vadd.f32 %v2768, %v2800
      %v2809 = vadd.f32 %v2770, %v2801
      %v2810 = vadd.f32 %v2773, %v2802
      %v2811 = vadd.f32 %v2775, %v2803
      %v2812 = vadd.f32 %v2778, %v2804
      %v2813 = vadd.f32 %v2780, %v2805
      %v2814 = vmul.f32 %v2806, 0.7978846
      %v2815 = vmul.f32 %v2807, 0.7978846
      %v2816 = vmul.f32 %v2808, 0.7978846
      %v2817 = vmul.f32 %v2809, 0.7978846
      %v2818 = vmul.f32 %v2810, 0.7978846
      %v2819 = vmul.f32 %v2811, 0.7978846
      %v2820 = vmul.f32 %v2812, 0.7978846
      %v2821 = vmul.f32 %v2813, 0.7978846
      %v2822 = vtanh.pop %v2814
      %v2823 = vtanh.pop %v2815
      %v2824 = vtanh.pop %v2816
      %v2825 = vtanh.pop %v2817
      %v2826 = vtanh.pop %v2818
      %v2827 = vtanh.pop %v2819
      %v2828 = vtanh.pop %v2820
      %v2829 = vtanh.pop %v2821
      %v2830 = vadd.f32 %v2822, 1.0
      %v2831 = vadd.f32 %v2823, 1.0
      %v2832 = vadd.f32 %v2824, 1.0
      %v2833 = vadd.f32 %v2825, 1.0
      %v2834 = vadd.f32 %v2826, 1.0
      %v2835 = vadd.f32 %v2827, 1.0
      %v2836 = vadd.f32 %v2828, 1.0
      %v2837 = vadd.f32 %v2829, 1.0
      %v2838 = vmul.f32 %v2830, 0.5
      %v2839 = vmul.f32 %v2831, 0.5
      %v2840 = vmul.f32 %v2832, 0.5
      %v2841 = vmul.f32 %v2833, 0.5
      %v2842 = vmul.f32 %v2834, 0.5
      %v2843 = vmul.f32 %v2835, 0.5
      %v2844 = vmul.f32 %v2836, 0.5
      %v2845 = vmul.f32 %v2837, 0.5
      %v2846 = vmul.f32 %v2763, %v2838
      %v2847 = vmul.f32 %v2765, %v2839
      %v2848 = vmul.f32 %v2768, %v2840
      %v2849 = vmul.f32 %v2770, %v2841
      %v2850 = vmul.f32 %v2773, %v2842
      %v2851 = vmul.f32 %v2775, %v2843
      %v2852 = vmul.f32 %v2778, %v2844
      %v2853 = vmul.f32 %v2780, %v2845
      %v2854 = vld [vmem:[%s8] sm:$0xf]
      %v2855 = vld [vmem:[%s8 + $0x4] sm:$0xf]
      %v2856 = vld [vmem:[%s8 + $0x8] sm:$0xf]
      %v2857 = vld [vmem:[%s8 + $0xc] sm:$0xf]
      %v2858 = vld [vmem:[%s8 + $0x10] sm:$0xf]
      %v2859 = vld [vmem:[%s8 + $0x14] sm:$0xf]
      %v2860 = vld [vmem:[%s8 + $0x18] sm:$0xf]
      %v2861 = vld [vmem:[%s8 + $0x1c] sm:$0xf]
      %v2862 = vld [vmem:[%s8 + $0x20] sm:$0xf]
      %v2863 = vld [vmem:[%s8 + $0x24] sm:$0xf]
      %v2864 = vld [vmem:[%s8 + $0x28] sm:$0xf]
      %v2865 = vld [vmem:[%s8 + $0x2c] sm:$0xf]
      %v2866 = vld [vmem:[%s8 + $0x30] sm:$0xf]
      %v2867 = vld [vmem:[%s8 + $0x34] sm:$0xf]
      %v2868 = vld [vmem:[%s8 + $0x38] sm:$0xf]
      %v2869 = vld [vmem:[%s8 + $0x3c] sm:$0xf]
      %v2870 = vpack.c.bf16 %v2847, %v2846
      %v2871 = vpack.c.bf16 %v2849, %v2848
      %v2872 = vpack.c.bf16 %v2851, %v2850
      %v2873 = vpack.c.bf16 %v2853, %v2852
      %v2890 = vunpack.c.l.b16 %v2854
      %v2891 = vunpack.c.l.b16 %v2855
      %v2892 = vunpack.c.l.b16 %v2856
      %v2893 = vunpack.c.l.b16 %v2857
      %v2894 = vunpack.c.l.b16 %v2858
      %v2895 = vunpack.c.l.b16 %v2859
      %v2896 = vunpack.c.l.b16 %v2860
      %v2897 = vunpack.c.l.b16 %v2861
      %v2898 = vunpack.c.l.b16 %v2862
      %v2899 = vunpack.c.l.b16 %v2863
      %v2900 = vunpack.c.l.b16 %v2864
      %v2901 = vunpack.c.l.b16 %v2865
      %v2902 = vunpack.c.l.b16 %v2866
      %v2903 = vunpack.c.l.b16 %v2867
      %v2904 = vunpack.c.l.b16 %v2868
      %v2905 = vunpack.c.l.b16 %v2869
      %v2906 = vpack.c.b16 %v2891, %v2890
      %v2907 = vpack.c.b16 %v2893, %v2892
      %v2908 = vpack.c.b16 %v2895, %v2894
      %v2909 = vpack.c.b16 %v2897, %v2896
      %v2910 = vpack.c.b16 %v2899, %v2898
      %v2911 = vpack.c.b16 %v2901, %v2900
      %v2912 = vpack.c.b16 %v2903, %v2902
      %v2913 = vpack.c.b16 %v2905, %v2904
      %2922 = vmatpush.bf16.msra.mxu0 %v2913
      %2923 = vmatpush.bf16.msra.mxu0 %v2912
      %2924 = vmatpush.bf16.msra.mxu0 %v2911
      %2925 = vmatpush.bf16.msra.mxu0 %v2910
      %2926 = vmatpush.bf16.msra.mxu0 %v2909
      %2927 = vmatpush.bf16.msra.mxu0 %v2908
      %2928 = vmatpush.bf16.msra.mxu0 %v2907
      %2929 = vmatpush.bf16.msra.mxu0 %v2906
      %2930 = vmatmul.bf16.gmra.mxu0 %v2870
      %v2931 = vpop.f32.mrf.mxu0
      %v2932 = vadd.f32 0.0, %v2931
      %v2933 = vpop.f32.mrf.mxu0
      %v2934 = vadd.f32 0.0, %v2933
      %2935 = vmatmul.bf16.gmra.mxu0 %v2871
      %v2936 = vpop.f32.mrf.mxu0
      %v2937 = vadd.f32 0.0, %v2936
      %v2938 = vpop.f32.mrf.mxu0
      %v2939 = vadd.f32 0.0, %v2938
      %2940 = vmatmul.bf16.gmra.mxu0 %v2872
      %v2941 = vpop.f32.mrf.mxu0
      %v2942 = vadd.f32 0.0, %v2941
      %v2943 = vpop.f32.mrf.mxu0
      %v2944 = vadd.f32 0.0, %v2943
      %2945 = vmatmul.bf16.gmra.mxu0 %v2873
      %v2946 = vpop.f32.mrf.mxu0
      %v2947 = vadd.f32 0.0, %v2946
      %v2948 = vpop.f32.mrf.mxu0
      %v2949 = vadd.f32 0.0, %v2948
      %2950 = vdwg.mxu0
      %v2951 = vadd.f32 %v2499, %v2932
      %v2952 = vadd.f32 %v2500, %v2934
      %v2953 = vadd.f32 %v2501, %v2937
      %v2954 = vadd.f32 %v2502, %v2939
      %v2955 = vadd.f32 %v2503, %v2942
      %v2956 = vadd.f32 %v2504, %v2944
      %v2957 = vadd.f32 %v2505, %v2947
      %v2958 = vadd.f32 %v2506, %v2949
      %v2959 = vld [vmem:[%s2 + $0xd] sm:$0x1]
      %v2960 = vperm.slane %v2959, 0
      %v2961 = vadd.f32 %v2951, %v2960
      %v2962 = vadd.f32 %v2952, %v2960
      %v2963 = vadd.f32 %v2953, %v2960
      %v2964 = vadd.f32 %v2954, %v2960
      %v2965 = vadd.f32 %v2955, %v2960
      %v2966 = vadd.f32 %v2956, %v2960
      %v2967 = vadd.f32 %v2957, %v2960
      %v2968 = vadd.f32 %v2958, %v2960
      %v2969 = vld [vmem:[%s9] sm:$0xf]
      %v2970 = vld [vmem:[%s9 + $0x4] sm:$0xf]
      %v2971 = vld [vmem:[%s9 + $0x8] sm:$0xf]
      %v2972 = vld [vmem:[%s9 + $0xc] sm:$0xf]
      %v2973 = vld [vmem:[%s9 + $0x10] sm:$0xf]
      %v2974 = vld [vmem:[%s9 + $0x14] sm:$0xf]
      %v2975 = vld [vmem:[%s9 + $0x18] sm:$0xf]
      %v2976 = vld [vmem:[%s9 + $0x1c] sm:$0xf]
      %v2977 = vpack.c.bf16 %v2962, %v2961
      %v2978 = vpack.c.bf16 %v2964, %v2963
      %v2979 = vpack.c.bf16 %v2966, %v2965
      %v2980 = vpack.c.bf16 %v2968, %v2967
      %v2989 = vunpack.c.l.b16 %v2969
      %v2990 = vunpack.c.l.b16 %v2970
      %v2991 = vunpack.c.l.b16 %v2971
      %v2992 = vunpack.c.l.b16 %v2972
      %v2993 = vunpack.c.l.b16 %v2973
      %v2994 = vunpack.c.l.b16 %v2974
      %v2995 = vunpack.c.l.b16 %v2975
      %v2996 = vunpack.c.l.b16 %v2976
      %v2997 = vpack.c.b16 %v2990, %v2989
      %v2998 = vpack.c.b16 %v2992, %v2991
      %v2999 = vpack.c.b16 %v2994, %v2993
      %v3000 = vpack.c.b16 %v2996, %v2995
      %v3006 = vsel %vm1352, %v2977, 0
      %v3009 = vsel %vm1352, %v2978, 0
      %v3012 = vsel %vm1352, %v2979, 0
      %v3015 = vsel %vm1352, %v2980, 0
      %3017 = vmatpush.bf16.msra.mxu0 0
      %3018 = vmatpush.bf16.msra.mxu0 0
      %3019 = vmatpush.bf16.msra.mxu0 0
      %3020 = vmatpush.bf16.msra.mxu0 0
      %3021 = vmatpush.bf16.msra.mxu0 %v3000
      %3022 = vmatpush.bf16.msra.mxu0 %v2999
      %3023 = vmatpush.bf16.msra.mxu0 %v2998
      %3024 = vmatpush.bf16.msra.mxu0 %v2997
      %3025 = vmatmul.bf16.gmra.mxu0 %v3006
      %v3026 = vpop.f32.mrf.mxu0
      %v3027 = vadd.f32 0.0, %v3026
      %v3028 = vpop.f32.mrf.mxu0
      %v3029 = vadd.f32 0.0, %v3028
      %3030 = vmatmul.bf16.gmra.mxu0 %v3009
      %v3031 = vpop.f32.mrf.mxu0
      %v3032 = vadd.f32 0.0, %v3031
      %v3033 = vpop.f32.mrf.mxu0
      %v3034 = vadd.f32 0.0, %v3033
      %3035 = vmatmul.bf16.gmra.mxu0 %v3012
      %v3036 = vpop.f32.mrf.mxu0
      %v3037 = vadd.f32 0.0, %v3036
      %v3038 = vpop.f32.mrf.mxu0
      %v3039 = vadd.f32 0.0, %v3038
      %3040 = vmatmul.bf16.gmra.mxu0 %v3015
      %v3041 = vpop.f32.mrf.mxu0
      %v3042 = vadd.f32 0.0, %v3041
      %v3043 = vpop.f32.mrf.mxu0
      %v3044 = vadd.f32 0.0, %v3043
      %3045 = vdwg.mxu0
      %v3046 = vld [vmem:[%s2 + $0xe] sm:$0x1]
      %v3047 = vld [vmem:[%s2 + $0xf] sm:$0x1]
      %v3048 = vsel %vm1769, %v3027, 0.0
      %3049 = vadd.xlane.f32.xlu0 %v3048
      %v3050 = vpop.xlane.xlu0 %3049
      %v3051 = vsel %vm1769, %v3029, 0.0
      %3052 = vadd.xlane.f32.xlu0 %v3051
      %v3053 = vpop.xlane.xlu0 %3052
      %v3054 = vsel %vm1769, %v3032, 0.0
      %3055 = vadd.xlane.f32.xlu0 %v3054
      %v3056 = vpop.xlane.xlu0 %3055
      %v3057 = vsel %vm1769, %v3034, 0.0
      %3058 = vadd.xlane.f32.xlu0 %v3057
      %v3059 = vpop.xlane.xlu0 %3058
      %v3060 = vsel %vm1769, %v3037, 0.0
      %3061 = vadd.xlane.f32.xlu0 %v3060
      %v3062 = vpop.xlane.xlu0 %3061
      %v3063 = vsel %vm1769, %v3039, 0.0
      %3064 = vadd.xlane.f32.xlu0 %v3063
      %v3065 = vpop.xlane.xlu0 %3064
      %v3066 = vsel %vm1769, %v3042, 0.0
      %3067 = vadd.xlane.f32.xlu0 %v3066
      %v3068 = vpop.xlane.xlu0 %3067
      %v3069 = vsel %vm1769, %v3044, 0.0
      %3070 = vadd.xlane.f32.xlu0 %v3069
      %v3071 = vpop.xlane.xlu0 %3070
      %v3072 = vrcp.pop 32.0
      %v3073 = vmul.f32 32.0, %v3072
      %v3074 = vsub.f32 1.0, %v3073
      %v3075 = vmul.f32 %v3072, %v3074
      %v3076 = vadd.f32 %v3072, %v3075
      %vm3077 = vweird.f32 %v3072
      %v3078 = vsel %vm3077, %v3072, %v3076
      %v3079 = vmul.f32 %v3050, %v3078
      %v3080 = vmul.f32 %v3053, %v3078
      %v3081 = vmul.f32 %v3056, %v3078
      %v3082 = vmul.f32 %v3059, %v3078
      %v3083 = vmul.f32 %v3062, %v3078
      %v3084 = vmul.f32 %v3065, %v3078
      %v3085 = vmul.f32 %v3068, %v3078
      %v3086 = vmul.f32 %v3071, %v3078
      %v3087 = vsub.f32 %v3027, %v3079
      %v3088 = vsub.f32 %v3029, %v3080
      %v3089 = vsub.f32 %v3032, %v3081
      %v3090 = vsub.f32 %v3034, %v3082
      %v3091 = vsub.f32 %v3037, %v3083
      %v3092 = vsub.f32 %v3039, %v3084
      %v3093 = vsub.f32 %v3042, %v3085
      %v3094 = vsub.f32 %v3044, %v3086
      %v3095 = vmul.f32 %v3087, %v3087
      %v3096 = vmul.f32 %v3088, %v3088
      %v3097 = vmul.f32 %v3089, %v3089
      %v3098 = vmul.f32 %v3090, %v3090
      %v3099 = vmul.f32 %v3091, %v3091
      %v3100 = vmul.f32 %v3092, %v3092
      %v3101 = vmul.f32 %v3093, %v3093
      %v3102 = vmul.f32 %v3094, %v3094
      %v3103 = vsel %vm1769, %v3095, 0.0
      %3104 = vadd.xlane.f32.xlu0 %v3103
      %v3105 = vpop.xlane.xlu0 %3104
      %v3106 = vsel %vm1769, %v3096, 0.0
      %3107 = vadd.xlane.f32.xlu0 %v3106
      %v3108 = vpop.xlane.xlu0 %3107
      %v3109 = vsel %vm1769, %v3097, 0.0
      %3110 = vadd.xlane.f32.xlu0 %v3109
      %v3111 = vpop.xlane.xlu0 %3110
      %v3112 = vsel %vm1769, %v3098, 0.0
      %3113 = vadd.xlane.f32.xlu0 %v3112
      %v3114 = vpop.xlane.xlu0 %3113
      %v3115 = vsel %vm1769, %v3099, 0.0
      %3116 = vadd.xlane.f32.xlu0 %v3115
      %v3117 = vpop.xlane.xlu0 %3116
      %v3118 = vsel %vm1769, %v3100, 0.0
      %3119 = vadd.xlane.f32.xlu0 %v3118
      %v3120 = vpop.xlane.xlu0 %3119
      %v3121 = vsel %vm1769, %v3101, 0.0
      %3122 = vadd.xlane.f32.xlu0 %v3121
      %v3123 = vpop.xlane.xlu0 %3122
      %v3124 = vsel %vm1769, %v3102, 0.0
      %3125 = vadd.xlane.f32.xlu0 %v3124
      %v3126 = vpop.xlane.xlu0 %3125
      %v3127 = vmul.f32 %v3105, %v3078
      %v3128 = vmul.f32 %v3108, %v3078
      %v3129 = vmul.f32 %v3111, %v3078
      %v3130 = vmul.f32 %v3114, %v3078
      %v3131 = vmul.f32 %v3117, %v3078
      %v3132 = vmul.f32 %v3120, %v3078
      %v3133 = vmul.f32 %v3123, %v3078
      %v3134 = vmul.f32 %v3126, %v3078
      %v3135 = vadd.f32 %v3127, 1e-06
      %v3136 = vadd.f32 %v3128, 1e-06
      %v3137 = vadd.f32 %v3129, 1e-06
      %v3138 = vadd.f32 %v3130, 1e-06
      %v3139 = vadd.f32 %v3131, 1e-06
      %v3140 = vadd.f32 %v3132, 1e-06
      %v3141 = vadd.f32 %v3133, 1e-06
      %v3142 = vadd.f32 %v3134, 1e-06
      %v3143 = vrsqrt.pop %v3135
      %v3144 = vmul.f32 %v3143, %v3135
      %v3145 = vmul.f32 %v3144, %v3143
      %v3146 = vmul.f32 0.5, %v3145
      %v3147 = vsub.f32 1.5, %v3146
      %v3148 = vmul.f32 %v3143, %v3147
      %vm3149 = vweird.f32 %v3135
      %vm3150 = vweird.f32 %v3143
      %vm3151 = vmor %vm3149, %vm3150
      %v3152 = vsel %vm3151, %v3143, %v3148
      %v3153 = vrsqrt.pop %v3136
      %v3154 = vmul.f32 %v3153, %v3136
      %v3155 = vmul.f32 %v3154, %v3153
      %v3156 = vmul.f32 0.5, %v3155
      %v3157 = vsub.f32 1.5, %v3156
      %v3158 = vmul.f32 %v3153, %v3157
      %vm3159 = vweird.f32 %v3136
      %vm3160 = vweird.f32 %v3153
      %vm3161 = vmor %vm3159, %vm3160
      %v3162 = vsel %vm3161, %v3153, %v3158
      %v3163 = vrsqrt.pop %v3137
      %v3164 = vmul.f32 %v3163, %v3137
      %v3165 = vmul.f32 %v3164, %v3163
      %v3166 = vmul.f32 0.5, %v3165
      %v3167 = vsub.f32 1.5, %v3166
      %v3168 = vmul.f32 %v3163, %v3167
      %vm3169 = vweird.f32 %v3137
      %vm3170 = vweird.f32 %v3163
      %vm3171 = vmor %vm3169, %vm3170
      %v3172 = vsel %vm3171, %v3163, %v3168
      %v3173 = vrsqrt.pop %v3138
      %v3174 = vmul.f32 %v3173, %v3138
      %v3175 = vmul.f32 %v3174, %v3173
      %v3176 = vmul.f32 0.5, %v3175
      %v3177 = vsub.f32 1.5, %v3176
      %v3178 = vmul.f32 %v3173, %v3177
      %vm3179 = vweird.f32 %v3138
      %vm3180 = vweird.f32 %v3173
      %vm3181 = vmor %vm3179, %vm3180
      %v3182 = vsel %vm3181, %v3173, %v3178
      %v3183 = vrsqrt.pop %v3139
      %v3184 = vmul.f32 %v3183, %v3139
      %v3185 = vmul.f32 %v3184, %v3183
      %v3186 = vmul.f32 0.5, %v3185
      %v3187 = vsub.f32 1.5, %v3186
      %v3188 = vmul.f32 %v3183, %v3187
      %vm3189 = vweird.f32 %v3139
      %vm3190 = vweird.f32 %v3183
      %vm3191 = vmor %vm3189, %vm3190
      %v3192 = vsel %vm3191, %v3183, %v3188
      %v3193 = vrsqrt.pop %v3140
      %v3194 = vmul.f32 %v3193, %v3140
      %v3195 = vmul.f32 %v3194, %v3193
      %v3196 = vmul.f32 0.5, %v3195
      %v3197 = vsub.f32 1.5, %v3196
      %v3198 = vmul.f32 %v3193, %v3197
      %vm3199 = vweird.f32 %v3140
      %vm3200 = vweird.f32 %v3193
      %vm3201 = vmor %vm3199, %vm3200
      %v3202 = vsel %vm3201, %v3193, %v3198
      %v3203 = vrsqrt.pop %v3141
      %v3204 = vmul.f32 %v3203, %v3141
      %v3205 = vmul.f32 %v3204, %v3203
      %v3206 = vmul.f32 0.5, %v3205
      %v3207 = vsub.f32 1.5, %v3206
      %v3208 = vmul.f32 %v3203, %v3207
      %vm3209 = vweird.f32 %v3141
      %vm3210 = vweird.f32 %v3203
      %vm3211 = vmor %vm3209, %vm3210
      %v3212 = vsel %vm3211, %v3203, %v3208
      %v3213 = vrsqrt.pop %v3142
      %v3214 = vmul.f32 %v3213, %v3142
      %v3215 = vmul.f32 %v3214, %v3213
      %v3216 = vmul.f32 0.5, %v3215
      %v3217 = vsub.f32 1.5, %v3216
      %v3218 = vmul.f32 %v3213, %v3217
      %vm3219 = vweird.f32 %v3142
      %vm3220 = vweird.f32 %v3213
      %vm3221 = vmor %vm3219, %vm3220
      %v3222 = vsel %vm3221, %v3213, %v3218
      %v3223 = vmul.f32 %v3087, %v3152
      %v3224 = vmul.f32 %v3088, %v3162
      %v3225 = vmul.f32 %v3089, %v3172
      %v3226 = vmul.f32 %v3090, %v3182
      %v3227 = vmul.f32 %v3091, %v3192
      %v3228 = vmul.f32 %v3092, %v3202
      %v3229 = vmul.f32 %v3093, %v3212
      %v3230 = vmul.f32 %v3094, %v3222
      %v3231 = vperm.slane %v3046, 0
      %v3232 = vmul.f32 %v3223, %v3231
      %v3233 = vmul.f32 %v3224, %v3231
      %v3234 = vmul.f32 %v3225, %v3231
      %v3235 = vmul.f32 %v3226, %v3231
      %v3236 = vmul.f32 %v3227, %v3231
      %v3237 = vmul.f32 %v3228, %v3231
      %v3238 = vmul.f32 %v3229, %v3231
      %v3239 = vmul.f32 %v3230, %v3231
      %v3240 = vperm.slane %v3047, 0
      %v3241 = vadd.f32 %v3232, %v3240
      %v3242 = vadd.f32 %v3233, %v3240
      %v3243 = vadd.f32 %v3234, %v3240
      %v3244 = vadd.f32 %v3235, %v3240
      %v3245 = vadd.f32 %v3236, %v3240
      %v3246 = vadd.f32 %v3237, %v3240
      %v3247 = vadd.f32 %v3238, %v3240
      %v3248 = vadd.f32 %v3239, %v3240
      %v3249 = vld [vmem:[%s2 + $0x10] sm:$0x1]
      %v3250 = vperm.slane %v3249, 0
      %v3251 = vadd.f32 %v3241, %v3250
      %v3252 = vadd.f32 %v3242, %v3250
      %v3253 = vadd.f32 %v3243, %v3250
      %v3254 = vadd.f32 %v3244, %v3250
      %v3255 = vadd.f32 %v3245, %v3250
      %v3256 = vadd.f32 %v3246, %v3250
      %v3257 = vadd.f32 %v3247, %v3250
      %v3258 = vadd.f32 %v3248, %v3250
      %v3259 = vld [vmem:[%s10] sm:$0xff]
      %v3260 = vld [vmem:[%s10 + $0x8] sm:$0xff]
      %v3261 = vld [vmem:[%s10 + $0x10] sm:$0xff]
      %v3262 = vld [vmem:[%s10 + $0x18] sm:$0xff]
      %v3263 = vld [vmem:[%s10 + $0x20] sm:$0xff]
      %v3264 = vld [vmem:[%s10 + $0x28] sm:$0xff]
      %v3265 = vld [vmem:[%s10 + $0x30] sm:$0xff]
      %v3266 = vld [vmem:[%s10 + $0x38] sm:$0xff]
      %v3267 = vld [vmem:[%s2 + $0x11] sm:$0x1]
      %v3268 = vld [vmem:[%s2 + $0x12] sm:$0x1]
      %v3269 = vld [vmem:[%s620] sm:$0x3]
      %v3271 = vrot.slane %v3268, 7
      %v3274 = vrot.slane %v3269, 6
      %vm3276 = vcmask 1040384
      %v3277 = vsel %vm3276, %v3267, %v3271
      %vm3278 = vcmask 1041408
      %v3279 = vsel %vm3278, %v3277, %v3274
      %v3280 = vld [vmem:[%s11] sm:$0xf]
      %v3281 = vld [vmem:[%s11 + $0x4] sm:$0xf]
      %v3282 = vld [vmem:[%s11 + $0x8] sm:$0xf]
      %v3283 = vld [vmem:[%s11 + $0xc] sm:$0xf]
      %v3284 = vpack.c.bf16 %v3279, %v3279
      %v3285 = vld [vmem:[%s2 + $0x13] sm:$0x1]
      %v3286 = vperm.slane %v3285, 0
      %v3291 = vunpack.c.l.b16 %v3280
      %v3292 = vunpack.c.l.b16 %v3281
      %v3293 = vunpack.c.l.b16 %v3282
      %v3294 = vunpack.c.l.b16 %v3283
      %v3295 = vpack.c.b16 %v3292, %v3291
      %v3296 = vpack.c.b16 %v3294, %v3293
      %v3300 = vsel %vm1769, %v3284, 0
      %3302 = vmatpush.bf16.msra.mxu0 0
      %3303 = vmatpush.bf16.msra.mxu0 0
      %3304 = vmatpush.bf16.msra.mxu0 0
      %3305 = vmatpush.bf16.msra.mxu0 0
      %3306 = vmatpush.bf16.msra.mxu0 0
      %3307 = vmatpush.bf16.msra.mxu0 0
      %3308 = vmatpush.bf16.msra.mxu0 %v3296
      %3309 = vmatpush.bf16.msra.mxu0 %v3295
      %3310 = vmatmul.bf16.gmra.mxu0 %v3300
      %v3311 = vpop.f32.mrf.mxu0
      %v3312 = vadd.f32 %v3286, %v3311
      %v3313 = vpop.f32.mrf.mxu0
      %3314 = vdwg.mxu0
      %v3315 = vadd.f32 %v3251, %v3259
      %v3316 = vadd.f32 %v3252, %v3260
      %v3317 = vadd.f32 %v3253, %v3261
      %v3318 = vadd.f32 %v3254, %v3262
      %v3319 = vadd.f32 %v3255, %v3263
      %v3320 = vadd.f32 %v3256, %v3264
      %v3321 = vadd.f32 %v3257, %v3265
      %v3322 = vadd.f32 %v3258, %v3266
      %s3323 = scalar_lea.vmem %s11, 16
      %v3324 = vld [vmem:[%s3323] sm:$0xf]
      %v3325 = vld [vmem:[%s3323 + $0x4] sm:$0xf]
      %v3326 = vld [vmem:[%s3323 + $0x8] sm:$0xf]
      %v3327 = vld [vmem:[%s3323 + $0xc] sm:$0xf]
      %v3328 = vpack.c.bf16 %v3316, %v3315
      %v3329 = vpack.c.bf16 %v3318, %v3317
      %v3330 = vpack.c.bf16 %v3320, %v3319
      %v3331 = vpack.c.bf16 %v3322, %v3321
      %v3332 = vld [vmem:[%s2 + $0x14] sm:$0x1]
      %v3333 = vperm.slane %v3332, 0
      %v3338 = vunpack.c.l.b16 %v3324
      %v3339 = vunpack.c.l.b16 %v3325
      %v3340 = vunpack.c.l.b16 %v3326
      %v3341 = vunpack.c.l.b16 %v3327
      %v3342 = vpack.c.b16 %v3339, %v3338
      %v3343 = vpack.c.b16 %v3341, %v3340
      %v3347 = vsel %vm1769, %v3328, 0
      %v3350 = vsel %vm1769, %v3329, 0
      %v3353 = vsel %vm1769, %v3330, 0
      %v3356 = vsel %vm1769, %v3331, 0
      %3358 = vmatpush.bf16.msra.mxu0 0
      %3359 = vmatpush.bf16.msra.mxu0 0
      %3360 = vmatpush.bf16.msra.mxu0 0
      %3361 = vmatpush.bf16.msra.mxu0 0
      %3362 = vmatpush.bf16.msra.mxu0 0
      %3363 = vmatpush.bf16.msra.mxu0 0
      %3364 = vmatpush.bf16.msra.mxu0 %v3343
      %3365 = vmatpush.bf16.msra.mxu0 %v3342
      %3366 = vmatmul.bf16.gmra.mxu0 %v3347
      %v3367 = vpop.f32.mrf.mxu0
      %v3368 = vadd.f32 %v3333, %v3367
      %v3369 = vpop.f32.mrf.mxu0
      %v3370 = vadd.f32 %v3333, %v3369
      %3371 = vmatmul.bf16.gmra.mxu0 %v3350
      %v3372 = vpop.f32.mrf.mxu0
      %v3373 = vadd.f32 %v3333, %v3372
      %v3374 = vpop.f32.mrf.mxu0
      %v3375 = vadd.f32 %v3333, %v3374
      %3376 = vmatmul.bf16.gmra.mxu0 %v3353
      %v3377 = vpop.f32.mrf.mxu0
      %v3378 = vadd.f32 %v3333, %v3377
      %v3379 = vpop.f32.mrf.mxu0
      %v3380 = vadd.f32 %v3333, %v3379
      %3381 = vmatmul.bf16.gmra.mxu0 %v3356
      %v3382 = vpop.f32.mrf.mxu0
      %v3383 = vadd.f32 %v3333, %v3382
      %v3384 = vpop.f32.mrf.mxu0
      %v3385 = vadd.f32 %v3333, %v3384
      %3386 = vdwg.mxu0
      %s3387 = scalar_lea.vmem %s11, 32
      %v3388 = vld [vmem:[%s3387] sm:$0xf]
      %v3389 = vld [vmem:[%s3387 + $0x4] sm:$0xf]
      %v3390 = vld [vmem:[%s3387 + $0x8] sm:$0xf]
      %v3391 = vld [vmem:[%s3387 + $0xc] sm:$0xf]
      %v3392 = vpack.c.bf16 %v3252, %v3251
      %v3393 = vpack.c.bf16 %v3254, %v3253
      %v3394 = vpack.c.bf16 %v3256, %v3255
      %v3395 = vpack.c.bf16 %v3258, %v3257
      %v3396 = vld [vmem:[%s2 + $0x15] sm:$0x1]
      %v3397 = vperm.slane %v3396, 0
      %v3402 = vunpack.c.l.b16 %v3388
      %v3403 = vunpack.c.l.b16 %v3389
      %v3404 = vunpack.c.l.b16 %v3390
      %v3405 = vunpack.c.l.b16 %v3391
      %v3406 = vpack.c.b16 %v3403, %v3402
      %v3407 = vpack.c.b16 %v3405, %v3404
      %v3411 = vsel %vm1769, %v3392, 0
      %v3414 = vsel %vm1769, %v3393, 0
      %v3417 = vsel %vm1769, %v3394, 0
      %v3420 = vsel %vm1769, %v3395, 0
      %3422 = vmatpush.bf16.msra.mxu0 0
      %3423 = vmatpush.bf16.msra.mxu0 0
      %3424 = vmatpush.bf16.msra.mxu0 0
      %3425 = vmatpush.bf16.msra.mxu0 0
      %3426 = vmatpush.bf16.msra.mxu0 0
      %3427 = vmatpush.bf16.msra.mxu0 0
      %3428 = vmatpush.bf16.msra.mxu0 %v3407
      %3429 = vmatpush.bf16.msra.mxu0 %v3406
      %3430 = vmatmul.bf16.gmra.mxu0 %v3411
      %v3431 = vpop.f32.mrf.mxu0
      %v3432 = vadd.f32 %v3397, %v3431
      %v3433 = vpop.f32.mrf.mxu0
      %v3434 = vadd.f32 %v3397, %v3433
      %3435 = vmatmul.bf16.gmra.mxu0 %v3414
      %v3436 = vpop.f32.mrf.mxu0
      %v3437 = vadd.f32 %v3397, %v3436
      %v3438 = vpop.f32.mrf.mxu0
      %v3439 = vadd.f32 %v3397, %v3438
      %3440 = vmatmul.bf16.gmra.mxu0 %v3417
      %v3441 = vpop.f32.mrf.mxu0
      %v3442 = vadd.f32 %v3397, %v3441
      %v3443 = vpop.f32.mrf.mxu0
      %v3444 = vadd.f32 %v3397, %v3443
      %3445 = vmatmul.bf16.gmra.mxu0 %v3420
      %v3446 = vpop.f32.mrf.mxu0
      %v3447 = vadd.f32 %v3397, %v3446
      %v3448 = vpop.f32.mrf.mxu0
      %v3449 = vadd.f32 %v3397, %v3448
      %3450 = vdwg.mxu0
      %v3451 = vpack.c.bf16 %v3312, %v3312
      %v3452 = vpack.c.bf16 %v3370, %v3368
      %v3453 = vpack.c.bf16 %v3375, %v3373
      %v3454 = vpack.c.bf16 %v3380, %v3378
      %v3455 = vpack.c.bf16 %v3385, %v3383
      %v3457 = vsel %vm1769, %v3451, 0
      %v3460 = vsel %vm1769, %v3452, 0
      %v3463 = vsel %vm1769, %v3453, 0
      %v3466 = vsel %vm1769, %v3454, 0
      %v3469 = vsel %vm1769, %v3455, 0
      %3471 = vmatpush.bf16.xpose.msra.mxu0 0
      %3472 = vmatpush.bf16.xpose.msra.mxu0 0
      %3473 = vmatpush.bf16.xpose.msra.mxu0 0
      %3474 = vmatpush.bf16.xpose.msra.mxu0 0
      %3475 = vmatpush.bf16.xpose.msra.mxu0 %v3469
      %3476 = vmatpush.bf16.xpose.msra.mxu0 %v3466
      %3477 = vmatpush.bf16.xpose.msra.mxu0 %v3463
      %3478 = vmatpush.bf16.xpose.msra.mxu0 %v3460
      %3479 = vmatmul.bf16.gmra.mxu0 %v3457
      %v3480 = vpop.f32.mrf.mxu0
      %v3481 = vadd.f32 0.0, %v3480
      %v3482 = vpop.f32.mrf.mxu0
      %3483 = vdwg.mxu0
      %v3484 = vmul.f32 %v3481, 0.17677669
      %vm3485 = vcmask 519168
      %v3486 = vsel %vm3485, %v3484, -inf
      %3487 = vmax.xlane.f32.xlu0 %v3486
      %v3488 = vpop.xlane.xlu0 %3487
      %v3489 = vsub.f32 %v3484, %v3488
      %v3490 = vmul.f32 %v3489, 1.442695
      %v3491 = vpow.pop %v3490
      %v3492 = vsel %vm3485, %v3491, 0.0
      %3493 = vadd.xlane.f32.xlu0 %v3492
      %v3494 = vpop.xlane.xlu0 %3493
      %v3495 = vrcp.pop %v3494
      %v3496 = vmul.f32 %v3491, %v3495
      %v3497 = vpack.c.bf16 %v3496, %v3496
      %v3498 = vpack.c.bf16 %v3434, %v3432
      %v3499 = vpack.c.bf16 %v3439, %v3437
      %v3500 = vpack.c.bf16 %v3444, %v3442
      %v3501 = vpack.c.bf16 %v3449, %v3447
      %v3503 = vsel %vm1352, %v3497, 0
      %3505 = vmatpush.bf16.msra.mxu0 0
      %3506 = vmatpush.bf16.msra.mxu0 0
      %3507 = vmatpush.bf16.msra.mxu0 0
      %3508 = vmatpush.bf16.msra.mxu0 0
      %3509 = vmatpush.bf16.msra.mxu0 %v3501
      %3510 = vmatpush.bf16.msra.mxu0 %v3500
      %3511 = vmatpush.bf16.msra.mxu0 %v3499
      %3512 = vmatpush.bf16.msra.mxu0 %v3498
      %3513 = vmatmul.bf16.gmra.mxu0 %v3503
      %v3514 = vpop.f32.mrf.mxu0
      %v3515 = vadd.f32 0.0, %v3514
      %v3516 = vpop.f32.mrf.mxu0
      %3517 = vdwg.mxu0
      %s3518 = scalar_lea.vmem %s11, 48
      %v3519 = vld [vmem:[%s3518] sm:$0xf]
      %v3520 = vld [vmem:[%s3518 + $0x4] sm:$0xf]
      %v3521 = vld [vmem:[%s3518 + $0x8] sm:$0xf]
      %v3522 = vld [vmem:[%s3518 + $0xc] sm:$0xf]
      %v3523 = vpack.c.bf16 %v3515, %v3515
      %v3524 = vld [vmem:[%s2 + $0x16] sm:$0x1]
      %v3525 = vperm.slane %v3524, 0
      %v3530 = vunpack.c.l.b16 %v3519
      %v3531 = vunpack.c.l.b16 %v3520
      %v3532 = vunpack.c.l.b16 %v3521
      %v3533 = vunpack.c.l.b16 %v3522
      %v3534 = vpack.c.b16 %v3531, %v3530
      %v3535 = vpack.c.b16 %v3533, %v3532
      %v3539 = vsel %vm1769, %v3523, 0
      %3541 = vmatpush.bf16.msra.mxu0 0
      %3542 = vmatpush.bf16.msra.mxu0 0
      %3543 = vmatpush.bf16.msra.mxu0 0
      %3544 = vmatpush.bf16.msra.mxu0 0
      %3545 = vmatpush.bf16.msra.mxu0 0
      %3546 = vmatpush.bf16.msra.mxu0 0
      %3547 = vmatpush.bf16.msra.mxu0 %v3535
      %3548 = vmatpush.bf16.msra.mxu0 %v3534
      %3549 = vmatmul.bf16.gmra.mxu0 %v3539
      %v3550 = vpop.f32.mrf.mxu0
      %v3551 = vadd.f32 %v3525, %v3550
      %v3552 = vpop.f32.mrf.mxu0
      %3553 = vdwg.mxu0
      %v3554 = vadd.f32 %v3279, %v3551
      %v3555 = vld [vmem:[%s2 + $0x17] sm:$0x1]
      %v3556 = vld [vmem:[%s2 + $0x18] sm:$0x1]
      %vm3557 = vcmask 257024
      %v3558 = vsel %vm3557, %v3554, 0.0
      %3559 = vadd.xlane.f32.xlu0 %v3558
      %v3560 = vpop.xlane.xlu0 %3559
      %v3561 = vmul.f32 %v3560, %v3078
      %v3562 = vsub.f32 %v3554, %v3561
      %v3563 = vmul.f32 %v3562, %v3562
      %v3564 = vsel %vm3557, %v3563, 0.0
      %3565 = vadd.xlane.f32.xlu0 %v3564
      %v3566 = vpop.xlane.xlu0 %3565
      %v3567 = vmul.f32 %v3566, %v3078
      %v3568 = vadd.f32 %v3567, 1e-06
      %v3569 = vrsqrt.pop %v3568
      %v3570 = vmul.f32 %v3569, %v3568
      %v3571 = vmul.f32 %v3570, %v3569
      %v3572 = vmul.f32 0.5, %v3571
      %v3573 = vsub.f32 1.5, %v3572
      %v3574 = vmul.f32 %v3569, %v3573
      %vm3575 = vweird.f32 %v3568
      %vm3576 = vweird.f32 %v3569
      %vm3577 = vmor %vm3575, %vm3576
      %v3578 = vsel %vm3577, %v3569, %v3574
      %v3579 = vmul.f32 %v3562, %v3578
      %v3580 = vperm.slane %v3555, 0
      %v3581 = vmul.f32 %v3579, %v3580
      %v3582 = vperm.slane %v3556, 0
      %v3583 = vadd.f32 %v3581, %v3582
      %v3584 = vld [vmem:[%s12] sm:$0xf]
      %v3585 = vld [vmem:[%s12 + $0x4] sm:$0xf]
      %v3586 = vld [vmem:[%s12 + $0x8] sm:$0xf]
      %v3587 = vld [vmem:[%s12 + $0xc] sm:$0xf]
      %v3588 = vpack.c.bf16 %v3583, %v3583
      %v3589 = vld [vmem:[%s2 + $0x19] sm:$0x1]
      %v3590 = vperm.slane %v3589, 0
      %v3595 = vunpack.c.l.b16 %v3584
      %v3596 = vunpack.c.l.b16 %v3585
      %v3597 = vunpack.c.l.b16 %v3586
      %v3598 = vunpack.c.l.b16 %v3587
      %v3599 = vpack.c.b16 %v3596, %v3595
      %v3600 = vpack.c.b16 %v3598, %v3597
      %v3604 = vsel %vm1769, %v3588, 0
      %3606 = vmatpush.bf16.msra.mxu0 0
      %3607 = vmatpush.bf16.msra.mxu0 0
      %3608 = vmatpush.bf16.msra.mxu0 0
      %3609 = vmatpush.bf16.msra.mxu0 0
      %3610 = vmatpush.bf16.msra.mxu0 0
      %3611 = vmatpush.bf16.msra.mxu0 0
      %3612 = vmatpush.bf16.msra.mxu0 %v3600
      %3613 = vmatpush.bf16.msra.mxu0 %v3599
      %3614 = vmatmul.bf16.gmra.mxu0 %v3604
      %v3615 = vpop.f32.mrf.mxu0
      %v3616 = vadd.f32 %v3590, %v3615
      %v3617 = vpop.f32.mrf.mxu0
      %3618 = vdwg.mxu0
      %v3619 = vmul.f32 %v3616, %v3616
      %v3620 = vmul.f32 %v3616, %v3619
      %v3621 = vmul.f32 %v3620, 0.044715
      %v3622 = vadd.f32 %v3616, %v3621
      %v3623 = vmul.f32 %v3622, 0.7978846
      %v3624 = vtanh.pop %v3623
      %v3625 = vadd.f32 %v3624, 1.0
      %v3626 = vmul.f32 %v3625, 0.5
      %v3627 = vmul.f32 %v3616, %v3626
      %v3628 = vld [vmem:[%s13] sm:$0xf]
      %v3629 = vld [vmem:[%s13 + $0x4] sm:$0xf]
      %v3630 = vld [vmem:[%s13 + $0x8] sm:$0xf]
      %v3631 = vld [vmem:[%s13 + $0xc] sm:$0xf]
      %v3632 = vld [vmem:[%s13 + $0x10] sm:$0xf]
      %v3633 = vld [vmem:[%s13 + $0x14] sm:$0xf]
      %v3634 = vld [vmem:[%s13 + $0x18] sm:$0xf]
      %v3635 = vld [vmem:[%s13 + $0x1c] sm:$0xf]
      %v3636 = vld [vmem:[%s13 + $0x20] sm:$0xf]
      %v3637 = vld [vmem:[%s13 + $0x24] sm:$0xf]
      %v3638 = vld [vmem:[%s13 + $0x28] sm:$0xf]
      %v3639 = vld [vmem:[%s13 + $0x2c] sm:$0xf]
      %v3640 = vld [vmem:[%s13 + $0x30] sm:$0xf]
      %v3641 = vld [vmem:[%s13 + $0x34] sm:$0xf]
      %v3642 = vld [vmem:[%s13 + $0x38] sm:$0xf]
      %v3643 = vld [vmem:[%s13 + $0x3c] sm:$0xf]
      %v3644 = vpack.c.bf16 %v3627, %v3627
      %v3645 = vld [vmem:[%s2 + $0x1a] sm:$0x1]
      %v3646 = vperm.slane %v3645, 0
      %v3663 = vunpack.c.l.b16 %v3628
      %v3664 = vunpack.c.l.b16 %v3629
      %v3665 = vunpack.c.l.b16 %v3630
      %v3666 = vunpack.c.l.b16 %v3631
      %v3667 = vunpack.c.l.b16 %v3632
      %v3668 = vunpack.c.l.b16 %v3633
      %v3669 = vunpack.c.l.b16 %v3634
      %v3670 = vunpack.c.l.b16 %v3635
      %v3671 = vunpack.c.l.b16 %v3636
      %v3672 = vunpack.c.l.b16 %v3637
      %v3673 = vunpack.c.l.b16 %v3638
      %v3674 = vunpack.c.l.b16 %v3639
      %v3675 = vunpack.c.l.b16 %v3640
      %v3676 = vunpack.c.l.b16 %v3641
      %v3677 = vunpack.c.l.b16 %v3642
      %v3678 = vunpack.c.l.b16 %v3643
      %v3679 = vpack.c.b16 %v3664, %v3663
      %v3680 = vpack.c.b16 %v3666, %v3665
      %v3681 = vpack.c.b16 %v3668, %v3667
      %v3682 = vpack.c.b16 %v3670, %v3669
      %v3683 = vpack.c.b16 %v3672, %v3671
      %v3684 = vpack.c.b16 %v3674, %v3673
      %v3685 = vpack.c.b16 %v3676, %v3675
      %v3686 = vpack.c.b16 %v3678, %v3677
      %3695 = vmatpush.bf16.msra.mxu0 %v3686
      %3696 = vmatpush.bf16.msra.mxu0 %v3685
      %3697 = vmatpush.bf16.msra.mxu0 %v3684
      %3698 = vmatpush.bf16.msra.mxu0 %v3683
      %3699 = vmatpush.bf16.msra.mxu0 %v3682
      %3700 = vmatpush.bf16.msra.mxu0 %v3681
      %3701 = vmatpush.bf16.msra.mxu0 %v3680
      %3702 = vmatpush.bf16.msra.mxu0 %v3679
      %3703 = vmatmul.bf16.gmra.mxu0 %v3644
      %v3704 = vpop.f32.mrf.mxu0
      %v3705 = vadd.f32 %v3646, %v3704
      %v3706 = vpop.f32.mrf.mxu0
      %3707 = vdwg.mxu0
      %v3708 = vadd.f32 %v3583, %v3705
      %v3709 = vld [vmem:[%s2 + $0x1b] sm:$0x1]
      %v3710 = vld [vmem:[%s2 + $0x1c] sm:$0x1]
      %v3711 = vsel %vm3557, %v3708, 0.0
      %3712 = vadd.xlane.f32.xlu0 %v3711
      %v3713 = vpop.xlane.xlu0 %3712
      %v3714 = vmul.f32 %v3713, %v3078
      %v3715 = vsub.f32 %v3708, %v3714
      %v3716 = vmul.f32 %v3715, %v3715
      %v3717 = vsel %vm3557, %v3716, 0.0
      %3718 = vadd.xlane.f32.xlu0 %v3717
      %v3719 = vpop.xlane.xlu0 %3718
      %v3720 = vmul.f32 %v3719, %v3078
      %v3721 = vadd.f32 %v3720, 1e-06
      %v3722 = vrsqrt.pop %v3721
      %v3723 = vmul.f32 %v3722, %v3721
      %v3724 = vmul.f32 %v3723, %v3722
      %v3725 = vmul.f32 0.5, %v3724
      %v3726 = vsub.f32 1.5, %v3725
      %v3727 = vmul.f32 %v3722, %v3726
      %vm3728 = vweird.f32 %v3721
      %vm3729 = vweird.f32 %v3722
      %vm3730 = vmor %vm3728, %vm3729
      %v3731 = vsel %vm3730, %v3722, %v3727
      %v3732 = vmul.f32 %v3715, %v3731
      %v3733 = vperm.slane %v3709, 0
      %v3734 = vmul.f32 %v3732, %v3733
      %v3735 = vperm.slane %v3710, 0
      %v3736 = vadd.f32 %v3734, %v3735
      %s3737 = scalar_lea.vmem %s11, 64
      %v3738 = vld [vmem:[%s3737] sm:$0xf]
      %v3739 = vld [vmem:[%s3737 + $0x4] sm:$0xf]
      %v3740 = vld [vmem:[%s3737 + $0x8] sm:$0xf]
      %v3741 = vld [vmem:[%s3737 + $0xc] sm:$0xf]
      %v3742 = vpack.c.bf16 %v3736, %v3736
      %v3743 = vld [vmem:[%s2 + $0x1f] sm:$0x1]
      %v3745 = vshrl.u32 %v3742, 16
      %v3751 = vunpack.c.l.b16 %v3738
      %v3752 = vunpack.c.l.b16 %v3739
      %v3753 = vunpack.c.l.b16 %v3740
      %v3754 = vunpack.c.l.b16 %v3741
      %v3755 = vpack.c.b16 %v3752, %v3751
      %v3756 = vpack.c.b16 %v3754, %v3753
      %v3760 = vsel %vm1769, %v3745, 0
      %3762 = vmatpush.bf16.msra.mxu0 0
      %3763 = vmatpush.bf16.msra.mxu0 0
      %3764 = vmatpush.bf16.msra.mxu0 0
      %3765 = vmatpush.bf16.msra.mxu0 0
      %3766 = vmatpush.bf16.msra.mxu0 0
      %3767 = vmatpush.bf16.msra.mxu0 0
      %3768 = vmatpush.bf16.msra.mxu0 %v3756
      %3769 = vmatpush.bf16.msra.mxu0 %v3755
      %3770 = vmatmul.bf16.gmra.mxu0 %v3760
      %v3771 = vpop.f32.mrf.mxu0
      %v3772 = vadd.f32 %v3743, %v3771
      %v3773 = vpop.f32.mrf.mxu0
      %3774 = vdwg.mxu0
      %v3775 = vmax.f32 %v3772, 0.0
      %s3776 = scalar_lea.vmem %s11, 80
      %v3777 = vld [vmem:[%s3776] sm:$0xf]
      %v3778 = vld [vmem:[%s3776 + $0x4] sm:$0xf]
      %v3779 = vld [vmem:[%s3776 + $0x8] sm:$0xf]
      %v3780 = vld [vmem:[%s3776 + $0xc] sm:$0xf]
      %v3781 = vpack.c.bf16 %v3775, %v3775
      %v3782 = vld [vmem:[%s2 + $0x20] sm:$0x1]
      %v3787 = vunpack.c.l.b16 %v3777
      %v3788 = vunpack.c.l.b16 %v3778
      %v3789 = vunpack.c.l.b16 %v3779
      %v3790 = vunpack.c.l.b16 %v3780
      %v3791 = vpack.c.b16 %v3788, %v3787
      %v3792 = vpack.c.b16 %v3790, %v3789
      %v3796 = vsel %vm1769, %v3781, 0
      %3798 = vmatpush.bf16.msra.mxu0 0
      %3799 = vmatpush.bf16.msra.mxu0 0
      %3800 = vmatpush.bf16.msra.mxu0 0
      %3801 = vmatpush.bf16.msra.mxu0 0
      %3802 = vmatpush.bf16.msra.mxu0 0
      %3803 = vmatpush.bf16.msra.mxu0 0
      %3804 = vmatpush.bf16.msra.mxu0 %v3792
      %3805 = vmatpush.bf16.msra.mxu0 %v3791
      %3806 = vmatmul.bf16.gmra.mxu0 %v3796
      %v3807 = vpop.f32.mrf.mxu0
      %v3808 = vadd.f32 %v3782, %v3807
      %v3809 = vpop.f32.mrf.mxu0
      %3810 = vdwg.mxu0
      %v3811 = vmax.f32 %v3808, 0.0
      %v3812 = vld [vmem:[%s16] sm:$0xf]
      %v3813 = vld [vmem:[%s16 + $0x4] sm:$0xf]
      %v3814 = vld [vmem:[%s16 + $0x8] sm:$0xf]
      %v3815 = vld [vmem:[%s16 + $0xc] sm:$0xf]
      %v3816 = vpack.c.bf16 %v3811, %v3811
      %v3817 = vld [vmem:[%s2 + $0x21] sm:$0x1]
      %v3822 = vunpack.c.l.b16 %v3812
      %v3823 = vunpack.c.l.b16 %v3813
      %v3824 = vunpack.c.l.b16 %v3814
      %v3825 = vunpack.c.l.b16 %v3815
      %v3826 = vpack.c.b16 %v3823, %v3822
      %v3827 = vpack.c.b16 %v3825, %v3824
      %v3831 = vsel %vm1769, %v3816, 0
      %3833 = vmatpush.bf16.msra.mxu0 0
      %3834 = vmatpush.bf16.msra.mxu0 0
      %3835 = vmatpush.bf16.msra.mxu0 0
      %3836 = vmatpush.bf16.msra.mxu0 0
      %3837 = vmatpush.bf16.msra.mxu0 0
      %3838 = vmatpush.bf16.msra.mxu0 0
      %3839 = vmatpush.bf16.msra.mxu0 %v3827
      %3840 = vmatpush.bf16.msra.mxu0 %v3826
      %3841 = vmatmul.bf16.gmra.mxu0 %v3831
      %v3842 = vpop.f32.mrf.mxu0
      %v3843 = vadd.f32 %v3817, %v3842
      %v3844 = vpop.f32.mrf.mxu0
      %3845 = vdwg.mxu0
      %s3846 = scalar_lea.vmem %s11, 96
      %v3847 = vld [vmem:[%s3846] sm:$0xf]
      %v3848 = vld [vmem:[%s3846 + $0x4] sm:$0xf]
      %v3849 = vld [vmem:[%s3846 + $0x8] sm:$0xf]
      %v3850 = vld [vmem:[%s3846 + $0xc] sm:$0xf]
      %v3851 = vld [vmem:[%s2 + $0x22] sm:$0x1]
      %v3856 = vunpack.c.l.b16 %v3847
      %v3857 = vunpack.c.l.b16 %v3848
      %v3858 = vunpack.c.l.b16 %v3849
      %v3859 = vunpack.c.l.b16 %v3850
      %v3860 = vpack.c.b16 %v3857, %v3856
      %v3861 = vpack.c.b16 %v3859, %v3858
      %v3864 = vsel %vm1769, %v3742, 0
      %3866 = vmatpush.bf16.msra.mxu0 0
      %3867 = vmatpush.bf16.msra.mxu0 0
      %3868 = vmatpush.bf16.msra.mxu0 0
      %3869 = vmatpush.bf16.msra.mxu0 0
      %3870 = vmatpush.bf16.msra.mxu0 0
      %3871 = vmatpush.bf16.msra.mxu0 0
      %3872 = vmatpush.bf16.msra.mxu0 %v3861
      %3873 = vmatpush.bf16.msra.mxu0 %v3860
      %3874 = vmatmul.bf16.gmra.mxu0 %v3864
      %v3875 = vpop.f32.mrf.mxu0
      %v3876 = vadd.f32 %v3851, %v3875
      %v3877 = vpop.f32.mrf.mxu0
      %3878 = vdwg.mxu0
      %v3879 = vmax.f32 %v3876, 0.0
      %s3880 = scalar_lea.vmem %s11, 112
      %v3881 = vld [vmem:[%s3880] sm:$0xf]
      %v3882 = vld [vmem:[%s3880 + $0x4] sm:$0xf]
      %v3883 = vld [vmem:[%s3880 + $0x8] sm:$0xf]
      %v3884 = vld [vmem:[%s3880 + $0xc] sm:$0xf]
      %v3885 = vpack.c.bf16 %v3879, %v3879
      %v3886 = vld [vmem:[%s2 + $0x23] sm:$0x1]
      %v3891 = vunpack.c.l.b16 %v3881
      %v3892 = vunpack.c.l.b16 %v3882
      %v3893 = vunpack.c.l.b16 %v3883
      %v3894 = vunpack.c.l.b16 %v3884
      %v3895 = vpack.c.b16 %v3892, %v3891
      %v3896 = vpack.c.b16 %v3894, %v3893
      %v3900 = vsel %vm1769, %v3885, 0
      %3902 = vmatpush.bf16.msra.mxu0 0
      %3903 = vmatpush.bf16.msra.mxu0 0
      %3904 = vmatpush.bf16.msra.mxu0 0
      %3905 = vmatpush.bf16.msra.mxu0 0
      %3906 = vmatpush.bf16.msra.mxu0 0
      %3907 = vmatpush.bf16.msra.mxu0 0
      %3908 = vmatpush.bf16.msra.mxu0 %v3896
      %3909 = vmatpush.bf16.msra.mxu0 %v3895
      %3910 = vmatmul.bf16.gmra.mxu0 %v3900
      %v3911 = vpop.f32.mrf.mxu0
      %v3912 = vadd.f32 %v3886, %v3911
      %v3913 = vpop.f32.mrf.mxu0
      %3914 = vdwg.mxu0
      %v3915 = vmax.f32 %v3912, 0.0
      %v3916 = vld [vmem:[%s2 + $0x24] sm:$0x1]
      %v3917 = vmul.f32 %v3915, %v3916
      %vm3918 = vcmask 253952
      %v3919 = vsel %vm3918, %v3917, 0.0
      %3920 = vadd.xlane.f32.xlu0 %v3919
      %v3921 = vpop.xlane.xlu0 %3920
      %v3922 = vld [vmem:[%s2 + $0x25] sm:$0x1]
      %v3923 = vadd.f32 %v3921, %v3922
      %vm3924 = vcmask 0
      %3925 = vst.msk [vmem:[%s628] sm:$0x1] %vm3924, %v3923
      %v3926 = vld [vmem:[%s14] sm:$0xf]
      %v3927 = vld [vmem:[%s14 + $0x4] sm:$0xf]
      %v3928 = vld [vmem:[%s14 + $0x8] sm:$0xf]
      %v3929 = vld [vmem:[%s14 + $0xc] sm:$0xf]
      %v3930 = vld [vmem:[%s2 + $0x1d] sm:$0x1]
      %v3931 = vperm.slane %v3930, 0
      %v3936 = vunpack.c.l.b16 %v3926
      %v3937 = vunpack.c.l.b16 %v3927
      %v3938 = vunpack.c.l.b16 %v3928
      %v3939 = vunpack.c.l.b16 %v3929
      %v3940 = vpack.c.b16 %v3937, %v3936
      %v3941 = vpack.c.b16 %v3939, %v3938
      %3944 = vmatpush.bf16.msra.mxu0 0
      %3945 = vmatpush.bf16.msra.mxu0 0
      %3946 = vmatpush.bf16.msra.mxu0 0
      %3947 = vmatpush.bf16.msra.mxu0 0
      %3948 = vmatpush.bf16.msra.mxu0 0
      %3949 = vmatpush.bf16.msra.mxu0 0
      %3950 = vmatpush.bf16.msra.mxu0 %v3941
      %3951 = vmatpush.bf16.msra.mxu0 %v3940
      %3952 = vmatmul.bf16.gmra.mxu0 %v3411
      %v3953 = vpop.f32.mrf.mxu0
      %v3954 = vadd.f32 %v3931, %v3953
      %v3955 = vpop.f32.mrf.mxu0
      %v3956 = vadd.f32 %v3931, %v3955
      %3957 = vmatmul.bf16.gmra.mxu0 %v3414
      %v3958 = vpop.f32.mrf.mxu0
      %v3959 = vadd.f32 %v3931, %v3958
      %v3960 = vpop.f32.mrf.mxu0
      %v3961 = vadd.f32 %v3931, %v3960
      %3962 = vmatmul.bf16.gmra.mxu0 %v3417
      %v3963 = vpop.f32.mrf.mxu0
      %v3964 = vadd.f32 %v3931, %v3963
      %v3965 = vpop.f32.mrf.mxu0
      %v3966 = vadd.f32 %v3931, %v3965
      %3967 = vmatmul.bf16.gmra.mxu0 %v3420
      %v3968 = vpop.f32.mrf.mxu0
      %v3969 = vadd.f32 %v3931, %v3968
      %v3970 = vpop.f32.mrf.mxu0
      %v3971 = vadd.f32 %v3931, %v3970
      %3972 = vdwg.mxu0
      %v3973 = vmul.f32 %v3954, %v3954
      %v3974 = vmul.f32 %v3956, %v3956
      %v3975 = vmul.f32 %v3959, %v3959
      %v3976 = vmul.f32 %v3961, %v3961
      %v3977 = vmul.f32 %v3964, %v3964
      %v3978 = vmul.f32 %v3966, %v3966
      %v3979 = vmul.f32 %v3969, %v3969
      %v3980 = vmul.f32 %v3971, %v3971
      %v3981 = vmul.f32 %v3954, %v3973
      %v3982 = vmul.f32 %v3956, %v3974
      %v3983 = vmul.f32 %v3959, %v3975
      %v3984 = vmul.f32 %v3961, %v3976
      %v3985 = vmul.f32 %v3964, %v3977
      %v3986 = vmul.f32 %v3966, %v3978
      %v3987 = vmul.f32 %v3969, %v3979
      %v3988 = vmul.f32 %v3971, %v3980
      %v3989 = vmul.f32 %v3981, 0.044715
      %v3990 = vmul.f32 %v3982, 0.044715
      %v3991 = vmul.f32 %v3983, 0.044715
      %v3992 = vmul.f32 %v3984, 0.044715
      %v3993 = vmul.f32 %v3985, 0.044715
      %v3994 = vmul.f32 %v3986, 0.044715
      %v3995 = vmul.f32 %v3987, 0.044715
      %v3996 = vmul.f32 %v3988, 0.044715
      %v3997 = vadd.f32 %v3954, %v3989
      %v3998 = vadd.f32 %v3956, %v3990
      %v3999 = vadd.f32 %v3959, %v3991
      %v4000 = vadd.f32 %v3961, %v3992
      %v4001 = vadd.f32 %v3964, %v3993
      %v4002 = vadd.f32 %v3966, %v3994
      %v4003 = vadd.f32 %v3969, %v3995
      %v4004 = vadd.f32 %v3971, %v3996
      %v4005 = vmul.f32 %v3997, 0.7978846
      %v4006 = vmul.f32 %v3998, 0.7978846
      %v4007 = vmul.f32 %v3999, 0.7978846
      %v4008 = vmul.f32 %v4000, 0.7978846
      %v4009 = vmul.f32 %v4001, 0.7978846
      %v4010 = vmul.f32 %v4002, 0.7978846
      %v4011 = vmul.f32 %v4003, 0.7978846
      %v4012 = vmul.f32 %v4004, 0.7978846
      %v4013 = vtanh.pop %v4005
      %v4014 = vtanh.pop %v4006
      %v4015 = vtanh.pop %v4007
      %v4016 = vtanh.pop %v4008
      %v4017 = vtanh.pop %v4009
      %v4018 = vtanh.pop %v4010
      %v4019 = vtanh.pop %v4011
      %v4020 = vtanh.pop %v4012
      %v4021 = vadd.f32 %v4013, 1.0
      %v4022 = vadd.f32 %v4014, 1.0
      %v4023 = vadd.f32 %v4015, 1.0
      %v4024 = vadd.f32 %v4016, 1.0
      %v4025 = vadd.f32 %v4017, 1.0
      %v4026 = vadd.f32 %v4018, 1.0
      %v4027 = vadd.f32 %v4019, 1.0
      %v4028 = vadd.f32 %v4020, 1.0
      %v4029 = vmul.f32 %v4021, 0.5
      %v4030 = vmul.f32 %v4022, 0.5
      %v4031 = vmul.f32 %v4023, 0.5
      %v4032 = vmul.f32 %v4024, 0.5
      %v4033 = vmul.f32 %v4025, 0.5
      %v4034 = vmul.f32 %v4026, 0.5
      %v4035 = vmul.f32 %v4027, 0.5
      %v4036 = vmul.f32 %v4028, 0.5
      %v4037 = vmul.f32 %v3954, %v4029
      %v4038 = vmul.f32 %v3956, %v4030
      %v4039 = vmul.f32 %v3959, %v4031
      %v4040 = vmul.f32 %v3961, %v4032
      %v4041 = vmul.f32 %v3964, %v4033
      %v4042 = vmul.f32 %v3966, %v4034
      %v4043 = vmul.f32 %v3969, %v4035
      %v4044 = vmul.f32 %v3971, %v4036
      %v4045 = vld [vmem:[%s15] sm:$0xf]
      %v4046 = vld [vmem:[%s15 + $0x4] sm:$0xf]
      %v4047 = vld [vmem:[%s15 + $0x8] sm:$0xf]
      %v4048 = vld [vmem:[%s15 + $0xc] sm:$0xf]
      %v4049 = vld [vmem:[%s15 + $0x10] sm:$0xf]
      %v4050 = vld [vmem:[%s15 + $0x14] sm:$0xf]
      %v4051 = vld [vmem:[%s15 + $0x18] sm:$0xf]
      %v4052 = vld [vmem:[%s15 + $0x1c] sm:$0xf]
      %v4053 = vpack.c.bf16 %v4038, %v4037
      %v4054 = vpack.c.bf16 %v4040, %v4039
      %v4055 = vpack.c.bf16 %v4042, %v4041
      %v4056 = vpack.c.bf16 %v4044, %v4043
      %v4057 = vld [vmem:[%s2 + $0x1e] sm:$0x1]
      %v4058 = vperm.slane %v4057, 0
      %v4067 = vunpack.c.l.b16 %v4045
      %v4068 = vunpack.c.l.b16 %v4046
      %v4069 = vunpack.c.l.b16 %v4047
      %v4070 = vunpack.c.l.b16 %v4048
      %v4071 = vunpack.c.l.b16 %v4049
      %v4072 = vunpack.c.l.b16 %v4050
      %v4073 = vunpack.c.l.b16 %v4051
      %v4074 = vunpack.c.l.b16 %v4052
      %v4075 = vpack.c.b16 %v4068, %v4067
      %v4076 = vpack.c.b16 %v4070, %v4069
      %v4077 = vpack.c.b16 %v4072, %v4071
      %v4078 = vpack.c.b16 %v4074, %v4073
      %v4084 = vsel %vm1352, %v4053, 0
      %v4087 = vsel %vm1352, %v4054, 0
      %v4090 = vsel %vm1352, %v4055, 0
      %v4093 = vsel %vm1352, %v4056, 0
      %4095 = vmatpush.bf16.msra.mxu0 0
      %4096 = vmatpush.bf16.msra.mxu0 0
      %4097 = vmatpush.bf16.msra.mxu0 0
      %4098 = vmatpush.bf16.msra.mxu0 0
      %4099 = vmatpush.bf16.msra.mxu0 %v4078
      %4100 = vmatpush.bf16.msra.mxu0 %v4077
      %4101 = vmatpush.bf16.msra.mxu0 %v4076
      %4102 = vmatpush.bf16.msra.mxu0 %v4075
      %4103 = vmatmul.bf16.gmra.mxu0 %v4084
      %v4104 = vpop.f32.mrf.mxu0
      %v4105 = vadd.f32 %v4058, %v4104
      %v4106 = vpop.f32.mrf.mxu0
      %v4107 = vadd.f32 %v4058, %v4106
      %4108 = vmatmul.bf16.gmra.mxu0 %v4087
      %v4109 = vpop.f32.mrf.mxu0
      %v4110 = vadd.f32 %v4058, %v4109
      %v4111 = vpop.f32.mrf.mxu0
      %v4112 = vadd.f32 %v4058, %v4111
      %4113 = vmatmul.bf16.gmra.mxu0 %v4090
      %v4114 = vpop.f32.mrf.mxu0
      %v4115 = vadd.f32 %v4058, %v4114
      %v4116 = vpop.f32.mrf.mxu0
      %v4117 = vadd.f32 %v4058, %v4116
      %4118 = vmatmul.bf16.gmra.mxu0 %v4093
      %v4119 = vpop.f32.mrf.mxu0
      %v4120 = vadd.f32 %v4058, %v4119
      %v4121 = vpop.f32.mrf.mxu0
      %v4122 = vadd.f32 %v4058, %v4121
      %4123 = vdwg.mxu0
      %v4124 = vmul.f32 %v4105, %v4105
      %v4125 = vmul.f32 %v4107, %v4107
      %v4126 = vmul.f32 %v4110, %v4110
      %v4127 = vmul.f32 %v4112, %v4112
      %v4128 = vmul.f32 %v4115, %v4115
      %v4129 = vmul.f32 %v4117, %v4117
      %v4130 = vmul.f32 %v4120, %v4120
      %v4131 = vmul.f32 %v4122, %v4122
      %v4132 = vmul.f32 %v4105, %v4124
      %v4133 = vmul.f32 %v4107, %v4125
      %v4134 = vmul.f32 %v4110, %v4126
      %v4135 = vmul.f32 %v4112, %v4127
      %v4136 = vmul.f32 %v4115, %v4128
      %v4137 = vmul.f32 %v4117, %v4129
      %v4138 = vmul.f32 %v4120, %v4130
      %v4139 = vmul.f32 %v4122, %v4131
      %v4140 = vmul.f32 %v4132, 0.044715
      %v4141 = vmul.f32 %v4133, 0.044715
      %v4142 = vmul.f32 %v4134, 0.044715
      %v4143 = vmul.f32 %v4135, 0.044715
      %v4144 = vmul.f32 %v4136, 0.044715
      %v4145 = vmul.f32 %v4137, 0.044715
      %v4146 = vmul.f32 %v4138, 0.044715
      %v4147 = vmul.f32 %v4139, 0.044715
      %v4148 = vadd.f32 %v4105, %v4140
      %v4149 = vadd.f32 %v4107, %v4141
      %v4150 = vadd.f32 %v4110, %v4142
      %v4151 = vadd.f32 %v4112, %v4143
      %v4152 = vadd.f32 %v4115, %v4144
      %v4153 = vadd.f32 %v4117, %v4145
      %v4154 = vadd.f32 %v4120, %v4146
      %v4155 = vadd.f32 %v4122, %v4147
      %v4156 = vmul.f32 %v4148, 0.7978846
      %v4157 = vmul.f32 %v4149, 0.7978846
      %v4158 = vmul.f32 %v4150, 0.7978846
      %v4159 = vmul.f32 %v4151, 0.7978846
      %v4160 = vmul.f32 %v4152, 0.7978846
      %v4161 = vmul.f32 %v4153, 0.7978846
      %v4162 = vmul.f32 %v4154, 0.7978846
      %v4163 = vmul.f32 %v4155, 0.7978846
      %v4164 = vtanh.pop %v4156
      %v4165 = vtanh.pop %v4157
      %v4166 = vtanh.pop %v4158
      %v4167 = vtanh.pop %v4159
      %v4168 = vtanh.pop %v4160
      %v4169 = vtanh.pop %v4161
      %v4170 = vtanh.pop %v4162
      %v4171 = vtanh.pop %v4163
      %v4172 = vadd.f32 %v4164, 1.0
      %v4173 = vadd.f32 %v4165, 1.0
      %v4174 = vadd.f32 %v4166, 1.0
      %v4175 = vadd.f32 %v4167, 1.0
      %v4176 = vadd.f32 %v4168, 1.0
      %v4177 = vadd.f32 %v4169, 1.0
      %v4178 = vadd.f32 %v4170, 1.0
      %v4179 = vadd.f32 %v4171, 1.0
      %v4180 = vmul.f32 %v4172, 0.5
      %v4181 = vmul.f32 %v4173, 0.5
      %v4182 = vmul.f32 %v4174, 0.5
      %v4183 = vmul.f32 %v4175, 0.5
      %v4184 = vmul.f32 %v4176, 0.5
      %v4185 = vmul.f32 %v4177, 0.5
      %v4186 = vmul.f32 %v4178, 0.5
      %v4187 = vmul.f32 %v4179, 0.5
      %v4188 = vmul.f32 %v4105, %v4180
      %v4189 = vmul.f32 %v4107, %v4181
      %v4190 = vmul.f32 %v4110, %v4182
      %v4191 = vmul.f32 %v4112, %v4183
      %v4192 = vmul.f32 %v4115, %v4184
      %v4193 = vmul.f32 %v4117, %v4185
      %v4194 = vmul.f32 %v4120, %v4186
      %v4195 = vmul.f32 %v4122, %v4187
      %v4196 = vperm.slane %v3843, 0
      %v4197 = vmul.f32 %v4188, %v4196
      %v4198 = vmul.f32 %v4189, %v4196
      %v4199 = vmul.f32 %v4190, %v4196
      %v4200 = vmul.f32 %v4191, %v4196
      %v4201 = vmul.f32 %v4192, %v4196
      %v4202 = vmul.f32 %v4193, %v4196
      %v4203 = vmul.f32 %v4194, %v4196
      %v4204 = vmul.f32 %v4195, %v4196
      %v4205 = vld [vmem:[%s17] sm:$0xf]
      %v4206 = vld [vmem:[%s17 + $0x4] sm:$0xf]
      %v4207 = vpack.c.bf16 %v4198, %v4197
      %v4208 = vpack.c.bf16 %v4200, %v4199
      %v4209 = vpack.c.bf16 %v4202, %v4201
      %v4210 = vpack.c.bf16 %v4204, %v4203
      %v4213 = vunpack.c.l.b16 %v4205
      %v4214 = vunpack.c.l.b16 %v4206
      %v4215 = vpack.c.b16 %v4214, %v4213
      %4217 = vmatpush.bf16.xpose.msra.mxu0 0
      %4218 = vmatpush.bf16.xpose.msra.mxu0 0
      %4219 = vmatpush.bf16.xpose.msra.mxu0 0
      %4220 = vmatpush.bf16.xpose.msra.mxu0 0
      %4221 = vmatpush.bf16.xpose.msra.mxu0 %v4210
      %4222 = vmatpush.bf16.xpose.msra.mxu0 %v4209
      %4223 = vmatpush.bf16.xpose.msra.mxu0 %v4208
      %4224 = vmatpush.bf16.xpose.msra.mxu0 %v4207
      %4225 = vmatmul.bf16.gmra.mxu0 %v4215
      %v4226 = vpop.f32.mrf.mxu0
      %v4227 = vadd.f32 0.0, %v4226
      %v4228 = vpop.f32.mrf.mxu0
      %v4229 = vadd.f32 0.0, %v4228
      %4230 = vdwg.mxu0
      %4231 = vst.msk [vmem:[%s625] sm:$0xff] %vm1352, %v4227
      %4232 = vst.msk [vmem:[%s625 + $0x8] sm:$0xff] %vm1352, %v4229
      %p4233 = scmp.lt.s32.totalorder %s31, 1
      %s4234 = scalar_select %p4233, %s31, 1
      %s4235 = smul.addr %s4234, 2
      %s4236 = smul.addr %s4235, 8
      %s4237 = scalar_lea.vmem %s18, %s4236
      %p4238 = scmp.lt.s32.totalorder %s31, 1
      %s4239 = scalar_select %p4238, %s31, 1
      %s4240 = scalar_lea.vmem %s19, %s4239
      // Predicated region
      $region93: #{forward.2} parent=91 // pred_check
        %p4241 = pneg %p437
      $region94: #{forward.2} parent=91 // pred_check_branch
        %4243 = sbr.rel (%p4241) target = $region96
      $region95: #{forward.2} parent=91 // pred_region
        _
      $region96: #{forward.2} parent=91 // pred_fallthru
        _
      // Predicated region
      $region97: #{forward.2} parent=91 // pred_check
        %p4244 = pneg %p463
      $region98: #{forward.2} parent=91 // pred_check_branch
        %4246 = sbr.rel (%p4244) target = $region100
      $region99: #{forward.2} parent=91 // pred_region
        _
      $region100: #{forward.2} parent=91 // pred_fallthru
        _
    $region92: #{forward.2} parent=5 // pred_fallthru
      _
    %p4247 = scmp.le.s32.totalorder 2, %s26
    // Predicated region
    $region101: #{forward.2} parent=5 // pred_check
      %p4248 = pneg %p4247
    $region102: #{forward.2} parent=5 // pred_check_branch
      %4250 = sbr.rel (%p4248) target = $region104
    $region103: #{forward.2} parent=5 // pred_region
      %s4251 = ssub.s32 %s26, 2
      // Predicated region
      $region105: #{forward.2} parent=103 // pred_check
        %p4252 = pneg %p443
      $region106: #{forward.2} parent=103 // pred_check_branch
        %4254 = sbr.rel (%p4252) target = $region108
      $region107: #{forward.2} parent=103 // pred_region
        %p4255 = scmp.lt.s32.totalorder %s32, 1
        %s4256 = scalar_select %p4255, %s32, 1
        %s4257 = smul.addr %s4256, 2
        %s4258 = smul.addr %s4257, 8
        %s4259 = scalar_lea.vmem %s18, %s4258
      $region108: #{forward.2} parent=103 // pred_fallthru
        _
      // Predicated region
      $region109: #{forward.2} parent=103 // pred_check
        %p4260 = pneg %p469
      $region110: #{forward.2} parent=103 // pred_check_branch
        %4262 = sbr.rel (%p4260) target = $region112
      $region111: #{forward.2} parent=103 // pred_region
        %p4263 = scmp.lt.s32.totalorder %s32, 1
        %s4264 = scalar_select %p4263, %s32, 1
        %s4265 = scalar_lea.vmem %s19, %s4264
      $region112: #{forward.2} parent=103 // pred_fallthru
        _
    $region104: #{forward.2} parent=5 // pred_fallthru
      _
  $region6: #{forward.2} parent=0 // loop_footer
    %s30 = sadd.s32 1, %s26
  $region7: #{forward.2} parent=0 // loop_footer_branch
    %25 = sbr.rel target = $region3
  $region8: #{forward.2} parent=0 // loop_exit
    _

</llo_original>
